<compile_context>
chip_gen: v5e
topology: v5e:2x2
jax: 0.10.0
libtpu: 0.0.40
codegen_flags: <defaults>
</compile_context>

<pallas_src>
import jax
import jax.numpy as jnp
from jax.experimental import pallas as pl
from jax.experimental.pallas import tpu as pltpu

EPS = 1e-12


def addnorm_kernel(x_ref, w_ref, p_ref, x0_ref, o_ref):
    # fc: one uninterrupted full-K MXU pass. x is loaded as f32 and cast to the
    # weight dtype in-kernel (bf16 weight => bf16 x bf16 matmul, f32 accumulation).
    x = x_ref[...].astype(w_ref.dtype)
    y = jnp.dot(x, w_ref[...], preferred_element_type=jnp.float32)

    bias = p_ref[0:1, :]    # (1, N) f32
    gamma = p_ref[1:2, :]   # (1, N) f32
    beta = p_ref[2:3, :]    # (1, N) f32

    # TODO(synk): dropout(p=0.01) is identity in eval mode; train-mode masking not implemented.
    y = y + bias + x0_ref[...].astype(jnp.float32)

    # LayerNorm (biased variance, eps=1e-12): single pass over the f32 intermediate.
    mean = jnp.mean(y, axis=-1, keepdims=True)
    mean_sq = jnp.mean(y * y, axis=-1, keepdims=True)
    var = jnp.maximum(mean_sq - mean * mean, 0.0)
    yn = (y - mean) * jax.lax.rsqrt(var + EPS)
    o_ref[...] = (gamma * yn + beta).astype(o_ref.dtype)


def add_norm(x, w, b, gamma, beta, x0, *, tm=512, out_dtype=None):
    """Fused AddNorm forward.

    x:     [M, 3072] activations (kept in their HBM dtype; cast happens in-kernel).
    w:     [3072, 768] weight in (in, out) layout. Pass it PRE-CAST to bf16 (the stored
           param dtype) -- this wrapper performs no per-call weight cast.
    b, gamma, beta: [768] Linear bias / LayerNorm weight / LayerNorm bias.
    x0:    [M, 768] residual; its dtype also selects the output dtype by default
           (pass bf16 x0 to get the bf16-activation path).
    """
    M, K = x.shape
    Kw, N = w.shape
    assert Kw == K and x0.shape == (M, N)
    assert b.shape == (N,) and gamma.shape == (N,) and beta.shape == (N,)
    if out_dtype is None:
        out_dtype = x0.dtype

    # Tiny (3, N) resident param block; the stack is ~9 KiB -> negligible wrapper traffic.
    params = jnp.stack(
        [b.astype(jnp.float32), gamma.astype(jnp.float32), beta.astype(jnp.float32)]
    )

    # Collapse to a single grid step for small M (rounded to the 16-row sublane pack so
    # bf16 tiles lay out cleanly). Ragged tails are handled by Pallas's masked final-tile
    # stores -- no wrapper-side jnp.pad re-materializing x/x0 through HBM.
    tm_eff = min(tm, pl.cdiv(M, 16) * 16)
    grid = (pl.cdiv(M, tm_eff),)

    return pl.pallas_call(
        addnorm_kernel,
        out_shape=jax.ShapeDtypeStruct((M, N), out_dtype),
        grid_spec=pltpu.PrefetchScalarGridSpec(
            num_scalar_prefetch=0,
            grid=grid,
            in_specs=[
                pl.BlockSpec((tm_eff, K), lambda i: (i, 0)),  # x tile (source dtype)
                pl.BlockSpec((K, N), lambda i: (0, 0)),       # resident bf16 weight
                pl.BlockSpec((3, N), lambda i: (0, 0)),       # packed bias/gamma/beta (f32)
                pl.BlockSpec((tm_eff, N), lambda i: (i, 0)),  # x0 residual
            ],
            out_specs=pl.BlockSpec((tm_eff, N), lambda i: (i, 0)),
        ),
        compiler_params=pltpu.CompilerParams(
            # Independent M tiles -> megacore shardable (on v7x give the call >=2 tiles
            # or the second TensorCore sits idle).
            dimension_semantics=("parallel",),
            # Explicit scoped-VMEM limit: above v5e's 16 MiB default, below v7x's 64 MiB
            # physical VMEM. Fits the resident weight (9 MiB double-buffered) plus
            # tm=512 f32 x tiles (12 MiB) with headroom.
            vmem_limit_bytes=48 * 1024 * 1024,
        ),
    )(x, w, params, x0)


def add_norm_ref(x, w, b, gamma, beta, x0, matmul_dtype=jnp.float32):
    y = jnp.dot(
        x.astype(matmul_dtype), w.astype(matmul_dtype),
        preferred_element_type=jnp.float32,
    ) + b
    y = y + x0.astype(jnp.float32)
    u = jnp.mean(y, axis=-1, keepdims=True)
    s = jnp.mean((y - u) ** 2, axis=-1, keepdims=True)
    yn = (y - u) / jnp.sqrt(s + EPS)
    return gamma * yn + beta


if __name__ == "__main__":
    B, S = 2, 8               # batch, seq
    K_IN, N_OUT = 3072, 768   # fixed by the module: Linear(3072, 768), LayerNorm(768)
    M = B * S

    key = jax.random.PRNGKey(0)
    kx, kx0, kw, kb = jax.random.split(key, 4)

    x = jax.random.normal(kx, (B, S, K_IN), dtype=jnp.float32)
    x0 = jax.random.normal(kx0, (B, S, N_OUT), dtype=jnp.float32)

    # Deterministic parameter init (synthetic, PyTorch-like scale for the Linear).
    bound = 1.0 / (K_IN ** 0.5)
    w_f32 = jax.random.uniform(kw, (K_IN, N_OUT), jnp.float32, -bound, bound)
    b = jax.random.uniform(kb, (N_OUT,), jnp.float32, -bound, bound)
    gamma = jnp.ones((N_OUT,), jnp.float32)   # LayerNorm weight init
    beta = jnp.zeros((N_OUT,), jnp.float32)   # LayerNorm bias init

    # Pre-cast the weight ONCE outside the hot path (stored param dtype), not per call.
    w_bf16 = jax.block_until_ready(w_f32.astype(jnp.bfloat16))

    x2d = x.reshape(M, K_IN)
    x02d = x0.reshape(M, N_OUT)

    out = add_norm(x2d, w_bf16, b, gamma, beta, x02d)
    out = jax.block_until_ready(out)
    out3d = out.reshape(B, S, N_OUT)

    # Strict check: same bf16-matmul / f32-accumulate numerics as the kernel.
    ref_bf16 = add_norm_ref(
        x2d, w_f32, b, gamma, beta, x02d, matmul_dtype=jnp.bfloat16
    ).reshape(B, S, N_OUT)
    assert jnp.allclose(out3d, ref_bf16, atol=1e-3, rtol=1e-3), \
        "mismatch vs bf16-matmul reference"

    # Sanity check: close to the full-f32 reference (bf16 matmul error budget).
    ref_f32 = add_norm_ref(x2d, w_f32, b, gamma, beta, x02d).reshape(B, S, N_OUT)
    assert jnp.allclose(out3d, ref_f32, atol=5e-2, rtol=5e-2), \
        "mismatch vs f32 reference"

    print("KERNEL_OK")
</pallas_src>

<mosaic_0001>
module attributes {stable_mosaic.version = 11 : i64} {
  func.func @addnorm_kernel(%arg0: i32, %arg1: memref<16x3072xf32, #tpu.memory_space<vmem>>, %arg2: memref<3072x768xbf16, #tpu.memory_space<vmem>>, %arg3: memref<3x768xf32, #tpu.memory_space<vmem>>, %arg4: memref<16x768xf32, #tpu.memory_space<vmem>>, %arg5: memref<16x768xf32, #tpu.memory_space<vmem>>) attributes {dimension_semantics = [#tpu.dimension_semantics<parallel>], iteration_bounds = array<i64: 1>, scalar_prefetch = 0 : i64, scratch_operands = 0 : i64, tpu.core_type = #tpu.core_type<tc>, window_params = [{transform_indices = @transform_0, window_bounds = array<i64: 16, 3072>}, {pipeline_mode = #tpu.pipeline_mode<synchronous>, transform_indices = @transform_1, window_bounds = array<i64: 3072, 768>}, {pipeline_mode = #tpu.pipeline_mode<synchronous>, transform_indices = @transform_2, window_bounds = array<i64: 3, 768>}, {transform_indices = @transform_3, window_bounds = array<i64: 16, 768>}, {transform_indices = @transform_4, window_bounds = array<i64: 16, 768>}]} {
    %c0 = arith.constant 0 : index
    %c0_0 = arith.constant 0 : index
    %0 = vector.load %arg1[%c0, %c0_0] : memref<16x3072xf32, #tpu.memory_space<vmem>>, vector<16x3072xf32>
    %1 = arith.truncf %0 : vector<16x3072xf32> to vector<16x3072xbf16>
    %c0_1 = arith.constant 0 : index
    %c0_2 = arith.constant 0 : index
    %2 = vector.load %arg2[%c0_1, %c0_2] : memref<3072x768xbf16, #tpu.memory_space<vmem>>, vector<3072x768xbf16>
    %cst = arith.constant dense<0.000000e+00> : vector<16x768xf32>
    %3 = tpu.matmul %1, %2, %cst {dimension_numbers = #tpu.dot_dimension_numbers<[1], [0], [0], [1], [0, 0, 1, 1], [], []>} : vector<16x3072xbf16>, vector<3072x768xbf16>, vector<16x768xf32> -> vector<16x768xf32>
    %c0_3 = arith.constant 0 : index
    %c0_4 = arith.constant 0 : index
    %4 = vector.load %arg3[%c0_3, %c0_4] : memref<3x768xf32, #tpu.memory_space<vmem>>, vector<1x768xf32>
    %c1 = arith.constant 1 : index
    %c0_5 = arith.constant 0 : index
    %5 = vector.load %arg3[%c1, %c0_5] : memref<3x768xf32, #tpu.memory_space<vmem>>, vector<1x768xf32>
    %c2 = arith.constant 2 : index
    %c0_6 = arith.constant 0 : index
    %6 = vector.load %arg3[%c2, %c0_6] : memref<3x768xf32, #tpu.memory_space<vmem>>, vector<1x768xf32>
    %7 = vector.broadcast %4 : vector<1x768xf32> to vector<16x768xf32>
    %8 = arith.addf %3, %7 : vector<16x768xf32>
    %c0_7 = arith.constant 0 : index
    %c0_8 = arith.constant 0 : index
    %9 = vector.load %arg4[%c0_7, %c0_8] : memref<16x768xf32, #tpu.memory_space<vmem>>, vector<16x768xf32>
    %10 = arith.addf %8, %9 : vector<16x768xf32>
    %cst_9 = arith.constant dense<0.000000e+00> : vector<16xf32>
    %11 = vector.multi_reduction <add>, %10, %cst_9 [1] : vector<16x768xf32> to vector<16xf32>
    %12 = vector.shape_cast %11 : vector<16xf32> to vector<16x1xf32>
    %cst_10 = arith.constant 7.680000e+02 : f32
    %13 = vector.broadcast %cst_10 : f32 to vector<16x1xf32>
    %14 = arith.divf %12, %13 : vector<16x1xf32>
    %15 = arith.mulf %10, %10 : vector<16x768xf32>
    %cst_11 = arith.constant dense<0.000000e+00> : vector<16xf32>
    %16 = vector.multi_reduction <add>, %15, %cst_11 [1] : vector<16x768xf32> to vector<16xf32>
    %17 = vector.shape_cast %16 : vector<16xf32> to vector<16x1xf32>
    %cst_12 = arith.constant 7.680000e+02 : f32
    %18 = vector.broadcast %cst_12 : f32 to vector<16x1xf32>
    %19 = arith.divf %17, %18 : vector<16x1xf32>
    %20 = arith.mulf %14, %14 : vector<16x1xf32>
    %21 = arith.subf %19, %20 : vector<16x1xf32>
    %cst_13 = arith.constant 0.000000e+00 : f32
    %22 = vector.broadcast %cst_13 : f32 to vector<16x1xf32>
    %23 = arith.maximumf %21, %22 : vector<16x1xf32>
    %24 = vector.broadcast %14 : vector<16x1xf32> to vector<16x768xf32>
    %25 = arith.subf %10, %24 : vector<16x768xf32>
    %cst_14 = arith.constant 9.99999996E-13 : f32
    %26 = vector.broadcast %cst_14 : f32 to vector<16x1xf32>
    %27 = arith.addf %23, %26 : vector<16x1xf32>
    %28 = math.rsqrt %27 : vector<16x1xf32>
    %29 = vector.broadcast %28 : vector<16x1xf32> to vector<16x768xf32>
    %30 = arith.mulf %25, %29 : vector<16x768xf32>
    %31 = vector.broadcast %5 : vector<1x768xf32> to vector<16x768xf32>
    %32 = arith.mulf %31, %30 : vector<16x768xf32>
    %33 = vector.broadcast %6 : vector<1x768xf32> to vector<16x768xf32>
    %34 = arith.addf %32, %33 : vector<16x768xf32>
    %c0_15 = arith.constant 0 : index
    %c0_16 = arith.constant 0 : index
    %35 = vector.load %arg5[%c0_15, %c0_16] : memref<16x768xf32, #tpu.memory_space<vmem>>, vector<16x768xf32>
    tpu.vector_store %arg5[%c0_15, %c0_16], %34 {strides = array<i32>} : memref<16x768xf32, #tpu.memory_space<vmem>>, vector<16x768xf32>,
    return
  }
  func.func @transform_0(%arg0: i32) -> (i32, i32) {
    %c0_i32 = arith.constant 0 : i32
    %c0_i32_0 = arith.constant 0 : i32
    return %arg0, %c0_i32 : i32, i32
  }
  func.func @transform_1(%arg0: i32) -> (i32, i32) {
    %c0_i32 = arith.constant 0 : i32
    %c0_i32_0 = arith.constant 0 : i32
    %c0_i32_1 = arith.constant 0 : i32
    return %c0_i32, %c0_i32_0 : i32, i32
  }
  func.func @transform_2(%arg0: i32) -> (i32, i32) {
    %c0_i32 = arith.constant 0 : i32
    %c0_i32_0 = arith.constant 0 : i32
    %c0_i32_1 = arith.constant 0 : i32
    return %c0_i32, %c0_i32_0 : i32, i32
  }
  func.func @transform_3(%arg0: i32) -> (i32, i32) {
    %c0_i32 = arith.constant 0 : i32
    %c0_i32_0 = arith.constant 0 : i32
    return %arg0, %c0_i32 : i32, i32
  }
  func.func @transform_4(%arg0: i32) -> (i32, i32) {
    %c0_i32 = arith.constant 0 : i32
    %c0_i32_0 = arith.constant 0 : i32
    return %arg0, %c0_i32 : i32, i32
  }
}

</mosaic_0001>

<llo_original>
// kernel: tpu_custom_call.1
$region0: #{tpu_custom_call.1}
  #allocation0 [shape = 'u32[]', space=smem, size = 0x4, offset = 0x4, fixed_abs, tag = 'smem constant byte address 0x4 - core index']
  #allocation1 [shape = 'u32[72,128]{1,0:T(1,128)}', space=vmem, size = 0x9000, scoped, tag = 'internal scratch']
  %s0 = inlined_call_operand.hbm [shape: f32[16,3072], index: 0, kind: input, shape index: {}]
  %s1 = inlined_call_operand.hbm [shape: bf16[3072,768], index: 1, kind: input, shape index: {}]
  %s2 = inlined_call_operand.hbm [shape: f32[3,768], index: 2, kind: input, shape index: {}]
  %s3 = inlined_call_operand.hbm [shape: f32[16,768], index: 3, kind: input, shape index: {}]
  %s4 = inlined_call_operand.hbm [shape: f32[16,768], index: 4, kind: output, shape index: {}]
  %s5 = sld [smem:[#allocation0]]
  $region42: #{tpu_custom_call.1} parent=0
    _
  %s7 = ssub.s32 1, %s5
  %s8 = scalar_select 0, %s7, %s5
  $region1: #{tpu_custom_call.1} parent=0
    #allocation2 [shape = 'u8[196608]{0}', space=vmem, size = 0x30000, scoped, tag = 'input window, operand 0, single buffered']
    #allocation3 [shape = 's32[1]{0}', space=sflag, size = 0x4, scoped, tag = 'scoped memory for tpu_custom_call.1']
    #allocation4 [shape = 's32[1]{0}', space=sflag, size = 0x4, scoped, tag = 'scoped memory for tpu_custom_call.1']
    #allocation5 [shape = 'u8[4718592]{0}', space=vmem, size = 0x480000, scoped, tag = 'input window, operand 1, single buffered']
    #allocation6 [shape = 's32[1]{0}', space=sflag, size = 0x4, scoped, tag = 'scoped memory for tpu_custom_call.1']
    #allocation7 [shape = 'u8[12288]{0}', space=vmem, size = 0x3000, scoped, tag = 'input window, operand 2, single buffered']
    #allocation8 [shape = 'u8[49152]{0}', space=vmem, size = 0xc000, scoped, tag = 'input window, operand 3, single buffered']
    #allocation9 [shape = 's32[1]{0}', space=sflag, size = 0x4, scoped, tag = 'scoped memory for tpu_custom_call.1']
    #allocation10 [shape = 'u8[49152]{0}', space=vmem, size = 0xc000, scoped, tag = 'output window, operand 0, single buffered']
    %9 = vsyncpa [#allocation3], 0
    %10 = vsyncpa [#allocation6], 0
    %11 = vsyncpa [#allocation9], 0
    %12 = vsyncpa [#allocation4], 0
    // Predicated region
    $region2: #{tpu_custom_call.1} parent=1 // pred_check
      _
    $region3: #{tpu_custom_call.1} parent=1 // pred_check_branch
      %14 = sbr.rel (0) target = $region5
    $region4: #{tpu_custom_call.1} parent=1 // pred_region
      %16 = vsyncadd [#allocation3], 0
      %s17 = sshll.u32 %s0, 4
      %s18 = int_to_ptr.hbm [resolvable:$true] %s17
      %s19 = sshll.u32 [#allocation2], 4
      %s20 = int_to_ptr.vmem [resolvable:$true] %s19
      %25 = dma.hbm_to_vmem [thread:$0]  %s18, 6144, %s20, [#allocation3], 3072, 3072, 192
    $region5: #{tpu_custom_call.1} parent=1 // pred_fallthru
      _
    // Predicated region
    $region6: #{tpu_custom_call.1} parent=1 // pred_check
      _
    $region7: #{tpu_custom_call.1} parent=1 // pred_check_branch
      %27 = sbr.rel (0) target = $region9
    $region8: #{tpu_custom_call.1} parent=1 // pred_region
      %29 = vsyncadd [#allocation6], 0
      %s30 = sshll.u32 %s1, 4
      %s31 = int_to_ptr.hbm [resolvable:$true] %s30
      %s32 = sshll.u32 [#allocation5], 4
      %s33 = int_to_ptr.vmem [resolvable:$true] %s32
      %38 = dma.hbm_to_vmem [thread:$0]  %s31, 147456, %s33, [#allocation6], 384, 384, 24
    $region9: #{tpu_custom_call.1} parent=1 // pred_fallthru
      _
    // Predicated region
    $region10: #{tpu_custom_call.1} parent=1 // pred_check
      _
    $region11: #{tpu_custom_call.1} parent=1 // pred_check_branch
      %40 = sbr.rel (0) target = $region13
    $region12: #{tpu_custom_call.1} parent=1 // pred_region
      %42 = vsyncadd [#allocation6], 0
      %s44 = sshll.u32 %s2, 4
      %s45 = int_to_ptr.hbm [resolvable:$true] %s44
      %s46 = sshll.u32 [#allocation7], 4
      %s47 = int_to_ptr.vmem [resolvable:$true] %s46
      %49 = dma.hbm_to_vmem [thread:$0]  %s45, 384, %s47, [#allocation6]
    $region13: #{tpu_custom_call.1} parent=1 // pred_fallthru
      _
    // Predicated region
    $region14: #{tpu_custom_call.1} parent=1 // pred_check
      _
    $region15: #{tpu_custom_call.1} parent=1 // pred_check_branch
      %51 = sbr.rel (0) target = $region17
    $region16: #{tpu_custom_call.1} parent=1 // pred_region
      %53 = vsyncadd [#allocation9], 0
      %s54 = sshll.u32 %s3, 4
      %s55 = int_to_ptr.hbm [resolvable:$true] %s54
      %s56 = sshll.u32 [#allocation8], 4
      %s57 = int_to_ptr.vmem [resolvable:$true] %s56
      %62 = dma.hbm_to_vmem [thread:$0]  %s55, 1536, %s57, [#allocation9], 768, 768, 48
    $region17: #{tpu_custom_call.1} parent=1 // pred_fallthru
      _
    // Predicated region
    $region18: #{tpu_custom_call.1} parent=1 // pred_check
      _
    $region19: #{tpu_custom_call.1} parent=1 // pred_check_branch
      %64 = sbr.rel (0) target = $region21
    $region20: #{tpu_custom_call.1} parent=1 // pred_region
      %66 = dma.done [#allocation3], 6144
    $region21: #{tpu_custom_call.1} parent=1 // pred_fallthru
      _
    // Predicated region
    $region22: #{tpu_custom_call.1} parent=1 // pred_check
      _
    $region23: #{tpu_custom_call.1} parent=1 // pred_check_branch
      %68 = sbr.rel (0) target = $region25
    $region24: #{tpu_custom_call.1} parent=1 // pred_region
      %70 = dma.done [#allocation6], 147456
    $region25: #{tpu_custom_call.1} parent=1 // pred_fallthru
      _
    // Predicated region
    $region26: #{tpu_custom_call.1} parent=1 // pred_check
      _
    $region27: #{tpu_custom_call.1} parent=1 // pred_check_branch
      %72 = sbr.rel (0) target = $region29
    $region28: #{tpu_custom_call.1} parent=1 // pred_region
      %74 = dma.done [#allocation6], 384
    $region29: #{tpu_custom_call.1} parent=1 // pred_fallthru
      _
    // Predicated region
    $region30: #{tpu_custom_call.1} parent=1 // pred_check
      _
    $region31: #{tpu_custom_call.1} parent=1 // pred_check_branch
      %76 = sbr.rel (0) target = $region33
    $region32: #{tpu_custom_call.1} parent=1 // pred_region
      %78 = dma.done [#allocation9], 1536
    $region33: #{tpu_custom_call.1} parent=1 // pred_fallthru
      _
    %v79 = vld [vmem:[#allocation2] sm:$0xff]
    %v80 = vld [vmem:[#allocation2 + $0x8] sm:$0xff]
    %v81 = vld [vmem:[#allocation2 + $0x10] sm:$0xff]
    %v82 = vld [vmem:[#allocation2 + $0x18] sm:$0xff]
    %v83 = vld [vmem:[#allocation2 + $0x20] sm:$0xff]
    %v84 = vld [vmem:[#allocation2 + $0x28] sm:$0xff]
    %v85 = vld [vmem:[#allocation2 + $0x30] sm:$0xff]
    %v86 = vld [vmem:[#allocation2 + $0x38] sm:$0xff]
    %v87 = vld [vmem:[#allocation2 + $0x40] sm:$0xff]
    %v88 = vld [vmem:[#allocation2 + $0x48] sm:$0xff]
    %v89 = vld [vmem:[#allocation2 + $0x50] sm:$0xff]
    %v90 = vld [vmem:[#allocation2 + $0x58] sm:$0xff]
    %v91 = vld [vmem:[#allocation2 + $0x60] sm:$0xff]
    %v92 = vld [vmem:[#allocation2 + $0x68] sm:$0xff]
    %v93 = vld [vmem:[#allocation2 + $0x70] sm:$0xff]
    %v94 = vld [vmem:[#allocation2 + $0x78] sm:$0xff]
    %v95 = vld [vmem:[#allocation2 + $0x80] sm:$0xff]
    %v96 = vld [vmem:[#allocation2 + $0x88] sm:$0xff]
    %v97 = vld [vmem:[#allocation2 + $0x90] sm:$0xff]
    %v98 = vld [vmem:[#allocation2 + $0x98] sm:$0xff]
    %v99 = vld [vmem:[#allocation2 + $0xa0] sm:$0xff]
    %v100 = vld [vmem:[#allocation2 + $0xa8] sm:$0xff]
    %v101 = vld [vmem:[#allocation2 + $0xb0] sm:$0xff]
    %v102 = vld [vmem:[#allocation2 + $0xb8] sm:$0xff]
    %v103 = vld [vmem:[#allocation2 + $0xc0] sm:$0xff]
    %v104 = vld [vmem:[#allocation2 + $0xc8] sm:$0xff]
    %v105 = vld [vmem:[#allocation2 + $0xd0] sm:$0xff]
    %v106 = vld [vmem:[#allocation2 + $0xd8] sm:$0xff]
    %v107 = vld [vmem:[#allocation2 + $0xe0] sm:$0xff]
    %v108 = vld [vmem:[#allocation2 + $0xe8] sm:$0xff]
    %v109 = vld [vmem:[#allocation2 + $0xf0] sm:$0xff]
    %v110 = vld [vmem:[#allocation2 + $0xf8] sm:$0xff]
    %v111 = vld [vmem:[#allocation2 + $0x100] sm:$0xff]
    %v112 = vld [vmem:[#allocation2 + $0x108] sm:$0xff]
    %v113 = vld [vmem:[#allocation2 + $0x110] sm:$0xff]
    %v114 = vld [vmem:[#allocation2 + $0x118] sm:$0xff]
    %v115 = vld [vmem:[#allocation2 + $0x120] sm:$0xff]
    %v116 = vld [vmem:[#allocation2 + $0x128] sm:$0xff]
    %v117 = vld [vmem:[#allocation2 + $0x130] sm:$0xff]
    %v118 = vld [vmem:[#allocation2 + $0x138] sm:$0xff]
    %v119 = vld [vmem:[#allocation2 + $0x140] sm:$0xff]
    %v120 = vld [vmem:[#allocation2 + $0x148] sm:$0xff]
    %v121 = vld [vmem:[#allocation2 + $0x150] sm:$0xff]
    %v122 = vld [vmem:[#allocation2 + $0x158] sm:$0xff]
    %v123 = vld [vmem:[#allocation2 + $0x160] sm:$0xff]
    %v124 = vld [vmem:[#allocation2 + $0x168] sm:$0xff]
    %v125 = vld [vmem:[#allocation2 + $0x170] sm:$0xff]
    %v126 = vld [vmem:[#allocation2 + $0x178] sm:$0xff]
    %v127 = vpack.c.bf16 %v103, %v79
    %v128 = vpack.c.bf16 %v104, %v80
    %v129 = vpack.c.bf16 %v105, %v81
    %v130 = vpack.c.bf16 %v106, %v82
    %v131 = vpack.c.bf16 %v107, %v83
    %v132 = vpack.c.bf16 %v108, %v84
    %v133 = vpack.c.bf16 %v109, %v85
    %v134 = vpack.c.bf16 %v110, %v86
    %v135 = vpack.c.bf16 %v111, %v87
    %v136 = vpack.c.bf16 %v112, %v88
    %v137 = vpack.c.bf16 %v113, %v89
    %v138 = vpack.c.bf16 %v114, %v90
    %v139 = vpack.c.bf16 %v115, %v91
    %v140 = vpack.c.bf16 %v116, %v92
    %v141 = vpack.c.bf16 %v117, %v93
    %v142 = vpack.c.bf16 %v118, %v94
    %v143 = vpack.c.bf16 %v119, %v95
    %v144 = vpack.c.bf16 %v120, %v96
    %v145 = vpack.c.bf16 %v121, %v97
    %v146 = vpack.c.bf16 %v122, %v98
    %v147 = vpack.c.bf16 %v123, %v99
    %v148 = vpack.c.bf16 %v124, %v100
    %v149 = vpack.c.bf16 %v125, %v101
    %v150 = vpack.c.bf16 %v126, %v102
    %v151 = vld [vmem:[#allocation5] sm:$0xff]
    %v152 = vld [vmem:[#allocation5 + $0x8] sm:$0xff]
    %v153 = vld [vmem:[#allocation5 + $0x10] sm:$0xff]
    %v154 = vld [vmem:[#allocation5 + $0x18] sm:$0xff]
    %v155 = vld [vmem:[#allocation5 + $0x20] sm:$0xff]
    %v156 = vld [vmem:[#allocation5 + $0x28] sm:$0xff]
    %v157 = vld [vmem:[#allocation5 + $0x30] sm:$0xff]
    %v158 = vld [vmem:[#allocation5 + $0x38] sm:$0xff]
    %v159 = vld [vmem:[#allocation5 + $0x40] sm:$0xff]
    %v160 = vld [vmem:[#allocation5 + $0x48] sm:$0xff]
    %v161 = vld [vmem:[#allocation5 + $0x50] sm:$0xff]
    %v162 = vld [vmem:[#allocation5 + $0x58] sm:$0xff]
    %v163 = vld [vmem:[#allocation5 + $0x60] sm:$0xff]
    %v164 = vld [vmem:[#allocation5 + $0x68] sm:$0xff]
    %v165 = vld [vmem:[#allocation5 + $0x70] sm:$0xff]
    %v166 = vld [vmem:[#allocation5 + $0x78] sm:$0xff]
    %v167 = vld [vmem:[#allocation5 + $0x80] sm:$0xff]
    %v168 = vld [vmem:[#allocation5 + $0x88] sm:$0xff]
    %v169 = vld [vmem:[#allocation5 + $0x90] sm:$0xff]
    %v170 = vld [vmem:[#allocation5 + $0x98] sm:$0xff]
    %v171 = vld [vmem:[#allocation5 + $0xa0] sm:$0xff]
    %v172 = vld [vmem:[#allocation5 + $0xa8] sm:$0xff]
    %v173 = vld [vmem:[#allocation5 + $0xb0] sm:$0xff]
    %v174 = vld [vmem:[#allocation5 + $0xb8] sm:$0xff]
    %v175 = vld [vmem:[#allocation5 + $0xc0] sm:$0xff]
    %v176 = vld [vmem:[#allocation5 + $0xc8] sm:$0xff]
    %v177 = vld [vmem:[#allocation5 + $0xd0] sm:$0xff]
    %v178 = vld [vmem:[#allocation5 + $0xd8] sm:$0xff]
    %v179 = vld [vmem:[#allocation5 + $0xe0] sm:$0xff]
    %v180 = vld [vmem:[#allocation5 + $0xe8] sm:$0xff]
    %v181 = vld [vmem:[#allocation5 + $0xf0] sm:$0xff]
    %v182 = vld [vmem:[#allocation5 + $0xf8] sm:$0xff]
    %v183 = vld [vmem:[#allocation5 + $0x100] sm:$0xff]
    %v184 = vld [vmem:[#allocation5 + $0x108] sm:$0xff]
    %v185 = vld [vmem:[#allocation5 + $0x110] sm:$0xff]
    %v186 = vld [vmem:[#allocation5 + $0x118] sm:$0xff]
    %v187 = vld [vmem:[#allocation5 + $0x120] sm:$0xff]
    %v188 = vld [vmem:[#allocation5 + $0x128] sm:$0xff]
    %v189 = vld [vmem:[#allocation5 + $0x130] sm:$0xff]
    %v190 = vld [vmem:[#allocation5 + $0x138] sm:$0xff]
    %v191 = vld [vmem:[#allocation5 + $0x140] sm:$0xff]
    %v192 = vld [vmem:[#allocation5 + $0x148] sm:$0xff]
    %v193 = vld [vmem:[#allocation5 + $0x150] sm:$0xff]
    %v194 = vld [vmem:[#allocation5 + $0x158] sm:$0xff]
    %v195 = vld [vmem:[#allocation5 + $0x160] sm:$0xff]
    %v196 = vld [vmem:[#allocation5 + $0x168] sm:$0xff]
    %v197 = vld [vmem:[#allocation5 + $0x170] sm:$0xff]
    %v198 = vld [vmem:[#allocation5 + $0x178] sm:$0xff]
    %v199 = vld [vmem:[#allocation5 + $0x180] sm:$0xff]
    %v200 = vld [vmem:[#allocation5 + $0x188] sm:$0xff]
    %v201 = vld [vmem:[#allocation5 + $0x190] sm:$0xff]
    %v202 = vld [vmem:[#allocation5 + $0x198] sm:$0xff]
    %v203 = vld [vmem:[#allocation5 + $0x1a0] sm:$0xff]
    %v204 = vld [vmem:[#allocation5 + $0x1a8] sm:$0xff]
    %v205 = vld [vmem:[#allocation5 + $0x1b0] sm:$0xff]
    %v206 = vld [vmem:[#allocation5 + $0x1b8] sm:$0xff]
    %v207 = vld [vmem:[#allocation5 + $0x1c0] sm:$0xff]
    %v208 = vld [vmem:[#allocation5 + $0x1c8] sm:$0xff]
    %v209 = vld [vmem:[#allocation5 + $0x1d0] sm:$0xff]
    %v210 = vld [vmem:[#allocation5 + $0x1d8] sm:$0xff]
    %v211 = vld [vmem:[#allocation5 + $0x1e0] sm:$0xff]
    %v212 = vld [vmem:[#allocation5 + $0x1e8] sm:$0xff]
    %v213 = vld [vmem:[#allocation5 + $0x1f0] sm:$0xff]
    %v214 = vld [vmem:[#allocation5 + $0x1f8] sm:$0xff]
    %v215 = vld [vmem:[#allocation5 + $0x200] sm:$0xff]
    %v216 = vld [vmem:[#allocation5 + $0x208] sm:$0xff]
    %v217 = vld [vmem:[#allocation5 + $0x210] sm:$0xff]
    %v218 = vld [vmem:[#allocation5 + $0x218] sm:$0xff]
    %v219 = vld [vmem:[#allocation5 + $0x220] sm:$0xff]
    %v220 = vld [vmem:[#allocation5 + $0x228] sm:$0xff]
    %v221 = vld [vmem:[#allocation5 + $0x230] sm:$0xff]
    %v222 = vld [vmem:[#allocation5 + $0x238] sm:$0xff]
    %v223 = vld [vmem:[#allocation5 + $0x240] sm:$0xff]
    %v224 = vld [vmem:[#allocation5 + $0x248] sm:$0xff]
    %v225 = vld [vmem:[#allocation5 + $0x250] sm:$0xff]
    %v226 = vld [vmem:[#allocation5 + $0x258] sm:$0xff]
    %v227 = vld [vmem:[#allocation5 + $0x260] sm:$0xff]
    %v228 = vld [vmem:[#allocation5 + $0x268] sm:$0xff]
    %v229 = vld [vmem:[#allocation5 + $0x270] sm:$0xff]
    %v230 = vld [vmem:[#allocation5 + $0x278] sm:$0xff]
    %v231 = vld [vmem:[#allocation5 + $0x280] sm:$0xff]
    %v232 = vld [vmem:[#allocation5 + $0x288] sm:$0xff]
    %v233 = vld [vmem:[#allocation5 + $0x290] sm:$0xff]
    %v234 = vld [vmem:[#allocation5 + $0x298] sm:$0xff]
    %v235 = vld [vmem:[#allocation5 + $0x2a0] sm:$0xff]
    %v236 = vld [vmem:[#allocation5 + $0x2a8] sm:$0xff]
    %v237 = vld [vmem:[#allocation5 + $0x2b0] sm:$0xff]
    %v238 = vld [vmem:[#allocation5 + $0x2b8] sm:$0xff]
    %v239 = vld [vmem:[#allocation5 + $0x2c0] sm:$0xff]
    %v240 = vld [vmem:[#allocation5 + $0x2c8] sm:$0xff]
    %v241 = vld [vmem:[#allocation5 + $0x2d0] sm:$0xff]
    %v242 = vld [vmem:[#allocation5 + $0x2d8] sm:$0xff]
    %v243 = vld [vmem:[#allocation5 + $0x2e0] sm:$0xff]
    %v244 = vld [vmem:[#allocation5 + $0x2e8] sm:$0xff]
    %v245 = vld [vmem:[#allocation5 + $0x2f0] sm:$0xff]
    %v246 = vld [vmem:[#allocation5 + $0x2f8] sm:$0xff]
    %v247 = vld [vmem:[#allocation5 + $0x300] sm:$0xff]
    %v248 = vld [vmem:[#allocation5 + $0x308] sm:$0xff]
    %v249 = vld [vmem:[#allocation5 + $0x310] sm:$0xff]
    %v250 = vld [vmem:[#allocation5 + $0x318] sm:$0xff]
    %v251 = vld [vmem:[#allocation5 + $0x320] sm:$0xff]
    %v252 = vld [vmem:[#allocation5 + $0x328] sm:$0xff]
    %v253 = vld [vmem:[#allocation5 + $0x330] sm:$0xff]
    %v254 = vld [vmem:[#allocation5 + $0x338] sm:$0xff]
    %v255 = vld [vmem:[#allocation5 + $0x340] sm:$0xff]
    %v256 = vld [vmem:[#allocation5 + $0x348] sm:$0xff]
    %v257 = vld [vmem:[#allocation5 + $0x350] sm:$0xff]
    %v258 = vld [vmem:[#allocation5 + $0x358] sm:$0xff]
    %v259 = vld [vmem:[#allocation5 + $0x360] sm:$0xff]
    %v260 = vld [vmem:[#allocation5 + $0x368] sm:$0xff]
    %v261 = vld [vmem:[#allocation5 + $0x370] sm:$0xff]
    %v262 = vld [vmem:[#allocation5 + $0x378] sm:$0xff]
    %v263 = vld [vmem:[#allocation5 + $0x380] sm:$0xff]
    %v264 = vld [vmem:[#allocation5 + $0x388] sm:$0xff]
    %v265 = vld [vmem:[#allocation5 + $0x390] sm:$0xff]
    %v266 = vld [vmem:[#allocation5 + $0x398] sm:$0xff]
    %v267 = vld [vmem:[#allocation5 + $0x3a0] sm:$0xff]
    %v268 = vld [vmem:[#allocation5 + $0x3a8] sm:$0xff]
    %v269 = vld [vmem:[#allocation5 + $0x3b0] sm:$0xff]
    %v270 = vld [vmem:[#allocation5 + $0x3b8] sm:$0xff]
    %v271 = vld [vmem:[#allocation5 + $0x3c0] sm:$0xff]
    %v272 = vld [vmem:[#allocation5 + $0x3c8] sm:$0xff]
    %v273 = vld [vmem:[#allocation5 + $0x3d0] sm:$0xff]
    %v274 = vld [vmem:[#allocation5 + $0x3d8] sm:$0xff]
    %v275 = vld [vmem:[#allocation5 + $0x3e0] sm:$0xff]
    %v276 = vld [vmem:[#allocation5 + $0x3e8] sm:$0xff]
    %v277 = vld [vmem:[#allocation5 + $0x3f0] sm:$0xff]
    %v278 = vld [vmem:[#allocation5 + $0x3f8] sm:$0xff]
    %v279 = vld [vmem:[#allocation5 + $0x400] sm:$0xff]
    %v280 = vld [vmem:[#allocation5 + $0x408] sm:$0xff]
    %v281 = vld [vmem:[#allocation5 + $0x410] sm:$0xff]
    %v282 = vld [vmem:[#allocation5 + $0x418] sm:$0xff]
    %v283 = vld [vmem:[#allocation5 + $0x420] sm:$0xff]
    %v284 = vld [vmem:[#allocation5 + $0x428] sm:$0xff]
    %v285 = vld [vmem:[#allocation5 + $0x430] sm:$0xff]
    %v286 = vld [vmem:[#allocation5 + $0x438] sm:$0xff]
    %v287 = vld [vmem:[#allocation5 + $0x440] sm:$0xff]
    %v288 = vld [vmem:[#allocation5 + $0x448] sm:$0xff]
    %v289 = vld [vmem:[#allocation5 + $0x450] sm:$0xff]
    %v290 = vld [vmem:[#allocation5 + $0x458] sm:$0xff]
    %v291 = vld [vmem:[#allocation5 + $0x460] sm:$0xff]
    %v292 = vld [vmem:[#allocation5 + $0x468] sm:$0xff]
    %v293 = vld [vmem:[#allocation5 + $0x470] sm:$0xff]
    %v294 = vld [vmem:[#allocation5 + $0x478] sm:$0xff]
    %v295 = vld [vmem:[#allocation5 + $0x480] sm:$0xff]
    %v296 = vld [vmem:[#allocation5 + $0x488] sm:$0xff]
    %v297 = vld [vmem:[#allocation5 + $0x490] sm:$0xff]
    %v298 = vld [vmem:[#allocation5 + $0x498] sm:$0xff]
    %v299 = vld [vmem:[#allocation5 + $0x4a0] sm:$0xff]
    %v300 = vld [vmem:[#allocation5 + $0x4a8] sm:$0xff]
    %v301 = vld [vmem:[#allocation5 + $0x4b0] sm:$0xff]
    %v302 = vld [vmem:[#allocation5 + $0x4b8] sm:$0xff]
    %v303 = vld [vmem:[#allocation5 + $0x4c0] sm:$0xff]
    %v304 = vld [vmem:[#allocation5 + $0x4c8] sm:$0xff]
    %v305 = vld [vmem:[#allocation5 + $0x4d0] sm:$0xff]
    %v306 = vld [vmem:[#allocation5 + $0x4d8] sm:$0xff]
    %v307 = vld [vmem:[#allocation5 + $0x4e0] sm:$0xff]
    %v308 = vld [vmem:[#allocation5 + $0x4e8] sm:$0xff]
    %v309 = vld [vmem:[#allocation5 + $0x4f0] sm:$0xff]
    %v310 = vld [vmem:[#allocation5 + $0x4f8] sm:$0xff]
    %v311 = vld [vmem:[#allocation5 + $0x500] sm:$0xff]
    %v312 = vld [vmem:[#allocation5 + $0x508] sm:$0xff]
    %v313 = vld [vmem:[#allocation5 + $0x510] sm:$0xff]
    %v314 = vld [vmem:[#allocation5 + $0x518] sm:$0xff]
    %v315 = vld [vmem:[#allocation5 + $0x520] sm:$0xff]
    %v316 = vld [vmem:[#allocation5 + $0x528] sm:$0xff]
    %v317 = vld [vmem:[#allocation5 + $0x530] sm:$0xff]
    %v318 = vld [vmem:[#allocation5 + $0x538] sm:$0xff]
    %v319 = vld [vmem:[#allocation5 + $0x540] sm:$0xff]
    %v320 = vld [vmem:[#allocation5 + $0x548] sm:$0xff]
    %v321 = vld [vmem:[#allocation5 + $0x550] sm:$0xff]
    %v322 = vld [vmem:[#allocation5 + $0x558] sm:$0xff]
    %v323 = vld [vmem:[#allocation5 + $0x560] sm:$0xff]
    %v324 = vld [vmem:[#allocation5 + $0x568] sm:$0xff]
    %v325 = vld [vmem:[#allocation5 + $0x570] sm:$0xff]
    %v326 = vld [vmem:[#allocation5 + $0x578] sm:$0xff]
    %v327 = vld [vmem:[#allocation5 + $0x580] sm:$0xff]
    %v328 = vld [vmem:[#allocation5 + $0x588] sm:$0xff]
    %v329 = vld [vmem:[#allocation5 + $0x590] sm:$0xff]
    %v330 = vld [vmem:[#allocation5 + $0x598] sm:$0xff]
    %v331 = vld [vmem:[#allocation5 + $0x5a0] sm:$0xff]
    %v332 = vld [vmem:[#allocation5 + $0x5a8] sm:$0xff]
    %v333 = vld [vmem:[#allocation5 + $0x5b0] sm:$0xff]
    %v334 = vld [vmem:[#allocation5 + $0x5b8] sm:$0xff]
    %v335 = vld [vmem:[#allocation5 + $0x5c0] sm:$0xff]
    %v336 = vld [vmem:[#allocation5 + $0x5c8] sm:$0xff]
    %v337 = vld [vmem:[#allocation5 + $0x5d0] sm:$0xff]
    %v338 = vld [vmem:[#allocation5 + $0x5d8] sm:$0xff]
    %v339 = vld [vmem:[#allocation5 + $0x5e0] sm:$0xff]
    %v340 = vld [vmem:[#allocation5 + $0x5e8] sm:$0xff]
    %v341 = vld [vmem:[#allocation5 + $0x5f0] sm:$0xff]
    %v342 = vld [vmem:[#allocation5 + $0x5f8] sm:$0xff]
    %v343 = vld [vmem:[#allocation5 + $0x600] sm:$0xff]
    %v344 = vld [vmem:[#allocation5 + $0x608] sm:$0xff]
    %v345 = vld [vmem:[#allocation5 + $0x610] sm:$0xff]
    %v346 = vld [vmem:[#allocation5 + $0x618] sm:$0xff]
    %v347 = vld [vmem:[#allocation5 + $0x620] sm:$0xff]
    %v348 = vld [vmem:[#allocation5 + $0x628] sm:$0xff]
    %v349 = vld [vmem:[#allocation5 + $0x630] sm:$0xff]
    %v350 = vld [vmem:[#allocation5 + $0x638] sm:$0xff]
    %v351 = vld [vmem:[#allocation5 + $0x640] sm:$0xff]
    %v352 = vld [vmem:[#allocation5 + $0x648] sm:$0xff]
    %v353 = vld [vmem:[#allocation5 + $0x650] sm:$0xff]
    %v354 = vld [vmem:[#allocation5 + $0x658] sm:$0xff]
    %v355 = vld [vmem:[#allocation5 + $0x660] sm:$0xff]
    %v356 = vld [vmem:[#allocation5 + $0x668] sm:$0xff]
    %v357 = vld [vmem:[#allocation5 + $0x670] sm:$0xff]
    %v358 = vld [vmem:[#allocation5 + $0x678] sm:$0xff]
    %v359 = vld [vmem:[#allocation5 + $0x680] sm:$0xff]
    %v360 = vld [vmem:[#allocation5 + $0x688] sm:$0xff]
    %v361 = vld [vmem:[#allocation5 + $0x690] sm:$0xff]
    %v362 = vld [vmem:[#allocation5 + $0x698] sm:$0xff]
    %v363 = vld [vmem:[#allocation5 + $0x6a0] sm:$0xff]
    %v364 = vld [vmem:[#allocation5 + $0x6a8] sm:$0xff]
    %v365 = vld [vmem:[#allocation5 + $0x6b0] sm:$0xff]
    %v366 = vld [vmem:[#allocation5 + $0x6b8] sm:$0xff]
    %v367 = vld [vmem:[#allocation5 + $0x6c0] sm:$0xff]
    %v368 = vld [vmem:[#allocation5 + $0x6c8] sm:$0xff]
    %v369 = vld [vmem:[#allocation5 + $0x6d0] sm:$0xff]
    %v370 = vld [vmem:[#allocation5 + $0x6d8] sm:$0xff]
    %v371 = vld [vmem:[#allocation5 + $0x6e0] sm:$0xff]
    %v372 = vld [vmem:[#allocation5 + $0x6e8] sm:$0xff]
    %v373 = vld [vmem:[#allocation5 + $0x6f0] sm:$0xff]
    %v374 = vld [vmem:[#allocation5 + $0x6f8] sm:$0xff]
    %v375 = vld [vmem:[#allocation5 + $0x700] sm:$0xff]
    %v376 = vld [vmem:[#allocation5 + $0x708] sm:$0xff]
    %v377 = vld [vmem:[#allocation5 + $0x710] sm:$0xff]
    %v378 = vld [vmem:[#allocation5 + $0x718] sm:$0xff]
    %v379 = vld [vmem:[#allocation5 + $0x720] sm:$0xff]
    %v380 = vld [vmem:[#allocation5 + $0x728] sm:$0xff]
    %v381 = vld [vmem:[#allocation5 + $0x730] sm:$0xff]
    %v382 = vld [vmem:[#allocation5 + $0x738] sm:$0xff]
    %v383 = vld [vmem:[#allocation5 + $0x740] sm:$0xff]
    %v384 = vld [vmem:[#allocation5 + $0x748] sm:$0xff]
    %v385 = vld [vmem:[#allocation5 + $0x750] sm:$0xff]
    %v386 = vld [vmem:[#allocation5 + $0x758] sm:$0xff]
    %v387 = vld [vmem:[#allocation5 + $0x760] sm:$0xff]
    %v388 = vld [vmem:[#allocation5 + $0x768] sm:$0xff]
    %v389 = vld [vmem:[#allocation5 + $0x770] sm:$0xff]
    %v390 = vld [vmem:[#allocation5 + $0x778] sm:$0xff]
    %v391 = vld [vmem:[#allocation5 + $0x780] sm:$0xff]
    %v392 = vld [vmem:[#allocation5 + $0x788] sm:$0xff]
    %v393 = vld [vmem:[#allocation5 + $0x790] sm:$0xff]
    %v394 = vld [vmem:[#allocation5 + $0x798] sm:$0xff]
    %v395 = vld [vmem:[#allocation5 + $0x7a0] sm:$0xff]
    %v396 = vld [vmem:[#allocation5 + $0x7a8] sm:$0xff]
    %v397 = vld [vmem:[#allocation5 + $0x7b0] sm:$0xff]
    %v398 = vld [vmem:[#allocation5 + $0x7b8] sm:$0xff]
    %v399 = vld [vmem:[#allocation5 + $0x7c0] sm:$0xff]
    %v400 = vld [vmem:[#allocation5 + $0x7c8] sm:$0xff]
    %v401 = vld [vmem:[#allocation5 + $0x7d0] sm:$0xff]
    %v402 = vld [vmem:[#allocation5 + $0x7d8] sm:$0xff]
    %v403 = vld [vmem:[#allocation5 + $0x7e0] sm:$0xff]
    %v404 = vld [vmem:[#allocation5 + $0x7e8] sm:$0xff]
    %v405 = vld [vmem:[#allocation5 + $0x7f0] sm:$0xff]
    %v406 = vld [vmem:[#allocation5 + $0x7f8] sm:$0xff]
    %v407 = vld [vmem:[#allocation5 + $0x800] sm:$0xff]
    %v408 = vld [vmem:[#allocation5 + $0x808] sm:$0xff]
    %v409 = vld [vmem:[#allocation5 + $0x810] sm:$0xff]
    %v410 = vld [vmem:[#allocation5 + $0x818] sm:$0xff]
    %v411 = vld [vmem:[#allocation5 + $0x820] sm:$0xff]
    %v412 = vld [vmem:[#allocation5 + $0x828] sm:$0xff]
    %v413 = vld [vmem:[#allocation5 + $0x830] sm:$0xff]
    %v414 = vld [vmem:[#allocation5 + $0x838] sm:$0xff]
    %v415 = vld [vmem:[#allocation5 + $0x840] sm:$0xff]
    %v416 = vld [vmem:[#allocation5 + $0x848] sm:$0xff]
    %v417 = vld [vmem:[#allocation5 + $0x850] sm:$0xff]
    %v418 = vld [vmem:[#allocation5 + $0x858] sm:$0xff]
    %v419 = vld [vmem:[#allocation5 + $0x860] sm:$0xff]
    %v420 = vld [vmem:[#allocation5 + $0x868] sm:$0xff]
    %v421 = vld [vmem:[#allocation5 + $0x870] sm:$0xff]
    %v422 = vld [vmem:[#allocation5 + $0x878] sm:$0xff]
    %v423 = vld [vmem:[#allocation5 + $0x880] sm:$0xff]
    %v424 = vld [vmem:[#allocation5 + $0x888] sm:$0xff]
    %v425 = vld [vmem:[#allocation5 + $0x890] sm:$0xff]
    %v426 = vld [vmem:[#allocation5 + $0x898] sm:$0xff]
    %v427 = vld [vmem:[#allocation5 + $0x8a0] sm:$0xff]
    %v428 = vld [vmem:[#allocation5 + $0x8a8] sm:$0xff]
    %v429 = vld [vmem:[#allocation5 + $0x8b0] sm:$0xff]
    %v430 = vld [vmem:[#allocation5 + $0x8b8] sm:$0xff]
    %v431 = vld [vmem:[#allocation5 + $0x8c0] sm:$0xff]
    %v432 = vld [vmem:[#allocation5 + $0x8c8] sm:$0xff]
    %v433 = vld [vmem:[#allocation5 + $0x8d0] sm:$0xff]
    %v434 = vld [vmem:[#allocation5 + $0x8d8] sm:$0xff]
    %v435 = vld [vmem:[#allocation5 + $0x8e0] sm:$0xff]
    %v436 = vld [vmem:[#allocation5 + $0x8e8] sm:$0xff]
    %v437 = vld [vmem:[#allocation5 + $0x8f0] sm:$0xff]
    %v438 = vld [vmem:[#allocation5 + $0x8f8] sm:$0xff]
    %v439 = vld [vmem:[#allocation5 + $0x900] sm:$0xff]
    %v440 = vld [vmem:[#allocation5 + $0x908] sm:$0xff]
    %v441 = vld [vmem:[#allocation5 + $0x910] sm:$0xff]
    %v442 = vld [vmem:[#allocation5 + $0x918] sm:$0xff]
    %v443 = vld [vmem:[#allocation5 + $0x920] sm:$0xff]
    %v444 = vld [vmem:[#allocation5 + $0x928] sm:$0xff]
    %v445 = vld [vmem:[#allocation5 + $0x930] sm:$0xff]
    %v446 = vld [vmem:[#allocation5 + $0x938] sm:$0xff]
    %v447 = vld [vmem:[#allocation5 + $0x940] sm:$0xff]
    %v448 = vld [vmem:[#allocation5 + $0x948] sm:$0xff]
    %v449 = vld [vmem:[#allocation5 + $0x950] sm:$0xff]
    %v450 = vld [vmem:[#allocation5 + $0x958] sm:$0xff]
    %v451 = vld [vmem:[#allocation5 + $0x960] sm:$0xff]
    %v452 = vld [vmem:[#allocation5 + $0x968] sm:$0xff]
    %v453 = vld [vmem:[#allocation5 + $0x970] sm:$0xff]
    %v454 = vld [vmem:[#allocation5 + $0x978] sm:$0xff]
    %v455 = vld [vmem:[#allocation5 + $0x980] sm:$0xff]
    %v456 = vld [vmem:[#allocation5 + $0x988] sm:$0xff]
    %v457 = vld [vmem:[#allocation5 + $0x990] sm:$0xff]
    %v458 = vld [vmem:[#allocation5 + $0x998] sm:$0xff]
    %v459 = vld [vmem:[#allocation5 + $0x9a0] sm:$0xff]
    %v460 = vld [vmem:[#allocation5 + $0x9a8] sm:$0xff]
    %v461 = vld [vmem:[#allocation5 + $0x9b0] sm:$0xff]
    %v462 = vld [vmem:[#allocation5 + $0x9b8] sm:$0xff]
    %v463 = vld [vmem:[#allocation5 + $0x9c0] sm:$0xff]
    %v464 = vld [vmem:[#allocation5 + $0x9c8] sm:$0xff]
    %v465 = vld [vmem:[#allocation5 + $0x9d0] sm:$0xff]
    %v466 = vld [vmem:[#allocation5 + $0x9d8] sm:$0xff]
    %v467 = vld [vmem:[#allocation5 + $0x9e0] sm:$0xff]
    %v468 = vld [vmem:[#allocation5 + $0x9e8] sm:$0xff]
    %v469 = vld [vmem:[#allocation5 + $0x9f0] sm:$0xff]
    %v470 = vld [vmem:[#allocation5 + $0x9f8] sm:$0xff]
    %v471 = vld [vmem:[#allocation5 + $0xa00] sm:$0xff]
    %v472 = vld [vmem:[#allocation5 + $0xa08] sm:$0xff]
    %v473 = vld [vmem:[#allocation5 + $0xa10] sm:$0xff]
    %v474 = vld [vmem:[#allocation5 + $0xa18] sm:$0xff]
    %v475 = vld [vmem:[#allocation5 + $0xa20] sm:$0xff]
    %v476 = vld [vmem:[#allocation5 + $0xa28] sm:$0xff]
    %v477 = vld [vmem:[#allocation5 + $0xa30] sm:$0xff]
    %v478 = vld [vmem:[#allocation5 + $0xa38] sm:$0xff]
    %v479 = vld [vmem:[#allocation5 + $0xa40] sm:$0xff]
    %v480 = vld [vmem:[#allocation5 + $0xa48] sm:$0xff]
    %v481 = vld [vmem:[#allocation5 + $0xa50] sm:$0xff]
    %v482 = vld [vmem:[#allocation5 + $0xa58] sm:$0xff]
    %v483 = vld [vmem:[#allocation5 + $0xa60] sm:$0xff]
    %v484 = vld [vmem:[#allocation5 + $0xa68] sm:$0xff]
    %v485 = vld [vmem:[#allocation5 + $0xa70] sm:$0xff]
    %v486 = vld [vmem:[#allocation5 + $0xa78] sm:$0xff]
    %v487 = vld [vmem:[#allocation5 + $0xa80] sm:$0xff]
    %v488 = vld [vmem:[#allocation5 + $0xa88] sm:$0xff]
    %v489 = vld [vmem:[#allocation5 + $0xa90] sm:$0xff]
    %v490 = vld [vmem:[#allocation5 + $0xa98] sm:$0xff]
    %v491 = vld [vmem:[#allocation5 + $0xaa0] sm:$0xff]
    %v492 = vld [vmem:[#allocation5 + $0xaa8] sm:$0xff]
    %v493 = vld [vmem:[#allocation5 + $0xab0] sm:$0xff]
    %v494 = vld [vmem:[#allocation5 + $0xab8] sm:$0xff]
    %v495 = vld [vmem:[#allocation5 + $0xac0] sm:$0xff]
    %v496 = vld [vmem:[#allocation5 + $0xac8] sm:$0xff]
    %v497 = vld [vmem:[#allocation5 + $0xad0] sm:$0xff]
    %v498 = vld [vmem:[#allocation5 + $0xad8] sm:$0xff]
    %v499 = vld [vmem:[#allocation5 + $0xae0] sm:$0xff]
    %v500 = vld [vmem:[#allocation5 + $0xae8] sm:$0xff]
    %v501 = vld [vmem:[#allocation5 + $0xaf0] sm:$0xff]
    %v502 = vld [vmem:[#allocation5 + $0xaf8] sm:$0xff]
    %v503 = vld [vmem:[#allocation5 + $0xb00] sm:$0xff]
    %v504 = vld [vmem:[#allocation5 + $0xb08] sm:$0xff]
    %v505 = vld [vmem:[#allocation5 + $0xb10] sm:$0xff]
    %v506 = vld [vmem:[#allocation5 + $0xb18] sm:$0xff]
    %v507 = vld [vmem:[#allocation5 + $0xb20] sm:$0xff]
    %v508 = vld [vmem:[#allocation5 + $0xb28] sm:$0xff]
    %v509 = vld [vmem:[#allocation5 + $0xb30] sm:$0xff]
    %v510 = vld [vmem:[#allocation5 + $0xb38] sm:$0xff]
    %v511 = vld [vmem:[#allocation5 + $0xb40] sm:$0xff]
    %v512 = vld [vmem:[#allocation5 + $0xb48] sm:$0xff]
    %v513 = vld [vmem:[#allocation5 + $0xb50] sm:$0xff]
    %v514 = vld [vmem:[#allocation5 + $0xb58] sm:$0xff]
    %v515 = vld [vmem:[#allocation5 + $0xb60] sm:$0xff]
    %v516 = vld [vmem:[#allocation5 + $0xb68] sm:$0xff]
    %v517 = vld [vmem:[#allocation5 + $0xb70] sm:$0xff]
    %v518 = vld [vmem:[#allocation5 + $0xb78] sm:$0xff]
    %v519 = vld [vmem:[#allocation5 + $0xb80] sm:$0xff]
    %v520 = vld [vmem:[#allocation5 + $0xb88] sm:$0xff]
    %v521 = vld [vmem:[#allocation5 + $0xb90] sm:$0xff]
    %v522 = vld [vmem:[#allocation5 + $0xb98] sm:$0xff]
    %v523 = vld [vmem:[#allocation5 + $0xba0] sm:$0xff]
    %v524 = vld [vmem:[#allocation5 + $0xba8] sm:$0xff]
    %v525 = vld [vmem:[#allocation5 + $0xbb0] sm:$0xff]
    %v526 = vld [vmem:[#allocation5 + $0xbb8] sm:$0xff]
    %v527 = vld [vmem:[#allocation5 + $0xbc0] sm:$0xff]
    %v528 = vld [vmem:[#allocation5 + $0xbc8] sm:$0xff]
    %v529 = vld [vmem:[#allocation5 + $0xbd0] sm:$0xff]
    %v530 = vld [vmem:[#allocation5 + $0xbd8] sm:$0xff]
    %v531 = vld [vmem:[#allocation5 + $0xbe0] sm:$0xff]
    %v532 = vld [vmem:[#allocation5 + $0xbe8] sm:$0xff]
    %v533 = vld [vmem:[#allocation5 + $0xbf0] sm:$0xff]
    %v534 = vld [vmem:[#allocation5 + $0xbf8] sm:$0xff]
    %v535 = vld [vmem:[#allocation5 + $0xc00] sm:$0xff]
    %v536 = vld [vmem:[#allocation5 + $0xc08] sm:$0xff]
    %v537 = vld [vmem:[#allocation5 + $0xc10] sm:$0xff]
    %v538 = vld [vmem:[#allocation5 + $0xc18] sm:$0xff]
    %v539 = vld [vmem:[#allocation5 + $0xc20] sm:$0xff]
    %v540 = vld [vmem:[#allocation5 + $0xc28] sm:$0xff]
    %v541 = vld [vmem:[#allocation5 + $0xc30] sm:$0xff]
    %v542 = vld [vmem:[#allocation5 + $0xc38] sm:$0xff]
    %v543 = vld [vmem:[#allocation5 + $0xc40] sm:$0xff]
    %v544 = vld [vmem:[#allocation5 + $0xc48] sm:$0xff]
    %v545 = vld [vmem:[#allocation5 + $0xc50] sm:$0xff]
    %v546 = vld [vmem:[#allocation5 + $0xc58] sm:$0xff]
    %v547 = vld [vmem:[#allocation5 + $0xc60] sm:$0xff]
    %v548 = vld [vmem:[#allocation5 + $0xc68] sm:$0xff]
    %v549 = vld [vmem:[#allocation5 + $0xc70] sm:$0xff]
    %v550 = vld [vmem:[#allocation5 + $0xc78] sm:$0xff]
    %v551 = vld [vmem:[#allocation5 + $0xc80] sm:$0xff]
    %v552 = vld [vmem:[#allocation5 + $0xc88] sm:$0xff]
    %v553 = vld [vmem:[#allocation5 + $0xc90] sm:$0xff]
    %v554 = vld [vmem:[#allocation5 + $0xc98] sm:$0xff]
    %v555 = vld [vmem:[#allocation5 + $0xca0] sm:$0xff]
    %v556 = vld [vmem:[#allocation5 + $0xca8] sm:$0xff]
    %v557 = vld [vmem:[#allocation5 + $0xcb0] sm:$0xff]
    %v558 = vld [vmem:[#allocation5 + $0xcb8] sm:$0xff]
    %v559 = vld [vmem:[#allocation5 + $0xcc0] sm:$0xff]
    %v560 = vld [vmem:[#allocation5 + $0xcc8] sm:$0xff]
    %v561 = vld [vmem:[#allocation5 + $0xcd0] sm:$0xff]
    %v562 = vld [vmem:[#allocation5 + $0xcd8] sm:$0xff]
    %v563 = vld [vmem:[#allocation5 + $0xce0] sm:$0xff]
    %v564 = vld [vmem:[#allocation5 + $0xce8] sm:$0xff]
    %v565 = vld [vmem:[#allocation5 + $0xcf0] sm:$0xff]
    %v566 = vld [vmem:[#allocation5 + $0xcf8] sm:$0xff]
    %v567 = vld [vmem:[#allocation5 + $0xd00] sm:$0xff]
    %v568 = vld [vmem:[#allocation5 + $0xd08] sm:$0xff]
    %v569 = vld [vmem:[#allocation5 + $0xd10] sm:$0xff]
    %v570 = vld [vmem:[#allocation5 + $0xd18] sm:$0xff]
    %v571 = vld [vmem:[#allocation5 + $0xd20] sm:$0xff]
    %v572 = vld [vmem:[#allocation5 + $0xd28] sm:$0xff]
    %v573 = vld [vmem:[#allocation5 + $0xd30] sm:$0xff]
    %v574 = vld [vmem:[#allocation5 + $0xd38] sm:$0xff]
    %v575 = vld [vmem:[#allocation5 + $0xd40] sm:$0xff]
    %v576 = vld [vmem:[#allocation5 + $0xd48] sm:$0xff]
    %v577 = vld [vmem:[#allocation5 + $0xd50] sm:$0xff]
    %v578 = vld [vmem:[#allocation5 + $0xd58] sm:$0xff]
    %v579 = vld [vmem:[#allocation5 + $0xd60] sm:$0xff]
    %v580 = vld [vmem:[#allocation5 + $0xd68] sm:$0xff]
    %v581 = vld [vmem:[#allocation5 + $0xd70] sm:$0xff]
    %v582 = vld [vmem:[#allocation5 + $0xd78] sm:$0xff]
    %v583 = vld [vmem:[#allocation5 + $0xd80] sm:$0xff]
    %v584 = vld [vmem:[#allocation5 + $0xd88] sm:$0xff]
    %v585 = vld [vmem:[#allocation5 + $0xd90] sm:$0xff]
    %v586 = vld [vmem:[#allocation5 + $0xd98] sm:$0xff]
    %v587 = vld [vmem:[#allocation5 + $0xda0] sm:$0xff]
    %v588 = vld [vmem:[#allocation5 + $0xda8] sm:$0xff]
    %v589 = vld [vmem:[#allocation5 + $0xdb0] sm:$0xff]
    %v590 = vld [vmem:[#allocation5 + $0xdb8] sm:$0xff]
    %v591 = vld [vmem:[#allocation5 + $0xdc0] sm:$0xff]
    %v592 = vld [vmem:[#allocation5 + $0xdc8] sm:$0xff]
    %v593 = vld [vmem:[#allocation5 + $0xdd0] sm:$0xff]
    %v594 = vld [vmem:[#allocation5 + $0xdd8] sm:$0xff]
    %v595 = vld [vmem:[#allocation5 + $0xde0] sm:$0xff]
    %v596 = vld [vmem:[#allocation5 + $0xde8] sm:$0xff]
    %v597 = vld [vmem:[#allocation5 + $0xdf0] sm:$0xff]
    %v598 = vld [vmem:[#allocation5 + $0xdf8] sm:$0xff]
    %v599 = vld [vmem:[#allocation5 + $0xe00] sm:$0xff]
    %v600 = vld [vmem:[#allocation5 + $0xe08] sm:$0xff]
    %v601 = vld [vmem:[#allocation5 + $0xe10] sm:$0xff]
    %v602 = vld [vmem:[#allocation5 + $0xe18] sm:$0xff]
    %v603 = vld [vmem:[#allocation5 + $0xe20] sm:$0xff]
    %v604 = vld [vmem:[#allocation5 + $0xe28] sm:$0xff]
    %v605 = vld [vmem:[#allocation5 + $0xe30] sm:$0xff]
    %v606 = vld [vmem:[#allocation5 + $0xe38] sm:$0xff]
    %v607 = vld [vmem:[#allocation5 + $0xe40] sm:$0xff]
    %v608 = vld [vmem:[#allocation5 + $0xe48] sm:$0xff]
    %v609 = vld [vmem:[#allocation5 + $0xe50] sm:$0xff]
    %v610 = vld [vmem:[#allocation5 + $0xe58] sm:$0xff]
    %v611 = vld [vmem:[#allocation5 + $0xe60] sm:$0xff]
    %v612 = vld [vmem:[#allocation5 + $0xe68] sm:$0xff]
    %v613 = vld [vmem:[#allocation5 + $0xe70] sm:$0xff]
    %v614 = vld [vmem:[#allocation5 + $0xe78] sm:$0xff]
    %v615 = vld [vmem:[#allocation5 + $0xe80] sm:$0xff]
    %v616 = vld [vmem:[#allocation5 + $0xe88] sm:$0xff]
    %v617 = vld [vmem:[#allocation5 + $0xe90] sm:$0xff]
    %v618 = vld [vmem:[#allocation5 + $0xe98] sm:$0xff]
    %v619 = vld [vmem:[#allocation5 + $0xea0] sm:$0xff]
    %v620 = vld [vmem:[#allocation5 + $0xea8] sm:$0xff]
    %v621 = vld [vmem:[#allocation5 + $0xeb0] sm:$0xff]
    %v622 = vld [vmem:[#allocation5 + $0xeb8] sm:$0xff]
    %v623 = vld [vmem:[#allocation5 + $0xec0] sm:$0xff]
    %v624 = vld [vmem:[#allocation5 + $0xec8] sm:$0xff]
    %v625 = vld [vmem:[#allocation5 + $0xed0] sm:$0xff]
    %v626 = vld [vmem:[#allocation5 + $0xed8] sm:$0xff]
    %v627 = vld [vmem:[#allocation5 + $0xee0] sm:$0xff]
    %v628 = vld [vmem:[#allocation5 + $0xee8] sm:$0xff]
    %v629 = vld [vmem:[#allocation5 + $0xef0] sm:$0xff]
    %v630 = vld [vmem:[#allocation5 + $0xef8] sm:$0xff]
    %v631 = vld [vmem:[#allocation5 + $0xf00] sm:$0xff]
    %v632 = vld [vmem:[#allocation5 + $0xf08] sm:$0xff]
    %v633 = vld [vmem:[#allocation5 + $0xf10] sm:$0xff]
    %v634 = vld [vmem:[#allocation5 + $0xf18] sm:$0xff]
    %v635 = vld [vmem:[#allocation5 + $0xf20] sm:$0xff]
    %v636 = vld [vmem:[#allocation5 + $0xf28] sm:$0xff]
    %v637 = vld [vmem:[#allocation5 + $0xf30] sm:$0xff]
    %v638 = vld [vmem:[#allocation5 + $0xf38] sm:$0xff]
    %v639 = vld [vmem:[#allocation5 + $0xf40] sm:$0xff]
    %v640 = vld [vmem:[#allocation5 + $0xf48] sm:$0xff]
    %v641 = vld [vmem:[#allocation5 + $0xf50] sm:$0xff]
    %v642 = vld [vmem:[#allocation5 + $0xf58] sm:$0xff]
    %v643 = vld [vmem:[#allocation5 + $0xf60] sm:$0xff]
    %v644 = vld [vmem:[#allocation5 + $0xf68] sm:$0xff]
    %v645 = vld [vmem:[#allocation5 + $0xf70] sm:$0xff]
    %v646 = vld [vmem:[#allocation5 + $0xf78] sm:$0xff]
    %v647 = vld [vmem:[#allocation5 + $0xf80] sm:$0xff]
    %v648 = vld [vmem:[#allocation5 + $0xf88] sm:$0xff]
    %v649 = vld [vmem:[#allocation5 + $0xf90] sm:$0xff]
    %v650 = vld [vmem:[#allocation5 + $0xf98] sm:$0xff]
    %v651 = vld [vmem:[#allocation5 + $0xfa0] sm:$0xff]
    %v652 = vld [vmem:[#allocation5 + $0xfa8] sm:$0xff]
    %v653 = vld [vmem:[#allocation5 + $0xfb0] sm:$0xff]
    %v654 = vld [vmem:[#allocation5 + $0xfb8] sm:$0xff]
    %v655 = vld [vmem:[#allocation5 + $0xfc0] sm:$0xff]
    %v656 = vld [vmem:[#allocation5 + $0xfc8] sm:$0xff]
    %v657 = vld [vmem:[#allocation5 + $0xfd0] sm:$0xff]
    %v658 = vld [vmem:[#allocation5 + $0xfd8] sm:$0xff]
    %v659 = vld [vmem:[#allocation5 + $0xfe0] sm:$0xff]
    %v660 = vld [vmem:[#allocation5 + $0xfe8] sm:$0xff]
    %v661 = vld [vmem:[#allocation5 + $0xff0] sm:$0xff]
    %v662 = vld [vmem:[#allocation5 + $0xff8] sm:$0xff]
    %v663 = vld [vmem:[#allocation5 + $0x1000] sm:$0xff]
    %v664 = vld [vmem:[#allocation5 + $0x1008] sm:$0xff]
    %v665 = vld [vmem:[#allocation5 + $0x1010] sm:$0xff]
    %v666 = vld [vmem:[#allocation5 + $0x1018] sm:$0xff]
    %v667 = vld [vmem:[#allocation5 + $0x1020] sm:$0xff]
    %v668 = vld [vmem:[#allocation5 + $0x1028] sm:$0xff]
    %v669 = vld [vmem:[#allocation5 + $0x1030] sm:$0xff]
    %v670 = vld [vmem:[#allocation5 + $0x1038] sm:$0xff]
    %v671 = vld [vmem:[#allocation5 + $0x1040] sm:$0xff]
    %v672 = vld [vmem:[#allocation5 + $0x1048] sm:$0xff]
    %v673 = vld [vmem:[#allocation5 + $0x1050] sm:$0xff]
    %v674 = vld [vmem:[#allocation5 + $0x1058] sm:$0xff]
    %v675 = vld [vmem:[#allocation5 + $0x1060] sm:$0xff]
    %v676 = vld [vmem:[#allocation5 + $0x1068] sm:$0xff]
    %v677 = vld [vmem:[#allocation5 + $0x1070] sm:$0xff]
    %v678 = vld [vmem:[#allocation5 + $0x1078] sm:$0xff]
    %v679 = vld [vmem:[#allocation5 + $0x1080] sm:$0xff]
    %v680 = vld [vmem:[#allocation5 + $0x1088] sm:$0xff]
    %v681 = vld [vmem:[#allocation5 + $0x1090] sm:$0xff]
    %v682 = vld [vmem:[#allocation5 + $0x1098] sm:$0xff]
    %v683 = vld [vmem:[#allocation5 + $0x10a0] sm:$0xff]
    %v684 = vld [vmem:[#allocation5 + $0x10a8] sm:$0xff]
    %v685 = vld [vmem:[#allocation5 + $0x10b0] sm:$0xff]
    %v686 = vld [vmem:[#allocation5 + $0x10b8] sm:$0xff]
    %v687 = vld [vmem:[#allocation5 + $0x10c0] sm:$0xff]
    %v688 = vld [vmem:[#allocation5 + $0x10c8] sm:$0xff]
    %v689 = vld [vmem:[#allocation5 + $0x10d0] sm:$0xff]
    %v690 = vld [vmem:[#allocation5 + $0x10d8] sm:$0xff]
    %v691 = vld [vmem:[#allocation5 + $0x10e0] sm:$0xff]
    %v692 = vld [vmem:[#allocation5 + $0x10e8] sm:$0xff]
    %v693 = vld [vmem:[#allocation5 + $0x10f0] sm:$0xff]
    %v694 = vld [vmem:[#allocation5 + $0x10f8] sm:$0xff]
    %v695 = vld [vmem:[#allocation5 + $0x1100] sm:$0xff]
    %v696 = vld [vmem:[#allocation5 + $0x1108] sm:$0xff]
    %v697 = vld [vmem:[#allocation5 + $0x1110] sm:$0xff]
    %v698 = vld [vmem:[#allocation5 + $0x1118] sm:$0xff]
    %v699 = vld [vmem:[#allocation5 + $0x1120] sm:$0xff]
    %v700 = vld [vmem:[#allocation5 + $0x1128] sm:$0xff]
    %v701 = vld [vmem:[#allocation5 + $0x1130] sm:$0xff]
    %v702 = vld [vmem:[#allocation5 + $0x1138] sm:$0xff]
    %v703 = vld [vmem:[#allocation5 + $0x1140] sm:$0xff]
    %v704 = vld [vmem:[#allocation5 + $0x1148] sm:$0xff]
    %v705 = vld [vmem:[#allocation5 + $0x1150] sm:$0xff]
    %v706 = vld [vmem:[#allocation5 + $0x1158] sm:$0xff]
    %v707 = vld [vmem:[#allocation5 + $0x1160] sm:$0xff]
    %v708 = vld [vmem:[#allocation5 + $0x1168] sm:$0xff]
    %v709 = vld [vmem:[#allocation5 + $0x1170] sm:$0xff]
    %v710 = vld [vmem:[#allocation5 + $0x1178] sm:$0xff]
    %v711 = vld [vmem:[#allocation5 + $0x1180] sm:$0xff]
    %v712 = vld [vmem:[#allocation5 + $0x1188] sm:$0xff]
    %v713 = vld [vmem:[#allocation5 + $0x1190] sm:$0xff]
    %v714 = vld [vmem:[#allocation5 + $0x1198] sm:$0xff]
    %v715 = vld [vmem:[#allocation5 + $0x11a0] sm:$0xff]
    %v716 = vld [vmem:[#allocation5 + $0x11a8] sm:$0xff]
    %v717 = vld [vmem:[#allocation5 + $0x11b0] sm:$0xff]
    %v718 = vld [vmem:[#allocation5 + $0x11b8] sm:$0xff]
    %v719 = vld [vmem:[#allocation5 + $0x11c0] sm:$0xff]
    %v720 = vld [vmem:[#allocation5 + $0x11c8] sm:$0xff]
    %v721 = vld [vmem:[#allocation5 + $0x11d0] sm:$0xff]
    %v722 = vld [vmem:[#allocation5 + $0x11d8] sm:$0xff]
    %v723 = vld [vmem:[#allocation5 + $0x11e0] sm:$0xff]
    %v724 = vld [vmem:[#allocation5 + $0x11e8] sm:$0xff]
    %v725 = vld [vmem:[#allocation5 + $0x11f0] sm:$0xff]
    %v726 = vld [vmem:[#allocation5 + $0x11f8] sm:$0xff]
    %v727 = vld [vmem:[#allocation5 + $0x1200] sm:$0xff]
    %v728 = vld [vmem:[#allocation5 + $0x1208] sm:$0xff]
    %v729 = vld [vmem:[#allocation5 + $0x1210] sm:$0xff]
    %v730 = vld [vmem:[#allocation5 + $0x1218] sm:$0xff]
    %v731 = vld [vmem:[#allocation5 + $0x1220] sm:$0xff]
    %v732 = vld [vmem:[#allocation5 + $0x1228] sm:$0xff]
    %v733 = vld [vmem:[#allocation5 + $0x1230] sm:$0xff]
    %v734 = vld [vmem:[#allocation5 + $0x1238] sm:$0xff]
    %v735 = vld [vmem:[#allocation5 + $0x1240] sm:$0xff]
    %v736 = vld [vmem:[#allocation5 + $0x1248] sm:$0xff]
    %v737 = vld [vmem:[#allocation5 + $0x1250] sm:$0xff]
    %v738 = vld [vmem:[#allocation5 + $0x1258] sm:$0xff]
    %v739 = vld [vmem:[#allocation5 + $0x1260] sm:$0xff]
    %v740 = vld [vmem:[#allocation5 + $0x1268] sm:$0xff]
    %v741 = vld [vmem:[#allocation5 + $0x1270] sm:$0xff]
    %v742 = vld [vmem:[#allocation5 + $0x1278] sm:$0xff]
    %v743 = vld [vmem:[#allocation5 + $0x1280] sm:$0xff]
    %v744 = vld [vmem:[#allocation5 + $0x1288] sm:$0xff]
    %v745 = vld [vmem:[#allocation5 + $0x1290] sm:$0xff]
    %v746 = vld [vmem:[#allocation5 + $0x1298] sm:$0xff]
    %v747 = vld [vmem:[#allocation5 + $0x12a0] sm:$0xff]
    %v748 = vld [vmem:[#allocation5 + $0x12a8] sm:$0xff]
    %v749 = vld [vmem:[#allocation5 + $0x12b0] sm:$0xff]
    %v750 = vld [vmem:[#allocation5 + $0x12b8] sm:$0xff]
    %v751 = vld [vmem:[#allocation5 + $0x12c0] sm:$0xff]
    %v752 = vld [vmem:[#allocation5 + $0x12c8] sm:$0xff]
    %v753 = vld [vmem:[#allocation5 + $0x12d0] sm:$0xff]
    %v754 = vld [vmem:[#allocation5 + $0x12d8] sm:$0xff]
    %v755 = vld [vmem:[#allocation5 + $0x12e0] sm:$0xff]
    %v756 = vld [vmem:[#allocation5 + $0x12e8] sm:$0xff]
    %v757 = vld [vmem:[#allocation5 + $0x12f0] sm:$0xff]
    %v758 = vld [vmem:[#allocation5 + $0x12f8] sm:$0xff]
    %v759 = vld [vmem:[#allocation5 + $0x1300] sm:$0xff]
    %v760 = vld [vmem:[#allocation5 + $0x1308] sm:$0xff]
    %v761 = vld [vmem:[#allocation5 + $0x1310] sm:$0xff]
    %v762 = vld [vmem:[#allocation5 + $0x1318] sm:$0xff]
    %v763 = vld [vmem:[#allocation5 + $0x1320] sm:$0xff]
    %v764 = vld [vmem:[#allocation5 + $0x1328] sm:$0xff]
    %v765 = vld [vmem:[#allocation5 + $0x1330] sm:$0xff]
    %v766 = vld [vmem:[#allocation5 + $0x1338] sm:$0xff]
    %v767 = vld [vmem:[#allocation5 + $0x1340] sm:$0xff]
    %v768 = vld [vmem:[#allocation5 + $0x1348] sm:$0xff]
    %v769 = vld [vmem:[#allocation5 + $0x1350] sm:$0xff]
    %v770 = vld [vmem:[#allocation5 + $0x1358] sm:$0xff]
    %v771 = vld [vmem:[#allocation5 + $0x1360] sm:$0xff]
    %v772 = vld [vmem:[#allocation5 + $0x1368] sm:$0xff]
    %v773 = vld [vmem:[#allocation5 + $0x1370] sm:$0xff]
    %v774 = vld [vmem:[#allocation5 + $0x1378] sm:$0xff]
    %v775 = vld [vmem:[#allocation5 + $0x1380] sm:$0xff]
    %v776 = vld [vmem:[#allocation5 + $0x1388] sm:$0xff]
    %v777 = vld [vmem:[#allocation5 + $0x1390] sm:$0xff]
    %v778 = vld [vmem:[#allocation5 + $0x1398] sm:$0xff]
    %v779 = vld [vmem:[#allocation5 + $0x13a0] sm:$0xff]
    %v780 = vld [vmem:[#allocation5 + $0x13a8] sm:$0xff]
    %v781 = vld [vmem:[#allocation5 + $0x13b0] sm:$0xff]
    %v782 = vld [vmem:[#allocation5 + $0x13b8] sm:$0xff]
    %v783 = vld [vmem:[#allocation5 + $0x13c0] sm:$0xff]
    %v784 = vld [vmem:[#allocation5 + $0x13c8] sm:$0xff]
    %v785 = vld [vmem:[#allocation5 + $0x13d0] sm:$0xff]
    %v786 = vld [vmem:[#allocation5 + $0x13d8] sm:$0xff]
    %v787 = vld [vmem:[#allocation5 + $0x13e0] sm:$0xff]
    %v788 = vld [vmem:[#allocation5 + $0x13e8] sm:$0xff]
    %v789 = vld [vmem:[#allocation5 + $0x13f0] sm:$0xff]
    %v790 = vld [vmem:[#allocation5 + $0x13f8] sm:$0xff]
    %v791 = vld [vmem:[#allocation5 + $0x1400] sm:$0xff]
    %v792 = vld [vmem:[#allocation5 + $0x1408] sm:$0xff]
    %v793 = vld [vmem:[#allocation5 + $0x1410] sm:$0xff]
    %v794 = vld [vmem:[#allocation5 + $0x1418] sm:$0xff]
    %v795 = vld [vmem:[#allocation5 + $0x1420] sm:$0xff]
    %v796 = vld [vmem:[#allocation5 + $0x1428] sm:$0xff]
    %v797 = vld [vmem:[#allocation5 + $0x1430] sm:$0xff]
    %v798 = vld [vmem:[#allocation5 + $0x1438] sm:$0xff]
    %v799 = vld [vmem:[#allocation5 + $0x1440] sm:$0xff]
    %v800 = vld [vmem:[#allocation5 + $0x1448] sm:$0xff]
    %v801 = vld [vmem:[#allocation5 + $0x1450] sm:$0xff]
    %v802 = vld [vmem:[#allocation5 + $0x1458] sm:$0xff]
    %v803 = vld [vmem:[#allocation5 + $0x1460] sm:$0xff]
    %v804 = vld [vmem:[#allocation5 + $0x1468] sm:$0xff]
    %v805 = vld [vmem:[#allocation5 + $0x1470] sm:$0xff]
    %v806 = vld [vmem:[#allocation5 + $0x1478] sm:$0xff]
    %v807 = vld [vmem:[#allocation5 + $0x1480] sm:$0xff]
    %v808 = vld [vmem:[#allocation5 + $0x1488] sm:$0xff]
    %v809 = vld [vmem:[#allocation5 + $0x1490] sm:$0xff]
    %v810 = vld [vmem:[#allocation5 + $0x1498] sm:$0xff]
    %v811 = vld [vmem:[#allocation5 + $0x14a0] sm:$0xff]
    %v812 = vld [vmem:[#allocation5 + $0x14a8] sm:$0xff]
    %v813 = vld [vmem:[#allocation5 + $0x14b0] sm:$0xff]
    %v814 = vld [vmem:[#allocation5 + $0x14b8] sm:$0xff]
    %v815 = vld [vmem:[#allocation5 + $0x14c0] sm:$0xff]
    %v816 = vld [vmem:[#allocation5 + $0x14c8] sm:$0xff]
    %v817 = vld [vmem:[#allocation5 + $0x14d0] sm:$0xff]
    %v818 = vld [vmem:[#allocation5 + $0x14d8] sm:$0xff]
    %v819 = vld [vmem:[#allocation5 + $0x14e0] sm:$0xff]
    %v820 = vld [vmem:[#allocation5 + $0x14e8] sm:$0xff]
    %v821 = vld [vmem:[#allocation5 + $0x14f0] sm:$0xff]
    %v822 = vld [vmem:[#allocation5 + $0x14f8] sm:$0xff]
    %v823 = vld [vmem:[#allocation5 + $0x1500] sm:$0xff]
    %v824 = vld [vmem:[#allocation5 + $0x1508] sm:$0xff]
    %v825 = vld [vmem:[#allocation5 + $0x1510] sm:$0xff]
    %v826 = vld [vmem:[#allocation5 + $0x1518] sm:$0xff]
    %v827 = vld [vmem:[#allocation5 + $0x1520] sm:$0xff]
    %v828 = vld [vmem:[#allocation5 + $0x1528] sm:$0xff]
    %v829 = vld [vmem:[#allocation5 + $0x1530] sm:$0xff]
    %v830 = vld [vmem:[#allocation5 + $0x1538] sm:$0xff]
    %v831 = vld [vmem:[#allocation5 + $0x1540] sm:$0xff]
    %v832 = vld [vmem:[#allocation5 + $0x1548] sm:$0xff]
    %v833 = vld [vmem:[#allocation5 + $0x1550] sm:$0xff]
    %v834 = vld [vmem:[#allocation5 + $0x1558] sm:$0xff]
    %v835 = vld [vmem:[#allocation5 + $0x1560] sm:$0xff]
    %v836 = vld [vmem:[#allocation5 + $0x1568] sm:$0xff]
    %v837 = vld [vmem:[#allocation5 + $0x1570] sm:$0xff]
    %v838 = vld [vmem:[#allocation5 + $0x1578] sm:$0xff]
    %v839 = vld [vmem:[#allocation5 + $0x1580] sm:$0xff]
    %v840 = vld [vmem:[#allocation5 + $0x1588] sm:$0xff]
    %v841 = vld [vmem:[#allocation5 + $0x1590] sm:$0xff]
    %v842 = vld [vmem:[#allocation5 + $0x1598] sm:$0xff]
    %v843 = vld [vmem:[#allocation5 + $0x15a0] sm:$0xff]
    %v844 = vld [vmem:[#allocation5 + $0x15a8] sm:$0xff]
    %v845 = vld [vmem:[#allocation5 + $0x15b0] sm:$0xff]
    %v846 = vld [vmem:[#allocation5 + $0x15b8] sm:$0xff]
    %v847 = vld [vmem:[#allocation5 + $0x15c0] sm:$0xff]
    %v848 = vld [vmem:[#allocation5 + $0x15c8] sm:$0xff]
    %v849 = vld [vmem:[#allocation5 + $0x15d0] sm:$0xff]
    %v850 = vld [vmem:[#allocation5 + $0x15d8] sm:$0xff]
    %v851 = vld [vmem:[#allocation5 + $0x15e0] sm:$0xff]
    %v852 = vld [vmem:[#allocation5 + $0x15e8] sm:$0xff]
    %v853 = vld [vmem:[#allocation5 + $0x15f0] sm:$0xff]
    %v854 = vld [vmem:[#allocation5 + $0x15f8] sm:$0xff]
    %v855 = vld [vmem:[#allocation5 + $0x1600] sm:$0xff]
    %v856 = vld [vmem:[#allocation5 + $0x1608] sm:$0xff]
    %v857 = vld [vmem:[#allocation5 + $0x1610] sm:$0xff]
    %v858 = vld [vmem:[#allocation5 + $0x1618] sm:$0xff]
    %v859 = vld [vmem:[#allocation5 + $0x1620] sm:$0xff]
    %v860 = vld [vmem:[#allocation5 + $0x1628] sm:$0xff]
    %v861 = vld [vmem:[#allocation5 + $0x1630] sm:$0xff]
    %v862 = vld [vmem:[#allocation5 + $0x1638] sm:$0xff]
    %v863 = vld [vmem:[#allocation5 + $0x1640] sm:$0xff]
    %v864 = vld [vmem:[#allocation5 + $0x1648] sm:$0xff]
    %v865 = vld [vmem:[#allocation5 + $0x1650] sm:$0xff]
    %v866 = vld [vmem:[#allocation5 + $0x1658] sm:$0xff]
    %v867 = vld [vmem:[#allocation5 + $0x1660] sm:$0xff]
    %v868 = vld [vmem:[#allocation5 + $0x1668] sm:$0xff]
    %v869 = vld [vmem:[#allocation5 + $0x1670] sm:$0xff]
    %v870 = vld [vmem:[#allocation5 + $0x1678] sm:$0xff]
    %v871 = vld [vmem:[#allocation5 + $0x1680] sm:$0xff]
    %v872 = vld [vmem:[#allocation5 + $0x1688] sm:$0xff]
    %v873 = vld [vmem:[#allocation5 + $0x1690] sm:$0xff]
    %v874 = vld [vmem:[#allocation5 + $0x1698] sm:$0xff]
    %v875 = vld [vmem:[#allocation5 + $0x16a0] sm:$0xff]
    %v876 = vld [vmem:[#allocation5 + $0x16a8] sm:$0xff]
    %v877 = vld [vmem:[#allocation5 + $0x16b0] sm:$0xff]
    %v878 = vld [vmem:[#allocation5 + $0x16b8] sm:$0xff]
    %v879 = vld [vmem:[#allocation5 + $0x16c0] sm:$0xff]
    %v880 = vld [vmem:[#allocation5 + $0x16c8] sm:$0xff]
    %v881 = vld [vmem:[#allocation5 + $0x16d0] sm:$0xff]
    %v882 = vld [vmem:[#allocation5 + $0x16d8] sm:$0xff]
    %v883 = vld [vmem:[#allocation5 + $0x16e0] sm:$0xff]
    %v884 = vld [vmem:[#allocation5 + $0x16e8] sm:$0xff]
    %v885 = vld [vmem:[#allocation5 + $0x16f0] sm:$0xff]
    %v886 = vld [vmem:[#allocation5 + $0x16f8] sm:$0xff]
    %v887 = vld [vmem:[#allocation5 + $0x1700] sm:$0xff]
    %v888 = vld [vmem:[#allocation5 + $0x1708] sm:$0xff]
    %v889 = vld [vmem:[#allocation5 + $0x1710] sm:$0xff]
    %v890 = vld [vmem:[#allocation5 + $0x1718] sm:$0xff]
    %v891 = vld [vmem:[#allocation5 + $0x1720] sm:$0xff]
    %v892 = vld [vmem:[#allocation5 + $0x1728] sm:$0xff]
    %v893 = vld [vmem:[#allocation5 + $0x1730] sm:$0xff]
    %v894 = vld [vmem:[#allocation5 + $0x1738] sm:$0xff]
    %v895 = vld [vmem:[#allocation5 + $0x1740] sm:$0xff]
    %v896 = vld [vmem:[#allocation5 + $0x1748] sm:$0xff]
    %v897 = vld [vmem:[#allocation5 + $0x1750] sm:$0xff]
    %v898 = vld [vmem:[#allocation5 + $0x1758] sm:$0xff]
    %v899 = vld [vmem:[#allocation5 + $0x1760] sm:$0xff]
    %v900 = vld [vmem:[#allocation5 + $0x1768] sm:$0xff]
    %v901 = vld [vmem:[#allocation5 + $0x1770] sm:$0xff]
    %v902 = vld [vmem:[#allocation5 + $0x1778] sm:$0xff]
    %v903 = vld [vmem:[#allocation5 + $0x1780] sm:$0xff]
    %v904 = vld [vmem:[#allocation5 + $0x1788] sm:$0xff]
    %v905 = vld [vmem:[#allocation5 + $0x1790] sm:$0xff]
    %v906 = vld [vmem:[#allocation5 + $0x1798] sm:$0xff]
    %v907 = vld [vmem:[#allocation5 + $0x17a0] sm:$0xff]
    %v908 = vld [vmem:[#allocation5 + $0x17a8] sm:$0xff]
    %v909 = vld [vmem:[#allocation5 + $0x17b0] sm:$0xff]
    %v910 = vld [vmem:[#allocation5 + $0x17b8] sm:$0xff]
    %v911 = vld [vmem:[#allocation5 + $0x17c0] sm:$0xff]
    %v912 = vld [vmem:[#allocation5 + $0x17c8] sm:$0xff]
    %v913 = vld [vmem:[#allocation5 + $0x17d0] sm:$0xff]
    %v914 = vld [vmem:[#allocation5 + $0x17d8] sm:$0xff]
    %v915 = vld [vmem:[#allocation5 + $0x17e0] sm:$0xff]
    %v916 = vld [vmem:[#allocation5 + $0x17e8] sm:$0xff]
    %v917 = vld [vmem:[#allocation5 + $0x17f0] sm:$0xff]
    %v918 = vld [vmem:[#allocation5 + $0x17f8] sm:$0xff]
    %v919 = vld [vmem:[#allocation5 + $0x1800] sm:$0xff]
    %v920 = vld [vmem:[#allocation5 + $0x1808] sm:$0xff]
    %v921 = vld [vmem:[#allocation5 + $0x1810] sm:$0xff]
    %v922 = vld [vmem:[#allocation5 + $0x1818] sm:$0xff]
    %v923 = vld [vmem:[#allocation5 + $0x1820] sm:$0xff]
    %v924 = vld [vmem:[#allocation5 + $0x1828] sm:$0xff]
    %v925 = vld [vmem:[#allocation5 + $0x1830] sm:$0xff]
    %v926 = vld [vmem:[#allocation5 + $0x1838] sm:$0xff]
    %v927 = vld [vmem:[#allocation5 + $0x1840] sm:$0xff]
    %v928 = vld [vmem:[#allocation5 + $0x1848] sm:$0xff]
    %v929 = vld [vmem:[#allocation5 + $0x1850] sm:$0xff]
    %v930 = vld [vmem:[#allocation5 + $0x1858] sm:$0xff]
    %v931 = vld [vmem:[#allocation5 + $0x1860] sm:$0xff]
    %v932 = vld [vmem:[#allocation5 + $0x1868] sm:$0xff]
    %v933 = vld [vmem:[#allocation5 + $0x1870] sm:$0xff]
    %v934 = vld [vmem:[#allocation5 + $0x1878] sm:$0xff]
    %v935 = vld [vmem:[#allocation5 + $0x1880] sm:$0xff]
    %v936 = vld [vmem:[#allocation5 + $0x1888] sm:$0xff]
    %v937 = vld [vmem:[#allocation5 + $0x1890] sm:$0xff]
    %v938 = vld [vmem:[#allocation5 + $0x1898] sm:$0xff]
    %v939 = vld [vmem:[#allocation5 + $0x18a0] sm:$0xff]
    %v940 = vld [vmem:[#allocation5 + $0x18a8] sm:$0xff]
    %v941 = vld [vmem:[#allocation5 + $0x18b0] sm:$0xff]
    %v942 = vld [vmem:[#allocation5 + $0x18b8] sm:$0xff]
    %v943 = vld [vmem:[#allocation5 + $0x18c0] sm:$0xff]
    %v944 = vld [vmem:[#allocation5 + $0x18c8] sm:$0xff]
    %v945 = vld [vmem:[#allocation5 + $0x18d0] sm:$0xff]
    %v946 = vld [vmem:[#allocation5 + $0x18d8] sm:$0xff]
    %v947 = vld [vmem:[#allocation5 + $0x18e0] sm:$0xff]
    %v948 = vld [vmem:[#allocation5 + $0x18e8] sm:$0xff]
    %v949 = vld [vmem:[#allocation5 + $0x18f0] sm:$0xff]
    %v950 = vld [vmem:[#allocation5 + $0x18f8] sm:$0xff]
    %v951 = vld [vmem:[#allocation5 + $0x1900] sm:$0xff]
    %v952 = vld [vmem:[#allocation5 + $0x1908] sm:$0xff]
    %v953 = vld [vmem:[#allocation5 + $0x1910] sm:$0xff]
    %v954 = vld [vmem:[#allocation5 + $0x1918] sm:$0xff]
    %v955 = vld [vmem:[#allocation5 + $0x1920] sm:$0xff]
    %v956 = vld [vmem:[#allocation5 + $0x1928] sm:$0xff]
    %v957 = vld [vmem:[#allocation5 + $0x1930] sm:$0xff]
    %v958 = vld [vmem:[#allocation5 + $0x1938] sm:$0xff]
    %v959 = vld [vmem:[#allocation5 + $0x1940] sm:$0xff]
    %v960 = vld [vmem:[#allocation5 + $0x1948] sm:$0xff]
    %v961 = vld [vmem:[#allocation5 + $0x1950] sm:$0xff]
    %v962 = vld [vmem:[#allocation5 + $0x1958] sm:$0xff]
    %v963 = vld [vmem:[#allocation5 + $0x1960] sm:$0xff]
    %v964 = vld [vmem:[#allocation5 + $0x1968] sm:$0xff]
    %v965 = vld [vmem:[#allocation5 + $0x1970] sm:$0xff]
    %v966 = vld [vmem:[#allocation5 + $0x1978] sm:$0xff]
    %v967 = vld [vmem:[#allocation5 + $0x1980] sm:$0xff]
    %v968 = vld [vmem:[#allocation5 + $0x1988] sm:$0xff]
    %v969 = vld [vmem:[#allocation5 + $0x1990] sm:$0xff]
    %v970 = vld [vmem:[#allocation5 + $0x1998] sm:$0xff]
    %v971 = vld [vmem:[#allocation5 + $0x19a0] sm:$0xff]
    %v972 = vld [vmem:[#allocation5 + $0x19a8] sm:$0xff]
    %v973 = vld [vmem:[#allocation5 + $0x19b0] sm:$0xff]
    %v974 = vld [vmem:[#allocation5 + $0x19b8] sm:$0xff]
    %v975 = vld [vmem:[#allocation5 + $0x19c0] sm:$0xff]
    %v976 = vld [vmem:[#allocation5 + $0x19c8] sm:$0xff]
    %v977 = vld [vmem:[#allocation5 + $0x19d0] sm:$0xff]
    %v978 = vld [vmem:[#allocation5 + $0x19d8] sm:$0xff]
    %v979 = vld [vmem:[#allocation5 + $0x19e0] sm:$0xff]
    %v980 = vld [vmem:[#allocation5 + $0x19e8] sm:$0xff]
    %v981 = vld [vmem:[#allocation5 + $0x19f0] sm:$0xff]
    %v982 = vld [vmem:[#allocation5 + $0x19f8] sm:$0xff]
    %v983 = vld [vmem:[#allocation5 + $0x1a00] sm:$0xff]
    %v984 = vld [vmem:[#allocation5 + $0x1a08] sm:$0xff]
    %v985 = vld [vmem:[#allocation5 + $0x1a10] sm:$0xff]
    %v986 = vld [vmem:[#allocation5 + $0x1a18] sm:$0xff]
    %v987 = vld [vmem:[#allocation5 + $0x1a20] sm:$0xff]
    %v988 = vld [vmem:[#allocation5 + $0x1a28] sm:$0xff]
    %v989 = vld [vmem:[#allocation5 + $0x1a30] sm:$0xff]
    %v990 = vld [vmem:[#allocation5 + $0x1a38] sm:$0xff]
    %v991 = vld [vmem:[#allocation5 + $0x1a40] sm:$0xff]
    %v992 = vld [vmem:[#allocation5 + $0x1a48] sm:$0xff]
    %v993 = vld [vmem:[#allocation5 + $0x1a50] sm:$0xff]
    %v994 = vld [vmem:[#allocation5 + $0x1a58] sm:$0xff]
    %v995 = vld [vmem:[#allocation5 + $0x1a60] sm:$0xff]
    %v996 = vld [vmem:[#allocation5 + $0x1a68] sm:$0xff]
    %v997 = vld [vmem:[#allocation5 + $0x1a70] sm:$0xff]
    %v998 = vld [vmem:[#allocation5 + $0x1a78] sm:$0xff]
    %v999 = vld [vmem:[#allocation5 + $0x1a80] sm:$0xff]
    %v1000 = vld [vmem:[#allocation5 + $0x1a88] sm:$0xff]
    %v1001 = vld [vmem:[#allocation5 + $0x1a90] sm:$0xff]
    %v1002 = vld [vmem:[#allocation5 + $0x1a98] sm:$0xff]
    %v1003 = vld [vmem:[#allocation5 + $0x1aa0] sm:$0xff]
    %v1004 = vld [vmem:[#allocation5 + $0x1aa8] sm:$0xff]
    %v1005 = vld [vmem:[#allocation5 + $0x1ab0] sm:$0xff]
    %v1006 = vld [vmem:[#allocation5 + $0x1ab8] sm:$0xff]
    %v1007 = vld [vmem:[#allocation5 + $0x1ac0] sm:$0xff]
    %v1008 = vld [vmem:[#allocation5 + $0x1ac8] sm:$0xff]
    %v1009 = vld [vmem:[#allocation5 + $0x1ad0] sm:$0xff]
    %v1010 = vld [vmem:[#allocation5 + $0x1ad8] sm:$0xff]
    %v1011 = vld [vmem:[#allocation5 + $0x1ae0] sm:$0xff]
    %v1012 = vld [vmem:[#allocation5 + $0x1ae8] sm:$0xff]
    %v1013 = vld [vmem:[#allocation5 + $0x1af0] sm:$0xff]
    %v1014 = vld [vmem:[#allocation5 + $0x1af8] sm:$0xff]
    %v1015 = vld [vmem:[#allocation5 + $0x1b00] sm:$0xff]
    %v1016 = vld [vmem:[#allocation5 + $0x1b08] sm:$0xff]
    %v1017 = vld [vmem:[#allocation5 + $0x1b10] sm:$0xff]
    %v1018 = vld [vmem:[#allocation5 + $0x1b18] sm:$0xff]
    %v1019 = vld [vmem:[#allocation5 + $0x1b20] sm:$0xff]
    %v1020 = vld [vmem:[#allocation5 + $0x1b28] sm:$0xff]
    %v1021 = vld [vmem:[#allocation5 + $0x1b30] sm:$0xff]
    %v1022 = vld [vmem:[#allocation5 + $0x1b38] sm:$0xff]
    %v1023 = vld [vmem:[#allocation5 + $0x1b40] sm:$0xff]
    %v1024 = vld [vmem:[#allocation5 + $0x1b48] sm:$0xff]
    %v1025 = vld [vmem:[#allocation5 + $0x1b50] sm:$0xff]
    %v1026 = vld [vmem:[#allocation5 + $0x1b58] sm:$0xff]
    %v1027 = vld [vmem:[#allocation5 + $0x1b60] sm:$0xff]
    %v1028 = vld [vmem:[#allocation5 + $0x1b68] sm:$0xff]
    %v1029 = vld [vmem:[#allocation5 + $0x1b70] sm:$0xff]
    %v1030 = vld [vmem:[#allocation5 + $0x1b78] sm:$0xff]
    %v1031 = vld [vmem:[#allocation5 + $0x1b80] sm:$0xff]
    %v1032 = vld [vmem:[#allocation5 + $0x1b88] sm:$0xff]
    %v1033 = vld [vmem:[#allocation5 + $0x1b90] sm:$0xff]
    %v1034 = vld [vmem:[#allocation5 + $0x1b98] sm:$0xff]
    %v1035 = vld [vmem:[#allocation5 + $0x1ba0] sm:$0xff]
    %v1036 = vld [vmem:[#allocation5 + $0x1ba8] sm:$0xff]
    %v1037 = vld [vmem:[#allocation5 + $0x1bb0] sm:$0xff]
    %v1038 = vld [vmem:[#allocation5 + $0x1bb8] sm:$0xff]
    %v1039 = vld [vmem:[#allocation5 + $0x1bc0] sm:$0xff]
    %v1040 = vld [vmem:[#allocation5 + $0x1bc8] sm:$0xff]
    %v1041 = vld [vmem:[#allocation5 + $0x1bd0] sm:$0xff]
    %v1042 = vld [vmem:[#allocation5 + $0x1bd8] sm:$0xff]
    %v1043 = vld [vmem:[#allocation5 + $0x1be0] sm:$0xff]
    %v1044 = vld [vmem:[#allocation5 + $0x1be8] sm:$0xff]
    %v1045 = vld [vmem:[#allocation5 + $0x1bf0] sm:$0xff]
    %v1046 = vld [vmem:[#allocation5 + $0x1bf8] sm:$0xff]
    %v1047 = vld [vmem:[#allocation5 + $0x1c00] sm:$0xff]
    %v1048 = vld [vmem:[#allocation5 + $0x1c08] sm:$0xff]
    %v1049 = vld [vmem:[#allocation5 + $0x1c10] sm:$0xff]
    %v1050 = vld [vmem:[#allocation5 + $0x1c18] sm:$0xff]
    %v1051 = vld [vmem:[#allocation5 + $0x1c20] sm:$0xff]
    %v1052 = vld [vmem:[#allocation5 + $0x1c28] sm:$0xff]
    %v1053 = vld [vmem:[#allocation5 + $0x1c30] sm:$0xff]
    %v1054 = vld [vmem:[#allocation5 + $0x1c38] sm:$0xff]
    %v1055 = vld [vmem:[#allocation5 + $0x1c40] sm:$0xff]
    %v1056 = vld [vmem:[#allocation5 + $0x1c48] sm:$0xff]
    %v1057 = vld [vmem:[#allocation5 + $0x1c50] sm:$0xff]
    %v1058 = vld [vmem:[#allocation5 + $0x1c58] sm:$0xff]
    %v1059 = vld [vmem:[#allocation5 + $0x1c60] sm:$0xff]
    %v1060 = vld [vmem:[#allocation5 + $0x1c68] sm:$0xff]
    %v1061 = vld [vmem:[#allocation5 + $0x1c70] sm:$0xff]
    %v1062 = vld [vmem:[#allocation5 + $0x1c78] sm:$0xff]
    %v1063 = vld [vmem:[#allocation5 + $0x1c80] sm:$0xff]
    %v1064 = vld [vmem:[#allocation5 + $0x1c88] sm:$0xff]
    %v1065 = vld [vmem:[#allocation5 + $0x1c90] sm:$0xff]
    %v1066 = vld [vmem:[#allocation5 + $0x1c98] sm:$0xff]
    %v1067 = vld [vmem:[#allocation5 + $0x1ca0] sm:$0xff]
    %v1068 = vld [vmem:[#allocation5 + $0x1ca8] sm:$0xff]
    %v1069 = vld [vmem:[#allocation5 + $0x1cb0] sm:$0xff]
    %v1070 = vld [vmem:[#allocation5 + $0x1cb8] sm:$0xff]
    %v1071 = vld [vmem:[#allocation5 + $0x1cc0] sm:$0xff]
    %v1072 = vld [vmem:[#allocation5 + $0x1cc8] sm:$0xff]
    %v1073 = vld [vmem:[#allocation5 + $0x1cd0] sm:$0xff]
    %v1074 = vld [vmem:[#allocation5 + $0x1cd8] sm:$0xff]
    %v1075 = vld [vmem:[#allocation5 + $0x1ce0] sm:$0xff]
    %v1076 = vld [vmem:[#allocation5 + $0x1ce8] sm:$0xff]
    %v1077 = vld [vmem:[#allocation5 + $0x1cf0] sm:$0xff]
    %v1078 = vld [vmem:[#allocation5 + $0x1cf8] sm:$0xff]
    %v1079 = vld [vmem:[#allocation5 + $0x1d00] sm:$0xff]
    %v1080 = vld [vmem:[#allocation5 + $0x1d08] sm:$0xff]
    %v1081 = vld [vmem:[#allocation5 + $0x1d10] sm:$0xff]
    %v1082 = vld [vmem:[#allocation5 + $0x1d18] sm:$0xff]
    %v1083 = vld [vmem:[#allocation5 + $0x1d20] sm:$0xff]
    %v1084 = vld [vmem:[#allocation5 + $0x1d28] sm:$0xff]
    %v1085 = vld [vmem:[#allocation5 + $0x1d30] sm:$0xff]
    %v1086 = vld [vmem:[#allocation5 + $0x1d38] sm:$0xff]
    %v1087 = vld [vmem:[#allocation5 + $0x1d40] sm:$0xff]
    %v1088 = vld [vmem:[#allocation5 + $0x1d48] sm:$0xff]
    %v1089 = vld [vmem:[#allocation5 + $0x1d50] sm:$0xff]
    %v1090 = vld [vmem:[#allocation5 + $0x1d58] sm:$0xff]
    %v1091 = vld [vmem:[#allocation5 + $0x1d60] sm:$0xff]
    %v1092 = vld [vmem:[#allocation5 + $0x1d68] sm:$0xff]
    %v1093 = vld [vmem:[#allocation5 + $0x1d70] sm:$0xff]
    %v1094 = vld [vmem:[#allocation5 + $0x1d78] sm:$0xff]
    %v1095 = vld [vmem:[#allocation5 + $0x1d80] sm:$0xff]
    %v1096 = vld [vmem:[#allocation5 + $0x1d88] sm:$0xff]
    %v1097 = vld [vmem:[#allocation5 + $0x1d90] sm:$0xff]
    %v1098 = vld [vmem:[#allocation5 + $0x1d98] sm:$0xff]
    %v1099 = vld [vmem:[#allocation5 + $0x1da0] sm:$0xff]
    %v1100 = vld [vmem:[#allocation5 + $0x1da8] sm:$0xff]
    %v1101 = vld [vmem:[#allocation5 + $0x1db0] sm:$0xff]
    %v1102 = vld [vmem:[#allocation5 + $0x1db8] sm:$0xff]
    %v1103 = vld [vmem:[#allocation5 + $0x1dc0] sm:$0xff]
    %v1104 = vld [vmem:[#allocation5 + $0x1dc8] sm:$0xff]
    %v1105 = vld [vmem:[#allocation5 + $0x1dd0] sm:$0xff]
    %v1106 = vld [vmem:[#allocation5 + $0x1dd8] sm:$0xff]
    %v1107 = vld [vmem:[#allocation5 + $0x1de0] sm:$0xff]
    %v1108 = vld [vmem:[#allocation5 + $0x1de8] sm:$0xff]
    %v1109 = vld [vmem:[#allocation5 + $0x1df0] sm:$0xff]
    %v1110 = vld [vmem:[#allocation5 + $0x1df8] sm:$0xff]
    %v1111 = vld [vmem:[#allocation5 + $0x1e00] sm:$0xff]
    %v1112 = vld [vmem:[#allocation5 + $0x1e08] sm:$0xff]
    %v1113 = vld [vmem:[#allocation5 + $0x1e10] sm:$0xff]
    %v1114 = vld [vmem:[#allocation5 + $0x1e18] sm:$0xff]
    %v1115 = vld [vmem:[#allocation5 + $0x1e20] sm:$0xff]
    %v1116 = vld [vmem:[#allocation5 + $0x1e28] sm:$0xff]
    %v1117 = vld [vmem:[#allocation5 + $0x1e30] sm:$0xff]
    %v1118 = vld [vmem:[#allocation5 + $0x1e38] sm:$0xff]
    %v1119 = vld [vmem:[#allocation5 + $0x1e40] sm:$0xff]
    %v1120 = vld [vmem:[#allocation5 + $0x1e48] sm:$0xff]
    %v1121 = vld [vmem:[#allocation5 + $0x1e50] sm:$0xff]
    %v1122 = vld [vmem:[#allocation5 + $0x1e58] sm:$0xff]
    %v1123 = vld [vmem:[#allocation5 + $0x1e60] sm:$0xff]
    %v1124 = vld [vmem:[#allocation5 + $0x1e68] sm:$0xff]
    %v1125 = vld [vmem:[#allocation5 + $0x1e70] sm:$0xff]
    %v1126 = vld [vmem:[#allocation5 + $0x1e78] sm:$0xff]
    %v1127 = vld [vmem:[#allocation5 + $0x1e80] sm:$0xff]
    %v1128 = vld [vmem:[#allocation5 + $0x1e88] sm:$0xff]
    %v1129 = vld [vmem:[#allocation5 + $0x1e90] sm:$0xff]
    %v1130 = vld [vmem:[#allocation5 + $0x1e98] sm:$0xff]
    %v1131 = vld [vmem:[#allocation5 + $0x1ea0] sm:$0xff]
    %v1132 = vld [vmem:[#allocation5 + $0x1ea8] sm:$0xff]
    %v1133 = vld [vmem:[#allocation5 + $0x1eb0] sm:$0xff]
    %v1134 = vld [vmem:[#allocation5 + $0x1eb8] sm:$0xff]
    %v1135 = vld [vmem:[#allocation5 + $0x1ec0] sm:$0xff]
    %v1136 = vld [vmem:[#allocation5 + $0x1ec8] sm:$0xff]
    %v1137 = vld [vmem:[#allocation5 + $0x1ed0] sm:$0xff]
    %v1138 = vld [vmem:[#allocation5 + $0x1ed8] sm:$0xff]
    %v1139 = vld [vmem:[#allocation5 + $0x1ee0] sm:$0xff]
    %v1140 = vld [vmem:[#allocation5 + $0x1ee8] sm:$0xff]
    %v1141 = vld [vmem:[#allocation5 + $0x1ef0] sm:$0xff]
    %v1142 = vld [vmem:[#allocation5 + $0x1ef8] sm:$0xff]
    %v1143 = vld [vmem:[#allocation5 + $0x1f00] sm:$0xff]
    %v1144 = vld [vmem:[#allocation5 + $0x1f08] sm:$0xff]
    %v1145 = vld [vmem:[#allocation5 + $0x1f10] sm:$0xff]
    %v1146 = vld [vmem:[#allocation5 + $0x1f18] sm:$0xff]
    %v1147 = vld [vmem:[#allocation5 + $0x1f20] sm:$0xff]
    %v1148 = vld [vmem:[#allocation5 + $0x1f28] sm:$0xff]
    %v1149 = vld [vmem:[#allocation5 + $0x1f30] sm:$0xff]
    %v1150 = vld [vmem:[#allocation5 + $0x1f38] sm:$0xff]
    %v1151 = vld [vmem:[#allocation5 + $0x1f40] sm:$0xff]
    %v1152 = vld [vmem:[#allocation5 + $0x1f48] sm:$0xff]
    %v1153 = vld [vmem:[#allocation5 + $0x1f50] sm:$0xff]
    %v1154 = vld [vmem:[#allocation5 + $0x1f58] sm:$0xff]
    %v1155 = vld [vmem:[#allocation5 + $0x1f60] sm:$0xff]
    %v1156 = vld [vmem:[#allocation5 + $0x1f68] sm:$0xff]
    %v1157 = vld [vmem:[#allocation5 + $0x1f70] sm:$0xff]
    %v1158 = vld [vmem:[#allocation5 + $0x1f78] sm:$0xff]
    %v1159 = vld [vmem:[#allocation5 + $0x1f80] sm:$0xff]
    %v1160 = vld [vmem:[#allocation5 + $0x1f88] sm:$0xff]
    %v1161 = vld [vmem:[#allocation5 + $0x1f90] sm:$0xff]
    %v1162 = vld [vmem:[#allocation5 + $0x1f98] sm:$0xff]
    %v1163 = vld [vmem:[#allocation5 + $0x1fa0] sm:$0xff]
    %v1164 = vld [vmem:[#allocation5 + $0x1fa8] sm:$0xff]
    %v1165 = vld [vmem:[#allocation5 + $0x1fb0] sm:$0xff]
    %v1166 = vld [vmem:[#allocation5 + $0x1fb8] sm:$0xff]
    %v1167 = vld [vmem:[#allocation5 + $0x1fc0] sm:$0xff]
    %v1168 = vld [vmem:[#allocation5 + $0x1fc8] sm:$0xff]
    %v1169 = vld [vmem:[#allocation5 + $0x1fd0] sm:$0xff]
    %v1170 = vld [vmem:[#allocation5 + $0x1fd8] sm:$0xff]
    %v1171 = vld [vmem:[#allocation5 + $0x1fe0] sm:$0xff]
    %v1172 = vld [vmem:[#allocation5 + $0x1fe8] sm:$0xff]
    %v1173 = vld [vmem:[#allocation5 + $0x1ff0] sm:$0xff]
    %v1174 = vld [vmem:[#allocation5 + $0x1ff8] sm:$0xff]
    %v1175 = vld [vmem:[#allocation5 + $0x2000] sm:$0xff]
    %v1176 = vld [vmem:[#allocation5 + $0x2008] sm:$0xff]
    %v1177 = vld [vmem:[#allocation5 + $0x2010] sm:$0xff]
    %v1178 = vld [vmem:[#allocation5 + $0x2018] sm:$0xff]
    %v1179 = vld [vmem:[#allocation5 + $0x2020] sm:$0xff]
    %v1180 = vld [vmem:[#allocation5 + $0x2028] sm:$0xff]
    %v1181 = vld [vmem:[#allocation5 + $0x2030] sm:$0xff]
    %v1182 = vld [vmem:[#allocation5 + $0x2038] sm:$0xff]
    %v1183 = vld [vmem:[#allocation5 + $0x2040] sm:$0xff]
    %v1184 = vld [vmem:[#allocation5 + $0x2048] sm:$0xff]
    %v1185 = vld [vmem:[#allocation5 + $0x2050] sm:$0xff]
    %v1186 = vld [vmem:[#allocation5 + $0x2058] sm:$0xff]
    %v1187 = vld [vmem:[#allocation5 + $0x2060] sm:$0xff]
    %v1188 = vld [vmem:[#allocation5 + $0x2068] sm:$0xff]
    %v1189 = vld [vmem:[#allocation5 + $0x2070] sm:$0xff]
    %v1190 = vld [vmem:[#allocation5 + $0x2078] sm:$0xff]
    %v1191 = vld [vmem:[#allocation5 + $0x2080] sm:$0xff]
    %v1192 = vld [vmem:[#allocation5 + $0x2088] sm:$0xff]
    %v1193 = vld [vmem:[#allocation5 + $0x2090] sm:$0xff]
    %v1194 = vld [vmem:[#allocation5 + $0x2098] sm:$0xff]
    %v1195 = vld [vmem:[#allocation5 + $0x20a0] sm:$0xff]
    %v1196 = vld [vmem:[#allocation5 + $0x20a8] sm:$0xff]
    %v1197 = vld [vmem:[#allocation5 + $0x20b0] sm:$0xff]
    %v1198 = vld [vmem:[#allocation5 + $0x20b8] sm:$0xff]
    %v1199 = vld [vmem:[#allocation5 + $0x20c0] sm:$0xff]
    %v1200 = vld [vmem:[#allocation5 + $0x20c8] sm:$0xff]
    %v1201 = vld [vmem:[#allocation5 + $0x20d0] sm:$0xff]
    %v1202 = vld [vmem:[#allocation5 + $0x20d8] sm:$0xff]
    %v1203 = vld [vmem:[#allocation5 + $0x20e0] sm:$0xff]
    %v1204 = vld [vmem:[#allocation5 + $0x20e8] sm:$0xff]
    %v1205 = vld [vmem:[#allocation5 + $0x20f0] sm:$0xff]
    %v1206 = vld [vmem:[#allocation5 + $0x20f8] sm:$0xff]
    %v1207 = vld [vmem:[#allocation5 + $0x2100] sm:$0xff]
    %v1208 = vld [vmem:[#allocation5 + $0x2108] sm:$0xff]
    %v1209 = vld [vmem:[#allocation5 + $0x2110] sm:$0xff]
    %v1210 = vld [vmem:[#allocation5 + $0x2118] sm:$0xff]
    %v1211 = vld [vmem:[#allocation5 + $0x2120] sm:$0xff]
    %v1212 = vld [vmem:[#allocation5 + $0x2128] sm:$0xff]
    %v1213 = vld [vmem:[#allocation5 + $0x2130] sm:$0xff]
    %v1214 = vld [vmem:[#allocation5 + $0x2138] sm:$0xff]
    %v1215 = vld [vmem:[#allocation5 + $0x2140] sm:$0xff]
    %v1216 = vld [vmem:[#allocation5 + $0x2148] sm:$0xff]
    %v1217 = vld [vmem:[#allocation5 + $0x2150] sm:$0xff]
    %v1218 = vld [vmem:[#allocation5 + $0x2158] sm:$0xff]
    %v1219 = vld [vmem:[#allocation5 + $0x2160] sm:$0xff]
    %v1220 = vld [vmem:[#allocation5 + $0x2168] sm:$0xff]
    %v1221 = vld [vmem:[#allocation5 + $0x2170] sm:$0xff]
    %v1222 = vld [vmem:[#allocation5 + $0x2178] sm:$0xff]
    %v1223 = vld [vmem:[#allocation5 + $0x2180] sm:$0xff]
    %v1224 = vld [vmem:[#allocation5 + $0x2188] sm:$0xff]
    %v1225 = vld [vmem:[#allocation5 + $0x2190] sm:$0xff]
    %v1226 = vld [vmem:[#allocation5 + $0x2198] sm:$0xff]
    %v1227 = vld [vmem:[#allocation5 + $0x21a0] sm:$0xff]
    %v1228 = vld [vmem:[#allocation5 + $0x21a8] sm:$0xff]
    %v1229 = vld [vmem:[#allocation5 + $0x21b0] sm:$0xff]
    %v1230 = vld [vmem:[#allocation5 + $0x21b8] sm:$0xff]
    %v1231 = vld [vmem:[#allocation5 + $0x21c0] sm:$0xff]
    %v1232 = vld [vmem:[#allocation5 + $0x21c8] sm:$0xff]
    %v1233 = vld [vmem:[#allocation5 + $0x21d0] sm:$0xff]
    %v1234 = vld [vmem:[#allocation5 + $0x21d8] sm:$0xff]
    %v1235 = vld [vmem:[#allocation5 + $0x21e0] sm:$0xff]
    %v1236 = vld [vmem:[#allocation5 + $0x21e8] sm:$0xff]
    %v1237 = vld [vmem:[#allocation5 + $0x21f0] sm:$0xff]
    %v1238 = vld [vmem:[#allocation5 + $0x21f8] sm:$0xff]
    %v1239 = vld [vmem:[#allocation5 + $0x2200] sm:$0xff]
    %v1240 = vld [vmem:[#allocation5 + $0x2208] sm:$0xff]
    %v1241 = vld [vmem:[#allocation5 + $0x2210] sm:$0xff]
    %v1242 = vld [vmem:[#allocation5 + $0x2218] sm:$0xff]
    %v1243 = vld [vmem:[#allocation5 + $0x2220] sm:$0xff]
    %v1244 = vld [vmem:[#allocation5 + $0x2228] sm:$0xff]
    %v1245 = vld [vmem:[#allocation5 + $0x2230] sm:$0xff]
    %v1246 = vld [vmem:[#allocation5 + $0x2238] sm:$0xff]
    %v1247 = vld [vmem:[#allocation5 + $0x2240] sm:$0xff]
    %v1248 = vld [vmem:[#allocation5 + $0x2248] sm:$0xff]
    %v1249 = vld [vmem:[#allocation5 + $0x2250] sm:$0xff]
    %v1250 = vld [vmem:[#allocation5 + $0x2258] sm:$0xff]
    %v1251 = vld [vmem:[#allocation5 + $0x2260] sm:$0xff]
    %v1252 = vld [vmem:[#allocation5 + $0x2268] sm:$0xff]
    %v1253 = vld [vmem:[#allocation5 + $0x2270] sm:$0xff]
    %v1254 = vld [vmem:[#allocation5 + $0x2278] sm:$0xff]
    %v1255 = vld [vmem:[#allocation5 + $0x2280] sm:$0xff]
    %v1256 = vld [vmem:[#allocation5 + $0x2288] sm:$0xff]
    %v1257 = vld [vmem:[#allocation5 + $0x2290] sm:$0xff]
    %v1258 = vld [vmem:[#allocation5 + $0x2298] sm:$0xff]
    %v1259 = vld [vmem:[#allocation5 + $0x22a0] sm:$0xff]
    %v1260 = vld [vmem:[#allocation5 + $0x22a8] sm:$0xff]
    %v1261 = vld [vmem:[#allocation5 + $0x22b0] sm:$0xff]
    %v1262 = vld [vmem:[#allocation5 + $0x22b8] sm:$0xff]
    %v1263 = vld [vmem:[#allocation5 + $0x22c0] sm:$0xff]
    %v1264 = vld [vmem:[#allocation5 + $0x22c8] sm:$0xff]
    %v1265 = vld [vmem:[#allocation5 + $0x22d0] sm:$0xff]
    %v1266 = vld [vmem:[#allocation5 + $0x22d8] sm:$0xff]
    %v1267 = vld [vmem:[#allocation5 + $0x22e0] sm:$0xff]
    %v1268 = vld [vmem:[#allocation5 + $0x22e8] sm:$0xff]
    %v1269 = vld [vmem:[#allocation5 + $0x22f0] sm:$0xff]
    %v1270 = vld [vmem:[#allocation5 + $0x22f8] sm:$0xff]
    %v1271 = vld [vmem:[#allocation5 + $0x2300] sm:$0xff]
    %v1272 = vld [vmem:[#allocation5 + $0x2308] sm:$0xff]
    %v1273 = vld [vmem:[#allocation5 + $0x2310] sm:$0xff]
    %v1274 = vld [vmem:[#allocation5 + $0x2318] sm:$0xff]
    %v1275 = vld [vmem:[#allocation5 + $0x2320] sm:$0xff]
    %v1276 = vld [vmem:[#allocation5 + $0x2328] sm:$0xff]
    %v1277 = vld [vmem:[#allocation5 + $0x2330] sm:$0xff]
    %v1278 = vld [vmem:[#allocation5 + $0x2338] sm:$0xff]
    %v1279 = vld [vmem:[#allocation5 + $0x2340] sm:$0xff]
    %v1280 = vld [vmem:[#allocation5 + $0x2348] sm:$0xff]
    %v1281 = vld [vmem:[#allocation5 + $0x2350] sm:$0xff]
    %v1282 = vld [vmem:[#allocation5 + $0x2358] sm:$0xff]
    %v1283 = vld [vmem:[#allocation5 + $0x2360] sm:$0xff]
    %v1284 = vld [vmem:[#allocation5 + $0x2368] sm:$0xff]
    %v1285 = vld [vmem:[#allocation5 + $0x2370] sm:$0xff]
    %v1286 = vld [vmem:[#allocation5 + $0x2378] sm:$0xff]
    %v1287 = vld [vmem:[#allocation5 + $0x2380] sm:$0xff]
    %v1288 = vld [vmem:[#allocation5 + $0x2388] sm:$0xff]
    %v1289 = vld [vmem:[#allocation5 + $0x2390] sm:$0xff]
    %v1290 = vld [vmem:[#allocation5 + $0x2398] sm:$0xff]
    %v1291 = vld [vmem:[#allocation5 + $0x23a0] sm:$0xff]
    %v1292 = vld [vmem:[#allocation5 + $0x23a8] sm:$0xff]
    %v1293 = vld [vmem:[#allocation5 + $0x23b0] sm:$0xff]
    %v1294 = vld [vmem:[#allocation5 + $0x23b8] sm:$0xff]
    %v1295 = vld [vmem:[#allocation5 + $0x23c0] sm:$0xff]
    %v1296 = vld [vmem:[#allocation5 + $0x23c8] sm:$0xff]
    %v1297 = vld [vmem:[#allocation5 + $0x23d0] sm:$0xff]
    %v1298 = vld [vmem:[#allocation5 + $0x23d8] sm:$0xff]
    %v1299 = vld [vmem:[#allocation5 + $0x23e0] sm:$0xff]
    %v1300 = vld [vmem:[#allocation5 + $0x23e8] sm:$0xff]
    %v1301 = vld [vmem:[#allocation5 + $0x23f0] sm:$0xff]
    %v1302 = vld [vmem:[#allocation5 + $0x23f8] sm:$0xff]
    %v1303 = vld [vmem:[#allocation7] ss:$4 sm:$0x3f]
    %s1304 = scalar_lea.vmem [#allocation7], 1
    %v1305 = vld [vmem:[%s1304] ss:$4 sm:$0x3f]
    %s1306 = scalar_lea.vmem [#allocation7], 2
    %v1307 = vld [vmem:[%s1306] ss:$4 sm:$0x3f]
    %v1309 = vperm.slane %v1303, 0
    %v1310 = vperm.slane %v1303, 1
    %v1311 = vperm.slane %v1303, 2
    %v1312 = vperm.slane %v1303, 3
    %v1313 = vperm.slane %v1303, 4
    %v1314 = vperm.slane %v1303, 5
    %v2473 = vunpack.c.l.b16 %v151
    %v2474 = vunpack.c.h.b16 %v151
    %v2475 = vunpack.c.l.b16 %v152
    %v2476 = vunpack.c.h.b16 %v152
    %v2477 = vunpack.c.l.b16 %v153
    %v2478 = vunpack.c.h.b16 %v153
    %v2479 = vunpack.c.l.b16 %v154
    %v2480 = vunpack.c.h.b16 %v154
    %v2481 = vunpack.c.l.b16 %v155
    %v2482 = vunpack.c.h.b16 %v155
    %v2483 = vunpack.c.l.b16 %v156
    %v2484 = vunpack.c.h.b16 %v156
    %v2485 = vunpack.c.l.b16 %v157
    %v2486 = vunpack.c.h.b16 %v157
    %v2487 = vunpack.c.l.b16 %v158
    %v2488 = vunpack.c.h.b16 %v158
    %v2489 = vunpack.c.l.b16 %v159
    %v2490 = vunpack.c.h.b16 %v159
    %v2491 = vunpack.c.l.b16 %v160
    %v2492 = vunpack.c.h.b16 %v160
    %v2493 = vunpack.c.l.b16 %v161
    %v2494 = vunpack.c.h.b16 %v161
    %v2495 = vunpack.c.l.b16 %v162
    %v2496 = vunpack.c.h.b16 %v162
    %v2497 = vunpack.c.l.b16 %v163
    %v2498 = vunpack.c.h.b16 %v163
    %v2499 = vunpack.c.l.b16 %v164
    %v2500 = vunpack.c.h.b16 %v164
    %v2501 = vunpack.c.l.b16 %v165
    %v2502 = vunpack.c.h.b16 %v165
    %v2503 = vunpack.c.l.b16 %v166
    %v2504 = vunpack.c.h.b16 %v166
    %v2505 = vunpack.c.l.b16 %v167
    %v2506 = vunpack.c.h.b16 %v167
    %v2507 = vunpack.c.l.b16 %v168
    %v2508 = vunpack.c.h.b16 %v168
    %v2509 = vunpack.c.l.b16 %v169
    %v2510 = vunpack.c.h.b16 %v169
    %v2511 = vunpack.c.l.b16 %v170
    %v2512 = vunpack.c.h.b16 %v170
    %v2513 = vunpack.c.l.b16 %v171
    %v2514 = vunpack.c.h.b16 %v171
    %v2515 = vunpack.c.l.b16 %v172
    %v2516 = vunpack.c.h.b16 %v172
    %v2517 = vunpack.c.l.b16 %v173
    %v2518 = vunpack.c.h.b16 %v173
    %v2519 = vunpack.c.l.b16 %v174
    %v2520 = vunpack.c.h.b16 %v174
    %v2521 = vunpack.c.l.b16 %v175
    %v2522 = vunpack.c.h.b16 %v175
    %v2523 = vunpack.c.l.b16 %v176
    %v2524 = vunpack.c.h.b16 %v176
    %v2525 = vunpack.c.l.b16 %v177
    %v2526 = vunpack.c.h.b16 %v177
    %v2527 = vunpack.c.l.b16 %v178
    %v2528 = vunpack.c.h.b16 %v178
    %v2529 = vunpack.c.l.b16 %v179
    %v2530 = vunpack.c.h.b16 %v179
    %v2531 = vunpack.c.l.b16 %v180
    %v2532 = vunpack.c.h.b16 %v180
    %v2533 = vunpack.c.l.b16 %v181
    %v2534 = vunpack.c.h.b16 %v181
    %v2535 = vunpack.c.l.b16 %v182
    %v2536 = vunpack.c.h.b16 %v182
    %v2537 = vunpack.c.l.b16 %v183
    %v2538 = vunpack.c.h.b16 %v183
    %v2539 = vunpack.c.l.b16 %v184
    %v2540 = vunpack.c.h.b16 %v184
    %v2541 = vunpack.c.l.b16 %v185
    %v2542 = vunpack.c.h.b16 %v185
    %v2543 = vunpack.c.l.b16 %v186
    %v2544 = vunpack.c.h.b16 %v186
    %v2545 = vunpack.c.l.b16 %v187
    %v2546 = vunpack.c.h.b16 %v187
    %v2547 = vunpack.c.l.b16 %v188
    %v2548 = vunpack.c.h.b16 %v188
    %v2549 = vunpack.c.l.b16 %v189
    %v2550 = vunpack.c.h.b16 %v189
    %v2551 = vunpack.c.l.b16 %v190
    %v2552 = vunpack.c.h.b16 %v190
    %v2553 = vunpack.c.l.b16 %v191
    %v2554 = vunpack.c.h.b16 %v191
    %v2555 = vunpack.c.l.b16 %v192
    %v2556 = vunpack.c.h.b16 %v192
    %v2557 = vunpack.c.l.b16 %v193
    %v2558 = vunpack.c.h.b16 %v193
    %v2559 = vunpack.c.l.b16 %v194
    %v2560 = vunpack.c.h.b16 %v194
    %v2561 = vunpack.c.l.b16 %v195
    %v2562 = vunpack.c.h.b16 %v195
    %v2563 = vunpack.c.l.b16 %v196
    %v2564 = vunpack.c.h.b16 %v196
    %v2565 = vunpack.c.l.b16 %v197
    %v2566 = vunpack.c.h.b16 %v197
    %v2567 = vunpack.c.l.b16 %v198
    %v2568 = vunpack.c.h.b16 %v198
    %v2569 = vunpack.c.l.b16 %v199
    %v2570 = vunpack.c.h.b16 %v199
    %v2571 = vunpack.c.l.b16 %v200
    %v2572 = vunpack.c.h.b16 %v200
    %v2573 = vunpack.c.l.b16 %v201
    %v2574 = vunpack.c.h.b16 %v201
    %v2575 = vunpack.c.l.b16 %v202
    %v2576 = vunpack.c.h.b16 %v202
    %v2577 = vunpack.c.l.b16 %v203
    %v2578 = vunpack.c.h.b16 %v203
    %v2579 = vunpack.c.l.b16 %v204
    %v2580 = vunpack.c.h.b16 %v204
    %v2581 = vunpack.c.l.b16 %v205
    %v2582 = vunpack.c.h.b16 %v205
    %v2583 = vunpack.c.l.b16 %v206
    %v2584 = vunpack.c.h.b16 %v206
    %v2585 = vunpack.c.l.b16 %v207
    %v2586 = vunpack.c.h.b16 %v207
    %v2587 = vunpack.c.l.b16 %v208
    %v2588 = vunpack.c.h.b16 %v208
    %v2589 = vunpack.c.l.b16 %v209
    %v2590 = vunpack.c.h.b16 %v209
    %v2591 = vunpack.c.l.b16 %v210
    %v2592 = vunpack.c.h.b16 %v210
    %v2593 = vunpack.c.l.b16 %v211
    %v2594 = vunpack.c.h.b16 %v211
    %v2595 = vunpack.c.l.b16 %v212
    %v2596 = vunpack.c.h.b16 %v212
    %v2597 = vunpack.c.l.b16 %v213
    %v2598 = vunpack.c.h.b16 %v213
    %v2599 = vunpack.c.l.b16 %v214
    %v2600 = vunpack.c.h.b16 %v214
    %v2601 = vunpack.c.l.b16 %v215
    %v2602 = vunpack.c.h.b16 %v215
    %v2603 = vunpack.c.l.b16 %v216
    %v2604 = vunpack.c.h.b16 %v216
    %v2605 = vunpack.c.l.b16 %v217
    %v2606 = vunpack.c.h.b16 %v217
    %v2607 = vunpack.c.l.b16 %v218
    %v2608 = vunpack.c.h.b16 %v218
    %v2609 = vunpack.c.l.b16 %v219
    %v2610 = vunpack.c.h.b16 %v219
    %v2611 = vunpack.c.l.b16 %v220
    %v2612 = vunpack.c.h.b16 %v220
    %v2613 = vunpack.c.l.b16 %v221
    %v2614 = vunpack.c.h.b16 %v221
    %v2615 = vunpack.c.l.b16 %v222
    %v2616 = vunpack.c.h.b16 %v222
    %v2617 = vunpack.c.l.b16 %v223
    %v2618 = vunpack.c.h.b16 %v223
    %v2619 = vunpack.c.l.b16 %v224
    %v2620 = vunpack.c.h.b16 %v224
    %v2621 = vunpack.c.l.b16 %v225
    %v2622 = vunpack.c.h.b16 %v225
    %v2623 = vunpack.c.l.b16 %v226
    %v2624 = vunpack.c.h.b16 %v226
    %v2625 = vunpack.c.l.b16 %v227
    %v2626 = vunpack.c.h.b16 %v227
    %v2627 = vunpack.c.l.b16 %v228
    %v2628 = vunpack.c.h.b16 %v228
    %v2629 = vunpack.c.l.b16 %v229
    %v2630 = vunpack.c.h.b16 %v229
    %v2631 = vunpack.c.l.b16 %v230
    %v2632 = vunpack.c.h.b16 %v230
    %v2633 = vunpack.c.l.b16 %v231
    %v2634 = vunpack.c.h.b16 %v231
    %v2635 = vunpack.c.l.b16 %v232
    %v2636 = vunpack.c.h.b16 %v232
    %v2637 = vunpack.c.l.b16 %v233
    %v2638 = vunpack.c.h.b16 %v233
    %v2639 = vunpack.c.l.b16 %v234
    %v2640 = vunpack.c.h.b16 %v234
    %v2641 = vunpack.c.l.b16 %v235
    %v2642 = vunpack.c.h.b16 %v235
    %v2643 = vunpack.c.l.b16 %v236
    %v2644 = vunpack.c.h.b16 %v236
    %v2645 = vunpack.c.l.b16 %v237
    %v2646 = vunpack.c.h.b16 %v237
    %v2647 = vunpack.c.l.b16 %v238
    %v2648 = vunpack.c.h.b16 %v238
    %v2649 = vunpack.c.l.b16 %v239
    %v2650 = vunpack.c.h.b16 %v239
    %v2651 = vunpack.c.l.b16 %v240
    %v2652 = vunpack.c.h.b16 %v240
    %v2653 = vunpack.c.l.b16 %v241
    %v2654 = vunpack.c.h.b16 %v241
    %v2655 = vunpack.c.l.b16 %v242
    %v2656 = vunpack.c.h.b16 %v242
    %v2657 = vunpack.c.l.b16 %v243
    %v2658 = vunpack.c.h.b16 %v243
    %v2659 = vunpack.c.l.b16 %v244
    %v2660 = vunpack.c.h.b16 %v244
    %v2661 = vunpack.c.l.b16 %v245
    %v2662 = vunpack.c.h.b16 %v245
    %v2663 = vunpack.c.l.b16 %v246
    %v2664 = vunpack.c.h.b16 %v246
    %v2665 = vunpack.c.l.b16 %v247
    %v2666 = vunpack.c.h.b16 %v247
    %v2667 = vunpack.c.l.b16 %v248
    %v2668 = vunpack.c.h.b16 %v248
    %v2669 = vunpack.c.l.b16 %v249
    %v2670 = vunpack.c.h.b16 %v249
    %v2671 = vunpack.c.l.b16 %v250
    %v2672 = vunpack.c.h.b16 %v250
    %v2673 = vunpack.c.l.b16 %v251
    %v2674 = vunpack.c.h.b16 %v251
    %v2675 = vunpack.c.l.b16 %v252
    %v2676 = vunpack.c.h.b16 %v252
    %v2677 = vunpack.c.l.b16 %v253
    %v2678 = vunpack.c.h.b16 %v253
    %v2679 = vunpack.c.l.b16 %v254
    %v2680 = vunpack.c.h.b16 %v254
    %v2681 = vunpack.c.l.b16 %v255
    %v2682 = vunpack.c.h.b16 %v255
    %v2683 = vunpack.c.l.b16 %v256
    %v2684 = vunpack.c.h.b16 %v256
    %v2685 = vunpack.c.l.b16 %v257
    %v2686 = vunpack.c.h.b16 %v257
    %v2687 = vunpack.c.l.b16 %v258
    %v2688 = vunpack.c.h.b16 %v258
    %v2689 = vunpack.c.l.b16 %v259
    %v2690 = vunpack.c.h.b16 %v259
    %v2691 = vunpack.c.l.b16 %v260
    %v2692 = vunpack.c.h.b16 %v260
    %v2693 = vunpack.c.l.b16 %v261
    %v2694 = vunpack.c.h.b16 %v261
    %v2695 = vunpack.c.l.b16 %v262
    %v2696 = vunpack.c.h.b16 %v262
    %v2697 = vunpack.c.l.b16 %v263
    %v2698 = vunpack.c.h.b16 %v263
    %v2699 = vunpack.c.l.b16 %v264
    %v2700 = vunpack.c.h.b16 %v264
    %v2701 = vunpack.c.l.b16 %v265
    %v2702 = vunpack.c.h.b16 %v265
    %v2703 = vunpack.c.l.b16 %v266
    %v2704 = vunpack.c.h.b16 %v266
    %v2705 = vunpack.c.l.b16 %v267
    %v2706 = vunpack.c.h.b16 %v267
    %v2707 = vunpack.c.l.b16 %v268
    %v2708 = vunpack.c.h.b16 %v268
    %v2709 = vunpack.c.l.b16 %v269
    %v2710 = vunpack.c.h.b16 %v269
    %v2711 = vunpack.c.l.b16 %v270
    %v2712 = vunpack.c.h.b16 %v270
    %v2713 = vunpack.c.l.b16 %v271
    %v2714 = vunpack.c.h.b16 %v271
    %v2715 = vunpack.c.l.b16 %v272
    %v2716 = vunpack.c.h.b16 %v272
    %v2717 = vunpack.c.l.b16 %v273
    %v2718 = vunpack.c.h.b16 %v273
    %v2719 = vunpack.c.l.b16 %v274
    %v2720 = vunpack.c.h.b16 %v274
    %v2721 = vunpack.c.l.b16 %v275
    %v2722 = vunpack.c.h.b16 %v275
    %v2723 = vunpack.c.l.b16 %v276
    %v2724 = vunpack.c.h.b16 %v276
    %v2725 = vunpack.c.l.b16 %v277
    %v2726 = vunpack.c.h.b16 %v277
    %v2727 = vunpack.c.l.b16 %v278
    %v2728 = vunpack.c.h.b16 %v278
    %v2729 = vunpack.c.l.b16 %v279
    %v2730 = vunpack.c.h.b16 %v279
    %v2731 = vunpack.c.l.b16 %v280
    %v2732 = vunpack.c.h.b16 %v280
    %v2733 = vunpack.c.l.b16 %v281
    %v2734 = vunpack.c.h.b16 %v281
    %v2735 = vunpack.c.l.b16 %v282
    %v2736 = vunpack.c.h.b16 %v282
    %v2737 = vunpack.c.l.b16 %v283
    %v2738 = vunpack.c.h.b16 %v283
    %v2739 = vunpack.c.l.b16 %v284
    %v2740 = vunpack.c.h.b16 %v284
    %v2741 = vunpack.c.l.b16 %v285
    %v2742 = vunpack.c.h.b16 %v285
    %v2743 = vunpack.c.l.b16 %v286
    %v2744 = vunpack.c.h.b16 %v286
    %v2745 = vunpack.c.l.b16 %v287
    %v2746 = vunpack.c.h.b16 %v287
    %v2747 = vunpack.c.l.b16 %v288
    %v2748 = vunpack.c.h.b16 %v288
    %v2749 = vunpack.c.l.b16 %v289
    %v2750 = vunpack.c.h.b16 %v289
    %v2751 = vunpack.c.l.b16 %v290
    %v2752 = vunpack.c.h.b16 %v290
    %v2753 = vunpack.c.l.b16 %v291
    %v2754 = vunpack.c.h.b16 %v291
    %v2755 = vunpack.c.l.b16 %v292
    %v2756 = vunpack.c.h.b16 %v292
    %v2757 = vunpack.c.l.b16 %v293
    %v2758 = vunpack.c.h.b16 %v293
    %v2759 = vunpack.c.l.b16 %v294
    %v2760 = vunpack.c.h.b16 %v294
    %v2761 = vunpack.c.l.b16 %v295
    %v2762 = vunpack.c.h.b16 %v295
    %v2763 = vunpack.c.l.b16 %v296
    %v2764 = vunpack.c.h.b16 %v296
    %v2765 = vunpack.c.l.b16 %v297
    %v2766 = vunpack.c.h.b16 %v297
    %v2767 = vunpack.c.l.b16 %v298
    %v2768 = vunpack.c.h.b16 %v298
    %v2769 = vunpack.c.l.b16 %v299
    %v2770 = vunpack.c.h.b16 %v299
    %v2771 = vunpack.c.l.b16 %v300
    %v2772 = vunpack.c.h.b16 %v300
    %v2773 = vunpack.c.l.b16 %v301
    %v2774 = vunpack.c.h.b16 %v301
    %v2775 = vunpack.c.l.b16 %v302
    %v2776 = vunpack.c.h.b16 %v302
    %v2777 = vunpack.c.l.b16 %v303
    %v2778 = vunpack.c.h.b16 %v303
    %v2779 = vunpack.c.l.b16 %v304
    %v2780 = vunpack.c.h.b16 %v304
    %v2781 = vunpack.c.l.b16 %v305
    %v2782 = vunpack.c.h.b16 %v305
    %v2783 = vunpack.c.l.b16 %v306
    %v2784 = vunpack.c.h.b16 %v306
    %v2785 = vunpack.c.l.b16 %v307
    %v2786 = vunpack.c.h.b16 %v307
    %v2787 = vunpack.c.l.b16 %v308
    %v2788 = vunpack.c.h.b16 %v308
    %v2789 = vunpack.c.l.b16 %v309
    %v2790 = vunpack.c.h.b16 %v309
    %v2791 = vunpack.c.l.b16 %v310
    %v2792 = vunpack.c.h.b16 %v310
    %v2793 = vunpack.c.l.b16 %v311
    %v2794 = vunpack.c.h.b16 %v311
    %v2795 = vunpack.c.l.b16 %v312
    %v2796 = vunpack.c.h.b16 %v312
    %v2797 = vunpack.c.l.b16 %v313
    %v2798 = vunpack.c.h.b16 %v313
    %v2799 = vunpack.c.l.b16 %v314
    %v2800 = vunpack.c.h.b16 %v314
    %v2801 = vunpack.c.l.b16 %v315
    %v2802 = vunpack.c.h.b16 %v315
    %v2803 = vunpack.c.l.b16 %v316
    %v2804 = vunpack.c.h.b16 %v316
    %v2805 = vunpack.c.l.b16 %v317
    %v2806 = vunpack.c.h.b16 %v317
    %v2807 = vunpack.c.l.b16 %v318
    %v2808 = vunpack.c.h.b16 %v318
    %v2809 = vunpack.c.l.b16 %v319
    %v2810 = vunpack.c.h.b16 %v319
    %v2811 = vunpack.c.l.b16 %v320
    %v2812 = vunpack.c.h.b16 %v320
    %v2813 = vunpack.c.l.b16 %v321
    %v2814 = vunpack.c.h.b16 %v321
    %v2815 = vunpack.c.l.b16 %v322
    %v2816 = vunpack.c.h.b16 %v322
    %v2817 = vunpack.c.l.b16 %v323
    %v2818 = vunpack.c.h.b16 %v323
    %v2819 = vunpack.c.l.b16 %v324
    %v2820 = vunpack.c.h.b16 %v324
    %v2821 = vunpack.c.l.b16 %v325
    %v2822 = vunpack.c.h.b16 %v325
    %v2823 = vunpack.c.l.b16 %v326
    %v2824 = vunpack.c.h.b16 %v326
    %v2825 = vunpack.c.l.b16 %v327
    %v2826 = vunpack.c.h.b16 %v327
    %v2827 = vunpack.c.l.b16 %v328
    %v2828 = vunpack.c.h.b16 %v328
    %v2829 = vunpack.c.l.b16 %v329
    %v2830 = vunpack.c.h.b16 %v329
    %v2831 = vunpack.c.l.b16 %v330
    %v2832 = vunpack.c.h.b16 %v330
    %v2833 = vunpack.c.l.b16 %v331
    %v2834 = vunpack.c.h.b16 %v331
    %v2835 = vunpack.c.l.b16 %v332
    %v2836 = vunpack.c.h.b16 %v332
    %v2837 = vunpack.c.l.b16 %v333
    %v2838 = vunpack.c.h.b16 %v333
    %v2839 = vunpack.c.l.b16 %v334
    %v2840 = vunpack.c.h.b16 %v334
    %v2841 = vunpack.c.l.b16 %v335
    %v2842 = vunpack.c.h.b16 %v335
    %v2843 = vunpack.c.l.b16 %v336
    %v2844 = vunpack.c.h.b16 %v336
    %v2845 = vunpack.c.l.b16 %v337
    %v2846 = vunpack.c.h.b16 %v337
    %v2847 = vunpack.c.l.b16 %v338
    %v2848 = vunpack.c.h.b16 %v338
    %v2849 = vunpack.c.l.b16 %v339
    %v2850 = vunpack.c.h.b16 %v339
    %v2851 = vunpack.c.l.b16 %v340
    %v2852 = vunpack.c.h.b16 %v340
    %v2853 = vunpack.c.l.b16 %v341
    %v2854 = vunpack.c.h.b16 %v341
    %v2855 = vunpack.c.l.b16 %v342
    %v2856 = vunpack.c.h.b16 %v342
    %v2857 = vunpack.c.l.b16 %v343
    %v2858 = vunpack.c.h.b16 %v343
    %v2859 = vunpack.c.l.b16 %v344
    %v2860 = vunpack.c.h.b16 %v344
    %v2861 = vunpack.c.l.b16 %v345
    %v2862 = vunpack.c.h.b16 %v345
    %v2863 = vunpack.c.l.b16 %v346
    %v2864 = vunpack.c.h.b16 %v346
    %v2865 = vunpack.c.l.b16 %v347
    %v2866 = vunpack.c.h.b16 %v347
    %v2867 = vunpack.c.l.b16 %v348
    %v2868 = vunpack.c.h.b16 %v348
    %v2869 = vunpack.c.l.b16 %v349
    %v2870 = vunpack.c.h.b16 %v349
    %v2871 = vunpack.c.l.b16 %v350
    %v2872 = vunpack.c.h.b16 %v350
    %v2873 = vunpack.c.l.b16 %v351
    %v2874 = vunpack.c.h.b16 %v351
    %v2875 = vunpack.c.l.b16 %v352
    %v2876 = vunpack.c.h.b16 %v352
    %v2877 = vunpack.c.l.b16 %v353
    %v2878 = vunpack.c.h.b16 %v353
    %v2879 = vunpack.c.l.b16 %v354
    %v2880 = vunpack.c.h.b16 %v354
    %v2881 = vunpack.c.l.b16 %v355
    %v2882 = vunpack.c.h.b16 %v355
    %v2883 = vunpack.c.l.b16 %v356
    %v2884 = vunpack.c.h.b16 %v356
    %v2885 = vunpack.c.l.b16 %v357
    %v2886 = vunpack.c.h.b16 %v357
    %v2887 = vunpack.c.l.b16 %v358
    %v2888 = vunpack.c.h.b16 %v358
    %v2889 = vunpack.c.l.b16 %v359
    %v2890 = vunpack.c.h.b16 %v359
    %v2891 = vunpack.c.l.b16 %v360
    %v2892 = vunpack.c.h.b16 %v360
    %v2893 = vunpack.c.l.b16 %v361
    %v2894 = vunpack.c.h.b16 %v361
    %v2895 = vunpack.c.l.b16 %v362
    %v2896 = vunpack.c.h.b16 %v362
    %v2897 = vunpack.c.l.b16 %v363
    %v2898 = vunpack.c.h.b16 %v363
    %v2899 = vunpack.c.l.b16 %v364
    %v2900 = vunpack.c.h.b16 %v364
    %v2901 = vunpack.c.l.b16 %v365
    %v2902 = vunpack.c.h.b16 %v365
    %v2903 = vunpack.c.l.b16 %v366
    %v2904 = vunpack.c.h.b16 %v366
    %v2905 = vunpack.c.l.b16 %v367
    %v2906 = vunpack.c.h.b16 %v367
    %v2907 = vunpack.c.l.b16 %v368
    %v2908 = vunpack.c.h.b16 %v368
    %v2909 = vunpack.c.l.b16 %v369
    %v2910 = vunpack.c.h.b16 %v369
    %v2911 = vunpack.c.l.b16 %v370
    %v2912 = vunpack.c.h.b16 %v370
    %v2913 = vunpack.c.l.b16 %v371
    %v2914 = vunpack.c.h.b16 %v371
    %v2915 = vunpack.c.l.b16 %v372
    %v2916 = vunpack.c.h.b16 %v372
    %v2917 = vunpack.c.l.b16 %v373
    %v2918 = vunpack.c.h.b16 %v373
    %v2919 = vunpack.c.l.b16 %v374
    %v2920 = vunpack.c.h.b16 %v374
    %v2921 = vunpack.c.l.b16 %v375
    %v2922 = vunpack.c.h.b16 %v375
    %v2923 = vunpack.c.l.b16 %v376
    %v2924 = vunpack.c.h.b16 %v376
    %v2925 = vunpack.c.l.b16 %v377
    %v2926 = vunpack.c.h.b16 %v377
    %v2927 = vunpack.c.l.b16 %v378
    %v2928 = vunpack.c.h.b16 %v378
    %v2929 = vunpack.c.l.b16 %v379
    %v2930 = vunpack.c.h.b16 %v379
    %v2931 = vunpack.c.l.b16 %v380
    %v2932 = vunpack.c.h.b16 %v380
    %v2933 = vunpack.c.l.b16 %v381
    %v2934 = vunpack.c.h.b16 %v381
    %v2935 = vunpack.c.l.b16 %v382
    %v2936 = vunpack.c.h.b16 %v382
    %v2937 = vunpack.c.l.b16 %v383
    %v2938 = vunpack.c.h.b16 %v383
    %v2939 = vunpack.c.l.b16 %v384
    %v2940 = vunpack.c.h.b16 %v384
    %v2941 = vunpack.c.l.b16 %v385
    %v2942 = vunpack.c.h.b16 %v385
    %v2943 = vunpack.c.l.b16 %v386
    %v2944 = vunpack.c.h.b16 %v386
    %v2945 = vunpack.c.l.b16 %v387
    %v2946 = vunpack.c.h.b16 %v387
    %v2947 = vunpack.c.l.b16 %v388
    %v2948 = vunpack.c.h.b16 %v388
    %v2949 = vunpack.c.l.b16 %v389
    %v2950 = vunpack.c.h.b16 %v389
    %v2951 = vunpack.c.l.b16 %v390
    %v2952 = vunpack.c.h.b16 %v390
    %v2953 = vunpack.c.l.b16 %v391
    %v2954 = vunpack.c.h.b16 %v391
    %v2955 = vunpack.c.l.b16 %v392
    %v2956 = vunpack.c.h.b16 %v392
    %v2957 = vunpack.c.l.b16 %v393
    %v2958 = vunpack.c.h.b16 %v393
    %v2959 = vunpack.c.l.b16 %v394
    %v2960 = vunpack.c.h.b16 %v394
    %v2961 = vunpack.c.l.b16 %v395
    %v2962 = vunpack.c.h.b16 %v395
    %v2963 = vunpack.c.l.b16 %v396
    %v2964 = vunpack.c.h.b16 %v396
    %v2965 = vunpack.c.l.b16 %v397
    %v2966 = vunpack.c.h.b16 %v397
    %v2967 = vunpack.c.l.b16 %v398
    %v2968 = vunpack.c.h.b16 %v398
    %v2969 = vunpack.c.l.b16 %v399
    %v2970 = vunpack.c.h.b16 %v399
    %v2971 = vunpack.c.l.b16 %v400
    %v2972 = vunpack.c.h.b16 %v400
    %v2973 = vunpack.c.l.b16 %v401
    %v2974 = vunpack.c.h.b16 %v401
    %v2975 = vunpack.c.l.b16 %v402
    %v2976 = vunpack.c.h.b16 %v402
    %v2977 = vunpack.c.l.b16 %v403
    %v2978 = vunpack.c.h.b16 %v403
    %v2979 = vunpack.c.l.b16 %v404
    %v2980 = vunpack.c.h.b16 %v404
    %v2981 = vunpack.c.l.b16 %v405
    %v2982 = vunpack.c.h.b16 %v405
    %v2983 = vunpack.c.l.b16 %v406
    %v2984 = vunpack.c.h.b16 %v406
    %v2985 = vunpack.c.l.b16 %v407
    %v2986 = vunpack.c.h.b16 %v407
    %v2987 = vunpack.c.l.b16 %v408
    %v2988 = vunpack.c.h.b16 %v408
    %v2989 = vunpack.c.l.b16 %v409
    %v2990 = vunpack.c.h.b16 %v409
    %v2991 = vunpack.c.l.b16 %v410
    %v2992 = vunpack.c.h.b16 %v410
    %v2993 = vunpack.c.l.b16 %v411
    %v2994 = vunpack.c.h.b16 %v411
    %v2995 = vunpack.c.l.b16 %v412
    %v2996 = vunpack.c.h.b16 %v412
    %v2997 = vunpack.c.l.b16 %v413
    %v2998 = vunpack.c.h.b16 %v413
    %v2999 = vunpack.c.l.b16 %v414
    %v3000 = vunpack.c.h.b16 %v414
    %v3001 = vunpack.c.l.b16 %v415
    %v3002 = vunpack.c.h.b16 %v415
    %v3003 = vunpack.c.l.b16 %v416
    %v3004 = vunpack.c.h.b16 %v416
    %v3005 = vunpack.c.l.b16 %v417
    %v3006 = vunpack.c.h.b16 %v417
    %v3007 = vunpack.c.l.b16 %v418
    %v3008 = vunpack.c.h.b16 %v418
    %v3009 = vunpack.c.l.b16 %v419
    %v3010 = vunpack.c.h.b16 %v419
    %v3011 = vunpack.c.l.b16 %v420
    %v3012 = vunpack.c.h.b16 %v420
    %v3013 = vunpack.c.l.b16 %v421
    %v3014 = vunpack.c.h.b16 %v421
    %v3015 = vunpack.c.l.b16 %v422
    %v3016 = vunpack.c.h.b16 %v422
    %v3017 = vunpack.c.l.b16 %v423
    %v3018 = vunpack.c.h.b16 %v423
    %v3019 = vunpack.c.l.b16 %v424
    %v3020 = vunpack.c.h.b16 %v424
    %v3021 = vunpack.c.l.b16 %v425
    %v3022 = vunpack.c.h.b16 %v425
    %v3023 = vunpack.c.l.b16 %v426
    %v3024 = vunpack.c.h.b16 %v426
    %v3025 = vunpack.c.l.b16 %v427
    %v3026 = vunpack.c.h.b16 %v427
    %v3027 = vunpack.c.l.b16 %v428
    %v3028 = vunpack.c.h.b16 %v428
    %v3029 = vunpack.c.l.b16 %v429
    %v3030 = vunpack.c.h.b16 %v429
    %v3031 = vunpack.c.l.b16 %v430
    %v3032 = vunpack.c.h.b16 %v430
    %v3033 = vunpack.c.l.b16 %v431
    %v3034 = vunpack.c.h.b16 %v431
    %v3035 = vunpack.c.l.b16 %v432
    %v3036 = vunpack.c.h.b16 %v432
    %v3037 = vunpack.c.l.b16 %v433
    %v3038 = vunpack.c.h.b16 %v433
    %v3039 = vunpack.c.l.b16 %v434
    %v3040 = vunpack.c.h.b16 %v434
    %v3041 = vunpack.c.l.b16 %v435
    %v3042 = vunpack.c.h.b16 %v435
    %v3043 = vunpack.c.l.b16 %v436
    %v3044 = vunpack.c.h.b16 %v436
    %v3045 = vunpack.c.l.b16 %v437
    %v3046 = vunpack.c.h.b16 %v437
    %v3047 = vunpack.c.l.b16 %v438
    %v3048 = vunpack.c.h.b16 %v438
    %v3049 = vunpack.c.l.b16 %v439
    %v3050 = vunpack.c.h.b16 %v439
    %v3051 = vunpack.c.l.b16 %v440
    %v3052 = vunpack.c.h.b16 %v440
    %v3053 = vunpack.c.l.b16 %v441
    %v3054 = vunpack.c.h.b16 %v441
    %v3055 = vunpack.c.l.b16 %v442
    %v3056 = vunpack.c.h.b16 %v442
    %v3057 = vunpack.c.l.b16 %v443
    %v3058 = vunpack.c.h.b16 %v443
    %v3059 = vunpack.c.l.b16 %v444
    %v3060 = vunpack.c.h.b16 %v444
    %v3061 = vunpack.c.l.b16 %v445
    %v3062 = vunpack.c.h.b16 %v445
    %v3063 = vunpack.c.l.b16 %v446
    %v3064 = vunpack.c.h.b16 %v446
    %v3065 = vunpack.c.l.b16 %v447
    %v3066 = vunpack.c.h.b16 %v447
    %v3067 = vunpack.c.l.b16 %v448
    %v3068 = vunpack.c.h.b16 %v448
    %v3069 = vunpack.c.l.b16 %v449
    %v3070 = vunpack.c.h.b16 %v449
    %v3071 = vunpack.c.l.b16 %v450
    %v3072 = vunpack.c.h.b16 %v450
    %v3073 = vunpack.c.l.b16 %v451
    %v3074 = vunpack.c.h.b16 %v451
    %v3075 = vunpack.c.l.b16 %v452
    %v3076 = vunpack.c.h.b16 %v452
    %v3077 = vunpack.c.l.b16 %v453
    %v3078 = vunpack.c.h.b16 %v453
    %v3079 = vunpack.c.l.b16 %v454
    %v3080 = vunpack.c.h.b16 %v454
    %v3081 = vunpack.c.l.b16 %v455
    %v3082 = vunpack.c.h.b16 %v455
    %v3083 = vunpack.c.l.b16 %v456
    %v3084 = vunpack.c.h.b16 %v456
    %v3085 = vunpack.c.l.b16 %v457
    %v3086 = vunpack.c.h.b16 %v457
    %v3087 = vunpack.c.l.b16 %v458
    %v3088 = vunpack.c.h.b16 %v458
    %v3089 = vunpack.c.l.b16 %v459
    %v3090 = vunpack.c.h.b16 %v459
    %v3091 = vunpack.c.l.b16 %v460
    %v3092 = vunpack.c.h.b16 %v460
    %v3093 = vunpack.c.l.b16 %v461
    %v3094 = vunpack.c.h.b16 %v461
    %v3095 = vunpack.c.l.b16 %v462
    %v3096 = vunpack.c.h.b16 %v462
    %v3097 = vunpack.c.l.b16 %v463
    %v3098 = vunpack.c.h.b16 %v463
    %v3099 = vunpack.c.l.b16 %v464
    %v3100 = vunpack.c.h.b16 %v464
    %v3101 = vunpack.c.l.b16 %v465
    %v3102 = vunpack.c.h.b16 %v465
    %v3103 = vunpack.c.l.b16 %v466
    %v3104 = vunpack.c.h.b16 %v466
    %v3105 = vunpack.c.l.b16 %v467
    %v3106 = vunpack.c.h.b16 %v467
    %v3107 = vunpack.c.l.b16 %v468
    %v3108 = vunpack.c.h.b16 %v468
    %v3109 = vunpack.c.l.b16 %v469
    %v3110 = vunpack.c.h.b16 %v469
    %v3111 = vunpack.c.l.b16 %v470
    %v3112 = vunpack.c.h.b16 %v470
    %v3113 = vunpack.c.l.b16 %v471
    %v3114 = vunpack.c.h.b16 %v471
    %v3115 = vunpack.c.l.b16 %v472
    %v3116 = vunpack.c.h.b16 %v472
    %v3117 = vunpack.c.l.b16 %v473
    %v3118 = vunpack.c.h.b16 %v473
    %v3119 = vunpack.c.l.b16 %v474
    %v3120 = vunpack.c.h.b16 %v474
    %v3121 = vunpack.c.l.b16 %v475
    %v3122 = vunpack.c.h.b16 %v475
    %v3123 = vunpack.c.l.b16 %v476
    %v3124 = vunpack.c.h.b16 %v476
    %v3125 = vunpack.c.l.b16 %v477
    %v3126 = vunpack.c.h.b16 %v477
    %v3127 = vunpack.c.l.b16 %v478
    %v3128 = vunpack.c.h.b16 %v478
    %v3129 = vunpack.c.l.b16 %v479
    %v3130 = vunpack.c.h.b16 %v479
    %v3131 = vunpack.c.l.b16 %v480
    %v3132 = vunpack.c.h.b16 %v480
    %v3133 = vunpack.c.l.b16 %v481
    %v3134 = vunpack.c.h.b16 %v481
    %v3135 = vunpack.c.l.b16 %v482
    %v3136 = vunpack.c.h.b16 %v482
    %v3137 = vunpack.c.l.b16 %v483
    %v3138 = vunpack.c.h.b16 %v483
    %v3139 = vunpack.c.l.b16 %v484
    %v3140 = vunpack.c.h.b16 %v484
    %v3141 = vunpack.c.l.b16 %v485
    %v3142 = vunpack.c.h.b16 %v485
    %v3143 = vunpack.c.l.b16 %v486
    %v3144 = vunpack.c.h.b16 %v486
    %v3145 = vunpack.c.l.b16 %v487
    %v3146 = vunpack.c.h.b16 %v487
    %v3147 = vunpack.c.l.b16 %v488
    %v3148 = vunpack.c.h.b16 %v488
    %v3149 = vunpack.c.l.b16 %v489
    %v3150 = vunpack.c.h.b16 %v489
    %v3151 = vunpack.c.l.b16 %v490
    %v3152 = vunpack.c.h.b16 %v490
    %v3153 = vunpack.c.l.b16 %v491
    %v3154 = vunpack.c.h.b16 %v491
    %v3155 = vunpack.c.l.b16 %v492
    %v3156 = vunpack.c.h.b16 %v492
    %v3157 = vunpack.c.l.b16 %v493
    %v3158 = vunpack.c.h.b16 %v493
    %v3159 = vunpack.c.l.b16 %v494
    %v3160 = vunpack.c.h.b16 %v494
    %v3161 = vunpack.c.l.b16 %v495
    %v3162 = vunpack.c.h.b16 %v495
    %v3163 = vunpack.c.l.b16 %v496
    %v3164 = vunpack.c.h.b16 %v496
    %v3165 = vunpack.c.l.b16 %v497
    %v3166 = vunpack.c.h.b16 %v497
    %v3167 = vunpack.c.l.b16 %v498
    %v3168 = vunpack.c.h.b16 %v498
    %v3169 = vunpack.c.l.b16 %v499
    %v3170 = vunpack.c.h.b16 %v499
    %v3171 = vunpack.c.l.b16 %v500
    %v3172 = vunpack.c.h.b16 %v500
    %v3173 = vunpack.c.l.b16 %v501
    %v3174 = vunpack.c.h.b16 %v501
    %v3175 = vunpack.c.l.b16 %v502
    %v3176 = vunpack.c.h.b16 %v502
    %v3177 = vunpack.c.l.b16 %v503
    %v3178 = vunpack.c.h.b16 %v503
    %v3179 = vunpack.c.l.b16 %v504
    %v3180 = vunpack.c.h.b16 %v504
    %v3181 = vunpack.c.l.b16 %v505
    %v3182 = vunpack.c.h.b16 %v505
    %v3183 = vunpack.c.l.b16 %v506
    %v3184 = vunpack.c.h.b16 %v506
    %v3185 = vunpack.c.l.b16 %v507
    %v3186 = vunpack.c.h.b16 %v507
    %v3187 = vunpack.c.l.b16 %v508
    %v3188 = vunpack.c.h.b16 %v508
    %v3189 = vunpack.c.l.b16 %v509
    %v3190 = vunpack.c.h.b16 %v509
    %v3191 = vunpack.c.l.b16 %v510
    %v3192 = vunpack.c.h.b16 %v510
    %v3193 = vunpack.c.l.b16 %v511
    %v3194 = vunpack.c.h.b16 %v511
    %v3195 = vunpack.c.l.b16 %v512
    %v3196 = vunpack.c.h.b16 %v512
    %v3197 = vunpack.c.l.b16 %v513
    %v3198 = vunpack.c.h.b16 %v513
    %v3199 = vunpack.c.l.b16 %v514
    %v3200 = vunpack.c.h.b16 %v514
    %v3201 = vunpack.c.l.b16 %v515
    %v3202 = vunpack.c.h.b16 %v515
    %v3203 = vunpack.c.l.b16 %v516
    %v3204 = vunpack.c.h.b16 %v516
    %v3205 = vunpack.c.l.b16 %v517
    %v3206 = vunpack.c.h.b16 %v517
    %v3207 = vunpack.c.l.b16 %v518
    %v3208 = vunpack.c.h.b16 %v518
    %v3209 = vunpack.c.l.b16 %v519
    %v3210 = vunpack.c.h.b16 %v519
    %v3211 = vunpack.c.l.b16 %v520
    %v3212 = vunpack.c.h.b16 %v520
    %v3213 = vunpack.c.l.b16 %v521
    %v3214 = vunpack.c.h.b16 %v521
    %v3215 = vunpack.c.l.b16 %v522
    %v3216 = vunpack.c.h.b16 %v522
    %v3217 = vunpack.c.l.b16 %v523
    %v3218 = vunpack.c.h.b16 %v523
    %v3219 = vunpack.c.l.b16 %v524
    %v3220 = vunpack.c.h.b16 %v524
    %v3221 = vunpack.c.l.b16 %v525
    %v3222 = vunpack.c.h.b16 %v525
    %v3223 = vunpack.c.l.b16 %v526
    %v3224 = vunpack.c.h.b16 %v526
    %v3225 = vunpack.c.l.b16 %v527
    %v3226 = vunpack.c.h.b16 %v527
    %v3227 = vunpack.c.l.b16 %v528
    %v3228 = vunpack.c.h.b16 %v528
    %v3229 = vunpack.c.l.b16 %v529
    %v3230 = vunpack.c.h.b16 %v529
    %v3231 = vunpack.c.l.b16 %v530
    %v3232 = vunpack.c.h.b16 %v530
    %v3233 = vunpack.c.l.b16 %v531
    %v3234 = vunpack.c.h.b16 %v531
    %v3235 = vunpack.c.l.b16 %v532
    %v3236 = vunpack.c.h.b16 %v532
    %v3237 = vunpack.c.l.b16 %v533
    %v3238 = vunpack.c.h.b16 %v533
    %v3239 = vunpack.c.l.b16 %v534
    %v3240 = vunpack.c.h.b16 %v534
    %v3241 = vunpack.c.l.b16 %v535
    %v3242 = vunpack.c.h.b16 %v535
    %v3243 = vunpack.c.l.b16 %v536
    %v3244 = vunpack.c.h.b16 %v536
    %v3245 = vunpack.c.l.b16 %v537
    %v3246 = vunpack.c.h.b16 %v537
    %v3247 = vunpack.c.l.b16 %v538
    %v3248 = vunpack.c.h.b16 %v538
    %v3249 = vunpack.c.l.b16 %v539
    %v3250 = vunpack.c.h.b16 %v539
    %v3251 = vunpack.c.l.b16 %v540
    %v3252 = vunpack.c.h.b16 %v540
    %v3253 = vunpack.c.l.b16 %v541
    %v3254 = vunpack.c.h.b16 %v541
    %v3255 = vunpack.c.l.b16 %v542
    %v3256 = vunpack.c.h.b16 %v542
    %v3257 = vunpack.c.l.b16 %v543
    %v3258 = vunpack.c.h.b16 %v543
    %v3259 = vunpack.c.l.b16 %v544
    %v3260 = vunpack.c.h.b16 %v544
    %v3261 = vunpack.c.l.b16 %v545
    %v3262 = vunpack.c.h.b16 %v545
    %v3263 = vunpack.c.l.b16 %v546
    %v3264 = vunpack.c.h.b16 %v546
    %v3265 = vunpack.c.l.b16 %v547
    %v3266 = vunpack.c.h.b16 %v547
    %v3267 = vunpack.c.l.b16 %v548
    %v3268 = vunpack.c.h.b16 %v548
    %v3269 = vunpack.c.l.b16 %v549
    %v3270 = vunpack.c.h.b16 %v549
    %v3271 = vunpack.c.l.b16 %v550
    %v3272 = vunpack.c.h.b16 %v550
    %v3273 = vunpack.c.l.b16 %v551
    %v3274 = vunpack.c.h.b16 %v551
    %v3275 = vunpack.c.l.b16 %v552
    %v3276 = vunpack.c.h.b16 %v552
    %v3277 = vunpack.c.l.b16 %v553
    %v3278 = vunpack.c.h.b16 %v553
    %v3279 = vunpack.c.l.b16 %v554
    %v3280 = vunpack.c.h.b16 %v554
    %v3281 = vunpack.c.l.b16 %v555
    %v3282 = vunpack.c.h.b16 %v555
    %v3283 = vunpack.c.l.b16 %v556
    %v3284 = vunpack.c.h.b16 %v556
    %v3285 = vunpack.c.l.b16 %v557
    %v3286 = vunpack.c.h.b16 %v557
    %v3287 = vunpack.c.l.b16 %v558
    %v3288 = vunpack.c.h.b16 %v558
    %v3289 = vunpack.c.l.b16 %v559
    %v3290 = vunpack.c.h.b16 %v559
    %v3291 = vunpack.c.l.b16 %v560
    %v3292 = vunpack.c.h.b16 %v560
    %v3293 = vunpack.c.l.b16 %v561
    %v3294 = vunpack.c.h.b16 %v561
    %v3295 = vunpack.c.l.b16 %v562
    %v3296 = vunpack.c.h.b16 %v562
    %v3297 = vunpack.c.l.b16 %v563
    %v3298 = vunpack.c.h.b16 %v563
    %v3299 = vunpack.c.l.b16 %v564
    %v3300 = vunpack.c.h.b16 %v564
    %v3301 = vunpack.c.l.b16 %v565
    %v3302 = vunpack.c.h.b16 %v565
    %v3303 = vunpack.c.l.b16 %v566
    %v3304 = vunpack.c.h.b16 %v566
    %v3305 = vunpack.c.l.b16 %v567
    %v3306 = vunpack.c.h.b16 %v567
    %v3307 = vunpack.c.l.b16 %v568
    %v3308 = vunpack.c.h.b16 %v568
    %v3309 = vunpack.c.l.b16 %v569
    %v3310 = vunpack.c.h.b16 %v569
    %v3311 = vunpack.c.l.b16 %v570
    %v3312 = vunpack.c.h.b16 %v570
    %v3313 = vunpack.c.l.b16 %v571
    %v3314 = vunpack.c.h.b16 %v571
    %v3315 = vunpack.c.l.b16 %v572
    %v3316 = vunpack.c.h.b16 %v572
    %v3317 = vunpack.c.l.b16 %v573
    %v3318 = vunpack.c.h.b16 %v573
    %v3319 = vunpack.c.l.b16 %v574
    %v3320 = vunpack.c.h.b16 %v574
    %v3321 = vunpack.c.l.b16 %v575
    %v3322 = vunpack.c.h.b16 %v575
    %v3323 = vunpack.c.l.b16 %v576
    %v3324 = vunpack.c.h.b16 %v576
    %v3325 = vunpack.c.l.b16 %v577
    %v3326 = vunpack.c.h.b16 %v577
    %v3327 = vunpack.c.l.b16 %v578
    %v3328 = vunpack.c.h.b16 %v578
    %v3329 = vunpack.c.l.b16 %v579
    %v3330 = vunpack.c.h.b16 %v579
    %v3331 = vunpack.c.l.b16 %v580
    %v3332 = vunpack.c.h.b16 %v580
    %v3333 = vunpack.c.l.b16 %v581
    %v3334 = vunpack.c.h.b16 %v581
    %v3335 = vunpack.c.l.b16 %v582
    %v3336 = vunpack.c.h.b16 %v582
    %v3337 = vunpack.c.l.b16 %v583
    %v3338 = vunpack.c.h.b16 %v583
    %v3339 = vunpack.c.l.b16 %v584
    %v3340 = vunpack.c.h.b16 %v584
    %v3341 = vunpack.c.l.b16 %v585
    %v3342 = vunpack.c.h.b16 %v585
    %v3343 = vunpack.c.l.b16 %v586
    %v3344 = vunpack.c.h.b16 %v586
    %v3345 = vunpack.c.l.b16 %v587
    %v3346 = vunpack.c.h.b16 %v587
    %v3347 = vunpack.c.l.b16 %v588
    %v3348 = vunpack.c.h.b16 %v588
    %v3349 = vunpack.c.l.b16 %v589
    %v3350 = vunpack.c.h.b16 %v589
    %v3351 = vunpack.c.l.b16 %v590
    %v3352 = vunpack.c.h.b16 %v590
    %v3353 = vunpack.c.l.b16 %v591
    %v3354 = vunpack.c.h.b16 %v591
    %v3355 = vunpack.c.l.b16 %v592
    %v3356 = vunpack.c.h.b16 %v592
    %v3357 = vunpack.c.l.b16 %v593
    %v3358 = vunpack.c.h.b16 %v593
    %v3359 = vunpack.c.l.b16 %v594
    %v3360 = vunpack.c.h.b16 %v594
    %v3361 = vunpack.c.l.b16 %v595
    %v3362 = vunpack.c.h.b16 %v595
    %v3363 = vunpack.c.l.b16 %v596
    %v3364 = vunpack.c.h.b16 %v596
    %v3365 = vunpack.c.l.b16 %v597
    %v3366 = vunpack.c.h.b16 %v597
    %v3367 = vunpack.c.l.b16 %v598
    %v3368 = vunpack.c.h.b16 %v598
    %v3369 = vunpack.c.l.b16 %v599
    %v3370 = vunpack.c.h.b16 %v599
    %v3371 = vunpack.c.l.b16 %v600
    %v3372 = vunpack.c.h.b16 %v600
    %v3373 = vunpack.c.l.b16 %v601
    %v3374 = vunpack.c.h.b16 %v601
    %v3375 = vunpack.c.l.b16 %v602
    %v3376 = vunpack.c.h.b16 %v602
    %v3377 = vunpack.c.l.b16 %v603
    %v3378 = vunpack.c.h.b16 %v603
    %v3379 = vunpack.c.l.b16 %v604
    %v3380 = vunpack.c.h.b16 %v604
    %v3381 = vunpack.c.l.b16 %v605
    %v3382 = vunpack.c.h.b16 %v605
    %v3383 = vunpack.c.l.b16 %v606
    %v3384 = vunpack.c.h.b16 %v606
    %v3385 = vunpack.c.l.b16 %v607
    %v3386 = vunpack.c.h.b16 %v607
    %v3387 = vunpack.c.l.b16 %v608
    %v3388 = vunpack.c.h.b16 %v608
    %v3389 = vunpack.c.l.b16 %v609
    %v3390 = vunpack.c.h.b16 %v609
    %v3391 = vunpack.c.l.b16 %v610
    %v3392 = vunpack.c.h.b16 %v610
    %v3393 = vunpack.c.l.b16 %v611
    %v3394 = vunpack.c.h.b16 %v611
    %v3395 = vunpack.c.l.b16 %v612
    %v3396 = vunpack.c.h.b16 %v612
    %v3397 = vunpack.c.l.b16 %v613
    %v3398 = vunpack.c.h.b16 %v613
    %v3399 = vunpack.c.l.b16 %v614
    %v3400 = vunpack.c.h.b16 %v614
    %v3401 = vunpack.c.l.b16 %v615
    %v3402 = vunpack.c.h.b16 %v615
    %v3403 = vunpack.c.l.b16 %v616
    %v3404 = vunpack.c.h.b16 %v616
    %v3405 = vunpack.c.l.b16 %v617
    %v3406 = vunpack.c.h.b16 %v617
    %v3407 = vunpack.c.l.b16 %v618
    %v3408 = vunpack.c.h.b16 %v618
    %v3409 = vunpack.c.l.b16 %v619
    %v3410 = vunpack.c.h.b16 %v619
    %v3411 = vunpack.c.l.b16 %v620
    %v3412 = vunpack.c.h.b16 %v620
    %v3413 = vunpack.c.l.b16 %v621
    %v3414 = vunpack.c.h.b16 %v621
    %v3415 = vunpack.c.l.b16 %v622
    %v3416 = vunpack.c.h.b16 %v622
    %v3417 = vunpack.c.l.b16 %v623
    %v3418 = vunpack.c.h.b16 %v623
    %v3419 = vunpack.c.l.b16 %v624
    %v3420 = vunpack.c.h.b16 %v624
    %v3421 = vunpack.c.l.b16 %v625
    %v3422 = vunpack.c.h.b16 %v625
    %v3423 = vunpack.c.l.b16 %v626
    %v3424 = vunpack.c.h.b16 %v626
    %v3425 = vunpack.c.l.b16 %v627
    %v3426 = vunpack.c.h.b16 %v627
    %v3427 = vunpack.c.l.b16 %v628
    %v3428 = vunpack.c.h.b16 %v628
    %v3429 = vunpack.c.l.b16 %v629
    %v3430 = vunpack.c.h.b16 %v629
    %v3431 = vunpack.c.l.b16 %v630
    %v3432 = vunpack.c.h.b16 %v630
    %v3433 = vunpack.c.l.b16 %v631
    %v3434 = vunpack.c.h.b16 %v631
    %v3435 = vunpack.c.l.b16 %v632
    %v3436 = vunpack.c.h.b16 %v632
    %v3437 = vunpack.c.l.b16 %v633
    %v3438 = vunpack.c.h.b16 %v633
    %v3439 = vunpack.c.l.b16 %v634
    %v3440 = vunpack.c.h.b16 %v634
    %v3441 = vunpack.c.l.b16 %v635
    %v3442 = vunpack.c.h.b16 %v635
    %v3443 = vunpack.c.l.b16 %v636
    %v3444 = vunpack.c.h.b16 %v636
    %v3445 = vunpack.c.l.b16 %v637
    %v3446 = vunpack.c.h.b16 %v637
    %v3447 = vunpack.c.l.b16 %v638
    %v3448 = vunpack.c.h.b16 %v638
    %v3449 = vunpack.c.l.b16 %v639
    %v3450 = vunpack.c.h.b16 %v639
    %v3451 = vunpack.c.l.b16 %v640
    %v3452 = vunpack.c.h.b16 %v640
    %v3453 = vunpack.c.l.b16 %v641
    %v3454 = vunpack.c.h.b16 %v641
    %v3455 = vunpack.c.l.b16 %v642
    %v3456 = vunpack.c.h.b16 %v642
    %v3457 = vunpack.c.l.b16 %v643
    %v3458 = vunpack.c.h.b16 %v643
    %v3459 = vunpack.c.l.b16 %v644
    %v3460 = vunpack.c.h.b16 %v644
    %v3461 = vunpack.c.l.b16 %v645
    %v3462 = vunpack.c.h.b16 %v645
    %v3463 = vunpack.c.l.b16 %v646
    %v3464 = vunpack.c.h.b16 %v646
    %v3465 = vunpack.c.l.b16 %v647
    %v3466 = vunpack.c.h.b16 %v647
    %v3467 = vunpack.c.l.b16 %v648
    %v3468 = vunpack.c.h.b16 %v648
    %v3469 = vunpack.c.l.b16 %v649
    %v3470 = vunpack.c.h.b16 %v649
    %v3471 = vunpack.c.l.b16 %v650
    %v3472 = vunpack.c.h.b16 %v650
    %v3473 = vunpack.c.l.b16 %v651
    %v3474 = vunpack.c.h.b16 %v651
    %v3475 = vunpack.c.l.b16 %v652
    %v3476 = vunpack.c.h.b16 %v652
    %v3477 = vunpack.c.l.b16 %v653
    %v3478 = vunpack.c.h.b16 %v653
    %v3479 = vunpack.c.l.b16 %v654
    %v3480 = vunpack.c.h.b16 %v654
    %v3481 = vunpack.c.l.b16 %v655
    %v3482 = vunpack.c.h.b16 %v655
    %v3483 = vunpack.c.l.b16 %v656
    %v3484 = vunpack.c.h.b16 %v656
    %v3485 = vunpack.c.l.b16 %v657
    %v3486 = vunpack.c.h.b16 %v657
    %v3487 = vunpack.c.l.b16 %v658
    %v3488 = vunpack.c.h.b16 %v658
    %v3489 = vunpack.c.l.b16 %v659
    %v3490 = vunpack.c.h.b16 %v659
    %v3491 = vunpack.c.l.b16 %v660
    %v3492 = vunpack.c.h.b16 %v660
    %v3493 = vunpack.c.l.b16 %v661
    %v3494 = vunpack.c.h.b16 %v661
    %v3495 = vunpack.c.l.b16 %v662
    %v3496 = vunpack.c.h.b16 %v662
    %v3497 = vunpack.c.l.b16 %v663
    %v3498 = vunpack.c.h.b16 %v663
    %v3499 = vunpack.c.l.b16 %v664
    %v3500 = vunpack.c.h.b16 %v664
    %v3501 = vunpack.c.l.b16 %v665
    %v3502 = vunpack.c.h.b16 %v665
    %v3503 = vunpack.c.l.b16 %v666
    %v3504 = vunpack.c.h.b16 %v666
    %v3505 = vunpack.c.l.b16 %v667
    %v3506 = vunpack.c.h.b16 %v667
    %v3507 = vunpack.c.l.b16 %v668
    %v3508 = vunpack.c.h.b16 %v668
    %v3509 = vunpack.c.l.b16 %v669
    %v3510 = vunpack.c.h.b16 %v669
    %v3511 = vunpack.c.l.b16 %v670
    %v3512 = vunpack.c.h.b16 %v670
    %v3513 = vunpack.c.l.b16 %v671
    %v3514 = vunpack.c.h.b16 %v671
    %v3515 = vunpack.c.l.b16 %v672
    %v3516 = vunpack.c.h.b16 %v672
    %v3517 = vunpack.c.l.b16 %v673
    %v3518 = vunpack.c.h.b16 %v673
    %v3519 = vunpack.c.l.b16 %v674
    %v3520 = vunpack.c.h.b16 %v674
    %v3521 = vunpack.c.l.b16 %v675
    %v3522 = vunpack.c.h.b16 %v675
    %v3523 = vunpack.c.l.b16 %v676
    %v3524 = vunpack.c.h.b16 %v676
    %v3525 = vunpack.c.l.b16 %v677
    %v3526 = vunpack.c.h.b16 %v677
    %v3527 = vunpack.c.l.b16 %v678
    %v3528 = vunpack.c.h.b16 %v678
    %v3529 = vunpack.c.l.b16 %v679
    %v3530 = vunpack.c.h.b16 %v679
    %v3531 = vunpack.c.l.b16 %v680
    %v3532 = vunpack.c.h.b16 %v680
    %v3533 = vunpack.c.l.b16 %v681
    %v3534 = vunpack.c.h.b16 %v681
    %v3535 = vunpack.c.l.b16 %v682
    %v3536 = vunpack.c.h.b16 %v682
    %v3537 = vunpack.c.l.b16 %v683
    %v3538 = vunpack.c.h.b16 %v683
    %v3539 = vunpack.c.l.b16 %v684
    %v3540 = vunpack.c.h.b16 %v684
    %v3541 = vunpack.c.l.b16 %v685
    %v3542 = vunpack.c.h.b16 %v685
    %v3543 = vunpack.c.l.b16 %v686
    %v3544 = vunpack.c.h.b16 %v686
    %v3545 = vunpack.c.l.b16 %v687
    %v3546 = vunpack.c.h.b16 %v687
    %v3547 = vunpack.c.l.b16 %v688
    %v3548 = vunpack.c.h.b16 %v688
    %v3549 = vunpack.c.l.b16 %v689
    %v3550 = vunpack.c.h.b16 %v689
    %v3551 = vunpack.c.l.b16 %v690
    %v3552 = vunpack.c.h.b16 %v690
    %v3553 = vunpack.c.l.b16 %v691
    %v3554 = vunpack.c.h.b16 %v691
    %v3555 = vunpack.c.l.b16 %v692
    %v3556 = vunpack.c.h.b16 %v692
    %v3557 = vunpack.c.l.b16 %v693
    %v3558 = vunpack.c.h.b16 %v693
    %v3559 = vunpack.c.l.b16 %v694
    %v3560 = vunpack.c.h.b16 %v694
    %v3561 = vunpack.c.l.b16 %v695
    %v3562 = vunpack.c.h.b16 %v695
    %v3563 = vunpack.c.l.b16 %v696
    %v3564 = vunpack.c.h.b16 %v696
    %v3565 = vunpack.c.l.b16 %v697
    %v3566 = vunpack.c.h.b16 %v697
    %v3567 = vunpack.c.l.b16 %v698
    %v3568 = vunpack.c.h.b16 %v698
    %v3569 = vunpack.c.l.b16 %v699
    %v3570 = vunpack.c.h.b16 %v699
    %v3571 = vunpack.c.l.b16 %v700
    %v3572 = vunpack.c.h.b16 %v700
    %v3573 = vunpack.c.l.b16 %v701
    %v3574 = vunpack.c.h.b16 %v701
    %v3575 = vunpack.c.l.b16 %v702
    %v3576 = vunpack.c.h.b16 %v702
    %v3577 = vunpack.c.l.b16 %v703
    %v3578 = vunpack.c.h.b16 %v703
    %v3579 = vunpack.c.l.b16 %v704
    %v3580 = vunpack.c.h.b16 %v704
    %v3581 = vunpack.c.l.b16 %v705
    %v3582 = vunpack.c.h.b16 %v705
    %v3583 = vunpack.c.l.b16 %v706
    %v3584 = vunpack.c.h.b16 %v706
    %v3585 = vunpack.c.l.b16 %v707
    %v3586 = vunpack.c.h.b16 %v707
    %v3587 = vunpack.c.l.b16 %v708
    %v3588 = vunpack.c.h.b16 %v708
    %v3589 = vunpack.c.l.b16 %v709
    %v3590 = vunpack.c.h.b16 %v709
    %v3591 = vunpack.c.l.b16 %v710
    %v3592 = vunpack.c.h.b16 %v710
    %v3593 = vunpack.c.l.b16 %v711
    %v3594 = vunpack.c.h.b16 %v711
    %v3595 = vunpack.c.l.b16 %v712
    %v3596 = vunpack.c.h.b16 %v712
    %v3597 = vunpack.c.l.b16 %v713
    %v3598 = vunpack.c.h.b16 %v713
    %v3599 = vunpack.c.l.b16 %v714
    %v3600 = vunpack.c.h.b16 %v714
    %v3601 = vunpack.c.l.b16 %v715
    %v3602 = vunpack.c.h.b16 %v715
    %v3603 = vunpack.c.l.b16 %v716
    %v3604 = vunpack.c.h.b16 %v716
    %v3605 = vunpack.c.l.b16 %v717
    %v3606 = vunpack.c.h.b16 %v717
    %v3607 = vunpack.c.l.b16 %v718
    %v3608 = vunpack.c.h.b16 %v718
    %v3609 = vunpack.c.l.b16 %v719
    %v3610 = vunpack.c.h.b16 %v719
    %v3611 = vunpack.c.l.b16 %v720
    %v3612 = vunpack.c.h.b16 %v720
    %v3613 = vunpack.c.l.b16 %v721
    %v3614 = vunpack.c.h.b16 %v721
    %v3615 = vunpack.c.l.b16 %v722
    %v3616 = vunpack.c.h.b16 %v722
    %v3617 = vunpack.c.l.b16 %v723
    %v3618 = vunpack.c.h.b16 %v723
    %v3619 = vunpack.c.l.b16 %v724
    %v3620 = vunpack.c.h.b16 %v724
    %v3621 = vunpack.c.l.b16 %v725
    %v3622 = vunpack.c.h.b16 %v725
    %v3623 = vunpack.c.l.b16 %v726
    %v3624 = vunpack.c.h.b16 %v726
    %v3625 = vunpack.c.l.b16 %v727
    %v3626 = vunpack.c.h.b16 %v727
    %v3627 = vunpack.c.l.b16 %v728
    %v3628 = vunpack.c.h.b16 %v728
    %v3629 = vunpack.c.l.b16 %v729
    %v3630 = vunpack.c.h.b16 %v729
    %v3631 = vunpack.c.l.b16 %v730
    %v3632 = vunpack.c.h.b16 %v730
    %v3633 = vunpack.c.l.b16 %v731
    %v3634 = vunpack.c.h.b16 %v731
    %v3635 = vunpack.c.l.b16 %v732
    %v3636 = vunpack.c.h.b16 %v732
    %v3637 = vunpack.c.l.b16 %v733
    %v3638 = vunpack.c.h.b16 %v733
    %v3639 = vunpack.c.l.b16 %v734
    %v3640 = vunpack.c.h.b16 %v734
    %v3641 = vunpack.c.l.b16 %v735
    %v3642 = vunpack.c.h.b16 %v735
    %v3643 = vunpack.c.l.b16 %v736
    %v3644 = vunpack.c.h.b16 %v736
    %v3645 = vunpack.c.l.b16 %v737
    %v3646 = vunpack.c.h.b16 %v737
    %v3647 = vunpack.c.l.b16 %v738
    %v3648 = vunpack.c.h.b16 %v738
    %v3649 = vunpack.c.l.b16 %v739
    %v3650 = vunpack.c.h.b16 %v739
    %v3651 = vunpack.c.l.b16 %v740
    %v3652 = vunpack.c.h.b16 %v740
    %v3653 = vunpack.c.l.b16 %v741
    %v3654 = vunpack.c.h.b16 %v741
    %v3655 = vunpack.c.l.b16 %v742
    %v3656 = vunpack.c.h.b16 %v742
    %v3657 = vunpack.c.l.b16 %v743
    %v3658 = vunpack.c.h.b16 %v743
    %v3659 = vunpack.c.l.b16 %v744
    %v3660 = vunpack.c.h.b16 %v744
    %v3661 = vunpack.c.l.b16 %v745
    %v3662 = vunpack.c.h.b16 %v745
    %v3663 = vunpack.c.l.b16 %v746
    %v3664 = vunpack.c.h.b16 %v746
    %v3665 = vunpack.c.l.b16 %v747
    %v3666 = vunpack.c.h.b16 %v747
    %v3667 = vunpack.c.l.b16 %v748
    %v3668 = vunpack.c.h.b16 %v748
    %v3669 = vunpack.c.l.b16 %v749
    %v3670 = vunpack.c.h.b16 %v749
    %v3671 = vunpack.c.l.b16 %v750
    %v3672 = vunpack.c.h.b16 %v750
    %v3673 = vunpack.c.l.b16 %v751
    %v3674 = vunpack.c.h.b16 %v751
    %v3675 = vunpack.c.l.b16 %v752
    %v3676 = vunpack.c.h.b16 %v752
    %v3677 = vunpack.c.l.b16 %v753
    %v3678 = vunpack.c.h.b16 %v753
    %v3679 = vunpack.c.l.b16 %v754
    %v3680 = vunpack.c.h.b16 %v754
    %v3681 = vunpack.c.l.b16 %v755
    %v3682 = vunpack.c.h.b16 %v755
    %v3683 = vunpack.c.l.b16 %v756
    %v3684 = vunpack.c.h.b16 %v756
    %v3685 = vunpack.c.l.b16 %v757
    %v3686 = vunpack.c.h.b16 %v757
    %v3687 = vunpack.c.l.b16 %v758
    %v3688 = vunpack.c.h.b16 %v758
    %v3689 = vunpack.c.l.b16 %v759
    %v3690 = vunpack.c.h.b16 %v759
    %v3691 = vunpack.c.l.b16 %v760
    %v3692 = vunpack.c.h.b16 %v760
    %v3693 = vunpack.c.l.b16 %v761
    %v3694 = vunpack.c.h.b16 %v761
    %v3695 = vunpack.c.l.b16 %v762
    %v3696 = vunpack.c.h.b16 %v762
    %v3697 = vunpack.c.l.b16 %v763
    %v3698 = vunpack.c.h.b16 %v763
    %v3699 = vunpack.c.l.b16 %v764
    %v3700 = vunpack.c.h.b16 %v764
    %v3701 = vunpack.c.l.b16 %v765
    %v3702 = vunpack.c.h.b16 %v765
    %v3703 = vunpack.c.l.b16 %v766
    %v3704 = vunpack.c.h.b16 %v766
    %v3705 = vunpack.c.l.b16 %v767
    %v3706 = vunpack.c.h.b16 %v767
    %v3707 = vunpack.c.l.b16 %v768
    %v3708 = vunpack.c.h.b16 %v768
    %v3709 = vunpack.c.l.b16 %v769
    %v3710 = vunpack.c.h.b16 %v769
    %v3711 = vunpack.c.l.b16 %v770
    %v3712 = vunpack.c.h.b16 %v770
    %v3713 = vunpack.c.l.b16 %v771
    %v3714 = vunpack.c.h.b16 %v771
    %v3715 = vunpack.c.l.b16 %v772
    %v3716 = vunpack.c.h.b16 %v772
    %v3717 = vunpack.c.l.b16 %v773
    %v3718 = vunpack.c.h.b16 %v773
    %v3719 = vunpack.c.l.b16 %v774
    %v3720 = vunpack.c.h.b16 %v774
    %v3721 = vunpack.c.l.b16 %v775
    %v3722 = vunpack.c.h.b16 %v775
    %v3723 = vunpack.c.l.b16 %v776
    %v3724 = vunpack.c.h.b16 %v776
    %v3725 = vunpack.c.l.b16 %v777
    %v3726 = vunpack.c.h.b16 %v777
    %v3727 = vunpack.c.l.b16 %v778
    %v3728 = vunpack.c.h.b16 %v778
    %v3729 = vunpack.c.l.b16 %v779
    %v3730 = vunpack.c.h.b16 %v779
    %v3731 = vunpack.c.l.b16 %v780
    %v3732 = vunpack.c.h.b16 %v780
    %v3733 = vunpack.c.l.b16 %v781
    %v3734 = vunpack.c.h.b16 %v781
    %v3735 = vunpack.c.l.b16 %v782
    %v3736 = vunpack.c.h.b16 %v782
    %v3737 = vunpack.c.l.b16 %v783
    %v3738 = vunpack.c.h.b16 %v783
    %v3739 = vunpack.c.l.b16 %v784
    %v3740 = vunpack.c.h.b16 %v784
    %v3741 = vunpack.c.l.b16 %v785
    %v3742 = vunpack.c.h.b16 %v785
    %v3743 = vunpack.c.l.b16 %v786
    %v3744 = vunpack.c.h.b16 %v786
    %v3745 = vunpack.c.l.b16 %v787
    %v3746 = vunpack.c.h.b16 %v787
    %v3747 = vunpack.c.l.b16 %v788
    %v3748 = vunpack.c.h.b16 %v788
    %v3749 = vunpack.c.l.b16 %v789
    %v3750 = vunpack.c.h.b16 %v789
    %v3751 = vunpack.c.l.b16 %v790
    %v3752 = vunpack.c.h.b16 %v790
    %v3753 = vunpack.c.l.b16 %v791
    %v3754 = vunpack.c.h.b16 %v791
    %v3755 = vunpack.c.l.b16 %v792
    %v3756 = vunpack.c.h.b16 %v792
    %v3757 = vunpack.c.l.b16 %v793
    %v3758 = vunpack.c.h.b16 %v793
    %v3759 = vunpack.c.l.b16 %v794
    %v3760 = vunpack.c.h.b16 %v794
    %v3761 = vunpack.c.l.b16 %v795
    %v3762 = vunpack.c.h.b16 %v795
    %v3763 = vunpack.c.l.b16 %v796
    %v3764 = vunpack.c.h.b16 %v796
    %v3765 = vunpack.c.l.b16 %v797
    %v3766 = vunpack.c.h.b16 %v797
    %v3767 = vunpack.c.l.b16 %v798
    %v3768 = vunpack.c.h.b16 %v798
    %v3769 = vunpack.c.l.b16 %v799
    %v3770 = vunpack.c.h.b16 %v799
    %v3771 = vunpack.c.l.b16 %v800
    %v3772 = vunpack.c.h.b16 %v800
    %v3773 = vunpack.c.l.b16 %v801
    %v3774 = vunpack.c.h.b16 %v801
    %v3775 = vunpack.c.l.b16 %v802
    %v3776 = vunpack.c.h.b16 %v802
    %v3777 = vunpack.c.l.b16 %v803
    %v3778 = vunpack.c.h.b16 %v803
    %v3779 = vunpack.c.l.b16 %v804
    %v3780 = vunpack.c.h.b16 %v804
    %v3781 = vunpack.c.l.b16 %v805
    %v3782 = vunpack.c.h.b16 %v805
    %v3783 = vunpack.c.l.b16 %v806
    %v3784 = vunpack.c.h.b16 %v806
    %v3785 = vunpack.c.l.b16 %v807
    %v3786 = vunpack.c.h.b16 %v807
    %v3787 = vunpack.c.l.b16 %v808
    %v3788 = vunpack.c.h.b16 %v808
    %v3789 = vunpack.c.l.b16 %v809
    %v3790 = vunpack.c.h.b16 %v809
    %v3791 = vunpack.c.l.b16 %v810
    %v3792 = vunpack.c.h.b16 %v810
    %v3793 = vunpack.c.l.b16 %v811
    %v3794 = vunpack.c.h.b16 %v811
    %v3795 = vunpack.c.l.b16 %v812
    %v3796 = vunpack.c.h.b16 %v812
    %v3797 = vunpack.c.l.b16 %v813
    %v3798 = vunpack.c.h.b16 %v813
    %v3799 = vunpack.c.l.b16 %v814
    %v3800 = vunpack.c.h.b16 %v814
    %v3801 = vunpack.c.l.b16 %v815
    %v3802 = vunpack.c.h.b16 %v815
    %v3803 = vunpack.c.l.b16 %v816
    %v3804 = vunpack.c.h.b16 %v816
    %v3805 = vunpack.c.l.b16 %v817
    %v3806 = vunpack.c.h.b16 %v817
    %v3807 = vunpack.c.l.b16 %v818
    %v3808 = vunpack.c.h.b16 %v818
    %v3809 = vunpack.c.l.b16 %v819
    %v3810 = vunpack.c.h.b16 %v819
    %v3811 = vunpack.c.l.b16 %v820
    %v3812 = vunpack.c.h.b16 %v820
    %v3813 = vunpack.c.l.b16 %v821
    %v3814 = vunpack.c.h.b16 %v821
    %v3815 = vunpack.c.l.b16 %v822
    %v3816 = vunpack.c.h.b16 %v822
    %v3817 = vunpack.c.l.b16 %v823
    %v3818 = vunpack.c.h.b16 %v823
    %v3819 = vunpack.c.l.b16 %v824
    %v3820 = vunpack.c.h.b16 %v824
    %v3821 = vunpack.c.l.b16 %v825
    %v3822 = vunpack.c.h.b16 %v825
    %v3823 = vunpack.c.l.b16 %v826
    %v3824 = vunpack.c.h.b16 %v826
    %v3825 = vunpack.c.l.b16 %v827
    %v3826 = vunpack.c.h.b16 %v827
    %v3827 = vunpack.c.l.b16 %v828
    %v3828 = vunpack.c.h.b16 %v828
    %v3829 = vunpack.c.l.b16 %v829
    %v3830 = vunpack.c.h.b16 %v829
    %v3831 = vunpack.c.l.b16 %v830
    %v3832 = vunpack.c.h.b16 %v830
    %v3833 = vunpack.c.l.b16 %v831
    %v3834 = vunpack.c.h.b16 %v831
    %v3835 = vunpack.c.l.b16 %v832
    %v3836 = vunpack.c.h.b16 %v832
    %v3837 = vunpack.c.l.b16 %v833
    %v3838 = vunpack.c.h.b16 %v833
    %v3839 = vunpack.c.l.b16 %v834
    %v3840 = vunpack.c.h.b16 %v834
    %v3841 = vunpack.c.l.b16 %v835
    %v3842 = vunpack.c.h.b16 %v835
    %v3843 = vunpack.c.l.b16 %v836
    %v3844 = vunpack.c.h.b16 %v836
    %v3845 = vunpack.c.l.b16 %v837
    %v3846 = vunpack.c.h.b16 %v837
    %v3847 = vunpack.c.l.b16 %v838
    %v3848 = vunpack.c.h.b16 %v838
    %v3849 = vunpack.c.l.b16 %v839
    %v3850 = vunpack.c.h.b16 %v839
    %v3851 = vunpack.c.l.b16 %v840
    %v3852 = vunpack.c.h.b16 %v840
    %v3853 = vunpack.c.l.b16 %v841
    %v3854 = vunpack.c.h.b16 %v841
    %v3855 = vunpack.c.l.b16 %v842
    %v3856 = vunpack.c.h.b16 %v842
    %v3857 = vunpack.c.l.b16 %v843
    %v3858 = vunpack.c.h.b16 %v843
    %v3859 = vunpack.c.l.b16 %v844
    %v3860 = vunpack.c.h.b16 %v844
    %v3861 = vunpack.c.l.b16 %v845
    %v3862 = vunpack.c.h.b16 %v845
    %v3863 = vunpack.c.l.b16 %v846
    %v3864 = vunpack.c.h.b16 %v846
    %v3865 = vunpack.c.l.b16 %v847
    %v3866 = vunpack.c.h.b16 %v847
    %v3867 = vunpack.c.l.b16 %v848
    %v3868 = vunpack.c.h.b16 %v848
    %v3869 = vunpack.c.l.b16 %v849
    %v3870 = vunpack.c.h.b16 %v849
    %v3871 = vunpack.c.l.b16 %v850
    %v3872 = vunpack.c.h.b16 %v850
    %v3873 = vunpack.c.l.b16 %v851
    %v3874 = vunpack.c.h.b16 %v851
    %v3875 = vunpack.c.l.b16 %v852
    %v3876 = vunpack.c.h.b16 %v852
    %v3877 = vunpack.c.l.b16 %v853
    %v3878 = vunpack.c.h.b16 %v853
    %v3879 = vunpack.c.l.b16 %v854
    %v3880 = vunpack.c.h.b16 %v854
    %v3881 = vunpack.c.l.b16 %v855
    %v3882 = vunpack.c.h.b16 %v855
    %v3883 = vunpack.c.l.b16 %v856
    %v3884 = vunpack.c.h.b16 %v856
    %v3885 = vunpack.c.l.b16 %v857
    %v3886 = vunpack.c.h.b16 %v857
    %v3887 = vunpack.c.l.b16 %v858
    %v3888 = vunpack.c.h.b16 %v858
    %v3889 = vunpack.c.l.b16 %v859
    %v3890 = vunpack.c.h.b16 %v859
    %v3891 = vunpack.c.l.b16 %v860
    %v3892 = vunpack.c.h.b16 %v860
    %v3893 = vunpack.c.l.b16 %v861
    %v3894 = vunpack.c.h.b16 %v861
    %v3895 = vunpack.c.l.b16 %v862
    %v3896 = vunpack.c.h.b16 %v862
    %v3897 = vunpack.c.l.b16 %v863
    %v3898 = vunpack.c.h.b16 %v863
    %v3899 = vunpack.c.l.b16 %v864
    %v3900 = vunpack.c.h.b16 %v864
    %v3901 = vunpack.c.l.b16 %v865
    %v3902 = vunpack.c.h.b16 %v865
    %v3903 = vunpack.c.l.b16 %v866
    %v3904 = vunpack.c.h.b16 %v866
    %v3905 = vunpack.c.l.b16 %v867
    %v3906 = vunpack.c.h.b16 %v867
    %v3907 = vunpack.c.l.b16 %v868
    %v3908 = vunpack.c.h.b16 %v868
    %v3909 = vunpack.c.l.b16 %v869
    %v3910 = vunpack.c.h.b16 %v869
    %v3911 = vunpack.c.l.b16 %v870
    %v3912 = vunpack.c.h.b16 %v870
    %v3913 = vunpack.c.l.b16 %v871
    %v3914 = vunpack.c.h.b16 %v871
    %v3915 = vunpack.c.l.b16 %v872
    %v3916 = vunpack.c.h.b16 %v872
    %v3917 = vunpack.c.l.b16 %v873
    %v3918 = vunpack.c.h.b16 %v873
    %v3919 = vunpack.c.l.b16 %v874
    %v3920 = vunpack.c.h.b16 %v874
    %v3921 = vunpack.c.l.b16 %v875
    %v3922 = vunpack.c.h.b16 %v875
    %v3923 = vunpack.c.l.b16 %v876
    %v3924 = vunpack.c.h.b16 %v876
    %v3925 = vunpack.c.l.b16 %v877
    %v3926 = vunpack.c.h.b16 %v877
    %v3927 = vunpack.c.l.b16 %v878
    %v3928 = vunpack.c.h.b16 %v878
    %v3929 = vunpack.c.l.b16 %v879
    %v3930 = vunpack.c.h.b16 %v879
    %v3931 = vunpack.c.l.b16 %v880
    %v3932 = vunpack.c.h.b16 %v880
    %v3933 = vunpack.c.l.b16 %v881
    %v3934 = vunpack.c.h.b16 %v881
    %v3935 = vunpack.c.l.b16 %v882
    %v3936 = vunpack.c.h.b16 %v882
    %v3937 = vunpack.c.l.b16 %v883
    %v3938 = vunpack.c.h.b16 %v883
    %v3939 = vunpack.c.l.b16 %v884
    %v3940 = vunpack.c.h.b16 %v884
    %v3941 = vunpack.c.l.b16 %v885
    %v3942 = vunpack.c.h.b16 %v885
    %v3943 = vunpack.c.l.b16 %v886
    %v3944 = vunpack.c.h.b16 %v886
    %v3945 = vunpack.c.l.b16 %v887
    %v3946 = vunpack.c.h.b16 %v887
    %v3947 = vunpack.c.l.b16 %v888
    %v3948 = vunpack.c.h.b16 %v888
    %v3949 = vunpack.c.l.b16 %v889
    %v3950 = vunpack.c.h.b16 %v889
    %v3951 = vunpack.c.l.b16 %v890
    %v3952 = vunpack.c.h.b16 %v890
    %v3953 = vunpack.c.l.b16 %v891
    %v3954 = vunpack.c.h.b16 %v891
    %v3955 = vunpack.c.l.b16 %v892
    %v3956 = vunpack.c.h.b16 %v892
    %v3957 = vunpack.c.l.b16 %v893
    %v3958 = vunpack.c.h.b16 %v893
    %v3959 = vunpack.c.l.b16 %v894
    %v3960 = vunpack.c.h.b16 %v894
    %v3961 = vunpack.c.l.b16 %v895
    %v3962 = vunpack.c.h.b16 %v895
    %v3963 = vunpack.c.l.b16 %v896
    %v3964 = vunpack.c.h.b16 %v896
    %v3965 = vunpack.c.l.b16 %v897
    %v3966 = vunpack.c.h.b16 %v897
    %v3967 = vunpack.c.l.b16 %v898
    %v3968 = vunpack.c.h.b16 %v898
    %v3969 = vunpack.c.l.b16 %v899
    %v3970 = vunpack.c.h.b16 %v899
    %v3971 = vunpack.c.l.b16 %v900
    %v3972 = vunpack.c.h.b16 %v900
    %v3973 = vunpack.c.l.b16 %v901
    %v3974 = vunpack.c.h.b16 %v901
    %v3975 = vunpack.c.l.b16 %v902
    %v3976 = vunpack.c.h.b16 %v902
    %v3977 = vunpack.c.l.b16 %v903
    %v3978 = vunpack.c.h.b16 %v903
    %v3979 = vunpack.c.l.b16 %v904
    %v3980 = vunpack.c.h.b16 %v904
    %v3981 = vunpack.c.l.b16 %v905
    %v3982 = vunpack.c.h.b16 %v905
    %v3983 = vunpack.c.l.b16 %v906
    %v3984 = vunpack.c.h.b16 %v906
    %v3985 = vunpack.c.l.b16 %v907
    %v3986 = vunpack.c.h.b16 %v907
    %v3987 = vunpack.c.l.b16 %v908
    %v3988 = vunpack.c.h.b16 %v908
    %v3989 = vunpack.c.l.b16 %v909
    %v3990 = vunpack.c.h.b16 %v909
    %v3991 = vunpack.c.l.b16 %v910
    %v3992 = vunpack.c.h.b16 %v910
    %v3993 = vunpack.c.l.b16 %v911
    %v3994 = vunpack.c.h.b16 %v911
    %v3995 = vunpack.c.l.b16 %v912
    %v3996 = vunpack.c.h.b16 %v912
    %v3997 = vunpack.c.l.b16 %v913
    %v3998 = vunpack.c.h.b16 %v913
    %v3999 = vunpack.c.l.b16 %v914
    %v4000 = vunpack.c.h.b16 %v914
    %v4001 = vunpack.c.l.b16 %v915
    %v4002 = vunpack.c.h.b16 %v915
    %v4003 = vunpack.c.l.b16 %v916
    %v4004 = vunpack.c.h.b16 %v916
    %v4005 = vunpack.c.l.b16 %v917
    %v4006 = vunpack.c.h.b16 %v917
    %v4007 = vunpack.c.l.b16 %v918
    %v4008 = vunpack.c.h.b16 %v918
    %v4009 = vunpack.c.l.b16 %v919
    %v4010 = vunpack.c.h.b16 %v919
    %v4011 = vunpack.c.l.b16 %v920
    %v4012 = vunpack.c.h.b16 %v920
    %v4013 = vunpack.c.l.b16 %v921
    %v4014 = vunpack.c.h.b16 %v921
    %v4015 = vunpack.c.l.b16 %v922
    %v4016 = vunpack.c.h.b16 %v922
    %v4017 = vunpack.c.l.b16 %v923
    %v4018 = vunpack.c.h.b16 %v923
    %v4019 = vunpack.c.l.b16 %v924
    %v4020 = vunpack.c.h.b16 %v924
    %v4021 = vunpack.c.l.b16 %v925
    %v4022 = vunpack.c.h.b16 %v925
    %v4023 = vunpack.c.l.b16 %v926
    %v4024 = vunpack.c.h.b16 %v926
    %v4025 = vunpack.c.l.b16 %v927
    %v4026 = vunpack.c.h.b16 %v927
    %v4027 = vunpack.c.l.b16 %v928
    %v4028 = vunpack.c.h.b16 %v928
    %v4029 = vunpack.c.l.b16 %v929
    %v4030 = vunpack.c.h.b16 %v929
    %v4031 = vunpack.c.l.b16 %v930
    %v4032 = vunpack.c.h.b16 %v930
    %v4033 = vunpack.c.l.b16 %v931
    %v4034 = vunpack.c.h.b16 %v931
    %v4035 = vunpack.c.l.b16 %v932
    %v4036 = vunpack.c.h.b16 %v932
    %v4037 = vunpack.c.l.b16 %v933
    %v4038 = vunpack.c.h.b16 %v933
    %v4039 = vunpack.c.l.b16 %v934
    %v4040 = vunpack.c.h.b16 %v934
    %v4041 = vunpack.c.l.b16 %v935
    %v4042 = vunpack.c.h.b16 %v935
    %v4043 = vunpack.c.l.b16 %v936
    %v4044 = vunpack.c.h.b16 %v936
    %v4045 = vunpack.c.l.b16 %v937
    %v4046 = vunpack.c.h.b16 %v937
    %v4047 = vunpack.c.l.b16 %v938
    %v4048 = vunpack.c.h.b16 %v938
    %v4049 = vunpack.c.l.b16 %v939
    %v4050 = vunpack.c.h.b16 %v939
    %v4051 = vunpack.c.l.b16 %v940
    %v4052 = vunpack.c.h.b16 %v940
    %v4053 = vunpack.c.l.b16 %v941
    %v4054 = vunpack.c.h.b16 %v941
    %v4055 = vunpack.c.l.b16 %v942
    %v4056 = vunpack.c.h.b16 %v942
    %v4057 = vunpack.c.l.b16 %v943
    %v4058 = vunpack.c.h.b16 %v943
    %v4059 = vunpack.c.l.b16 %v944
    %v4060 = vunpack.c.h.b16 %v944
    %v4061 = vunpack.c.l.b16 %v945
    %v4062 = vunpack.c.h.b16 %v945
    %v4063 = vunpack.c.l.b16 %v946
    %v4064 = vunpack.c.h.b16 %v946
    %v4065 = vunpack.c.l.b16 %v947
    %v4066 = vunpack.c.h.b16 %v947
    %v4067 = vunpack.c.l.b16 %v948
    %v4068 = vunpack.c.h.b16 %v948
    %v4069 = vunpack.c.l.b16 %v949
    %v4070 = vunpack.c.h.b16 %v949
    %v4071 = vunpack.c.l.b16 %v950
    %v4072 = vunpack.c.h.b16 %v950
    %v4073 = vunpack.c.l.b16 %v951
    %v4074 = vunpack.c.h.b16 %v951
    %v4075 = vunpack.c.l.b16 %v952
    %v4076 = vunpack.c.h.b16 %v952
    %v4077 = vunpack.c.l.b16 %v953
    %v4078 = vunpack.c.h.b16 %v953
    %v4079 = vunpack.c.l.b16 %v954
    %v4080 = vunpack.c.h.b16 %v954
    %v4081 = vunpack.c.l.b16 %v955
    %v4082 = vunpack.c.h.b16 %v955
    %v4083 = vunpack.c.l.b16 %v956
    %v4084 = vunpack.c.h.b16 %v956
    %v4085 = vunpack.c.l.b16 %v957
    %v4086 = vunpack.c.h.b16 %v957
    %v4087 = vunpack.c.l.b16 %v958
    %v4088 = vunpack.c.h.b16 %v958
    %v4089 = vunpack.c.l.b16 %v959
    %v4090 = vunpack.c.h.b16 %v959
    %v4091 = vunpack.c.l.b16 %v960
    %v4092 = vunpack.c.h.b16 %v960
    %v4093 = vunpack.c.l.b16 %v961
    %v4094 = vunpack.c.h.b16 %v961
    %v4095 = vunpack.c.l.b16 %v962
    %v4096 = vunpack.c.h.b16 %v962
    %v4097 = vunpack.c.l.b16 %v963
    %v4098 = vunpack.c.h.b16 %v963
    %v4099 = vunpack.c.l.b16 %v964
    %v4100 = vunpack.c.h.b16 %v964
    %v4101 = vunpack.c.l.b16 %v965
    %v4102 = vunpack.c.h.b16 %v965
    %v4103 = vunpack.c.l.b16 %v966
    %v4104 = vunpack.c.h.b16 %v966
    %v4105 = vunpack.c.l.b16 %v967
    %v4106 = vunpack.c.h.b16 %v967
    %v4107 = vunpack.c.l.b16 %v968
    %v4108 = vunpack.c.h.b16 %v968
    %v4109 = vunpack.c.l.b16 %v969
    %v4110 = vunpack.c.h.b16 %v969
    %v4111 = vunpack.c.l.b16 %v970
    %v4112 = vunpack.c.h.b16 %v970
    %v4113 = vunpack.c.l.b16 %v971
    %v4114 = vunpack.c.h.b16 %v971
    %v4115 = vunpack.c.l.b16 %v972
    %v4116 = vunpack.c.h.b16 %v972
    %v4117 = vunpack.c.l.b16 %v973
    %v4118 = vunpack.c.h.b16 %v973
    %v4119 = vunpack.c.l.b16 %v974
    %v4120 = vunpack.c.h.b16 %v974
    %v4121 = vunpack.c.l.b16 %v975
    %v4122 = vunpack.c.h.b16 %v975
    %v4123 = vunpack.c.l.b16 %v976
    %v4124 = vunpack.c.h.b16 %v976
    %v4125 = vunpack.c.l.b16 %v977
    %v4126 = vunpack.c.h.b16 %v977
    %v4127 = vunpack.c.l.b16 %v978
    %v4128 = vunpack.c.h.b16 %v978
    %v4129 = vunpack.c.l.b16 %v979
    %v4130 = vunpack.c.h.b16 %v979
    %v4131 = vunpack.c.l.b16 %v980
    %v4132 = vunpack.c.h.b16 %v980
    %v4133 = vunpack.c.l.b16 %v981
    %v4134 = vunpack.c.h.b16 %v981
    %v4135 = vunpack.c.l.b16 %v982
    %v4136 = vunpack.c.h.b16 %v982
    %v4137 = vunpack.c.l.b16 %v983
    %v4138 = vunpack.c.h.b16 %v983
    %v4139 = vunpack.c.l.b16 %v984
    %v4140 = vunpack.c.h.b16 %v984
    %v4141 = vunpack.c.l.b16 %v985
    %v4142 = vunpack.c.h.b16 %v985
    %v4143 = vunpack.c.l.b16 %v986
    %v4144 = vunpack.c.h.b16 %v986
    %v4145 = vunpack.c.l.b16 %v987
    %v4146 = vunpack.c.h.b16 %v987
    %v4147 = vunpack.c.l.b16 %v988
    %v4148 = vunpack.c.h.b16 %v988
    %v4149 = vunpack.c.l.b16 %v989
    %v4150 = vunpack.c.h.b16 %v989
    %v4151 = vunpack.c.l.b16 %v990
    %v4152 = vunpack.c.h.b16 %v990
    %v4153 = vunpack.c.l.b16 %v991
    %v4154 = vunpack.c.h.b16 %v991
    %v4155 = vunpack.c.l.b16 %v992
    %v4156 = vunpack.c.h.b16 %v992
    %v4157 = vunpack.c.l.b16 %v993
    %v4158 = vunpack.c.h.b16 %v993
    %v4159 = vunpack.c.l.b16 %v994
    %v4160 = vunpack.c.h.b16 %v994
    %v4161 = vunpack.c.l.b16 %v995
    %v4162 = vunpack.c.h.b16 %v995
    %v4163 = vunpack.c.l.b16 %v996
    %v4164 = vunpack.c.h.b16 %v996
    %v4165 = vunpack.c.l.b16 %v997
    %v4166 = vunpack.c.h.b16 %v997
    %v4167 = vunpack.c.l.b16 %v998
    %v4168 = vunpack.c.h.b16 %v998
    %v4169 = vunpack.c.l.b16 %v999
    %v4170 = vunpack.c.h.b16 %v999
    %v4171 = vunpack.c.l.b16 %v1000
    %v4172 = vunpack.c.h.b16 %v1000
    %v4173 = vunpack.c.l.b16 %v1001
    %v4174 = vunpack.c.h.b16 %v1001
    %v4175 = vunpack.c.l.b16 %v1002
    %v4176 = vunpack.c.h.b16 %v1002
    %v4177 = vunpack.c.l.b16 %v1003
    %v4178 = vunpack.c.h.b16 %v1003
    %v4179 = vunpack.c.l.b16 %v1004
    %v4180 = vunpack.c.h.b16 %v1004
    %v4181 = vunpack.c.l.b16 %v1005
    %v4182 = vunpack.c.h.b16 %v1005
    %v4183 = vunpack.c.l.b16 %v1006
    %v4184 = vunpack.c.h.b16 %v1006
    %v4185 = vunpack.c.l.b16 %v1007
    %v4186 = vunpack.c.h.b16 %v1007
    %v4187 = vunpack.c.l.b16 %v1008
    %v4188 = vunpack.c.h.b16 %v1008
    %v4189 = vunpack.c.l.b16 %v1009
    %v4190 = vunpack.c.h.b16 %v1009
    %v4191 = vunpack.c.l.b16 %v1010
    %v4192 = vunpack.c.h.b16 %v1010
    %v4193 = vunpack.c.l.b16 %v1011
    %v4194 = vunpack.c.h.b16 %v1011
    %v4195 = vunpack.c.l.b16 %v1012
    %v4196 = vunpack.c.h.b16 %v1012
    %v4197 = vunpack.c.l.b16 %v1013
    %v4198 = vunpack.c.h.b16 %v1013
    %v4199 = vunpack.c.l.b16 %v1014
    %v4200 = vunpack.c.h.b16 %v1014
    %v4201 = vunpack.c.l.b16 %v1015
    %v4202 = vunpack.c.h.b16 %v1015
    %v4203 = vunpack.c.l.b16 %v1016
    %v4204 = vunpack.c.h.b16 %v1016
    %v4205 = vunpack.c.l.b16 %v1017
    %v4206 = vunpack.c.h.b16 %v1017
    %v4207 = vunpack.c.l.b16 %v1018
    %v4208 = vunpack.c.h.b16 %v1018
    %v4209 = vunpack.c.l.b16 %v1019
    %v4210 = vunpack.c.h.b16 %v1019
    %v4211 = vunpack.c.l.b16 %v1020
    %v4212 = vunpack.c.h.b16 %v1020
    %v4213 = vunpack.c.l.b16 %v1021
    %v4214 = vunpack.c.h.b16 %v1021
    %v4215 = vunpack.c.l.b16 %v1022
    %v4216 = vunpack.c.h.b16 %v1022
    %v4217 = vunpack.c.l.b16 %v1023
    %v4218 = vunpack.c.h.b16 %v1023
    %v4219 = vunpack.c.l.b16 %v1024
    %v4220 = vunpack.c.h.b16 %v1024
    %v4221 = vunpack.c.l.b16 %v1025
    %v4222 = vunpack.c.h.b16 %v1025
    %v4223 = vunpack.c.l.b16 %v1026
    %v4224 = vunpack.c.h.b16 %v1026
    %v4225 = vunpack.c.l.b16 %v1027
    %v4226 = vunpack.c.h.b16 %v1027
    %v4227 = vunpack.c.l.b16 %v1028
    %v4228 = vunpack.c.h.b16 %v1028
    %v4229 = vunpack.c.l.b16 %v1029
    %v4230 = vunpack.c.h.b16 %v1029
    %v4231 = vunpack.c.l.b16 %v1030
    %v4232 = vunpack.c.h.b16 %v1030
    %v4233 = vunpack.c.l.b16 %v1031
    %v4234 = vunpack.c.h.b16 %v1031
    %v4235 = vunpack.c.l.b16 %v1032
    %v4236 = vunpack.c.h.b16 %v1032
    %v4237 = vunpack.c.l.b16 %v1033
    %v4238 = vunpack.c.h.b16 %v1033
    %v4239 = vunpack.c.l.b16 %v1034
    %v4240 = vunpack.c.h.b16 %v1034
    %v4241 = vunpack.c.l.b16 %v1035
    %v4242 = vunpack.c.h.b16 %v1035
    %v4243 = vunpack.c.l.b16 %v1036
    %v4244 = vunpack.c.h.b16 %v1036
    %v4245 = vunpack.c.l.b16 %v1037
    %v4246 = vunpack.c.h.b16 %v1037
    %v4247 = vunpack.c.l.b16 %v1038
    %v4248 = vunpack.c.h.b16 %v1038
    %v4249 = vunpack.c.l.b16 %v1039
    %v4250 = vunpack.c.h.b16 %v1039
    %v4251 = vunpack.c.l.b16 %v1040
    %v4252 = vunpack.c.h.b16 %v1040
    %v4253 = vunpack.c.l.b16 %v1041
    %v4254 = vunpack.c.h.b16 %v1041
    %v4255 = vunpack.c.l.b16 %v1042
    %v4256 = vunpack.c.h.b16 %v1042
    %v4257 = vunpack.c.l.b16 %v1043
    %v4258 = vunpack.c.h.b16 %v1043
    %v4259 = vunpack.c.l.b16 %v1044
    %v4260 = vunpack.c.h.b16 %v1044
    %v4261 = vunpack.c.l.b16 %v1045
    %v4262 = vunpack.c.h.b16 %v1045
    %v4263 = vunpack.c.l.b16 %v1046
    %v4264 = vunpack.c.h.b16 %v1046
    %v4265 = vunpack.c.l.b16 %v1047
    %v4266 = vunpack.c.h.b16 %v1047
    %v4267 = vunpack.c.l.b16 %v1048
    %v4268 = vunpack.c.h.b16 %v1048
    %v4269 = vunpack.c.l.b16 %v1049
    %v4270 = vunpack.c.h.b16 %v1049
    %v4271 = vunpack.c.l.b16 %v1050
    %v4272 = vunpack.c.h.b16 %v1050
    %v4273 = vunpack.c.l.b16 %v1051
    %v4274 = vunpack.c.h.b16 %v1051
    %v4275 = vunpack.c.l.b16 %v1052
    %v4276 = vunpack.c.h.b16 %v1052
    %v4277 = vunpack.c.l.b16 %v1053
    %v4278 = vunpack.c.h.b16 %v1053
    %v4279 = vunpack.c.l.b16 %v1054
    %v4280 = vunpack.c.h.b16 %v1054
    %v4281 = vunpack.c.l.b16 %v1055
    %v4282 = vunpack.c.h.b16 %v1055
    %v4283 = vunpack.c.l.b16 %v1056
    %v4284 = vunpack.c.h.b16 %v1056
    %v4285 = vunpack.c.l.b16 %v1057
    %v4286 = vunpack.c.h.b16 %v1057
    %v4287 = vunpack.c.l.b16 %v1058
    %v4288 = vunpack.c.h.b16 %v1058
    %v4289 = vunpack.c.l.b16 %v1059
    %v4290 = vunpack.c.h.b16 %v1059
    %v4291 = vunpack.c.l.b16 %v1060
    %v4292 = vunpack.c.h.b16 %v1060
    %v4293 = vunpack.c.l.b16 %v1061
    %v4294 = vunpack.c.h.b16 %v1061
    %v4295 = vunpack.c.l.b16 %v1062
    %v4296 = vunpack.c.h.b16 %v1062
    %v4297 = vunpack.c.l.b16 %v1063
    %v4298 = vunpack.c.h.b16 %v1063
    %v4299 = vunpack.c.l.b16 %v1064
    %v4300 = vunpack.c.h.b16 %v1064
    %v4301 = vunpack.c.l.b16 %v1065
    %v4302 = vunpack.c.h.b16 %v1065
    %v4303 = vunpack.c.l.b16 %v1066
    %v4304 = vunpack.c.h.b16 %v1066
    %v4305 = vunpack.c.l.b16 %v1067
    %v4306 = vunpack.c.h.b16 %v1067
    %v4307 = vunpack.c.l.b16 %v1068
    %v4308 = vunpack.c.h.b16 %v1068
    %v4309 = vunpack.c.l.b16 %v1069
    %v4310 = vunpack.c.h.b16 %v1069
    %v4311 = vunpack.c.l.b16 %v1070
    %v4312 = vunpack.c.h.b16 %v1070
    %v4313 = vunpack.c.l.b16 %v1071
    %v4314 = vunpack.c.h.b16 %v1071
    %v4315 = vunpack.c.l.b16 %v1072
    %v4316 = vunpack.c.h.b16 %v1072
    %v4317 = vunpack.c.l.b16 %v1073
    %v4318 = vunpack.c.h.b16 %v1073
    %v4319 = vunpack.c.l.b16 %v1074
    %v4320 = vunpack.c.h.b16 %v1074
    %v4321 = vunpack.c.l.b16 %v1075
    %v4322 = vunpack.c.h.b16 %v1075
    %v4323 = vunpack.c.l.b16 %v1076
    %v4324 = vunpack.c.h.b16 %v1076
    %v4325 = vunpack.c.l.b16 %v1077
    %v4326 = vunpack.c.h.b16 %v1077
    %v4327 = vunpack.c.l.b16 %v1078
    %v4328 = vunpack.c.h.b16 %v1078
    %v4329 = vunpack.c.l.b16 %v1079
    %v4330 = vunpack.c.h.b16 %v1079
    %v4331 = vunpack.c.l.b16 %v1080
    %v4332 = vunpack.c.h.b16 %v1080
    %v4333 = vunpack.c.l.b16 %v1081
    %v4334 = vunpack.c.h.b16 %v1081
    %v4335 = vunpack.c.l.b16 %v1082
    %v4336 = vunpack.c.h.b16 %v1082
    %v4337 = vunpack.c.l.b16 %v1083
    %v4338 = vunpack.c.h.b16 %v1083
    %v4339 = vunpack.c.l.b16 %v1084
    %v4340 = vunpack.c.h.b16 %v1084
    %v4341 = vunpack.c.l.b16 %v1085
    %v4342 = vunpack.c.h.b16 %v1085
    %v4343 = vunpack.c.l.b16 %v1086
    %v4344 = vunpack.c.h.b16 %v1086
    %v4345 = vunpack.c.l.b16 %v1087
    %v4346 = vunpack.c.h.b16 %v1087
    %v4347 = vunpack.c.l.b16 %v1088
    %v4348 = vunpack.c.h.b16 %v1088
    %v4349 = vunpack.c.l.b16 %v1089
    %v4350 = vunpack.c.h.b16 %v1089
    %v4351 = vunpack.c.l.b16 %v1090
    %v4352 = vunpack.c.h.b16 %v1090
    %v4353 = vunpack.c.l.b16 %v1091
    %v4354 = vunpack.c.h.b16 %v1091
    %v4355 = vunpack.c.l.b16 %v1092
    %v4356 = vunpack.c.h.b16 %v1092
    %v4357 = vunpack.c.l.b16 %v1093
    %v4358 = vunpack.c.h.b16 %v1093
    %v4359 = vunpack.c.l.b16 %v1094
    %v4360 = vunpack.c.h.b16 %v1094
    %v4361 = vunpack.c.l.b16 %v1095
    %v4362 = vunpack.c.h.b16 %v1095
    %v4363 = vunpack.c.l.b16 %v1096
    %v4364 = vunpack.c.h.b16 %v1096
    %v4365 = vunpack.c.l.b16 %v1097
    %v4366 = vunpack.c.h.b16 %v1097
    %v4367 = vunpack.c.l.b16 %v1098
    %v4368 = vunpack.c.h.b16 %v1098
    %v4369 = vunpack.c.l.b16 %v1099
    %v4370 = vunpack.c.h.b16 %v1099
    %v4371 = vunpack.c.l.b16 %v1100
    %v4372 = vunpack.c.h.b16 %v1100
    %v4373 = vunpack.c.l.b16 %v1101
    %v4374 = vunpack.c.h.b16 %v1101
    %v4375 = vunpack.c.l.b16 %v1102
    %v4376 = vunpack.c.h.b16 %v1102
    %v4377 = vunpack.c.l.b16 %v1103
    %v4378 = vunpack.c.h.b16 %v1103
    %v4379 = vunpack.c.l.b16 %v1104
    %v4380 = vunpack.c.h.b16 %v1104
    %v4381 = vunpack.c.l.b16 %v1105
    %v4382 = vunpack.c.h.b16 %v1105
    %v4383 = vunpack.c.l.b16 %v1106
    %v4384 = vunpack.c.h.b16 %v1106
    %v4385 = vunpack.c.l.b16 %v1107
    %v4386 = vunpack.c.h.b16 %v1107
    %v4387 = vunpack.c.l.b16 %v1108
    %v4388 = vunpack.c.h.b16 %v1108
    %v4389 = vunpack.c.l.b16 %v1109
    %v4390 = vunpack.c.h.b16 %v1109
    %v4391 = vunpack.c.l.b16 %v1110
    %v4392 = vunpack.c.h.b16 %v1110
    %v4393 = vunpack.c.l.b16 %v1111
    %v4394 = vunpack.c.h.b16 %v1111
    %v4395 = vunpack.c.l.b16 %v1112
    %v4396 = vunpack.c.h.b16 %v1112
    %v4397 = vunpack.c.l.b16 %v1113
    %v4398 = vunpack.c.h.b16 %v1113
    %v4399 = vunpack.c.l.b16 %v1114
    %v4400 = vunpack.c.h.b16 %v1114
    %v4401 = vunpack.c.l.b16 %v1115
    %v4402 = vunpack.c.h.b16 %v1115
    %v4403 = vunpack.c.l.b16 %v1116
    %v4404 = vunpack.c.h.b16 %v1116
    %v4405 = vunpack.c.l.b16 %v1117
    %v4406 = vunpack.c.h.b16 %v1117
    %v4407 = vunpack.c.l.b16 %v1118
    %v4408 = vunpack.c.h.b16 %v1118
    %v4409 = vunpack.c.l.b16 %v1119
    %v4410 = vunpack.c.h.b16 %v1119
    %v4411 = vunpack.c.l.b16 %v1120
    %v4412 = vunpack.c.h.b16 %v1120
    %v4413 = vunpack.c.l.b16 %v1121
    %v4414 = vunpack.c.h.b16 %v1121
    %v4415 = vunpack.c.l.b16 %v1122
    %v4416 = vunpack.c.h.b16 %v1122
    %v4417 = vunpack.c.l.b16 %v1123
    %v4418 = vunpack.c.h.b16 %v1123
    %v4419 = vunpack.c.l.b16 %v1124
    %v4420 = vunpack.c.h.b16 %v1124
    %v4421 = vunpack.c.l.b16 %v1125
    %v4422 = vunpack.c.h.b16 %v1125
    %v4423 = vunpack.c.l.b16 %v1126
    %v4424 = vunpack.c.h.b16 %v1126
    %v4425 = vunpack.c.l.b16 %v1127
    %v4426 = vunpack.c.h.b16 %v1127
    %v4427 = vunpack.c.l.b16 %v1128
    %v4428 = vunpack.c.h.b16 %v1128
    %v4429 = vunpack.c.l.b16 %v1129
    %v4430 = vunpack.c.h.b16 %v1129
    %v4431 = vunpack.c.l.b16 %v1130
    %v4432 = vunpack.c.h.b16 %v1130
    %v4433 = vunpack.c.l.b16 %v1131
    %v4434 = vunpack.c.h.b16 %v1131
    %v4435 = vunpack.c.l.b16 %v1132
    %v4436 = vunpack.c.h.b16 %v1132
    %v4437 = vunpack.c.l.b16 %v1133
    %v4438 = vunpack.c.h.b16 %v1133
    %v4439 = vunpack.c.l.b16 %v1134
    %v4440 = vunpack.c.h.b16 %v1134
    %v4441 = vunpack.c.l.b16 %v1135
    %v4442 = vunpack.c.h.b16 %v1135
    %v4443 = vunpack.c.l.b16 %v1136
    %v4444 = vunpack.c.h.b16 %v1136
    %v4445 = vunpack.c.l.b16 %v1137
    %v4446 = vunpack.c.h.b16 %v1137
    %v4447 = vunpack.c.l.b16 %v1138
    %v4448 = vunpack.c.h.b16 %v1138
    %v4449 = vunpack.c.l.b16 %v1139
    %v4450 = vunpack.c.h.b16 %v1139
    %v4451 = vunpack.c.l.b16 %v1140
    %v4452 = vunpack.c.h.b16 %v1140
    %v4453 = vunpack.c.l.b16 %v1141
    %v4454 = vunpack.c.h.b16 %v1141
    %v4455 = vunpack.c.l.b16 %v1142
    %v4456 = vunpack.c.h.b16 %v1142
    %v4457 = vunpack.c.l.b16 %v1143
    %v4458 = vunpack.c.h.b16 %v1143
    %v4459 = vunpack.c.l.b16 %v1144
    %v4460 = vunpack.c.h.b16 %v1144
    %v4461 = vunpack.c.l.b16 %v1145
    %v4462 = vunpack.c.h.b16 %v1145
    %v4463 = vunpack.c.l.b16 %v1146
    %v4464 = vunpack.c.h.b16 %v1146
    %v4465 = vunpack.c.l.b16 %v1147
    %v4466 = vunpack.c.h.b16 %v1147
    %v4467 = vunpack.c.l.b16 %v1148
    %v4468 = vunpack.c.h.b16 %v1148
    %v4469 = vunpack.c.l.b16 %v1149
    %v4470 = vunpack.c.h.b16 %v1149
    %v4471 = vunpack.c.l.b16 %v1150
    %v4472 = vunpack.c.h.b16 %v1150
    %v4473 = vunpack.c.l.b16 %v1151
    %v4474 = vunpack.c.h.b16 %v1151
    %v4475 = vunpack.c.l.b16 %v1152
    %v4476 = vunpack.c.h.b16 %v1152
    %v4477 = vunpack.c.l.b16 %v1153
    %v4478 = vunpack.c.h.b16 %v1153
    %v4479 = vunpack.c.l.b16 %v1154
    %v4480 = vunpack.c.h.b16 %v1154
    %v4481 = vunpack.c.l.b16 %v1155
    %v4482 = vunpack.c.h.b16 %v1155
    %v4483 = vunpack.c.l.b16 %v1156
    %v4484 = vunpack.c.h.b16 %v1156
    %v4485 = vunpack.c.l.b16 %v1157
    %v4486 = vunpack.c.h.b16 %v1157
    %v4487 = vunpack.c.l.b16 %v1158
    %v4488 = vunpack.c.h.b16 %v1158
    %v4489 = vunpack.c.l.b16 %v1159
    %v4490 = vunpack.c.h.b16 %v1159
    %v4491 = vunpack.c.l.b16 %v1160
    %v4492 = vunpack.c.h.b16 %v1160
    %v4493 = vunpack.c.l.b16 %v1161
    %v4494 = vunpack.c.h.b16 %v1161
    %v4495 = vunpack.c.l.b16 %v1162
    %v4496 = vunpack.c.h.b16 %v1162
    %v4497 = vunpack.c.l.b16 %v1163
    %v4498 = vunpack.c.h.b16 %v1163
    %v4499 = vunpack.c.l.b16 %v1164
    %v4500 = vunpack.c.h.b16 %v1164
    %v4501 = vunpack.c.l.b16 %v1165
    %v4502 = vunpack.c.h.b16 %v1165
    %v4503 = vunpack.c.l.b16 %v1166
    %v4504 = vunpack.c.h.b16 %v1166
    %v4505 = vunpack.c.l.b16 %v1167
    %v4506 = vunpack.c.h.b16 %v1167
    %v4507 = vunpack.c.l.b16 %v1168
    %v4508 = vunpack.c.h.b16 %v1168
    %v4509 = vunpack.c.l.b16 %v1169
    %v4510 = vunpack.c.h.b16 %v1169
    %v4511 = vunpack.c.l.b16 %v1170
    %v4512 = vunpack.c.h.b16 %v1170
    %v4513 = vunpack.c.l.b16 %v1171
    %v4514 = vunpack.c.h.b16 %v1171
    %v4515 = vunpack.c.l.b16 %v1172
    %v4516 = vunpack.c.h.b16 %v1172
    %v4517 = vunpack.c.l.b16 %v1173
    %v4518 = vunpack.c.h.b16 %v1173
    %v4519 = vunpack.c.l.b16 %v1174
    %v4520 = vunpack.c.h.b16 %v1174
    %v4521 = vunpack.c.l.b16 %v1175
    %v4522 = vunpack.c.h.b16 %v1175
    %v4523 = vunpack.c.l.b16 %v1176
    %v4524 = vunpack.c.h.b16 %v1176
    %v4525 = vunpack.c.l.b16 %v1177
    %v4526 = vunpack.c.h.b16 %v1177
    %v4527 = vunpack.c.l.b16 %v1178
    %v4528 = vunpack.c.h.b16 %v1178
    %v4529 = vunpack.c.l.b16 %v1179
    %v4530 = vunpack.c.h.b16 %v1179
    %v4531 = vunpack.c.l.b16 %v1180
    %v4532 = vunpack.c.h.b16 %v1180
    %v4533 = vunpack.c.l.b16 %v1181
    %v4534 = vunpack.c.h.b16 %v1181
    %v4535 = vunpack.c.l.b16 %v1182
    %v4536 = vunpack.c.h.b16 %v1182
    %v4537 = vunpack.c.l.b16 %v1183
    %v4538 = vunpack.c.h.b16 %v1183
    %v4539 = vunpack.c.l.b16 %v1184
    %v4540 = vunpack.c.h.b16 %v1184
    %v4541 = vunpack.c.l.b16 %v1185
    %v4542 = vunpack.c.h.b16 %v1185
    %v4543 = vunpack.c.l.b16 %v1186
    %v4544 = vunpack.c.h.b16 %v1186
    %v4545 = vunpack.c.l.b16 %v1187
    %v4546 = vunpack.c.h.b16 %v1187
    %v4547 = vunpack.c.l.b16 %v1188
    %v4548 = vunpack.c.h.b16 %v1188
    %v4549 = vunpack.c.l.b16 %v1189
    %v4550 = vunpack.c.h.b16 %v1189
    %v4551 = vunpack.c.l.b16 %v1190
    %v4552 = vunpack.c.h.b16 %v1190
    %v4553 = vunpack.c.l.b16 %v1191
    %v4554 = vunpack.c.h.b16 %v1191
    %v4555 = vunpack.c.l.b16 %v1192
    %v4556 = vunpack.c.h.b16 %v1192
    %v4557 = vunpack.c.l.b16 %v1193
    %v4558 = vunpack.c.h.b16 %v1193
    %v4559 = vunpack.c.l.b16 %v1194
    %v4560 = vunpack.c.h.b16 %v1194
    %v4561 = vunpack.c.l.b16 %v1195
    %v4562 = vunpack.c.h.b16 %v1195
    %v4563 = vunpack.c.l.b16 %v1196
    %v4564 = vunpack.c.h.b16 %v1196
    %v4565 = vunpack.c.l.b16 %v1197
    %v4566 = vunpack.c.h.b16 %v1197
    %v4567 = vunpack.c.l.b16 %v1198
    %v4568 = vunpack.c.h.b16 %v1198
    %v4569 = vunpack.c.l.b16 %v1199
    %v4570 = vunpack.c.h.b16 %v1199
    %v4571 = vunpack.c.l.b16 %v1200
    %v4572 = vunpack.c.h.b16 %v1200
    %v4573 = vunpack.c.l.b16 %v1201
    %v4574 = vunpack.c.h.b16 %v1201
    %v4575 = vunpack.c.l.b16 %v1202
    %v4576 = vunpack.c.h.b16 %v1202
    %v4577 = vunpack.c.l.b16 %v1203
    %v4578 = vunpack.c.h.b16 %v1203
    %v4579 = vunpack.c.l.b16 %v1204
    %v4580 = vunpack.c.h.b16 %v1204
    %v4581 = vunpack.c.l.b16 %v1205
    %v4582 = vunpack.c.h.b16 %v1205
    %v4583 = vunpack.c.l.b16 %v1206
    %v4584 = vunpack.c.h.b16 %v1206
    %v4585 = vunpack.c.l.b16 %v1207
    %v4586 = vunpack.c.h.b16 %v1207
    %v4587 = vunpack.c.l.b16 %v1208
    %v4588 = vunpack.c.h.b16 %v1208
    %v4589 = vunpack.c.l.b16 %v1209
    %v4590 = vunpack.c.h.b16 %v1209
    %v4591 = vunpack.c.l.b16 %v1210
    %v4592 = vunpack.c.h.b16 %v1210
    %v4593 = vunpack.c.l.b16 %v1211
    %v4594 = vunpack.c.h.b16 %v1211
    %v4595 = vunpack.c.l.b16 %v1212
    %v4596 = vunpack.c.h.b16 %v1212
    %v4597 = vunpack.c.l.b16 %v1213
    %v4598 = vunpack.c.h.b16 %v1213
    %v4599 = vunpack.c.l.b16 %v1214
    %v4600 = vunpack.c.h.b16 %v1214
    %v4601 = vunpack.c.l.b16 %v1215
    %v4602 = vunpack.c.h.b16 %v1215
    %v4603 = vunpack.c.l.b16 %v1216
    %v4604 = vunpack.c.h.b16 %v1216
    %v4605 = vunpack.c.l.b16 %v1217
    %v4606 = vunpack.c.h.b16 %v1217
    %v4607 = vunpack.c.l.b16 %v1218
    %v4608 = vunpack.c.h.b16 %v1218
    %v4609 = vunpack.c.l.b16 %v1219
    %v4610 = vunpack.c.h.b16 %v1219
    %v4611 = vunpack.c.l.b16 %v1220
    %v4612 = vunpack.c.h.b16 %v1220
    %v4613 = vunpack.c.l.b16 %v1221
    %v4614 = vunpack.c.h.b16 %v1221
    %v4615 = vunpack.c.l.b16 %v1222
    %v4616 = vunpack.c.h.b16 %v1222
    %v4617 = vunpack.c.l.b16 %v1223
    %v4618 = vunpack.c.h.b16 %v1223
    %v4619 = vunpack.c.l.b16 %v1224
    %v4620 = vunpack.c.h.b16 %v1224
    %v4621 = vunpack.c.l.b16 %v1225
    %v4622 = vunpack.c.h.b16 %v1225
    %v4623 = vunpack.c.l.b16 %v1226
    %v4624 = vunpack.c.h.b16 %v1226
    %v4625 = vunpack.c.l.b16 %v1227
    %v4626 = vunpack.c.h.b16 %v1227
    %v4627 = vunpack.c.l.b16 %v1228
    %v4628 = vunpack.c.h.b16 %v1228
    %v4629 = vunpack.c.l.b16 %v1229
    %v4630 = vunpack.c.h.b16 %v1229
    %v4631 = vunpack.c.l.b16 %v1230
    %v4632 = vunpack.c.h.b16 %v1230
    %v4633 = vunpack.c.l.b16 %v1231
    %v4634 = vunpack.c.h.b16 %v1231
    %v4635 = vunpack.c.l.b16 %v1232
    %v4636 = vunpack.c.h.b16 %v1232
    %v4637 = vunpack.c.l.b16 %v1233
    %v4638 = vunpack.c.h.b16 %v1233
    %v4639 = vunpack.c.l.b16 %v1234
    %v4640 = vunpack.c.h.b16 %v1234
    %v4641 = vunpack.c.l.b16 %v1235
    %v4642 = vunpack.c.h.b16 %v1235
    %v4643 = vunpack.c.l.b16 %v1236
    %v4644 = vunpack.c.h.b16 %v1236
    %v4645 = vunpack.c.l.b16 %v1237
    %v4646 = vunpack.c.h.b16 %v1237
    %v4647 = vunpack.c.l.b16 %v1238
    %v4648 = vunpack.c.h.b16 %v1238
    %v4649 = vunpack.c.l.b16 %v1239
    %v4650 = vunpack.c.h.b16 %v1239
    %v4651 = vunpack.c.l.b16 %v1240
    %v4652 = vunpack.c.h.b16 %v1240
    %v4653 = vunpack.c.l.b16 %v1241
    %v4654 = vunpack.c.h.b16 %v1241
    %v4655 = vunpack.c.l.b16 %v1242
    %v4656 = vunpack.c.h.b16 %v1242
    %v4657 = vunpack.c.l.b16 %v1243
    %v4658 = vunpack.c.h.b16 %v1243
    %v4659 = vunpack.c.l.b16 %v1244
    %v4660 = vunpack.c.h.b16 %v1244
    %v4661 = vunpack.c.l.b16 %v1245
    %v4662 = vunpack.c.h.b16 %v1245
    %v4663 = vunpack.c.l.b16 %v1246
    %v4664 = vunpack.c.h.b16 %v1246
    %v4665 = vunpack.c.l.b16 %v1247
    %v4666 = vunpack.c.h.b16 %v1247
    %v4667 = vunpack.c.l.b16 %v1248
    %v4668 = vunpack.c.h.b16 %v1248
    %v4669 = vunpack.c.l.b16 %v1249
    %v4670 = vunpack.c.h.b16 %v1249
    %v4671 = vunpack.c.l.b16 %v1250
    %v4672 = vunpack.c.h.b16 %v1250
    %v4673 = vunpack.c.l.b16 %v1251
    %v4674 = vunpack.c.h.b16 %v1251
    %v4675 = vunpack.c.l.b16 %v1252
    %v4676 = vunpack.c.h.b16 %v1252
    %v4677 = vunpack.c.l.b16 %v1253
    %v4678 = vunpack.c.h.b16 %v1253
    %v4679 = vunpack.c.l.b16 %v1254
    %v4680 = vunpack.c.h.b16 %v1254
    %v4681 = vunpack.c.l.b16 %v1255
    %v4682 = vunpack.c.h.b16 %v1255
    %v4683 = vunpack.c.l.b16 %v1256
    %v4684 = vunpack.c.h.b16 %v1256
    %v4685 = vunpack.c.l.b16 %v1257
    %v4686 = vunpack.c.h.b16 %v1257
    %v4687 = vunpack.c.l.b16 %v1258
    %v4688 = vunpack.c.h.b16 %v1258
    %v4689 = vunpack.c.l.b16 %v1259
    %v4690 = vunpack.c.h.b16 %v1259
    %v4691 = vunpack.c.l.b16 %v1260
    %v4692 = vunpack.c.h.b16 %v1260
    %v4693 = vunpack.c.l.b16 %v1261
    %v4694 = vunpack.c.h.b16 %v1261
    %v4695 = vunpack.c.l.b16 %v1262
    %v4696 = vunpack.c.h.b16 %v1262
    %v4697 = vunpack.c.l.b16 %v1263
    %v4698 = vunpack.c.h.b16 %v1263
    %v4699 = vunpack.c.l.b16 %v1264
    %v4700 = vunpack.c.h.b16 %v1264
    %v4701 = vunpack.c.l.b16 %v1265
    %v4702 = vunpack.c.h.b16 %v1265
    %v4703 = vunpack.c.l.b16 %v1266
    %v4704 = vunpack.c.h.b16 %v1266
    %v4705 = vunpack.c.l.b16 %v1267
    %v4706 = vunpack.c.h.b16 %v1267
    %v4707 = vunpack.c.l.b16 %v1268
    %v4708 = vunpack.c.h.b16 %v1268
    %v4709 = vunpack.c.l.b16 %v1269
    %v4710 = vunpack.c.h.b16 %v1269
    %v4711 = vunpack.c.l.b16 %v1270
    %v4712 = vunpack.c.h.b16 %v1270
    %v4713 = vunpack.c.l.b16 %v1271
    %v4714 = vunpack.c.h.b16 %v1271
    %v4715 = vunpack.c.l.b16 %v1272
    %v4716 = vunpack.c.h.b16 %v1272
    %v4717 = vunpack.c.l.b16 %v1273
    %v4718 = vunpack.c.h.b16 %v1273
    %v4719 = vunpack.c.l.b16 %v1274
    %v4720 = vunpack.c.h.b16 %v1274
    %v4721 = vunpack.c.l.b16 %v1275
    %v4722 = vunpack.c.h.b16 %v1275
    %v4723 = vunpack.c.l.b16 %v1276
    %v4724 = vunpack.c.h.b16 %v1276
    %v4725 = vunpack.c.l.b16 %v1277
    %v4726 = vunpack.c.h.b16 %v1277
    %v4727 = vunpack.c.l.b16 %v1278
    %v4728 = vunpack.c.h.b16 %v1278
    %v4729 = vunpack.c.l.b16 %v1279
    %v4730 = vunpack.c.h.b16 %v1279
    %v4731 = vunpack.c.l.b16 %v1280
    %v4732 = vunpack.c.h.b16 %v1280
    %v4733 = vunpack.c.l.b16 %v1281
    %v4734 = vunpack.c.h.b16 %v1281
    %v4735 = vunpack.c.l.b16 %v1282
    %v4736 = vunpack.c.h.b16 %v1282
    %v4737 = vunpack.c.l.b16 %v1283
    %v4738 = vunpack.c.h.b16 %v1283
    %v4739 = vunpack.c.l.b16 %v1284
    %v4740 = vunpack.c.h.b16 %v1284
    %v4741 = vunpack.c.l.b16 %v1285
    %v4742 = vunpack.c.h.b16 %v1285
    %v4743 = vunpack.c.l.b16 %v1286
    %v4744 = vunpack.c.h.b16 %v1286
    %v4745 = vunpack.c.l.b16 %v1287
    %v4746 = vunpack.c.h.b16 %v1287
    %v4747 = vunpack.c.l.b16 %v1288
    %v4748 = vunpack.c.h.b16 %v1288
    %v4749 = vunpack.c.l.b16 %v1289
    %v4750 = vunpack.c.h.b16 %v1289
    %v4751 = vunpack.c.l.b16 %v1290
    %v4752 = vunpack.c.h.b16 %v1290
    %v4753 = vunpack.c.l.b16 %v1291
    %v4754 = vunpack.c.h.b16 %v1291
    %v4755 = vunpack.c.l.b16 %v1292
    %v4756 = vunpack.c.h.b16 %v1292
    %v4757 = vunpack.c.l.b16 %v1293
    %v4758 = vunpack.c.h.b16 %v1293
    %v4759 = vunpack.c.l.b16 %v1294
    %v4760 = vunpack.c.h.b16 %v1294
    %v4761 = vunpack.c.l.b16 %v1295
    %v4762 = vunpack.c.h.b16 %v1295
    %v4763 = vunpack.c.l.b16 %v1296
    %v4764 = vunpack.c.h.b16 %v1296
    %v4765 = vunpack.c.l.b16 %v1297
    %v4766 = vunpack.c.h.b16 %v1297
    %v4767 = vunpack.c.l.b16 %v1298
    %v4768 = vunpack.c.h.b16 %v1298
    %v4769 = vunpack.c.l.b16 %v1299
    %v4770 = vunpack.c.h.b16 %v1299
    %v4771 = vunpack.c.l.b16 %v1300
    %v4772 = vunpack.c.h.b16 %v1300
    %v4773 = vunpack.c.l.b16 %v1301
    %v4774 = vunpack.c.h.b16 %v1301
    %v4775 = vunpack.c.l.b16 %v1302
    %v4776 = vunpack.c.h.b16 %v1302
    %v4777 = vpack.c.b16 %v2479, %v2473
    %v4778 = vpack.c.b16 %v2480, %v2474
    %v4779 = vpack.c.b16 %v2481, %v2475
    %v4780 = vpack.c.b16 %v2482, %v2476
    %v4781 = vpack.c.b16 %v2483, %v2477
    %v4782 = vpack.c.b16 %v2484, %v2478
    %v4783 = vpack.c.b16 %v2491, %v2485
    %v4784 = vpack.c.b16 %v2492, %v2486
    %v4785 = vpack.c.b16 %v2493, %v2487
    %v4786 = vpack.c.b16 %v2494, %v2488
    %v4787 = vpack.c.b16 %v2495, %v2489
    %v4788 = vpack.c.b16 %v2496, %v2490
    %v4789 = vpack.c.b16 %v2503, %v2497
    %v4790 = vpack.c.b16 %v2504, %v2498
    %v4791 = vpack.c.b16 %v2505, %v2499
    %v4792 = vpack.c.b16 %v2506, %v2500
    %v4793 = vpack.c.b16 %v2507, %v2501
    %v4794 = vpack.c.b16 %v2508, %v2502
    %v4795 = vpack.c.b16 %v2515, %v2509
    %v4796 = vpack.c.b16 %v2516, %v2510
    %v4797 = vpack.c.b16 %v2517, %v2511
    %v4798 = vpack.c.b16 %v2518, %v2512
    %v4799 = vpack.c.b16 %v2519, %v2513
    %v4800 = vpack.c.b16 %v2520, %v2514
    %v4801 = vpack.c.b16 %v2527, %v2521
    %v4802 = vpack.c.b16 %v2528, %v2522
    %v4803 = vpack.c.b16 %v2529, %v2523
    %v4804 = vpack.c.b16 %v2530, %v2524
    %v4805 = vpack.c.b16 %v2531, %v2525
    %v4806 = vpack.c.b16 %v2532, %v2526
    %v4807 = vpack.c.b16 %v2539, %v2533
    %v4808 = vpack.c.b16 %v2540, %v2534
    %v4809 = vpack.c.b16 %v2541, %v2535
    %v4810 = vpack.c.b16 %v2542, %v2536
    %v4811 = vpack.c.b16 %v2543, %v2537
    %v4812 = vpack.c.b16 %v2544, %v2538
    %v4813 = vpack.c.b16 %v2551, %v2545
    %v4814 = vpack.c.b16 %v2552, %v2546
    %v4815 = vpack.c.b16 %v2553, %v2547
    %v4816 = vpack.c.b16 %v2554, %v2548
    %v4817 = vpack.c.b16 %v2555, %v2549
    %v4818 = vpack.c.b16 %v2556, %v2550
    %v4819 = vpack.c.b16 %v2563, %v2557
    %v4820 = vpack.c.b16 %v2564, %v2558
    %v4821 = vpack.c.b16 %v2565, %v2559
    %v4822 = vpack.c.b16 %v2566, %v2560
    %v4823 = vpack.c.b16 %v2567, %v2561
    %v4824 = vpack.c.b16 %v2568, %v2562
    %v4825 = vpack.c.b16 %v2575, %v2569
    %v4826 = vpack.c.b16 %v2576, %v2570
    %v4827 = vpack.c.b16 %v2577, %v2571
    %v4828 = vpack.c.b16 %v2578, %v2572
    %v4829 = vpack.c.b16 %v2579, %v2573
    %v4830 = vpack.c.b16 %v2580, %v2574
    %v4831 = vpack.c.b16 %v2587, %v2581
    %v4832 = vpack.c.b16 %v2588, %v2582
    %v4833 = vpack.c.b16 %v2589, %v2583
    %v4834 = vpack.c.b16 %v2590, %v2584
    %v4835 = vpack.c.b16 %v2591, %v2585
    %v4836 = vpack.c.b16 %v2592, %v2586
    %v4837 = vpack.c.b16 %v2599, %v2593
    %v4838 = vpack.c.b16 %v2600, %v2594
    %v4839 = vpack.c.b16 %v2601, %v2595
    %v4840 = vpack.c.b16 %v2602, %v2596
    %v4841 = vpack.c.b16 %v2603, %v2597
    %v4842 = vpack.c.b16 %v2604, %v2598
    %v4843 = vpack.c.b16 %v2611, %v2605
    %v4844 = vpack.c.b16 %v2612, %v2606
    %v4845 = vpack.c.b16 %v2613, %v2607
    %v4846 = vpack.c.b16 %v2614, %v2608
    %v4847 = vpack.c.b16 %v2615, %v2609
    %v4848 = vpack.c.b16 %v2616, %v2610
    %v4849 = vpack.c.b16 %v2623, %v2617
    %v4850 = vpack.c.b16 %v2624, %v2618
    %v4851 = vpack.c.b16 %v2625, %v2619
    %v4852 = vpack.c.b16 %v2626, %v2620
    %v4853 = vpack.c.b16 %v2627, %v2621
    %v4854 = vpack.c.b16 %v2628, %v2622
    %v4855 = vpack.c.b16 %v2635, %v2629
    %v4856 = vpack.c.b16 %v2636, %v2630
    %v4857 = vpack.c.b16 %v2637, %v2631
    %v4858 = vpack.c.b16 %v2638, %v2632
    %v4859 = vpack.c.b16 %v2639, %v2633
    %v4860 = vpack.c.b16 %v2640, %v2634
    %v4861 = vpack.c.b16 %v2647, %v2641
    %v4862 = vpack.c.b16 %v2648, %v2642
    %v4863 = vpack.c.b16 %v2649, %v2643
    %v4864 = vpack.c.b16 %v2650, %v2644
    %v4865 = vpack.c.b16 %v2651, %v2645
    %v4866 = vpack.c.b16 %v2652, %v2646
    %v4867 = vpack.c.b16 %v2659, %v2653
    %v4868 = vpack.c.b16 %v2660, %v2654
    %v4869 = vpack.c.b16 %v2661, %v2655
    %v4870 = vpack.c.b16 %v2662, %v2656
    %v4871 = vpack.c.b16 %v2663, %v2657
    %v4872 = vpack.c.b16 %v2664, %v2658
    %v4873 = vpack.c.b16 %v2671, %v2665
    %v4874 = vpack.c.b16 %v2672, %v2666
    %v4875 = vpack.c.b16 %v2673, %v2667
    %v4876 = vpack.c.b16 %v2674, %v2668
    %v4877 = vpack.c.b16 %v2675, %v2669
    %v4878 = vpack.c.b16 %v2676, %v2670
    %v4879 = vpack.c.b16 %v2683, %v2677
    %v4880 = vpack.c.b16 %v2684, %v2678
    %v4881 = vpack.c.b16 %v2685, %v2679
    %v4882 = vpack.c.b16 %v2686, %v2680
    %v4883 = vpack.c.b16 %v2687, %v2681
    %v4884 = vpack.c.b16 %v2688, %v2682
    %v4885 = vpack.c.b16 %v2695, %v2689
    %v4886 = vpack.c.b16 %v2696, %v2690
    %v4887 = vpack.c.b16 %v2697, %v2691
    %v4888 = vpack.c.b16 %v2698, %v2692
    %v4889 = vpack.c.b16 %v2699, %v2693
    %v4890 = vpack.c.b16 %v2700, %v2694
    %v4891 = vpack.c.b16 %v2707, %v2701
    %v4892 = vpack.c.b16 %v2708, %v2702
    %v4893 = vpack.c.b16 %v2709, %v2703
    %v4894 = vpack.c.b16 %v2710, %v2704
    %v4895 = vpack.c.b16 %v2711, %v2705
    %v4896 = vpack.c.b16 %v2712, %v2706
    %v4897 = vpack.c.b16 %v2719, %v2713
    %v4898 = vpack.c.b16 %v2720, %v2714
    %v4899 = vpack.c.b16 %v2721, %v2715
    %v4900 = vpack.c.b16 %v2722, %v2716
    %v4901 = vpack.c.b16 %v2723, %v2717
    %v4902 = vpack.c.b16 %v2724, %v2718
    %v4903 = vpack.c.b16 %v2731, %v2725
    %v4904 = vpack.c.b16 %v2732, %v2726
    %v4905 = vpack.c.b16 %v2733, %v2727
    %v4906 = vpack.c.b16 %v2734, %v2728
    %v4907 = vpack.c.b16 %v2735, %v2729
    %v4908 = vpack.c.b16 %v2736, %v2730
    %v4909 = vpack.c.b16 %v2743, %v2737
    %v4910 = vpack.c.b16 %v2744, %v2738
    %v4911 = vpack.c.b16 %v2745, %v2739
    %v4912 = vpack.c.b16 %v2746, %v2740
    %v4913 = vpack.c.b16 %v2747, %v2741
    %v4914 = vpack.c.b16 %v2748, %v2742
    %v4915 = vpack.c.b16 %v2755, %v2749
    %v4916 = vpack.c.b16 %v2756, %v2750
    %v4917 = vpack.c.b16 %v2757, %v2751
    %v4918 = vpack.c.b16 %v2758, %v2752
    %v4919 = vpack.c.b16 %v2759, %v2753
    %v4920 = vpack.c.b16 %v2760, %v2754
    %v4921 = vpack.c.b16 %v2767, %v2761
    %v4922 = vpack.c.b16 %v2768, %v2762
    %v4923 = vpack.c.b16 %v2769, %v2763
    %v4924 = vpack.c.b16 %v2770, %v2764
    %v4925 = vpack.c.b16 %v2771, %v2765
    %v4926 = vpack.c.b16 %v2772, %v2766
    %v4927 = vpack.c.b16 %v2779, %v2773
    %v4928 = vpack.c.b16 %v2780, %v2774
    %v4929 = vpack.c.b16 %v2781, %v2775
    %v4930 = vpack.c.b16 %v2782, %v2776
    %v4931 = vpack.c.b16 %v2783, %v2777
    %v4932 = vpack.c.b16 %v2784, %v2778
    %v4933 = vpack.c.b16 %v2791, %v2785
    %v4934 = vpack.c.b16 %v2792, %v2786
    %v4935 = vpack.c.b16 %v2793, %v2787
    %v4936 = vpack.c.b16 %v2794, %v2788
    %v4937 = vpack.c.b16 %v2795, %v2789
    %v4938 = vpack.c.b16 %v2796, %v2790
    %v4939 = vpack.c.b16 %v2803, %v2797
    %v4940 = vpack.c.b16 %v2804, %v2798
    %v4941 = vpack.c.b16 %v2805, %v2799
    %v4942 = vpack.c.b16 %v2806, %v2800
    %v4943 = vpack.c.b16 %v2807, %v2801
    %v4944 = vpack.c.b16 %v2808, %v2802
    %v4945 = vpack.c.b16 %v2815, %v2809
    %v4946 = vpack.c.b16 %v2816, %v2810
    %v4947 = vpack.c.b16 %v2817, %v2811
    %v4948 = vpack.c.b16 %v2818, %v2812
    %v4949 = vpack.c.b16 %v2819, %v2813
    %v4950 = vpack.c.b16 %v2820, %v2814
    %v4951 = vpack.c.b16 %v2827, %v2821
    %v4952 = vpack.c.b16 %v2828, %v2822
    %v4953 = vpack.c.b16 %v2829, %v2823
    %v4954 = vpack.c.b16 %v2830, %v2824
    %v4955 = vpack.c.b16 %v2831, %v2825
    %v4956 = vpack.c.b16 %v2832, %v2826
    %v4957 = vpack.c.b16 %v2839, %v2833
    %v4958 = vpack.c.b16 %v2840, %v2834
    %v4959 = vpack.c.b16 %v2841, %v2835
    %v4960 = vpack.c.b16 %v2842, %v2836
    %v4961 = vpack.c.b16 %v2843, %v2837
    %v4962 = vpack.c.b16 %v2844, %v2838
    %v4963 = vpack.c.b16 %v2851, %v2845
    %v4964 = vpack.c.b16 %v2852, %v2846
    %v4965 = vpack.c.b16 %v2853, %v2847
    %v4966 = vpack.c.b16 %v2854, %v2848
    %v4967 = vpack.c.b16 %v2855, %v2849
    %v4968 = vpack.c.b16 %v2856, %v2850
    %v4969 = vpack.c.b16 %v2863, %v2857
    %v4970 = vpack.c.b16 %v2864, %v2858
    %v4971 = vpack.c.b16 %v2865, %v2859
    %v4972 = vpack.c.b16 %v2866, %v2860
    %v4973 = vpack.c.b16 %v2867, %v2861
    %v4974 = vpack.c.b16 %v2868, %v2862
    %v4975 = vpack.c.b16 %v2875, %v2869
    %v4976 = vpack.c.b16 %v2876, %v2870
    %v4977 = vpack.c.b16 %v2877, %v2871
    %v4978 = vpack.c.b16 %v2878, %v2872
    %v4979 = vpack.c.b16 %v2879, %v2873
    %v4980 = vpack.c.b16 %v2880, %v2874
    %v4981 = vpack.c.b16 %v2887, %v2881
    %v4982 = vpack.c.b16 %v2888, %v2882
    %v4983 = vpack.c.b16 %v2889, %v2883
    %v4984 = vpack.c.b16 %v2890, %v2884
    %v4985 = vpack.c.b16 %v2891, %v2885
    %v4986 = vpack.c.b16 %v2892, %v2886
    %v4987 = vpack.c.b16 %v2899, %v2893
    %v4988 = vpack.c.b16 %v2900, %v2894
    %v4989 = vpack.c.b16 %v2901, %v2895
    %v4990 = vpack.c.b16 %v2902, %v2896
    %v4991 = vpack.c.b16 %v2903, %v2897
    %v4992 = vpack.c.b16 %v2904, %v2898
    %v4993 = vpack.c.b16 %v2911, %v2905
    %v4994 = vpack.c.b16 %v2912, %v2906
    %v4995 = vpack.c.b16 %v2913, %v2907
    %v4996 = vpack.c.b16 %v2914, %v2908
    %v4997 = vpack.c.b16 %v2915, %v2909
    %v4998 = vpack.c.b16 %v2916, %v2910
    %v4999 = vpack.c.b16 %v2923, %v2917
    %v5000 = vpack.c.b16 %v2924, %v2918
    %v5001 = vpack.c.b16 %v2925, %v2919
    %v5002 = vpack.c.b16 %v2926, %v2920
    %v5003 = vpack.c.b16 %v2927, %v2921
    %v5004 = vpack.c.b16 %v2928, %v2922
    %v5005 = vpack.c.b16 %v2935, %v2929
    %v5006 = vpack.c.b16 %v2936, %v2930
    %v5007 = vpack.c.b16 %v2937, %v2931
    %v5008 = vpack.c.b16 %v2938, %v2932
    %v5009 = vpack.c.b16 %v2939, %v2933
    %v5010 = vpack.c.b16 %v2940, %v2934
    %v5011 = vpack.c.b16 %v2947, %v2941
    %v5012 = vpack.c.b16 %v2948, %v2942
    %v5013 = vpack.c.b16 %v2949, %v2943
    %v5014 = vpack.c.b16 %v2950, %v2944
    %v5015 = vpack.c.b16 %v2951, %v2945
    %v5016 = vpack.c.b16 %v2952, %v2946
    %v5017 = vpack.c.b16 %v2959, %v2953
    %v5018 = vpack.c.b16 %v2960, %v2954
    %v5019 = vpack.c.b16 %v2961, %v2955
    %v5020 = vpack.c.b16 %v2962, %v2956
    %v5021 = vpack.c.b16 %v2963, %v2957
    %v5022 = vpack.c.b16 %v2964, %v2958
    %v5023 = vpack.c.b16 %v2971, %v2965
    %v5024 = vpack.c.b16 %v2972, %v2966
    %v5025 = vpack.c.b16 %v2973, %v2967
    %v5026 = vpack.c.b16 %v2974, %v2968
    %v5027 = vpack.c.b16 %v2975, %v2969
    %v5028 = vpack.c.b16 %v2976, %v2970
    %v5029 = vpack.c.b16 %v2983, %v2977
    %v5030 = vpack.c.b16 %v2984, %v2978
    %v5031 = vpack.c.b16 %v2985, %v2979
    %v5032 = vpack.c.b16 %v2986, %v2980
    %v5033 = vpack.c.b16 %v2987, %v2981
    %v5034 = vpack.c.b16 %v2988, %v2982
    %v5035 = vpack.c.b16 %v2995, %v2989
    %v5036 = vpack.c.b16 %v2996, %v2990
    %v5037 = vpack.c.b16 %v2997, %v2991
    %v5038 = vpack.c.b16 %v2998, %v2992
    %v5039 = vpack.c.b16 %v2999, %v2993
    %v5040 = vpack.c.b16 %v3000, %v2994
    %v5041 = vpack.c.b16 %v3007, %v3001
    %v5042 = vpack.c.b16 %v3008, %v3002
    %v5043 = vpack.c.b16 %v3009, %v3003
    %v5044 = vpack.c.b16 %v3010, %v3004
    %v5045 = vpack.c.b16 %v3011, %v3005
    %v5046 = vpack.c.b16 %v3012, %v3006
    %v5047 = vpack.c.b16 %v3019, %v3013
    %v5048 = vpack.c.b16 %v3020, %v3014
    %v5049 = vpack.c.b16 %v3021, %v3015
    %v5050 = vpack.c.b16 %v3022, %v3016
    %v5051 = vpack.c.b16 %v3023, %v3017
    %v5052 = vpack.c.b16 %v3024, %v3018
    %v5053 = vpack.c.b16 %v3031, %v3025
    %v5054 = vpack.c.b16 %v3032, %v3026
    %v5055 = vpack.c.b16 %v3033, %v3027
    %v5056 = vpack.c.b16 %v3034, %v3028
    %v5057 = vpack.c.b16 %v3035, %v3029
    %v5058 = vpack.c.b16 %v3036, %v3030
    %v5059 = vpack.c.b16 %v3043, %v3037
    %v5060 = vpack.c.b16 %v3044, %v3038
    %v5061 = vpack.c.b16 %v3045, %v3039
    %v5062 = vpack.c.b16 %v3046, %v3040
    %v5063 = vpack.c.b16 %v3047, %v3041
    %v5064 = vpack.c.b16 %v3048, %v3042
    %v5065 = vpack.c.b16 %v3055, %v3049
    %v5066 = vpack.c.b16 %v3056, %v3050
    %v5067 = vpack.c.b16 %v3057, %v3051
    %v5068 = vpack.c.b16 %v3058, %v3052
    %v5069 = vpack.c.b16 %v3059, %v3053
    %v5070 = vpack.c.b16 %v3060, %v3054
    %v5071 = vpack.c.b16 %v3067, %v3061
    %v5072 = vpack.c.b16 %v3068, %v3062
    %v5073 = vpack.c.b16 %v3069, %v3063
    %v5074 = vpack.c.b16 %v3070, %v3064
    %v5075 = vpack.c.b16 %v3071, %v3065
    %v5076 = vpack.c.b16 %v3072, %v3066
    %v5077 = vpack.c.b16 %v3079, %v3073
    %v5078 = vpack.c.b16 %v3080, %v3074
    %v5079 = vpack.c.b16 %v3081, %v3075
    %v5080 = vpack.c.b16 %v3082, %v3076
    %v5081 = vpack.c.b16 %v3083, %v3077
    %v5082 = vpack.c.b16 %v3084, %v3078
    %v5083 = vpack.c.b16 %v3091, %v3085
    %v5084 = vpack.c.b16 %v3092, %v3086
    %v5085 = vpack.c.b16 %v3093, %v3087
    %v5086 = vpack.c.b16 %v3094, %v3088
    %v5087 = vpack.c.b16 %v3095, %v3089
    %v5088 = vpack.c.b16 %v3096, %v3090
    %v5089 = vpack.c.b16 %v3103, %v3097
    %v5090 = vpack.c.b16 %v3104, %v3098
    %v5091 = vpack.c.b16 %v3105, %v3099
    %v5092 = vpack.c.b16 %v3106, %v3100
    %v5093 = vpack.c.b16 %v3107, %v3101
    %v5094 = vpack.c.b16 %v3108, %v3102
    %v5095 = vpack.c.b16 %v3115, %v3109
    %v5096 = vpack.c.b16 %v3116, %v3110
    %v5097 = vpack.c.b16 %v3117, %v3111
    %v5098 = vpack.c.b16 %v3118, %v3112
    %v5099 = vpack.c.b16 %v3119, %v3113
    %v5100 = vpack.c.b16 %v3120, %v3114
    %v5101 = vpack.c.b16 %v3127, %v3121
    %v5102 = vpack.c.b16 %v3128, %v3122
    %v5103 = vpack.c.b16 %v3129, %v3123
    %v5104 = vpack.c.b16 %v3130, %v3124
    %v5105 = vpack.c.b16 %v3131, %v3125
    %v5106 = vpack.c.b16 %v3132, %v3126
    %v5107 = vpack.c.b16 %v3139, %v3133
    %v5108 = vpack.c.b16 %v3140, %v3134
    %v5109 = vpack.c.b16 %v3141, %v3135
    %v5110 = vpack.c.b16 %v3142, %v3136
    %v5111 = vpack.c.b16 %v3143, %v3137
    %v5112 = vpack.c.b16 %v3144, %v3138
    %v5113 = vpack.c.b16 %v3151, %v3145
    %v5114 = vpack.c.b16 %v3152, %v3146
    %v5115 = vpack.c.b16 %v3153, %v3147
    %v5116 = vpack.c.b16 %v3154, %v3148
    %v5117 = vpack.c.b16 %v3155, %v3149
    %v5118 = vpack.c.b16 %v3156, %v3150
    %v5119 = vpack.c.b16 %v3163, %v3157
    %v5120 = vpack.c.b16 %v3164, %v3158
    %v5121 = vpack.c.b16 %v3165, %v3159
    %v5122 = vpack.c.b16 %v3166, %v3160
    %v5123 = vpack.c.b16 %v3167, %v3161
    %v5124 = vpack.c.b16 %v3168, %v3162
    %v5125 = vpack.c.b16 %v3175, %v3169
    %v5126 = vpack.c.b16 %v3176, %v3170
    %v5127 = vpack.c.b16 %v3177, %v3171
    %v5128 = vpack.c.b16 %v3178, %v3172
    %v5129 = vpack.c.b16 %v3179, %v3173
    %v5130 = vpack.c.b16 %v3180, %v3174
    %v5131 = vpack.c.b16 %v3187, %v3181
    %v5132 = vpack.c.b16 %v3188, %v3182
    %v5133 = vpack.c.b16 %v3189, %v3183
    %v5134 = vpack.c.b16 %v3190, %v3184
    %v5135 = vpack.c.b16 %v3191, %v3185
    %v5136 = vpack.c.b16 %v3192, %v3186
    %v5137 = vpack.c.b16 %v3199, %v3193
    %v5138 = vpack.c.b16 %v3200, %v3194
    %v5139 = vpack.c.b16 %v3201, %v3195
    %v5140 = vpack.c.b16 %v3202, %v3196
    %v5141 = vpack.c.b16 %v3203, %v3197
    %v5142 = vpack.c.b16 %v3204, %v3198
    %v5143 = vpack.c.b16 %v3211, %v3205
    %v5144 = vpack.c.b16 %v3212, %v3206
    %v5145 = vpack.c.b16 %v3213, %v3207
    %v5146 = vpack.c.b16 %v3214, %v3208
    %v5147 = vpack.c.b16 %v3215, %v3209
    %v5148 = vpack.c.b16 %v3216, %v3210
    %v5149 = vpack.c.b16 %v3223, %v3217
    %v5150 = vpack.c.b16 %v3224, %v3218
    %v5151 = vpack.c.b16 %v3225, %v3219
    %v5152 = vpack.c.b16 %v3226, %v3220
    %v5153 = vpack.c.b16 %v3227, %v3221
    %v5154 = vpack.c.b16 %v3228, %v3222
    %v5155 = vpack.c.b16 %v3235, %v3229
    %v5156 = vpack.c.b16 %v3236, %v3230
    %v5157 = vpack.c.b16 %v3237, %v3231
    %v5158 = vpack.c.b16 %v3238, %v3232
    %v5159 = vpack.c.b16 %v3239, %v3233
    %v5160 = vpack.c.b16 %v3240, %v3234
    %v5161 = vpack.c.b16 %v3247, %v3241
    %v5162 = vpack.c.b16 %v3248, %v3242
    %v5163 = vpack.c.b16 %v3249, %v3243
    %v5164 = vpack.c.b16 %v3250, %v3244
    %v5165 = vpack.c.b16 %v3251, %v3245
    %v5166 = vpack.c.b16 %v3252, %v3246
    %v5167 = vpack.c.b16 %v3259, %v3253
    %v5168 = vpack.c.b16 %v3260, %v3254
    %v5169 = vpack.c.b16 %v3261, %v3255
    %v5170 = vpack.c.b16 %v3262, %v3256
    %v5171 = vpack.c.b16 %v3263, %v3257
    %v5172 = vpack.c.b16 %v3264, %v3258
    %v5173 = vpack.c.b16 %v3271, %v3265
    %v5174 = vpack.c.b16 %v3272, %v3266
    %v5175 = vpack.c.b16 %v3273, %v3267
    %v5176 = vpack.c.b16 %v3274, %v3268
    %v5177 = vpack.c.b16 %v3275, %v3269
    %v5178 = vpack.c.b16 %v3276, %v3270
    %v5179 = vpack.c.b16 %v3283, %v3277
    %v5180 = vpack.c.b16 %v3284, %v3278
    %v5181 = vpack.c.b16 %v3285, %v3279
    %v5182 = vpack.c.b16 %v3286, %v3280
    %v5183 = vpack.c.b16 %v3287, %v3281
    %v5184 = vpack.c.b16 %v3288, %v3282
    %v5185 = vpack.c.b16 %v3295, %v3289
    %v5186 = vpack.c.b16 %v3296, %v3290
    %v5187 = vpack.c.b16 %v3297, %v3291
    %v5188 = vpack.c.b16 %v3298, %v3292
    %v5189 = vpack.c.b16 %v3299, %v3293
    %v5190 = vpack.c.b16 %v3300, %v3294
    %v5191 = vpack.c.b16 %v3307, %v3301
    %v5192 = vpack.c.b16 %v3308, %v3302
    %v5193 = vpack.c.b16 %v3309, %v3303
    %v5194 = vpack.c.b16 %v3310, %v3304
    %v5195 = vpack.c.b16 %v3311, %v3305
    %v5196 = vpack.c.b16 %v3312, %v3306
    %v5197 = vpack.c.b16 %v3319, %v3313
    %v5198 = vpack.c.b16 %v3320, %v3314
    %v5199 = vpack.c.b16 %v3321, %v3315
    %v5200 = vpack.c.b16 %v3322, %v3316
    %v5201 = vpack.c.b16 %v3323, %v3317
    %v5202 = vpack.c.b16 %v3324, %v3318
    %v5203 = vpack.c.b16 %v3331, %v3325
    %v5204 = vpack.c.b16 %v3332, %v3326
    %v5205 = vpack.c.b16 %v3333, %v3327
    %v5206 = vpack.c.b16 %v3334, %v3328
    %v5207 = vpack.c.b16 %v3335, %v3329
    %v5208 = vpack.c.b16 %v3336, %v3330
    %v5209 = vpack.c.b16 %v3343, %v3337
    %v5210 = vpack.c.b16 %v3344, %v3338
    %v5211 = vpack.c.b16 %v3345, %v3339
    %v5212 = vpack.c.b16 %v3346, %v3340
    %v5213 = vpack.c.b16 %v3347, %v3341
    %v5214 = vpack.c.b16 %v3348, %v3342
    %v5215 = vpack.c.b16 %v3355, %v3349
    %v5216 = vpack.c.b16 %v3356, %v3350
    %v5217 = vpack.c.b16 %v3357, %v3351
    %v5218 = vpack.c.b16 %v3358, %v3352
    %v5219 = vpack.c.b16 %v3359, %v3353
    %v5220 = vpack.c.b16 %v3360, %v3354
    %v5221 = vpack.c.b16 %v3367, %v3361
    %v5222 = vpack.c.b16 %v3368, %v3362
    %v5223 = vpack.c.b16 %v3369, %v3363
    %v5224 = vpack.c.b16 %v3370, %v3364
    %v5225 = vpack.c.b16 %v3371, %v3365
    %v5226 = vpack.c.b16 %v3372, %v3366
    %v5227 = vpack.c.b16 %v3379, %v3373
    %v5228 = vpack.c.b16 %v3380, %v3374
    %v5229 = vpack.c.b16 %v3381, %v3375
    %v5230 = vpack.c.b16 %v3382, %v3376
    %v5231 = vpack.c.b16 %v3383, %v3377
    %v5232 = vpack.c.b16 %v3384, %v3378
    %v5233 = vpack.c.b16 %v3391, %v3385
    %v5234 = vpack.c.b16 %v3392, %v3386
    %v5235 = vpack.c.b16 %v3393, %v3387
    %v5236 = vpack.c.b16 %v3394, %v3388
    %v5237 = vpack.c.b16 %v3395, %v3389
    %v5238 = vpack.c.b16 %v3396, %v3390
    %v5239 = vpack.c.b16 %v3403, %v3397
    %v5240 = vpack.c.b16 %v3404, %v3398
    %v5241 = vpack.c.b16 %v3405, %v3399
    %v5242 = vpack.c.b16 %v3406, %v3400
    %v5243 = vpack.c.b16 %v3407, %v3401
    %v5244 = vpack.c.b16 %v3408, %v3402
    %v5245 = vpack.c.b16 %v3415, %v3409
    %v5246 = vpack.c.b16 %v3416, %v3410
    %v5247 = vpack.c.b16 %v3417, %v3411
    %v5248 = vpack.c.b16 %v3418, %v3412
    %v5249 = vpack.c.b16 %v3419, %v3413
    %v5250 = vpack.c.b16 %v3420, %v3414
    %v5251 = vpack.c.b16 %v3427, %v3421
    %v5252 = vpack.c.b16 %v3428, %v3422
    %v5253 = vpack.c.b16 %v3429, %v3423
    %v5254 = vpack.c.b16 %v3430, %v3424
    %v5255 = vpack.c.b16 %v3431, %v3425
    %v5256 = vpack.c.b16 %v3432, %v3426
    %v5257 = vpack.c.b16 %v3439, %v3433
    %v5258 = vpack.c.b16 %v3440, %v3434
    %v5259 = vpack.c.b16 %v3441, %v3435
    %v5260 = vpack.c.b16 %v3442, %v3436
    %v5261 = vpack.c.b16 %v3443, %v3437
    %v5262 = vpack.c.b16 %v3444, %v3438
    %v5263 = vpack.c.b16 %v3451, %v3445
    %v5264 = vpack.c.b16 %v3452, %v3446
    %v5265 = vpack.c.b16 %v3453, %v3447
    %v5266 = vpack.c.b16 %v3454, %v3448
    %v5267 = vpack.c.b16 %v3455, %v3449
    %v5268 = vpack.c.b16 %v3456, %v3450
    %v5269 = vpack.c.b16 %v3463, %v3457
    %v5270 = vpack.c.b16 %v3464, %v3458
    %v5271 = vpack.c.b16 %v3465, %v3459
    %v5272 = vpack.c.b16 %v3466, %v3460
    %v5273 = vpack.c.b16 %v3467, %v3461
    %v5274 = vpack.c.b16 %v3468, %v3462
    %v5275 = vpack.c.b16 %v3475, %v3469
    %v5276 = vpack.c.b16 %v3476, %v3470
    %v5277 = vpack.c.b16 %v3477, %v3471
    %v5278 = vpack.c.b16 %v3478, %v3472
    %v5279 = vpack.c.b16 %v3479, %v3473
    %v5280 = vpack.c.b16 %v3480, %v3474
    %v5281 = vpack.c.b16 %v3487, %v3481
    %v5282 = vpack.c.b16 %v3488, %v3482
    %v5283 = vpack.c.b16 %v3489, %v3483
    %v5284 = vpack.c.b16 %v3490, %v3484
    %v5285 = vpack.c.b16 %v3491, %v3485
    %v5286 = vpack.c.b16 %v3492, %v3486
    %v5287 = vpack.c.b16 %v3499, %v3493
    %v5288 = vpack.c.b16 %v3500, %v3494
    %v5289 = vpack.c.b16 %v3501, %v3495
    %v5290 = vpack.c.b16 %v3502, %v3496
    %v5291 = vpack.c.b16 %v3503, %v3497
    %v5292 = vpack.c.b16 %v3504, %v3498
    %v5293 = vpack.c.b16 %v3511, %v3505
    %v5294 = vpack.c.b16 %v3512, %v3506
    %v5295 = vpack.c.b16 %v3513, %v3507
    %v5296 = vpack.c.b16 %v3514, %v3508
    %v5297 = vpack.c.b16 %v3515, %v3509
    %v5298 = vpack.c.b16 %v3516, %v3510
    %v5299 = vpack.c.b16 %v3523, %v3517
    %v5300 = vpack.c.b16 %v3524, %v3518
    %v5301 = vpack.c.b16 %v3525, %v3519
    %v5302 = vpack.c.b16 %v3526, %v3520
    %v5303 = vpack.c.b16 %v3527, %v3521
    %v5304 = vpack.c.b16 %v3528, %v3522
    %v5305 = vpack.c.b16 %v3535, %v3529
    %v5306 = vpack.c.b16 %v3536, %v3530
    %v5307 = vpack.c.b16 %v3537, %v3531
    %v5308 = vpack.c.b16 %v3538, %v3532
    %v5309 = vpack.c.b16 %v3539, %v3533
    %v5310 = vpack.c.b16 %v3540, %v3534
    %v5311 = vpack.c.b16 %v3547, %v3541
    %v5312 = vpack.c.b16 %v3548, %v3542
    %v5313 = vpack.c.b16 %v3549, %v3543
    %v5314 = vpack.c.b16 %v3550, %v3544
    %v5315 = vpack.c.b16 %v3551, %v3545
    %v5316 = vpack.c.b16 %v3552, %v3546
    %v5317 = vpack.c.b16 %v3559, %v3553
    %v5318 = vpack.c.b16 %v3560, %v3554
    %v5319 = vpack.c.b16 %v3561, %v3555
    %v5320 = vpack.c.b16 %v3562, %v3556
    %v5321 = vpack.c.b16 %v3563, %v3557
    %v5322 = vpack.c.b16 %v3564, %v3558
    %v5323 = vpack.c.b16 %v3571, %v3565
    %v5324 = vpack.c.b16 %v3572, %v3566
    %v5325 = vpack.c.b16 %v3573, %v3567
    %v5326 = vpack.c.b16 %v3574, %v3568
    %v5327 = vpack.c.b16 %v3575, %v3569
    %v5328 = vpack.c.b16 %v3576, %v3570
    %v5329 = vpack.c.b16 %v3583, %v3577
    %v5330 = vpack.c.b16 %v3584, %v3578
    %v5331 = vpack.c.b16 %v3585, %v3579
    %v5332 = vpack.c.b16 %v3586, %v3580
    %v5333 = vpack.c.b16 %v3587, %v3581
    %v5334 = vpack.c.b16 %v3588, %v3582
    %v5335 = vpack.c.b16 %v3595, %v3589
    %v5336 = vpack.c.b16 %v3596, %v3590
    %v5337 = vpack.c.b16 %v3597, %v3591
    %v5338 = vpack.c.b16 %v3598, %v3592
    %v5339 = vpack.c.b16 %v3599, %v3593
    %v5340 = vpack.c.b16 %v3600, %v3594
    %v5341 = vpack.c.b16 %v3607, %v3601
    %v5342 = vpack.c.b16 %v3608, %v3602
    %v5343 = vpack.c.b16 %v3609, %v3603
    %v5344 = vpack.c.b16 %v3610, %v3604
    %v5345 = vpack.c.b16 %v3611, %v3605
    %v5346 = vpack.c.b16 %v3612, %v3606
    %v5347 = vpack.c.b16 %v3619, %v3613
    %v5348 = vpack.c.b16 %v3620, %v3614
    %v5349 = vpack.c.b16 %v3621, %v3615
    %v5350 = vpack.c.b16 %v3622, %v3616
    %v5351 = vpack.c.b16 %v3623, %v3617
    %v5352 = vpack.c.b16 %v3624, %v3618
    %v5353 = vpack.c.b16 %v3631, %v3625
    %v5354 = vpack.c.b16 %v3632, %v3626
    %v5355 = vpack.c.b16 %v3633, %v3627
    %v5356 = vpack.c.b16 %v3634, %v3628
    %v5357 = vpack.c.b16 %v3635, %v3629
    %v5358 = vpack.c.b16 %v3636, %v3630
    %v5359 = vpack.c.b16 %v3643, %v3637
    %v5360 = vpack.c.b16 %v3644, %v3638
    %v5361 = vpack.c.b16 %v3645, %v3639
    %v5362 = vpack.c.b16 %v3646, %v3640
    %v5363 = vpack.c.b16 %v3647, %v3641
    %v5364 = vpack.c.b16 %v3648, %v3642
    %v5365 = vpack.c.b16 %v3655, %v3649
    %v5366 = vpack.c.b16 %v3656, %v3650
    %v5367 = vpack.c.b16 %v3657, %v3651
    %v5368 = vpack.c.b16 %v3658, %v3652
    %v5369 = vpack.c.b16 %v3659, %v3653
    %v5370 = vpack.c.b16 %v3660, %v3654
    %v5371 = vpack.c.b16 %v3667, %v3661
    %v5372 = vpack.c.b16 %v3668, %v3662
    %v5373 = vpack.c.b16 %v3669, %v3663
    %v5374 = vpack.c.b16 %v3670, %v3664
    %v5375 = vpack.c.b16 %v3671, %v3665
    %v5376 = vpack.c.b16 %v3672, %v3666
    %v5377 = vpack.c.b16 %v3679, %v3673
    %v5378 = vpack.c.b16 %v3680, %v3674
    %v5379 = vpack.c.b16 %v3681, %v3675
    %v5380 = vpack.c.b16 %v3682, %v3676
    %v5381 = vpack.c.b16 %v3683, %v3677
    %v5382 = vpack.c.b16 %v3684, %v3678
    %v5383 = vpack.c.b16 %v3691, %v3685
    %v5384 = vpack.c.b16 %v3692, %v3686
    %v5385 = vpack.c.b16 %v3693, %v3687
    %v5386 = vpack.c.b16 %v3694, %v3688
    %v5387 = vpack.c.b16 %v3695, %v3689
    %v5388 = vpack.c.b16 %v3696, %v3690
    %v5389 = vpack.c.b16 %v3703, %v3697
    %v5390 = vpack.c.b16 %v3704, %v3698
    %v5391 = vpack.c.b16 %v3705, %v3699
    %v5392 = vpack.c.b16 %v3706, %v3700
    %v5393 = vpack.c.b16 %v3707, %v3701
    %v5394 = vpack.c.b16 %v3708, %v3702
    %v5395 = vpack.c.b16 %v3715, %v3709
    %v5396 = vpack.c.b16 %v3716, %v3710
    %v5397 = vpack.c.b16 %v3717, %v3711
    %v5398 = vpack.c.b16 %v3718, %v3712
    %v5399 = vpack.c.b16 %v3719, %v3713
    %v5400 = vpack.c.b16 %v3720, %v3714
    %v5401 = vpack.c.b16 %v3727, %v3721
    %v5402 = vpack.c.b16 %v3728, %v3722
    %v5403 = vpack.c.b16 %v3729, %v3723
    %v5404 = vpack.c.b16 %v3730, %v3724
    %v5405 = vpack.c.b16 %v3731, %v3725
    %v5406 = vpack.c.b16 %v3732, %v3726
    %v5407 = vpack.c.b16 %v3739, %v3733
    %v5408 = vpack.c.b16 %v3740, %v3734
    %v5409 = vpack.c.b16 %v3741, %v3735
    %v5410 = vpack.c.b16 %v3742, %v3736
    %v5411 = vpack.c.b16 %v3743, %v3737
    %v5412 = vpack.c.b16 %v3744, %v3738
    %v5413 = vpack.c.b16 %v3751, %v3745
    %v5414 = vpack.c.b16 %v3752, %v3746
    %v5415 = vpack.c.b16 %v3753, %v3747
    %v5416 = vpack.c.b16 %v3754, %v3748
    %v5417 = vpack.c.b16 %v3755, %v3749
    %v5418 = vpack.c.b16 %v3756, %v3750
    %v5419 = vpack.c.b16 %v3763, %v3757
    %v5420 = vpack.c.b16 %v3764, %v3758
    %v5421 = vpack.c.b16 %v3765, %v3759
    %v5422 = vpack.c.b16 %v3766, %v3760
    %v5423 = vpack.c.b16 %v3767, %v3761
    %v5424 = vpack.c.b16 %v3768, %v3762
    %v5425 = vpack.c.b16 %v3775, %v3769
    %v5426 = vpack.c.b16 %v3776, %v3770
    %v5427 = vpack.c.b16 %v3777, %v3771
    %v5428 = vpack.c.b16 %v3778, %v3772
    %v5429 = vpack.c.b16 %v3779, %v3773
    %v5430 = vpack.c.b16 %v3780, %v3774
    %v5431 = vpack.c.b16 %v3787, %v3781
    %v5432 = vpack.c.b16 %v3788, %v3782
    %v5433 = vpack.c.b16 %v3789, %v3783
    %v5434 = vpack.c.b16 %v3790, %v3784
    %v5435 = vpack.c.b16 %v3791, %v3785
    %v5436 = vpack.c.b16 %v3792, %v3786
    %v5437 = vpack.c.b16 %v3799, %v3793
    %v5438 = vpack.c.b16 %v3800, %v3794
    %v5439 = vpack.c.b16 %v3801, %v3795
    %v5440 = vpack.c.b16 %v3802, %v3796
    %v5441 = vpack.c.b16 %v3803, %v3797
    %v5442 = vpack.c.b16 %v3804, %v3798
    %v5443 = vpack.c.b16 %v3811, %v3805
    %v5444 = vpack.c.b16 %v3812, %v3806
    %v5445 = vpack.c.b16 %v3813, %v3807
    %v5446 = vpack.c.b16 %v3814, %v3808
    %v5447 = vpack.c.b16 %v3815, %v3809
    %v5448 = vpack.c.b16 %v3816, %v3810
    %v5449 = vpack.c.b16 %v3823, %v3817
    %v5450 = vpack.c.b16 %v3824, %v3818
    %v5451 = vpack.c.b16 %v3825, %v3819
    %v5452 = vpack.c.b16 %v3826, %v3820
    %v5453 = vpack.c.b16 %v3827, %v3821
    %v5454 = vpack.c.b16 %v3828, %v3822
    %v5455 = vpack.c.b16 %v3835, %v3829
    %v5456 = vpack.c.b16 %v3836, %v3830
    %v5457 = vpack.c.b16 %v3837, %v3831
    %v5458 = vpack.c.b16 %v3838, %v3832
    %v5459 = vpack.c.b16 %v3839, %v3833
    %v5460 = vpack.c.b16 %v3840, %v3834
    %v5461 = vpack.c.b16 %v3847, %v3841
    %v5462 = vpack.c.b16 %v3848, %v3842
    %v5463 = vpack.c.b16 %v3849, %v3843
    %v5464 = vpack.c.b16 %v3850, %v3844
    %v5465 = vpack.c.b16 %v3851, %v3845
    %v5466 = vpack.c.b16 %v3852, %v3846
    %v5467 = vpack.c.b16 %v3859, %v3853
    %v5468 = vpack.c.b16 %v3860, %v3854
    %v5469 = vpack.c.b16 %v3861, %v3855
    %v5470 = vpack.c.b16 %v3862, %v3856
    %v5471 = vpack.c.b16 %v3863, %v3857
    %v5472 = vpack.c.b16 %v3864, %v3858
    %v5473 = vpack.c.b16 %v3871, %v3865
    %v5474 = vpack.c.b16 %v3872, %v3866
    %v5475 = vpack.c.b16 %v3873, %v3867
    %v5476 = vpack.c.b16 %v3874, %v3868
    %v5477 = vpack.c.b16 %v3875, %v3869
    %v5478 = vpack.c.b16 %v3876, %v3870
    %v5479 = vpack.c.b16 %v3883, %v3877
    %v5480 = vpack.c.b16 %v3884, %v3878
    %v5481 = vpack.c.b16 %v3885, %v3879
    %v5482 = vpack.c.b16 %v3886, %v3880
    %v5483 = vpack.c.b16 %v3887, %v3881
    %v5484 = vpack.c.b16 %v3888, %v3882
    %v5485 = vpack.c.b16 %v3895, %v3889
    %v5486 = vpack.c.b16 %v3896, %v3890
    %v5487 = vpack.c.b16 %v3897, %v3891
    %v5488 = vpack.c.b16 %v3898, %v3892
    %v5489 = vpack.c.b16 %v3899, %v3893
    %v5490 = vpack.c.b16 %v3900, %v3894
    %v5491 = vpack.c.b16 %v3907, %v3901
    %v5492 = vpack.c.b16 %v3908, %v3902
    %v5493 = vpack.c.b16 %v3909, %v3903
    %v5494 = vpack.c.b16 %v3910, %v3904
    %v5495 = vpack.c.b16 %v3911, %v3905
    %v5496 = vpack.c.b16 %v3912, %v3906
    %v5497 = vpack.c.b16 %v3919, %v3913
    %v5498 = vpack.c.b16 %v3920, %v3914
    %v5499 = vpack.c.b16 %v3921, %v3915
    %v5500 = vpack.c.b16 %v3922, %v3916
    %v5501 = vpack.c.b16 %v3923, %v3917
    %v5502 = vpack.c.b16 %v3924, %v3918
    %v5503 = vpack.c.b16 %v3931, %v3925
    %v5504 = vpack.c.b16 %v3932, %v3926
    %v5505 = vpack.c.b16 %v3933, %v3927
    %v5506 = vpack.c.b16 %v3934, %v3928
    %v5507 = vpack.c.b16 %v3935, %v3929
    %v5508 = vpack.c.b16 %v3936, %v3930
    %v5509 = vpack.c.b16 %v3943, %v3937
    %v5510 = vpack.c.b16 %v3944, %v3938
    %v5511 = vpack.c.b16 %v3945, %v3939
    %v5512 = vpack.c.b16 %v3946, %v3940
    %v5513 = vpack.c.b16 %v3947, %v3941
    %v5514 = vpack.c.b16 %v3948, %v3942
    %v5515 = vpack.c.b16 %v3955, %v3949
    %v5516 = vpack.c.b16 %v3956, %v3950
    %v5517 = vpack.c.b16 %v3957, %v3951
    %v5518 = vpack.c.b16 %v3958, %v3952
    %v5519 = vpack.c.b16 %v3959, %v3953
    %v5520 = vpack.c.b16 %v3960, %v3954
    %v5521 = vpack.c.b16 %v3967, %v3961
    %v5522 = vpack.c.b16 %v3968, %v3962
    %v5523 = vpack.c.b16 %v3969, %v3963
    %v5524 = vpack.c.b16 %v3970, %v3964
    %v5525 = vpack.c.b16 %v3971, %v3965
    %v5526 = vpack.c.b16 %v3972, %v3966
    %v5527 = vpack.c.b16 %v3979, %v3973
    %v5528 = vpack.c.b16 %v3980, %v3974
    %v5529 = vpack.c.b16 %v3981, %v3975
    %v5530 = vpack.c.b16 %v3982, %v3976
    %v5531 = vpack.c.b16 %v3983, %v3977
    %v5532 = vpack.c.b16 %v3984, %v3978
    %v5533 = vpack.c.b16 %v3991, %v3985
    %v5534 = vpack.c.b16 %v3992, %v3986
    %v5535 = vpack.c.b16 %v3993, %v3987
    %v5536 = vpack.c.b16 %v3994, %v3988
    %v5537 = vpack.c.b16 %v3995, %v3989
    %v5538 = vpack.c.b16 %v3996, %v3990
    %v5539 = vpack.c.b16 %v4003, %v3997
    %v5540 = vpack.c.b16 %v4004, %v3998
    %v5541 = vpack.c.b16 %v4005, %v3999
    %v5542 = vpack.c.b16 %v4006, %v4000
    %v5543 = vpack.c.b16 %v4007, %v4001
    %v5544 = vpack.c.b16 %v4008, %v4002
    %v5545 = vpack.c.b16 %v4015, %v4009
    %v5546 = vpack.c.b16 %v4016, %v4010
    %v5547 = vpack.c.b16 %v4017, %v4011
    %v5548 = vpack.c.b16 %v4018, %v4012
    %v5549 = vpack.c.b16 %v4019, %v4013
    %v5550 = vpack.c.b16 %v4020, %v4014
    %v5551 = vpack.c.b16 %v4027, %v4021
    %v5552 = vpack.c.b16 %v4028, %v4022
    %v5553 = vpack.c.b16 %v4029, %v4023
    %v5554 = vpack.c.b16 %v4030, %v4024
    %v5555 = vpack.c.b16 %v4031, %v4025
    %v5556 = vpack.c.b16 %v4032, %v4026
    %v5557 = vpack.c.b16 %v4039, %v4033
    %v5558 = vpack.c.b16 %v4040, %v4034
    %v5559 = vpack.c.b16 %v4041, %v4035
    %v5560 = vpack.c.b16 %v4042, %v4036
    %v5561 = vpack.c.b16 %v4043, %v4037
    %v5562 = vpack.c.b16 %v4044, %v4038
    %v5563 = vpack.c.b16 %v4051, %v4045
    %v5564 = vpack.c.b16 %v4052, %v4046
    %v5565 = vpack.c.b16 %v4053, %v4047
    %v5566 = vpack.c.b16 %v4054, %v4048
    %v5567 = vpack.c.b16 %v4055, %v4049
    %v5568 = vpack.c.b16 %v4056, %v4050
    %v5569 = vpack.c.b16 %v4063, %v4057
    %v5570 = vpack.c.b16 %v4064, %v4058
    %v5571 = vpack.c.b16 %v4065, %v4059
    %v5572 = vpack.c.b16 %v4066, %v4060
    %v5573 = vpack.c.b16 %v4067, %v4061
    %v5574 = vpack.c.b16 %v4068, %v4062
    %v5575 = vpack.c.b16 %v4075, %v4069
    %v5576 = vpack.c.b16 %v4076, %v4070
    %v5577 = vpack.c.b16 %v4077, %v4071
    %v5578 = vpack.c.b16 %v4078, %v4072
    %v5579 = vpack.c.b16 %v4079, %v4073
    %v5580 = vpack.c.b16 %v4080, %v4074
    %v5581 = vpack.c.b16 %v4087, %v4081
    %v5582 = vpack.c.b16 %v4088, %v4082
    %v5583 = vpack.c.b16 %v4089, %v4083
    %v5584 = vpack.c.b16 %v4090, %v4084
    %v5585 = vpack.c.b16 %v4091, %v4085
    %v5586 = vpack.c.b16 %v4092, %v4086
    %v5587 = vpack.c.b16 %v4099, %v4093
    %v5588 = vpack.c.b16 %v4100, %v4094
    %v5589 = vpack.c.b16 %v4101, %v4095
    %v5590 = vpack.c.b16 %v4102, %v4096
    %v5591 = vpack.c.b16 %v4103, %v4097
    %v5592 = vpack.c.b16 %v4104, %v4098
    %v5593 = vpack.c.b16 %v4111, %v4105
    %v5594 = vpack.c.b16 %v4112, %v4106
    %v5595 = vpack.c.b16 %v4113, %v4107
    %v5596 = vpack.c.b16 %v4114, %v4108
    %v5597 = vpack.c.b16 %v4115, %v4109
    %v5598 = vpack.c.b16 %v4116, %v4110
    %v5599 = vpack.c.b16 %v4123, %v4117
    %v5600 = vpack.c.b16 %v4124, %v4118
    %v5601 = vpack.c.b16 %v4125, %v4119
    %v5602 = vpack.c.b16 %v4126, %v4120
    %v5603 = vpack.c.b16 %v4127, %v4121
    %v5604 = vpack.c.b16 %v4128, %v4122
    %v5605 = vpack.c.b16 %v4135, %v4129
    %v5606 = vpack.c.b16 %v4136, %v4130
    %v5607 = vpack.c.b16 %v4137, %v4131
    %v5608 = vpack.c.b16 %v4138, %v4132
    %v5609 = vpack.c.b16 %v4139, %v4133
    %v5610 = vpack.c.b16 %v4140, %v4134
    %v5611 = vpack.c.b16 %v4147, %v4141
    %v5612 = vpack.c.b16 %v4148, %v4142
    %v5613 = vpack.c.b16 %v4149, %v4143
    %v5614 = vpack.c.b16 %v4150, %v4144
    %v5615 = vpack.c.b16 %v4151, %v4145
    %v5616 = vpack.c.b16 %v4152, %v4146
    %v5617 = vpack.c.b16 %v4159, %v4153
    %v5618 = vpack.c.b16 %v4160, %v4154
    %v5619 = vpack.c.b16 %v4161, %v4155
    %v5620 = vpack.c.b16 %v4162, %v4156
    %v5621 = vpack.c.b16 %v4163, %v4157
    %v5622 = vpack.c.b16 %v4164, %v4158
    %v5623 = vpack.c.b16 %v4171, %v4165
    %v5624 = vpack.c.b16 %v4172, %v4166
    %v5625 = vpack.c.b16 %v4173, %v4167
    %v5626 = vpack.c.b16 %v4174, %v4168
    %v5627 = vpack.c.b16 %v4175, %v4169
    %v5628 = vpack.c.b16 %v4176, %v4170
    %v5629 = vpack.c.b16 %v4183, %v4177
    %v5630 = vpack.c.b16 %v4184, %v4178
    %v5631 = vpack.c.b16 %v4185, %v4179
    %v5632 = vpack.c.b16 %v4186, %v4180
    %v5633 = vpack.c.b16 %v4187, %v4181
    %v5634 = vpack.c.b16 %v4188, %v4182
    %v5635 = vpack.c.b16 %v4195, %v4189
    %v5636 = vpack.c.b16 %v4196, %v4190
    %v5637 = vpack.c.b16 %v4197, %v4191
    %v5638 = vpack.c.b16 %v4198, %v4192
    %v5639 = vpack.c.b16 %v4199, %v4193
    %v5640 = vpack.c.b16 %v4200, %v4194
    %v5641 = vpack.c.b16 %v4207, %v4201
    %v5642 = vpack.c.b16 %v4208, %v4202
    %v5643 = vpack.c.b16 %v4209, %v4203
    %v5644 = vpack.c.b16 %v4210, %v4204
    %v5645 = vpack.c.b16 %v4211, %v4205
    %v5646 = vpack.c.b16 %v4212, %v4206
    %v5647 = vpack.c.b16 %v4219, %v4213
    %v5648 = vpack.c.b16 %v4220, %v4214
    %v5649 = vpack.c.b16 %v4221, %v4215
    %v5650 = vpack.c.b16 %v4222, %v4216
    %v5651 = vpack.c.b16 %v4223, %v4217
    %v5652 = vpack.c.b16 %v4224, %v4218
    %v5653 = vpack.c.b16 %v4231, %v4225
    %v5654 = vpack.c.b16 %v4232, %v4226
    %v5655 = vpack.c.b16 %v4233, %v4227
    %v5656 = vpack.c.b16 %v4234, %v4228
    %v5657 = vpack.c.b16 %v4235, %v4229
    %v5658 = vpack.c.b16 %v4236, %v4230
    %v5659 = vpack.c.b16 %v4243, %v4237
    %v5660 = vpack.c.b16 %v4244, %v4238
    %v5661 = vpack.c.b16 %v4245, %v4239
    %v5662 = vpack.c.b16 %v4246, %v4240
    %v5663 = vpack.c.b16 %v4247, %v4241
    %v5664 = vpack.c.b16 %v4248, %v4242
    %v5665 = vpack.c.b16 %v4255, %v4249
    %v5666 = vpack.c.b16 %v4256, %v4250
    %v5667 = vpack.c.b16 %v4257, %v4251
    %v5668 = vpack.c.b16 %v4258, %v4252
    %v5669 = vpack.c.b16 %v4259, %v4253
    %v5670 = vpack.c.b16 %v4260, %v4254
    %v5671 = vpack.c.b16 %v4267, %v4261
    %v5672 = vpack.c.b16 %v4268, %v4262
    %v5673 = vpack.c.b16 %v4269, %v4263
    %v5674 = vpack.c.b16 %v4270, %v4264
    %v5675 = vpack.c.b16 %v4271, %v4265
    %v5676 = vpack.c.b16 %v4272, %v4266
    %v5677 = vpack.c.b16 %v4279, %v4273
    %v5678 = vpack.c.b16 %v4280, %v4274
    %v5679 = vpack.c.b16 %v4281, %v4275
    %v5680 = vpack.c.b16 %v4282, %v4276
    %v5681 = vpack.c.b16 %v4283, %v4277
    %v5682 = vpack.c.b16 %v4284, %v4278
    %v5683 = vpack.c.b16 %v4291, %v4285
    %v5684 = vpack.c.b16 %v4292, %v4286
    %v5685 = vpack.c.b16 %v4293, %v4287
    %v5686 = vpack.c.b16 %v4294, %v4288
    %v5687 = vpack.c.b16 %v4295, %v4289
    %v5688 = vpack.c.b16 %v4296, %v4290
    %v5689 = vpack.c.b16 %v4303, %v4297
    %v5690 = vpack.c.b16 %v4304, %v4298
    %v5691 = vpack.c.b16 %v4305, %v4299
    %v5692 = vpack.c.b16 %v4306, %v4300
    %v5693 = vpack.c.b16 %v4307, %v4301
    %v5694 = vpack.c.b16 %v4308, %v4302
    %v5695 = vpack.c.b16 %v4315, %v4309
    %v5696 = vpack.c.b16 %v4316, %v4310
    %v5697 = vpack.c.b16 %v4317, %v4311
    %v5698 = vpack.c.b16 %v4318, %v4312
    %v5699 = vpack.c.b16 %v4319, %v4313
    %v5700 = vpack.c.b16 %v4320, %v4314
    %v5701 = vpack.c.b16 %v4327, %v4321
    %v5702 = vpack.c.b16 %v4328, %v4322
    %v5703 = vpack.c.b16 %v4329, %v4323
    %v5704 = vpack.c.b16 %v4330, %v4324
    %v5705 = vpack.c.b16 %v4331, %v4325
    %v5706 = vpack.c.b16 %v4332, %v4326
    %v5707 = vpack.c.b16 %v4339, %v4333
    %v5708 = vpack.c.b16 %v4340, %v4334
    %v5709 = vpack.c.b16 %v4341, %v4335
    %v5710 = vpack.c.b16 %v4342, %v4336
    %v5711 = vpack.c.b16 %v4343, %v4337
    %v5712 = vpack.c.b16 %v4344, %v4338
    %v5713 = vpack.c.b16 %v4351, %v4345
    %v5714 = vpack.c.b16 %v4352, %v4346
    %v5715 = vpack.c.b16 %v4353, %v4347
    %v5716 = vpack.c.b16 %v4354, %v4348
    %v5717 = vpack.c.b16 %v4355, %v4349
    %v5718 = vpack.c.b16 %v4356, %v4350
    %v5719 = vpack.c.b16 %v4363, %v4357
    %v5720 = vpack.c.b16 %v4364, %v4358
    %v5721 = vpack.c.b16 %v4365, %v4359
    %v5722 = vpack.c.b16 %v4366, %v4360
    %v5723 = vpack.c.b16 %v4367, %v4361
    %v5724 = vpack.c.b16 %v4368, %v4362
    %v5725 = vpack.c.b16 %v4375, %v4369
    %v5726 = vpack.c.b16 %v4376, %v4370
    %v5727 = vpack.c.b16 %v4377, %v4371
    %v5728 = vpack.c.b16 %v4378, %v4372
    %v5729 = vpack.c.b16 %v4379, %v4373
    %v5730 = vpack.c.b16 %v4380, %v4374
    %v5731 = vpack.c.b16 %v4387, %v4381
    %v5732 = vpack.c.b16 %v4388, %v4382
    %v5733 = vpack.c.b16 %v4389, %v4383
    %v5734 = vpack.c.b16 %v4390, %v4384
    %v5735 = vpack.c.b16 %v4391, %v4385
    %v5736 = vpack.c.b16 %v4392, %v4386
    %v5737 = vpack.c.b16 %v4399, %v4393
    %v5738 = vpack.c.b16 %v4400, %v4394
    %v5739 = vpack.c.b16 %v4401, %v4395
    %v5740 = vpack.c.b16 %v4402, %v4396
    %v5741 = vpack.c.b16 %v4403, %v4397
    %v5742 = vpack.c.b16 %v4404, %v4398
    %v5743 = vpack.c.b16 %v4411, %v4405
    %v5744 = vpack.c.b16 %v4412, %v4406
    %v5745 = vpack.c.b16 %v4413, %v4407
    %v5746 = vpack.c.b16 %v4414, %v4408
    %v5747 = vpack.c.b16 %v4415, %v4409
    %v5748 = vpack.c.b16 %v4416, %v4410
    %v5749 = vpack.c.b16 %v4423, %v4417
    %v5750 = vpack.c.b16 %v4424, %v4418
    %v5751 = vpack.c.b16 %v4425, %v4419
    %v5752 = vpack.c.b16 %v4426, %v4420
    %v5753 = vpack.c.b16 %v4427, %v4421
    %v5754 = vpack.c.b16 %v4428, %v4422
    %v5755 = vpack.c.b16 %v4435, %v4429
    %v5756 = vpack.c.b16 %v4436, %v4430
    %v5757 = vpack.c.b16 %v4437, %v4431
    %v5758 = vpack.c.b16 %v4438, %v4432
    %v5759 = vpack.c.b16 %v4439, %v4433
    %v5760 = vpack.c.b16 %v4440, %v4434
    %v5761 = vpack.c.b16 %v4447, %v4441
    %v5762 = vpack.c.b16 %v4448, %v4442
    %v5763 = vpack.c.b16 %v4449, %v4443
    %v5764 = vpack.c.b16 %v4450, %v4444
    %v5765 = vpack.c.b16 %v4451, %v4445
    %v5766 = vpack.c.b16 %v4452, %v4446
    %v5767 = vpack.c.b16 %v4459, %v4453
    %v5768 = vpack.c.b16 %v4460, %v4454
    %v5769 = vpack.c.b16 %v4461, %v4455
    %v5770 = vpack.c.b16 %v4462, %v4456
    %v5771 = vpack.c.b16 %v4463, %v4457
    %v5772 = vpack.c.b16 %v4464, %v4458
    %v5773 = vpack.c.b16 %v4471, %v4465
    %v5774 = vpack.c.b16 %v4472, %v4466
    %v5775 = vpack.c.b16 %v4473, %v4467
    %v5776 = vpack.c.b16 %v4474, %v4468
    %v5777 = vpack.c.b16 %v4475, %v4469
    %v5778 = vpack.c.b16 %v4476, %v4470
    %v5779 = vpack.c.b16 %v4483, %v4477
    %v5780 = vpack.c.b16 %v4484, %v4478
    %v5781 = vpack.c.b16 %v4485, %v4479
    %v5782 = vpack.c.b16 %v4486, %v4480
    %v5783 = vpack.c.b16 %v4487, %v4481
    %v5784 = vpack.c.b16 %v4488, %v4482
    %v5785 = vpack.c.b16 %v4495, %v4489
    %v5786 = vpack.c.b16 %v4496, %v4490
    %v5787 = vpack.c.b16 %v4497, %v4491
    %v5788 = vpack.c.b16 %v4498, %v4492
    %v5789 = vpack.c.b16 %v4499, %v4493
    %v5790 = vpack.c.b16 %v4500, %v4494
    %v5791 = vpack.c.b16 %v4507, %v4501
    %v5792 = vpack.c.b16 %v4508, %v4502
    %v5793 = vpack.c.b16 %v4509, %v4503
    %v5794 = vpack.c.b16 %v4510, %v4504
    %v5795 = vpack.c.b16 %v4511, %v4505
    %v5796 = vpack.c.b16 %v4512, %v4506
    %v5797 = vpack.c.b16 %v4519, %v4513
    %v5798 = vpack.c.b16 %v4520, %v4514
    %v5799 = vpack.c.b16 %v4521, %v4515
    %v5800 = vpack.c.b16 %v4522, %v4516
    %v5801 = vpack.c.b16 %v4523, %v4517
    %v5802 = vpack.c.b16 %v4524, %v4518
    %v5803 = vpack.c.b16 %v4531, %v4525
    %v5804 = vpack.c.b16 %v4532, %v4526
    %v5805 = vpack.c.b16 %v4533, %v4527
    %v5806 = vpack.c.b16 %v4534, %v4528
    %v5807 = vpack.c.b16 %v4535, %v4529
    %v5808 = vpack.c.b16 %v4536, %v4530
    %v5809 = vpack.c.b16 %v4543, %v4537
    %v5810 = vpack.c.b16 %v4544, %v4538
    %v5811 = vpack.c.b16 %v4545, %v4539
    %v5812 = vpack.c.b16 %v4546, %v4540
    %v5813 = vpack.c.b16 %v4547, %v4541
    %v5814 = vpack.c.b16 %v4548, %v4542
    %v5815 = vpack.c.b16 %v4555, %v4549
    %v5816 = vpack.c.b16 %v4556, %v4550
    %v5817 = vpack.c.b16 %v4557, %v4551
    %v5818 = vpack.c.b16 %v4558, %v4552
    %v5819 = vpack.c.b16 %v4559, %v4553
    %v5820 = vpack.c.b16 %v4560, %v4554
    %v5821 = vpack.c.b16 %v4567, %v4561
    %v5822 = vpack.c.b16 %v4568, %v4562
    %v5823 = vpack.c.b16 %v4569, %v4563
    %v5824 = vpack.c.b16 %v4570, %v4564
    %v5825 = vpack.c.b16 %v4571, %v4565
    %v5826 = vpack.c.b16 %v4572, %v4566
    %v5827 = vpack.c.b16 %v4579, %v4573
    %v5828 = vpack.c.b16 %v4580, %v4574
    %v5829 = vpack.c.b16 %v4581, %v4575
    %v5830 = vpack.c.b16 %v4582, %v4576
    %v5831 = vpack.c.b16 %v4583, %v4577
    %v5832 = vpack.c.b16 %v4584, %v4578
    %v5833 = vpack.c.b16 %v4591, %v4585
    %v5834 = vpack.c.b16 %v4592, %v4586
    %v5835 = vpack.c.b16 %v4593, %v4587
    %v5836 = vpack.c.b16 %v4594, %v4588
    %v5837 = vpack.c.b16 %v4595, %v4589
    %v5838 = vpack.c.b16 %v4596, %v4590
    %v5839 = vpack.c.b16 %v4603, %v4597
    %v5840 = vpack.c.b16 %v4604, %v4598
    %v5841 = vpack.c.b16 %v4605, %v4599
    %v5842 = vpack.c.b16 %v4606, %v4600
    %v5843 = vpack.c.b16 %v4607, %v4601
    %v5844 = vpack.c.b16 %v4608, %v4602
    %v5845 = vpack.c.b16 %v4615, %v4609
    %v5846 = vpack.c.b16 %v4616, %v4610
    %v5847 = vpack.c.b16 %v4617, %v4611
    %v5848 = vpack.c.b16 %v4618, %v4612
    %v5849 = vpack.c.b16 %v4619, %v4613
    %v5850 = vpack.c.b16 %v4620, %v4614
    %v5851 = vpack.c.b16 %v4627, %v4621
    %v5852 = vpack.c.b16 %v4628, %v4622
    %v5853 = vpack.c.b16 %v4629, %v4623
    %v5854 = vpack.c.b16 %v4630, %v4624
    %v5855 = vpack.c.b16 %v4631, %v4625
    %v5856 = vpack.c.b16 %v4632, %v4626
    %v5857 = vpack.c.b16 %v4639, %v4633
    %v5858 = vpack.c.b16 %v4640, %v4634
    %v5859 = vpack.c.b16 %v4641, %v4635
    %v5860 = vpack.c.b16 %v4642, %v4636
    %v5861 = vpack.c.b16 %v4643, %v4637
    %v5862 = vpack.c.b16 %v4644, %v4638
    %v5863 = vpack.c.b16 %v4651, %v4645
    %v5864 = vpack.c.b16 %v4652, %v4646
    %v5865 = vpack.c.b16 %v4653, %v4647
    %v5866 = vpack.c.b16 %v4654, %v4648
    %v5867 = vpack.c.b16 %v4655, %v4649
    %v5868 = vpack.c.b16 %v4656, %v4650
    %v5869 = vpack.c.b16 %v4663, %v4657
    %v5870 = vpack.c.b16 %v4664, %v4658
    %v5871 = vpack.c.b16 %v4665, %v4659
    %v5872 = vpack.c.b16 %v4666, %v4660
    %v5873 = vpack.c.b16 %v4667, %v4661
    %v5874 = vpack.c.b16 %v4668, %v4662
    %v5875 = vpack.c.b16 %v4675, %v4669
    %v5876 = vpack.c.b16 %v4676, %v4670
    %v5877 = vpack.c.b16 %v4677, %v4671
    %v5878 = vpack.c.b16 %v4678, %v4672
    %v5879 = vpack.c.b16 %v4679, %v4673
    %v5880 = vpack.c.b16 %v4680, %v4674
    %v5881 = vpack.c.b16 %v4687, %v4681
    %v5882 = vpack.c.b16 %v4688, %v4682
    %v5883 = vpack.c.b16 %v4689, %v4683
    %v5884 = vpack.c.b16 %v4690, %v4684
    %v5885 = vpack.c.b16 %v4691, %v4685
    %v5886 = vpack.c.b16 %v4692, %v4686
    %v5887 = vpack.c.b16 %v4699, %v4693
    %v5888 = vpack.c.b16 %v4700, %v4694
    %v5889 = vpack.c.b16 %v4701, %v4695
    %v5890 = vpack.c.b16 %v4702, %v4696
    %v5891 = vpack.c.b16 %v4703, %v4697
    %v5892 = vpack.c.b16 %v4704, %v4698
    %v5893 = vpack.c.b16 %v4711, %v4705
    %v5894 = vpack.c.b16 %v4712, %v4706
    %v5895 = vpack.c.b16 %v4713, %v4707
    %v5896 = vpack.c.b16 %v4714, %v4708
    %v5897 = vpack.c.b16 %v4715, %v4709
    %v5898 = vpack.c.b16 %v4716, %v4710
    %v5899 = vpack.c.b16 %v4723, %v4717
    %v5900 = vpack.c.b16 %v4724, %v4718
    %v5901 = vpack.c.b16 %v4725, %v4719
    %v5902 = vpack.c.b16 %v4726, %v4720
    %v5903 = vpack.c.b16 %v4727, %v4721
    %v5904 = vpack.c.b16 %v4728, %v4722
    %v5905 = vpack.c.b16 %v4735, %v4729
    %v5906 = vpack.c.b16 %v4736, %v4730
    %v5907 = vpack.c.b16 %v4737, %v4731
    %v5908 = vpack.c.b16 %v4738, %v4732
    %v5909 = vpack.c.b16 %v4739, %v4733
    %v5910 = vpack.c.b16 %v4740, %v4734
    %v5911 = vpack.c.b16 %v4747, %v4741
    %v5912 = vpack.c.b16 %v4748, %v4742
    %v5913 = vpack.c.b16 %v4749, %v4743
    %v5914 = vpack.c.b16 %v4750, %v4744
    %v5915 = vpack.c.b16 %v4751, %v4745
    %v5916 = vpack.c.b16 %v4752, %v4746
    %v5917 = vpack.c.b16 %v4759, %v4753
    %v5918 = vpack.c.b16 %v4760, %v4754
    %v5919 = vpack.c.b16 %v4761, %v4755
    %v5920 = vpack.c.b16 %v4762, %v4756
    %v5921 = vpack.c.b16 %v4763, %v4757
    %v5922 = vpack.c.b16 %v4764, %v4758
    %v5923 = vpack.c.b16 %v4771, %v4765
    %v5924 = vpack.c.b16 %v4772, %v4766
    %v5925 = vpack.c.b16 %v4773, %v4767
    %v5926 = vpack.c.b16 %v4774, %v4768
    %v5927 = vpack.c.b16 %v4775, %v4769
    %v5928 = vpack.c.b16 %v4776, %v4770
    %7081 = vmatpush.bf16.msra.mxu0 %v4819
    %7082 = vmatpush.bf16.msra.mxu0 %v4813
    %7083 = vmatpush.bf16.msra.mxu0 %v4807
    %7084 = vmatpush.bf16.msra.mxu0 %v4801
    %7085 = vmatpush.bf16.msra.mxu0 %v4795
    %7086 = vmatpush.bf16.msra.mxu0 %v4789
    %7087 = vmatpush.bf16.msra.mxu0 %v4783
    %7088 = vmatpush.bf16.msra.mxu0 %v4777
    %7089 = vmatmul.bf16.gmra.mxu0 %v127
    %v7090 = vpop.f32.mrf.mxu0
    %v7091 = vadd.f32 %v1309, %v7090
    %v7092 = vpop.f32.mrf.mxu0
    %v7093 = vadd.f32 %v1309, %v7092
    %7094 = vdwg.mxu0
    %7095 = vmatpush.bf16.msra.mxu0 %v4867
    %7096 = vmatpush.bf16.msra.mxu0 %v4861
    %7097 = vmatpush.bf16.msra.mxu0 %v4855
    %7098 = vmatpush.bf16.msra.mxu0 %v4849
    %7099 = vmatpush.bf16.msra.mxu0 %v4843
    %7100 = vmatpush.bf16.msra.mxu0 %v4837
    %7101 = vmatpush.bf16.msra.mxu0 %v4831
    %7102 = vmatpush.bf16.msra.mxu0 %v4825
    %7103 = vmatmul.bf16.gmra.mxu0 %v128
    %v7104 = vpop.f32.mrf.mxu0
    %v7105 = vadd.f32 %v7091, %v7104
    %v7106 = vpop.f32.mrf.mxu0
    %v7107 = vadd.f32 %v7093, %v7106
    %7108 = vdwg.mxu0
    %7109 = vmatpush.bf16.msra.mxu0 %v4915
    %7110 = vmatpush.bf16.msra.mxu0 %v4909
    %7111 = vmatpush.bf16.msra.mxu0 %v4903
    %7112 = vmatpush.bf16.msra.mxu0 %v4897
    %7113 = vmatpush.bf16.msra.mxu0 %v4891
    %7114 = vmatpush.bf16.msra.mxu0 %v4885
    %7115 = vmatpush.bf16.msra.mxu0 %v4879
    %7116 = vmatpush.bf16.msra.mxu0 %v4873
    %7117 = vmatmul.bf16.gmra.mxu0 %v129
    %v7118 = vpop.f32.mrf.mxu0
    %v7119 = vadd.f32 %v7105, %v7118
    %v7120 = vpop.f32.mrf.mxu0
    %v7121 = vadd.f32 %v7107, %v7120
    %7122 = vdwg.mxu0
    %7123 = vmatpush.bf16.msra.mxu0 %v4963
    %7124 = vmatpush.bf16.msra.mxu0 %v4957
    %7125 = vmatpush.bf16.msra.mxu0 %v4951
    %7126 = vmatpush.bf16.msra.mxu0 %v4945
    %7127 = vmatpush.bf16.msra.mxu0 %v4939
    %7128 = vmatpush.bf16.msra.mxu0 %v4933
    %7129 = vmatpush.bf16.msra.mxu0 %v4927
    %7130 = vmatpush.bf16.msra.mxu0 %v4921
    %7131 = vmatmul.bf16.gmra.mxu0 %v130
    %v7132 = vpop.f32.mrf.mxu0
    %v7133 = vadd.f32 %v7119, %v7132
    %v7134 = vpop.f32.mrf.mxu0
    %v7135 = vadd.f32 %v7121, %v7134
    %7136 = vdwg.mxu0
    %7137 = vmatpush.bf16.msra.mxu0 %v5011
    %7138 = vmatpush.bf16.msra.mxu0 %v5005
    %7139 = vmatpush.bf16.msra.mxu0 %v4999
    %7140 = vmatpush.bf16.msra.mxu0 %v4993
    %7141 = vmatpush.bf16.msra.mxu0 %v4987
    %7142 = vmatpush.bf16.msra.mxu0 %v4981
    %7143 = vmatpush.bf16.msra.mxu0 %v4975
    %7144 = vmatpush.bf16.msra.mxu0 %v4969
    %7145 = vmatmul.bf16.gmra.mxu0 %v131
    %v7146 = vpop.f32.mrf.mxu0
    %v7147 = vadd.f32 %v7133, %v7146
    %v7148 = vpop.f32.mrf.mxu0
    %v7149 = vadd.f32 %v7135, %v7148
    %7150 = vdwg.mxu0
    %7151 = vmatpush.bf16.msra.mxu0 %v5059
    %7152 = vmatpush.bf16.msra.mxu0 %v5053
    %7153 = vmatpush.bf16.msra.mxu0 %v5047
    %7154 = vmatpush.bf16.msra.mxu0 %v5041
    %7155 = vmatpush.bf16.msra.mxu0 %v5035
    %7156 = vmatpush.bf16.msra.mxu0 %v5029
    %7157 = vmatpush.bf16.msra.mxu0 %v5023
    %7158 = vmatpush.bf16.msra.mxu0 %v5017
    %7159 = vmatmul.bf16.gmra.mxu0 %v132
    %v7160 = vpop.f32.mrf.mxu0
    %v7161 = vadd.f32 %v7147, %v7160
    %v7162 = vpop.f32.mrf.mxu0
    %v7163 = vadd.f32 %v7149, %v7162
    %7164 = vdwg.mxu0
    %7165 = vmatpush.bf16.msra.mxu0 %v5107
    %7166 = vmatpush.bf16.msra.mxu0 %v5101
    %7167 = vmatpush.bf16.msra.mxu0 %v5095
    %7168 = vmatpush.bf16.msra.mxu0 %v5089
    %7169 = vmatpush.bf16.msra.mxu0 %v5083
    %7170 = vmatpush.bf16.msra.mxu0 %v5077
    %7171 = vmatpush.bf16.msra.mxu0 %v5071
    %7172 = vmatpush.bf16.msra.mxu0 %v5065
    %7173 = vmatmul.bf16.gmra.mxu0 %v133
    %v7174 = vpop.f32.mrf.mxu0
    %v7175 = vadd.f32 %v7161, %v7174
    %v7176 = vpop.f32.mrf.mxu0
    %v7177 = vadd.f32 %v7163, %v7176
    %7178 = vdwg.mxu0
    %7179 = vmatpush.bf16.msra.mxu0 %v5155
    %7180 = vmatpush.bf16.msra.mxu0 %v5149
    %7181 = vmatpush.bf16.msra.mxu0 %v5143
    %7182 = vmatpush.bf16.msra.mxu0 %v5137
    %7183 = vmatpush.bf16.msra.mxu0 %v5131
    %7184 = vmatpush.bf16.msra.mxu0 %v5125
    %7185 = vmatpush.bf16.msra.mxu0 %v5119
    %7186 = vmatpush.bf16.msra.mxu0 %v5113
    %7187 = vmatmul.bf16.gmra.mxu0 %v134
    %v7188 = vpop.f32.mrf.mxu0
    %v7189 = vadd.f32 %v7175, %v7188
    %v7190 = vpop.f32.mrf.mxu0
    %v7191 = vadd.f32 %v7177, %v7190
    %7192 = vdwg.mxu0
    %7193 = vmatpush.bf16.msra.mxu0 %v5203
    %7194 = vmatpush.bf16.msra.mxu0 %v5197
    %7195 = vmatpush.bf16.msra.mxu0 %v5191
    %7196 = vmatpush.bf16.msra.mxu0 %v5185
    %7197 = vmatpush.bf16.msra.mxu0 %v5179
    %7198 = vmatpush.bf16.msra.mxu0 %v5173
    %7199 = vmatpush.bf16.msra.mxu0 %v5167
    %7200 = vmatpush.bf16.msra.mxu0 %v5161
    %7201 = vmatmul.bf16.gmra.mxu0 %v135
    %v7202 = vpop.f32.mrf.mxu0
    %v7203 = vadd.f32 %v7189, %v7202
    %v7204 = vpop.f32.mrf.mxu0
    %v7205 = vadd.f32 %v7191, %v7204
    %7206 = vdwg.mxu0
    %7207 = vmatpush.bf16.msra.mxu0 %v5251
    %7208 = vmatpush.bf16.msra.mxu0 %v5245
    %7209 = vmatpush.bf16.msra.mxu0 %v5239
    %7210 = vmatpush.bf16.msra.mxu0 %v5233
    %7211 = vmatpush.bf16.msra.mxu0 %v5227
    %7212 = vmatpush.bf16.msra.mxu0 %v5221
    %7213 = vmatpush.bf16.msra.mxu0 %v5215
    %7214 = vmatpush.bf16.msra.mxu0 %v5209
    %7215 = vmatmul.bf16.gmra.mxu0 %v136
    %v7216 = vpop.f32.mrf.mxu0
    %v7217 = vadd.f32 %v7203, %v7216
    %v7218 = vpop.f32.mrf.mxu0
    %v7219 = vadd.f32 %v7205, %v7218
    %7220 = vdwg.mxu0
    %7221 = vmatpush.bf16.msra.mxu0 %v5299
    %7222 = vmatpush.bf16.msra.mxu0 %v5293
    %7223 = vmatpush.bf16.msra.mxu0 %v5287
    %7224 = vmatpush.bf16.msra.mxu0 %v5281
    %7225 = vmatpush.bf16.msra.mxu0 %v5275
    %7226 = vmatpush.bf16.msra.mxu0 %v5269
    %7227 = vmatpush.bf16.msra.mxu0 %v5263
    %7228 = vmatpush.bf16.msra.mxu0 %v5257
    %7229 = vmatmul.bf16.gmra.mxu0 %v137
    %v7230 = vpop.f32.mrf.mxu0
    %v7231 = vadd.f32 %v7217, %v7230
    %v7232 = vpop.f32.mrf.mxu0
    %v7233 = vadd.f32 %v7219, %v7232
    %7234 = vdwg.mxu0
    %7235 = vmatpush.bf16.msra.mxu0 %v5347
    %7236 = vmatpush.bf16.msra.mxu0 %v5341
    %7237 = vmatpush.bf16.msra.mxu0 %v5335
    %7238 = vmatpush.bf16.msra.mxu0 %v5329
    %7239 = vmatpush.bf16.msra.mxu0 %v5323
    %7240 = vmatpush.bf16.msra.mxu0 %v5317
    %7241 = vmatpush.bf16.msra.mxu0 %v5311
    %7242 = vmatpush.bf16.msra.mxu0 %v5305
    %7243 = vmatmul.bf16.gmra.mxu0 %v138
    %v7244 = vpop.f32.mrf.mxu0
    %v7245 = vadd.f32 %v7231, %v7244
    %v7246 = vpop.f32.mrf.mxu0
    %v7247 = vadd.f32 %v7233, %v7246
    %7248 = vdwg.mxu0
    %7249 = vmatpush.bf16.msra.mxu0 %v5395
    %7250 = vmatpush.bf16.msra.mxu0 %v5389
    %7251 = vmatpush.bf16.msra.mxu0 %v5383
    %7252 = vmatpush.bf16.msra.mxu0 %v5377
    %7253 = vmatpush.bf16.msra.mxu0 %v5371
    %7254 = vmatpush.bf16.msra.mxu0 %v5365
    %7255 = vmatpush.bf16.msra.mxu0 %v5359
    %7256 = vmatpush.bf16.msra.mxu0 %v5353
    %7257 = vmatmul.bf16.gmra.mxu0 %v139
    %v7258 = vpop.f32.mrf.mxu0
    %v7259 = vadd.f32 %v7245, %v7258
    %v7260 = vpop.f32.mrf.mxu0
    %v7261 = vadd.f32 %v7247, %v7260
    %7262 = vdwg.mxu0
    %7263 = vmatpush.bf16.msra.mxu0 %v5443
    %7264 = vmatpush.bf16.msra.mxu0 %v5437
    %7265 = vmatpush.bf16.msra.mxu0 %v5431
    %7266 = vmatpush.bf16.msra.mxu0 %v5425
    %7267 = vmatpush.bf16.msra.mxu0 %v5419
    %7268 = vmatpush.bf16.msra.mxu0 %v5413
    %7269 = vmatpush.bf16.msra.mxu0 %v5407
    %7270 = vmatpush.bf16.msra.mxu0 %v5401
    %7271 = vmatmul.bf16.gmra.mxu0 %v140
    %v7272 = vpop.f32.mrf.mxu0
    %v7273 = vadd.f32 %v7259, %v7272
    %v7274 = vpop.f32.mrf.mxu0
    %v7275 = vadd.f32 %v7261, %v7274
    %7276 = vdwg.mxu0
    %7277 = vmatpush.bf16.msra.mxu0 %v5491
    %7278 = vmatpush.bf16.msra.mxu0 %v5485
    %7279 = vmatpush.bf16.msra.mxu0 %v5479
    %7280 = vmatpush.bf16.msra.mxu0 %v5473
    %7281 = vmatpush.bf16.msra.mxu0 %v5467
    %7282 = vmatpush.bf16.msra.mxu0 %v5461
    %7283 = vmatpush.bf16.msra.mxu0 %v5455
    %7284 = vmatpush.bf16.msra.mxu0 %v5449
    %7285 = vmatmul.bf16.gmra.mxu0 %v141
    %v7286 = vpop.f32.mrf.mxu0
    %v7287 = vadd.f32 %v7273, %v7286
    %v7288 = vpop.f32.mrf.mxu0
    %v7289 = vadd.f32 %v7275, %v7288
    %7290 = vdwg.mxu0
    %7291 = vmatpush.bf16.msra.mxu0 %v5539
    %7292 = vmatpush.bf16.msra.mxu0 %v5533
    %7293 = vmatpush.bf16.msra.mxu0 %v5527
    %7294 = vmatpush.bf16.msra.mxu0 %v5521
    %7295 = vmatpush.bf16.msra.mxu0 %v5515
    %7296 = vmatpush.bf16.msra.mxu0 %v5509
    %7297 = vmatpush.bf16.msra.mxu0 %v5503
    %7298 = vmatpush.bf16.msra.mxu0 %v5497
    %7299 = vmatmul.bf16.gmra.mxu0 %v142
    %v7300 = vpop.f32.mrf.mxu0
    %v7301 = vadd.f32 %v7287, %v7300
    %v7302 = vpop.f32.mrf.mxu0
    %v7303 = vadd.f32 %v7289, %v7302
    %7304 = vdwg.mxu0
    %7305 = vmatpush.bf16.msra.mxu0 %v5587
    %7306 = vmatpush.bf16.msra.mxu0 %v5581
    %7307 = vmatpush.bf16.msra.mxu0 %v5575
    %7308 = vmatpush.bf16.msra.mxu0 %v5569
    %7309 = vmatpush.bf16.msra.mxu0 %v5563
    %7310 = vmatpush.bf16.msra.mxu0 %v5557
    %7311 = vmatpush.bf16.msra.mxu0 %v5551
    %7312 = vmatpush.bf16.msra.mxu0 %v5545
    %7313 = vmatmul.bf16.gmra.mxu0 %v143
    %v7314 = vpop.f32.mrf.mxu0
    %v7315 = vadd.f32 %v7301, %v7314
    %v7316 = vpop.f32.mrf.mxu0
    %v7317 = vadd.f32 %v7303, %v7316
    %7318 = vdwg.mxu0
    %7319 = vmatpush.bf16.msra.mxu0 %v5635
    %7320 = vmatpush.bf16.msra.mxu0 %v5629
    %7321 = vmatpush.bf16.msra.mxu0 %v5623
    %7322 = vmatpush.bf16.msra.mxu0 %v5617
    %7323 = vmatpush.bf16.msra.mxu0 %v5611
    %7324 = vmatpush.bf16.msra.mxu0 %v5605
    %7325 = vmatpush.bf16.msra.mxu0 %v5599
    %7326 = vmatpush.bf16.msra.mxu0 %v5593
    %7327 = vmatmul.bf16.gmra.mxu0 %v144
    %v7328 = vpop.f32.mrf.mxu0
    %v7329 = vadd.f32 %v7315, %v7328
    %v7330 = vpop.f32.mrf.mxu0
    %v7331 = vadd.f32 %v7317, %v7330
    %7332 = vdwg.mxu0
    %7333 = vmatpush.bf16.msra.mxu0 %v5683
    %7334 = vmatpush.bf16.msra.mxu0 %v5677
    %7335 = vmatpush.bf16.msra.mxu0 %v5671
    %7336 = vmatpush.bf16.msra.mxu0 %v5665
    %7337 = vmatpush.bf16.msra.mxu0 %v5659
    %7338 = vmatpush.bf16.msra.mxu0 %v5653
    %7339 = vmatpush.bf16.msra.mxu0 %v5647
    %7340 = vmatpush.bf16.msra.mxu0 %v5641
    %7341 = vmatmul.bf16.gmra.mxu0 %v145
    %v7342 = vpop.f32.mrf.mxu0
    %v7343 = vadd.f32 %v7329, %v7342
    %v7344 = vpop.f32.mrf.mxu0
    %v7345 = vadd.f32 %v7331, %v7344
    %7346 = vdwg.mxu0
    %7347 = vmatpush.bf16.msra.mxu0 %v5731
    %7348 = vmatpush.bf16.msra.mxu0 %v5725
    %7349 = vmatpush.bf16.msra.mxu0 %v5719
    %7350 = vmatpush.bf16.msra.mxu0 %v5713
    %7351 = vmatpush.bf16.msra.mxu0 %v5707
    %7352 = vmatpush.bf16.msra.mxu0 %v5701
    %7353 = vmatpush.bf16.msra.mxu0 %v5695
    %7354 = vmatpush.bf16.msra.mxu0 %v5689
    %7355 = vmatmul.bf16.gmra.mxu0 %v146
    %v7356 = vpop.f32.mrf.mxu0
    %v7357 = vadd.f32 %v7343, %v7356
    %v7358 = vpop.f32.mrf.mxu0
    %v7359 = vadd.f32 %v7345, %v7358
    %7360 = vdwg.mxu0
    %7361 = vmatpush.bf16.msra.mxu0 %v5779
    %7362 = vmatpush.bf16.msra.mxu0 %v5773
    %7363 = vmatpush.bf16.msra.mxu0 %v5767
    %7364 = vmatpush.bf16.msra.mxu0 %v5761
    %7365 = vmatpush.bf16.msra.mxu0 %v5755
    %7366 = vmatpush.bf16.msra.mxu0 %v5749
    %7367 = vmatpush.bf16.msra.mxu0 %v5743
    %7368 = vmatpush.bf16.msra.mxu0 %v5737
    %7369 = vmatmul.bf16.gmra.mxu0 %v147
    %v7370 = vpop.f32.mrf.mxu0
    %v7371 = vadd.f32 %v7357, %v7370
    %v7372 = vpop.f32.mrf.mxu0
    %v7373 = vadd.f32 %v7359, %v7372
    %7374 = vdwg.mxu0
    %7375 = vmatpush.bf16.msra.mxu0 %v5827
    %7376 = vmatpush.bf16.msra.mxu0 %v5821
    %7377 = vmatpush.bf16.msra.mxu0 %v5815
    %7378 = vmatpush.bf16.msra.mxu0 %v5809
    %7379 = vmatpush.bf16.msra.mxu0 %v5803
    %7380 = vmatpush.bf16.msra.mxu0 %v5797
    %7381 = vmatpush.bf16.msra.mxu0 %v5791
    %7382 = vmatpush.bf16.msra.mxu0 %v5785
    %7383 = vmatmul.bf16.gmra.mxu0 %v148
    %v7384 = vpop.f32.mrf.mxu0
    %v7385 = vadd.f32 %v7371, %v7384
    %v7386 = vpop.f32.mrf.mxu0
    %v7387 = vadd.f32 %v7373, %v7386
    %7388 = vdwg.mxu0
    %7389 = vmatpush.bf16.msra.mxu0 %v5875
    %7390 = vmatpush.bf16.msra.mxu0 %v5869
    %7391 = vmatpush.bf16.msra.mxu0 %v5863
    %7392 = vmatpush.bf16.msra.mxu0 %v5857
    %7393 = vmatpush.bf16.msra.mxu0 %v5851
    %7394 = vmatpush.bf16.msra.mxu0 %v5845
    %7395 = vmatpush.bf16.msra.mxu0 %v5839
    %7396 = vmatpush.bf16.msra.mxu0 %v5833
    %7397 = vmatmul.bf16.gmra.mxu0 %v149
    %v7398 = vpop.f32.mrf.mxu0
    %v7399 = vadd.f32 %v7385, %v7398
    %v7400 = vpop.f32.mrf.mxu0
    %v7401 = vadd.f32 %v7387, %v7400
    %7402 = vdwg.mxu0
    %7403 = vmatpush.bf16.msra.mxu0 %v5923
    %7404 = vmatpush.bf16.msra.mxu0 %v5917
    %7405 = vmatpush.bf16.msra.mxu0 %v5911
    %7406 = vmatpush.bf16.msra.mxu0 %v5905
    %7407 = vmatpush.bf16.msra.mxu0 %v5899
    %7408 = vmatpush.bf16.msra.mxu0 %v5893
    %7409 = vmatpush.bf16.msra.mxu0 %v5887
    %7410 = vmatpush.bf16.msra.mxu0 %v5881
    %7411 = vmatmul.bf16.gmra.mxu0 %v150
    %v7412 = vpop.f32.mrf.mxu0
    %v7413 = vadd.f32 %v7399, %v7412
    %v7414 = vpop.f32.mrf.mxu0
    %v7415 = vadd.f32 %v7401, %v7414
    %7416 = vdwg.mxu0
    %7417 = vmatpush.bf16.msra.mxu0 %v4820
    %7418 = vmatpush.bf16.msra.mxu0 %v4814
    %7419 = vmatpush.bf16.msra.mxu0 %v4808
    %7420 = vmatpush.bf16.msra.mxu0 %v4802
    %7421 = vmatpush.bf16.msra.mxu0 %v4796
    %7422 = vmatpush.bf16.msra.mxu0 %v4790
    %7423 = vmatpush.bf16.msra.mxu0 %v4784
    %7424 = vmatpush.bf16.msra.mxu0 %v4778
    %7425 = vmatmul.bf16.gmra.mxu0 %v127
    %v7426 = vpop.f32.mrf.mxu0
    %v7427 = vadd.f32 %v1310, %v7426
    %v7428 = vpop.f32.mrf.mxu0
    %v7429 = vadd.f32 %v1310, %v7428
    %7430 = vdwg.mxu0
    %7431 = vmatpush.bf16.msra.mxu0 %v4868
    %7432 = vmatpush.bf16.msra.mxu0 %v4862
    %7433 = vmatpush.bf16.msra.mxu0 %v4856
    %7434 = vmatpush.bf16.msra.mxu0 %v4850
    %7435 = vmatpush.bf16.msra.mxu0 %v4844
    %7436 = vmatpush.bf16.msra.mxu0 %v4838
    %7437 = vmatpush.bf16.msra.mxu0 %v4832
    %7438 = vmatpush.bf16.msra.mxu0 %v4826
    %7439 = vmatmul.bf16.gmra.mxu0 %v128
    %v7440 = vpop.f32.mrf.mxu0
    %v7441 = vadd.f32 %v7427, %v7440
    %v7442 = vpop.f32.mrf.mxu0
    %v7443 = vadd.f32 %v7429, %v7442
    %7444 = vdwg.mxu0
    %7445 = vmatpush.bf16.msra.mxu0 %v4916
    %7446 = vmatpush.bf16.msra.mxu0 %v4910
    %7447 = vmatpush.bf16.msra.mxu0 %v4904
    %7448 = vmatpush.bf16.msra.mxu0 %v4898
    %7449 = vmatpush.bf16.msra.mxu0 %v4892
    %7450 = vmatpush.bf16.msra.mxu0 %v4886
    %7451 = vmatpush.bf16.msra.mxu0 %v4880
    %7452 = vmatpush.bf16.msra.mxu0 %v4874
    %7453 = vmatmul.bf16.gmra.mxu0 %v129
    %v7454 = vpop.f32.mrf.mxu0
    %v7455 = vadd.f32 %v7441, %v7454
    %v7456 = vpop.f32.mrf.mxu0
    %v7457 = vadd.f32 %v7443, %v7456
    %7458 = vdwg.mxu0
    %7459 = vmatpush.bf16.msra.mxu0 %v4964
    %7460 = vmatpush.bf16.msra.mxu0 %v4958
    %7461 = vmatpush.bf16.msra.mxu0 %v4952
    %7462 = vmatpush.bf16.msra.mxu0 %v4946
    %7463 = vmatpush.bf16.msra.mxu0 %v4940
    %7464 = vmatpush.bf16.msra.mxu0 %v4934
    %7465 = vmatpush.bf16.msra.mxu0 %v4928
    %7466 = vmatpush.bf16.msra.mxu0 %v4922
    %7467 = vmatmul.bf16.gmra.mxu0 %v130
    %v7468 = vpop.f32.mrf.mxu0
    %v7469 = vadd.f32 %v7455, %v7468
    %v7470 = vpop.f32.mrf.mxu0
    %v7471 = vadd.f32 %v7457, %v7470
    %7472 = vdwg.mxu0
    %7473 = vmatpush.bf16.msra.mxu0 %v5012
    %7474 = vmatpush.bf16.msra.mxu0 %v5006
    %7475 = vmatpush.bf16.msra.mxu0 %v5000
    %7476 = vmatpush.bf16.msra.mxu0 %v4994
    %7477 = vmatpush.bf16.msra.mxu0 %v4988
    %7478 = vmatpush.bf16.msra.mxu0 %v4982
    %7479 = vmatpush.bf16.msra.mxu0 %v4976
    %7480 = vmatpush.bf16.msra.mxu0 %v4970
    %7481 = vmatmul.bf16.gmra.mxu0 %v131
    %v7482 = vpop.f32.mrf.mxu0
    %v7483 = vadd.f32 %v7469, %v7482
    %v7484 = vpop.f32.mrf.mxu0
    %v7485 = vadd.f32 %v7471, %v7484
    %7486 = vdwg.mxu0
    %7487 = vmatpush.bf16.msra.mxu0 %v5060
    %7488 = vmatpush.bf16.msra.mxu0 %v5054
    %7489 = vmatpush.bf16.msra.mxu0 %v5048
    %7490 = vmatpush.bf16.msra.mxu0 %v5042
    %7491 = vmatpush.bf16.msra.mxu0 %v5036
    %7492 = vmatpush.bf16.msra.mxu0 %v5030
    %7493 = vmatpush.bf16.msra.mxu0 %v5024
    %7494 = vmatpush.bf16.msra.mxu0 %v5018
    %7495 = vmatmul.bf16.gmra.mxu0 %v132
    %v7496 = vpop.f32.mrf.mxu0
    %v7497 = vadd.f32 %v7483, %v7496
    %v7498 = vpop.f32.mrf.mxu0
    %v7499 = vadd.f32 %v7485, %v7498
    %7500 = vdwg.mxu0
    %7501 = vmatpush.bf16.msra.mxu0 %v5108
    %7502 = vmatpush.bf16.msra.mxu0 %v5102
    %7503 = vmatpush.bf16.msra.mxu0 %v5096
    %7504 = vmatpush.bf16.msra.mxu0 %v5090
    %7505 = vmatpush.bf16.msra.mxu0 %v5084
    %7506 = vmatpush.bf16.msra.mxu0 %v5078
    %7507 = vmatpush.bf16.msra.mxu0 %v5072
    %7508 = vmatpush.bf16.msra.mxu0 %v5066
    %7509 = vmatmul.bf16.gmra.mxu0 %v133
    %v7510 = vpop.f32.mrf.mxu0
    %v7511 = vadd.f32 %v7497, %v7510
    %v7512 = vpop.f32.mrf.mxu0
    %v7513 = vadd.f32 %v7499, %v7512
    %7514 = vdwg.mxu0
    %7515 = vmatpush.bf16.msra.mxu0 %v5156
    %7516 = vmatpush.bf16.msra.mxu0 %v5150
    %7517 = vmatpush.bf16.msra.mxu0 %v5144
    %7518 = vmatpush.bf16.msra.mxu0 %v5138
    %7519 = vmatpush.bf16.msra.mxu0 %v5132
    %7520 = vmatpush.bf16.msra.mxu0 %v5126
    %7521 = vmatpush.bf16.msra.mxu0 %v5120
    %7522 = vmatpush.bf16.msra.mxu0 %v5114
    %7523 = vmatmul.bf16.gmra.mxu0 %v134
    %v7524 = vpop.f32.mrf.mxu0
    %v7525 = vadd.f32 %v7511, %v7524
    %v7526 = vpop.f32.mrf.mxu0
    %v7527 = vadd.f32 %v7513, %v7526
    %7528 = vdwg.mxu0
    %7529 = vmatpush.bf16.msra.mxu0 %v5204
    %7530 = vmatpush.bf16.msra.mxu0 %v5198
    %7531 = vmatpush.bf16.msra.mxu0 %v5192
    %7532 = vmatpush.bf16.msra.mxu0 %v5186
    %7533 = vmatpush.bf16.msra.mxu0 %v5180
    %7534 = vmatpush.bf16.msra.mxu0 %v5174
    %7535 = vmatpush.bf16.msra.mxu0 %v5168
    %7536 = vmatpush.bf16.msra.mxu0 %v5162
    %7537 = vmatmul.bf16.gmra.mxu0 %v135
    %v7538 = vpop.f32.mrf.mxu0
    %v7539 = vadd.f32 %v7525, %v7538
    %v7540 = vpop.f32.mrf.mxu0
    %v7541 = vadd.f32 %v7527, %v7540
    %7542 = vdwg.mxu0
    %7543 = vmatpush.bf16.msra.mxu0 %v5252
    %7544 = vmatpush.bf16.msra.mxu0 %v5246
    %7545 = vmatpush.bf16.msra.mxu0 %v5240
    %7546 = vmatpush.bf16.msra.mxu0 %v5234
    %7547 = vmatpush.bf16.msra.mxu0 %v5228
    %7548 = vmatpush.bf16.msra.mxu0 %v5222
    %7549 = vmatpush.bf16.msra.mxu0 %v5216
    %7550 = vmatpush.bf16.msra.mxu0 %v5210
    %7551 = vmatmul.bf16.gmra.mxu0 %v136
    %v7552 = vpop.f32.mrf.mxu0
    %v7553 = vadd.f32 %v7539, %v7552
    %v7554 = vpop.f32.mrf.mxu0
    %v7555 = vadd.f32 %v7541, %v7554
    %7556 = vdwg.mxu0
    %7557 = vmatpush.bf16.msra.mxu0 %v5300
    %7558 = vmatpush.bf16.msra.mxu0 %v5294
    %7559 = vmatpush.bf16.msra.mxu0 %v5288
    %7560 = vmatpush.bf16.msra.mxu0 %v5282
    %7561 = vmatpush.bf16.msra.mxu0 %v5276
    %7562 = vmatpush.bf16.msra.mxu0 %v5270
    %7563 = vmatpush.bf16.msra.mxu0 %v5264
    %7564 = vmatpush.bf16.msra.mxu0 %v5258
    %7565 = vmatmul.bf16.gmra.mxu0 %v137
    %v7566 = vpop.f32.mrf.mxu0
    %v7567 = vadd.f32 %v7553, %v7566
    %v7568 = vpop.f32.mrf.mxu0
    %v7569 = vadd.f32 %v7555, %v7568
    %7570 = vdwg.mxu0
    %7571 = vmatpush.bf16.msra.mxu0 %v5348
    %7572 = vmatpush.bf16.msra.mxu0 %v5342
    %7573 = vmatpush.bf16.msra.mxu0 %v5336
    %7574 = vmatpush.bf16.msra.mxu0 %v5330
    %7575 = vmatpush.bf16.msra.mxu0 %v5324
    %7576 = vmatpush.bf16.msra.mxu0 %v5318
    %7577 = vmatpush.bf16.msra.mxu0 %v5312
    %7578 = vmatpush.bf16.msra.mxu0 %v5306
    %7579 = vmatmul.bf16.gmra.mxu0 %v138
    %v7580 = vpop.f32.mrf.mxu0
    %v7581 = vadd.f32 %v7567, %v7580
    %v7582 = vpop.f32.mrf.mxu0
    %v7583 = vadd.f32 %v7569, %v7582
    %7584 = vdwg.mxu0
    %7585 = vmatpush.bf16.msra.mxu0 %v5396
    %7586 = vmatpush.bf16.msra.mxu0 %v5390
    %7587 = vmatpush.bf16.msra.mxu0 %v5384
    %7588 = vmatpush.bf16.msra.mxu0 %v5378
    %7589 = vmatpush.bf16.msra.mxu0 %v5372
    %7590 = vmatpush.bf16.msra.mxu0 %v5366
    %7591 = vmatpush.bf16.msra.mxu0 %v5360
    %7592 = vmatpush.bf16.msra.mxu0 %v5354
    %7593 = vmatmul.bf16.gmra.mxu0 %v139
    %v7594 = vpop.f32.mrf.mxu0
    %v7595 = vadd.f32 %v7581, %v7594
    %v7596 = vpop.f32.mrf.mxu0
    %v7597 = vadd.f32 %v7583, %v7596
    %7598 = vdwg.mxu0
    %7599 = vmatpush.bf16.msra.mxu0 %v5444
    %7600 = vmatpush.bf16.msra.mxu0 %v5438
    %7601 = vmatpush.bf16.msra.mxu0 %v5432
    %7602 = vmatpush.bf16.msra.mxu0 %v5426
    %7603 = vmatpush.bf16.msra.mxu0 %v5420
    %7604 = vmatpush.bf16.msra.mxu0 %v5414
    %7605 = vmatpush.bf16.msra.mxu0 %v5408
    %7606 = vmatpush.bf16.msra.mxu0 %v5402
    %7607 = vmatmul.bf16.gmra.mxu0 %v140
    %v7608 = vpop.f32.mrf.mxu0
    %v7609 = vadd.f32 %v7595, %v7608
    %v7610 = vpop.f32.mrf.mxu0
    %v7611 = vadd.f32 %v7597, %v7610
    %7612 = vdwg.mxu0
    %7613 = vmatpush.bf16.msra.mxu0 %v5492
    %7614 = vmatpush.bf16.msra.mxu0 %v5486
    %7615 = vmatpush.bf16.msra.mxu0 %v5480
    %7616 = vmatpush.bf16.msra.mxu0 %v5474
    %7617 = vmatpush.bf16.msra.mxu0 %v5468
    %7618 = vmatpush.bf16.msra.mxu0 %v5462
    %7619 = vmatpush.bf16.msra.mxu0 %v5456
    %7620 = vmatpush.bf16.msra.mxu0 %v5450
    %7621 = vmatmul.bf16.gmra.mxu0 %v141
    %v7622 = vpop.f32.mrf.mxu0
    %v7623 = vadd.f32 %v7609, %v7622
    %v7624 = vpop.f32.mrf.mxu0
    %v7625 = vadd.f32 %v7611, %v7624
    %7626 = vdwg.mxu0
    %7627 = vmatpush.bf16.msra.mxu0 %v5540
    %7628 = vmatpush.bf16.msra.mxu0 %v5534
    %7629 = vmatpush.bf16.msra.mxu0 %v5528
    %7630 = vmatpush.bf16.msra.mxu0 %v5522
    %7631 = vmatpush.bf16.msra.mxu0 %v5516
    %7632 = vmatpush.bf16.msra.mxu0 %v5510
    %7633 = vmatpush.bf16.msra.mxu0 %v5504
    %7634 = vmatpush.bf16.msra.mxu0 %v5498
    %7635 = vmatmul.bf16.gmra.mxu0 %v142
    %v7636 = vpop.f32.mrf.mxu0
    %v7637 = vadd.f32 %v7623, %v7636
    %v7638 = vpop.f32.mrf.mxu0
    %v7639 = vadd.f32 %v7625, %v7638
    %7640 = vdwg.mxu0
    %7641 = vmatpush.bf16.msra.mxu0 %v5588
    %7642 = vmatpush.bf16.msra.mxu0 %v5582
    %7643 = vmatpush.bf16.msra.mxu0 %v5576
    %7644 = vmatpush.bf16.msra.mxu0 %v5570
    %7645 = vmatpush.bf16.msra.mxu0 %v5564
    %7646 = vmatpush.bf16.msra.mxu0 %v5558
    %7647 = vmatpush.bf16.msra.mxu0 %v5552
    %7648 = vmatpush.bf16.msra.mxu0 %v5546
    %7649 = vmatmul.bf16.gmra.mxu0 %v143
    %v7650 = vpop.f32.mrf.mxu0
    %v7651 = vadd.f32 %v7637, %v7650
    %v7652 = vpop.f32.mrf.mxu0
    %v7653 = vadd.f32 %v7639, %v7652
    %7654 = vdwg.mxu0
    %7655 = vmatpush.bf16.msra.mxu0 %v5636
    %7656 = vmatpush.bf16.msra.mxu0 %v5630
    %7657 = vmatpush.bf16.msra.mxu0 %v5624
    %7658 = vmatpush.bf16.msra.mxu0 %v5618
    %7659 = vmatpush.bf16.msra.mxu0 %v5612
    %7660 = vmatpush.bf16.msra.mxu0 %v5606
    %7661 = vmatpush.bf16.msra.mxu0 %v5600
    %7662 = vmatpush.bf16.msra.mxu0 %v5594
    %7663 = vmatmul.bf16.gmra.mxu0 %v144
    %v7664 = vpop.f32.mrf.mxu0
    %v7665 = vadd.f32 %v7651, %v7664
    %v7666 = vpop.f32.mrf.mxu0
    %v7667 = vadd.f32 %v7653, %v7666
    %7668 = vdwg.mxu0
    %7669 = vmatpush.bf16.msra.mxu0 %v5684
    %7670 = vmatpush.bf16.msra.mxu0 %v5678
    %7671 = vmatpush.bf16.msra.mxu0 %v5672
    %7672 = vmatpush.bf16.msra.mxu0 %v5666
    %7673 = vmatpush.bf16.msra.mxu0 %v5660
    %7674 = vmatpush.bf16.msra.mxu0 %v5654
    %7675 = vmatpush.bf16.msra.mxu0 %v5648
    %7676 = vmatpush.bf16.msra.mxu0 %v5642
    %7677 = vmatmul.bf16.gmra.mxu0 %v145
    %v7678 = vpop.f32.mrf.mxu0
    %v7679 = vadd.f32 %v7665, %v7678
    %v7680 = vpop.f32.mrf.mxu0
    %v7681 = vadd.f32 %v7667, %v7680
    %7682 = vdwg.mxu0
    %7683 = vmatpush.bf16.msra.mxu0 %v5732
    %7684 = vmatpush.bf16.msra.mxu0 %v5726
    %7685 = vmatpush.bf16.msra.mxu0 %v5720
    %7686 = vmatpush.bf16.msra.mxu0 %v5714
    %7687 = vmatpush.bf16.msra.mxu0 %v5708
    %7688 = vmatpush.bf16.msra.mxu0 %v5702
    %7689 = vmatpush.bf16.msra.mxu0 %v5696
    %7690 = vmatpush.bf16.msra.mxu0 %v5690
    %7691 = vmatmul.bf16.gmra.mxu0 %v146
    %v7692 = vpop.f32.mrf.mxu0
    %v7693 = vadd.f32 %v7679, %v7692
    %v7694 = vpop.f32.mrf.mxu0
    %v7695 = vadd.f32 %v7681, %v7694
    %7696 = vdwg.mxu0
    %7697 = vmatpush.bf16.msra.mxu0 %v5780
    %7698 = vmatpush.bf16.msra.mxu0 %v5774
    %7699 = vmatpush.bf16.msra.mxu0 %v5768
    %7700 = vmatpush.bf16.msra.mxu0 %v5762
    %7701 = vmatpush.bf16.msra.mxu0 %v5756
    %7702 = vmatpush.bf16.msra.mxu0 %v5750
    %7703 = vmatpush.bf16.msra.mxu0 %v5744
    %7704 = vmatpush.bf16.msra.mxu0 %v5738
    %7705 = vmatmul.bf16.gmra.mxu0 %v147
    %v7706 = vpop.f32.mrf.mxu0
    %v7707 = vadd.f32 %v7693, %v7706
    %v7708 = vpop.f32.mrf.mxu0
    %v7709 = vadd.f32 %v7695, %v7708
    %7710 = vdwg.mxu0
    %7711 = vmatpush.bf16.msra.mxu0 %v5828
    %7712 = vmatpush.bf16.msra.mxu0 %v5822
    %7713 = vmatpush.bf16.msra.mxu0 %v5816
    %7714 = vmatpush.bf16.msra.mxu0 %v5810
    %7715 = vmatpush.bf16.msra.mxu0 %v5804
    %7716 = vmatpush.bf16.msra.mxu0 %v5798
    %7717 = vmatpush.bf16.msra.mxu0 %v5792
    %7718 = vmatpush.bf16.msra.mxu0 %v5786
    %7719 = vmatmul.bf16.gmra.mxu0 %v148
    %v7720 = vpop.f32.mrf.mxu0
    %v7721 = vadd.f32 %v7707, %v7720
    %v7722 = vpop.f32.mrf.mxu0
    %v7723 = vadd.f32 %v7709, %v7722
    %7724 = vdwg.mxu0
    %7725 = vmatpush.bf16.msra.mxu0 %v5876
    %7726 = vmatpush.bf16.msra.mxu0 %v5870
    %7727 = vmatpush.bf16.msra.mxu0 %v5864
    %7728 = vmatpush.bf16.msra.mxu0 %v5858
    %7729 = vmatpush.bf16.msra.mxu0 %v5852
    %7730 = vmatpush.bf16.msra.mxu0 %v5846
    %7731 = vmatpush.bf16.msra.mxu0 %v5840
    %7732 = vmatpush.bf16.msra.mxu0 %v5834
    %7733 = vmatmul.bf16.gmra.mxu0 %v149
    %v7734 = vpop.f32.mrf.mxu0
    %v7735 = vadd.f32 %v7721, %v7734
    %v7736 = vpop.f32.mrf.mxu0
    %v7737 = vadd.f32 %v7723, %v7736
    %7738 = vdwg.mxu0
    %7739 = vmatpush.bf16.msra.mxu0 %v5924
    %7740 = vmatpush.bf16.msra.mxu0 %v5918
    %7741 = vmatpush.bf16.msra.mxu0 %v5912
    %7742 = vmatpush.bf16.msra.mxu0 %v5906
    %7743 = vmatpush.bf16.msra.mxu0 %v5900
    %7744 = vmatpush.bf16.msra.mxu0 %v5894
    %7745 = vmatpush.bf16.msra.mxu0 %v5888
    %7746 = vmatpush.bf16.msra.mxu0 %v5882
    %7747 = vmatmul.bf16.gmra.mxu0 %v150
    %v7748 = vpop.f32.mrf.mxu0
    %v7749 = vadd.f32 %v7735, %v7748
    %v7750 = vpop.f32.mrf.mxu0
    %v7751 = vadd.f32 %v7737, %v7750
    %7752 = vdwg.mxu0
    %7753 = vmatpush.bf16.msra.mxu0 %v4821
    %7754 = vmatpush.bf16.msra.mxu0 %v4815
    %7755 = vmatpush.bf16.msra.mxu0 %v4809
    %7756 = vmatpush.bf16.msra.mxu0 %v4803
    %7757 = vmatpush.bf16.msra.mxu0 %v4797
    %7758 = vmatpush.bf16.msra.mxu0 %v4791
    %7759 = vmatpush.bf16.msra.mxu0 %v4785
    %7760 = vmatpush.bf16.msra.mxu0 %v4779
    %7761 = vmatmul.bf16.gmra.mxu0 %v127
    %v7762 = vpop.f32.mrf.mxu0
    %v7763 = vadd.f32 %v1311, %v7762
    %v7764 = vpop.f32.mrf.mxu0
    %v7765 = vadd.f32 %v1311, %v7764
    %7766 = vdwg.mxu0
    %7767 = vmatpush.bf16.msra.mxu0 %v4869
    %7768 = vmatpush.bf16.msra.mxu0 %v4863
    %7769 = vmatpush.bf16.msra.mxu0 %v4857
    %7770 = vmatpush.bf16.msra.mxu0 %v4851
    %7771 = vmatpush.bf16.msra.mxu0 %v4845
    %7772 = vmatpush.bf16.msra.mxu0 %v4839
    %7773 = vmatpush.bf16.msra.mxu0 %v4833
    %7774 = vmatpush.bf16.msra.mxu0 %v4827
    %7775 = vmatmul.bf16.gmra.mxu0 %v128
    %v7776 = vpop.f32.mrf.mxu0
    %v7777 = vadd.f32 %v7763, %v7776
    %v7778 = vpop.f32.mrf.mxu0
    %v7779 = vadd.f32 %v7765, %v7778
    %7780 = vdwg.mxu0
    %7781 = vmatpush.bf16.msra.mxu0 %v4917
    %7782 = vmatpush.bf16.msra.mxu0 %v4911
    %7783 = vmatpush.bf16.msra.mxu0 %v4905
    %7784 = vmatpush.bf16.msra.mxu0 %v4899
    %7785 = vmatpush.bf16.msra.mxu0 %v4893
    %7786 = vmatpush.bf16.msra.mxu0 %v4887
    %7787 = vmatpush.bf16.msra.mxu0 %v4881
    %7788 = vmatpush.bf16.msra.mxu0 %v4875
    %7789 = vmatmul.bf16.gmra.mxu0 %v129
    %v7790 = vpop.f32.mrf.mxu0
    %v7791 = vadd.f32 %v7777, %v7790
    %v7792 = vpop.f32.mrf.mxu0
    %v7793 = vadd.f32 %v7779, %v7792
    %7794 = vdwg.mxu0
    %7795 = vmatpush.bf16.msra.mxu0 %v4965
    %7796 = vmatpush.bf16.msra.mxu0 %v4959
    %7797 = vmatpush.bf16.msra.mxu0 %v4953
    %7798 = vmatpush.bf16.msra.mxu0 %v4947
    %7799 = vmatpush.bf16.msra.mxu0 %v4941
    %7800 = vmatpush.bf16.msra.mxu0 %v4935
    %7801 = vmatpush.bf16.msra.mxu0 %v4929
    %7802 = vmatpush.bf16.msra.mxu0 %v4923
    %7803 = vmatmul.bf16.gmra.mxu0 %v130
    %v7804 = vpop.f32.mrf.mxu0
    %v7805 = vadd.f32 %v7791, %v7804
    %v7806 = vpop.f32.mrf.mxu0
    %v7807 = vadd.f32 %v7793, %v7806
    %7808 = vdwg.mxu0
    %7809 = vmatpush.bf16.msra.mxu0 %v5013
    %7810 = vmatpush.bf16.msra.mxu0 %v5007
    %7811 = vmatpush.bf16.msra.mxu0 %v5001
    %7812 = vmatpush.bf16.msra.mxu0 %v4995
    %7813 = vmatpush.bf16.msra.mxu0 %v4989
    %7814 = vmatpush.bf16.msra.mxu0 %v4983
    %7815 = vmatpush.bf16.msra.mxu0 %v4977
    %7816 = vmatpush.bf16.msra.mxu0 %v4971
    %7817 = vmatmul.bf16.gmra.mxu0 %v131
    %v7818 = vpop.f32.mrf.mxu0
    %v7819 = vadd.f32 %v7805, %v7818
    %v7820 = vpop.f32.mrf.mxu0
    %v7821 = vadd.f32 %v7807, %v7820
    %7822 = vdwg.mxu0
    %7823 = vmatpush.bf16.msra.mxu0 %v5061
    %7824 = vmatpush.bf16.msra.mxu0 %v5055
    %7825 = vmatpush.bf16.msra.mxu0 %v5049
    %7826 = vmatpush.bf16.msra.mxu0 %v5043
    %7827 = vmatpush.bf16.msra.mxu0 %v5037
    %7828 = vmatpush.bf16.msra.mxu0 %v5031
    %7829 = vmatpush.bf16.msra.mxu0 %v5025
    %7830 = vmatpush.bf16.msra.mxu0 %v5019
    %7831 = vmatmul.bf16.gmra.mxu0 %v132
    %v7832 = vpop.f32.mrf.mxu0
    %v7833 = vadd.f32 %v7819, %v7832
    %v7834 = vpop.f32.mrf.mxu0
    %v7835 = vadd.f32 %v7821, %v7834
    %7836 = vdwg.mxu0
    %7837 = vmatpush.bf16.msra.mxu0 %v5109
    %7838 = vmatpush.bf16.msra.mxu0 %v5103
    %7839 = vmatpush.bf16.msra.mxu0 %v5097
    %7840 = vmatpush.bf16.msra.mxu0 %v5091
    %7841 = vmatpush.bf16.msra.mxu0 %v5085
    %7842 = vmatpush.bf16.msra.mxu0 %v5079
    %7843 = vmatpush.bf16.msra.mxu0 %v5073
    %7844 = vmatpush.bf16.msra.mxu0 %v5067
    %7845 = vmatmul.bf16.gmra.mxu0 %v133
    %v7846 = vpop.f32.mrf.mxu0
    %v7847 = vadd.f32 %v7833, %v7846
    %v7848 = vpop.f32.mrf.mxu0
    %v7849 = vadd.f32 %v7835, %v7848
    %7850 = vdwg.mxu0
    %7851 = vmatpush.bf16.msra.mxu0 %v5157
    %7852 = vmatpush.bf16.msra.mxu0 %v5151
    %7853 = vmatpush.bf16.msra.mxu0 %v5145
    %7854 = vmatpush.bf16.msra.mxu0 %v5139
    %7855 = vmatpush.bf16.msra.mxu0 %v5133
    %7856 = vmatpush.bf16.msra.mxu0 %v5127
    %7857 = vmatpush.bf16.msra.mxu0 %v5121
    %7858 = vmatpush.bf16.msra.mxu0 %v5115
    %7859 = vmatmul.bf16.gmra.mxu0 %v134
    %v7860 = vpop.f32.mrf.mxu0
    %v7861 = vadd.f32 %v7847, %v7860
    %v7862 = vpop.f32.mrf.mxu0
    %v7863 = vadd.f32 %v7849, %v7862
    %7864 = vdwg.mxu0
    %7865 = vmatpush.bf16.msra.mxu0 %v5205
    %7866 = vmatpush.bf16.msra.mxu0 %v5199
    %7867 = vmatpush.bf16.msra.mxu0 %v5193
    %7868 = vmatpush.bf16.msra.mxu0 %v5187
    %7869 = vmatpush.bf16.msra.mxu0 %v5181
    %7870 = vmatpush.bf16.msra.mxu0 %v5175
    %7871 = vmatpush.bf16.msra.mxu0 %v5169
    %7872 = vmatpush.bf16.msra.mxu0 %v5163
    %7873 = vmatmul.bf16.gmra.mxu0 %v135
    %v7874 = vpop.f32.mrf.mxu0
    %v7875 = vadd.f32 %v7861, %v7874
    %v7876 = vpop.f32.mrf.mxu0
    %v7877 = vadd.f32 %v7863, %v7876
    %7878 = vdwg.mxu0
    %7879 = vmatpush.bf16.msra.mxu0 %v5253
    %7880 = vmatpush.bf16.msra.mxu0 %v5247
    %7881 = vmatpush.bf16.msra.mxu0 %v5241
    %7882 = vmatpush.bf16.msra.mxu0 %v5235
    %7883 = vmatpush.bf16.msra.mxu0 %v5229
    %7884 = vmatpush.bf16.msra.mxu0 %v5223
    %7885 = vmatpush.bf16.msra.mxu0 %v5217
    %7886 = vmatpush.bf16.msra.mxu0 %v5211
    %7887 = vmatmul.bf16.gmra.mxu0 %v136
    %v7888 = vpop.f32.mrf.mxu0
    %v7889 = vadd.f32 %v7875, %v7888
    %v7890 = vpop.f32.mrf.mxu0
    %v7891 = vadd.f32 %v7877, %v7890
    %7892 = vdwg.mxu0
    %7893 = vmatpush.bf16.msra.mxu0 %v5301
    %7894 = vmatpush.bf16.msra.mxu0 %v5295
    %7895 = vmatpush.bf16.msra.mxu0 %v5289
    %7896 = vmatpush.bf16.msra.mxu0 %v5283
    %7897 = vmatpush.bf16.msra.mxu0 %v5277
    %7898 = vmatpush.bf16.msra.mxu0 %v5271
    %7899 = vmatpush.bf16.msra.mxu0 %v5265
    %7900 = vmatpush.bf16.msra.mxu0 %v5259
    %7901 = vmatmul.bf16.gmra.mxu0 %v137
    %v7902 = vpop.f32.mrf.mxu0
    %v7903 = vadd.f32 %v7889, %v7902
    %v7904 = vpop.f32.mrf.mxu0
    %v7905 = vadd.f32 %v7891, %v7904
    %7906 = vdwg.mxu0
    %7907 = vmatpush.bf16.msra.mxu0 %v5349
    %7908 = vmatpush.bf16.msra.mxu0 %v5343
    %7909 = vmatpush.bf16.msra.mxu0 %v5337
    %7910 = vmatpush.bf16.msra.mxu0 %v5331
    %7911 = vmatpush.bf16.msra.mxu0 %v5325
    %7912 = vmatpush.bf16.msra.mxu0 %v5319
    %7913 = vmatpush.bf16.msra.mxu0 %v5313
    %7914 = vmatpush.bf16.msra.mxu0 %v5307
    %7915 = vmatmul.bf16.gmra.mxu0 %v138
    %v7916 = vpop.f32.mrf.mxu0
    %v7917 = vadd.f32 %v7903, %v7916
    %v7918 = vpop.f32.mrf.mxu0
    %v7919 = vadd.f32 %v7905, %v7918
    %7920 = vdwg.mxu0
    %7921 = vmatpush.bf16.msra.mxu0 %v5397
    %7922 = vmatpush.bf16.msra.mxu0 %v5391
    %7923 = vmatpush.bf16.msra.mxu0 %v5385
    %7924 = vmatpush.bf16.msra.mxu0 %v5379
    %7925 = vmatpush.bf16.msra.mxu0 %v5373
    %7926 = vmatpush.bf16.msra.mxu0 %v5367
    %7927 = vmatpush.bf16.msra.mxu0 %v5361
    %7928 = vmatpush.bf16.msra.mxu0 %v5355
    %7929 = vmatmul.bf16.gmra.mxu0 %v139
    %v7930 = vpop.f32.mrf.mxu0
    %v7931 = vadd.f32 %v7917, %v7930
    %v7932 = vpop.f32.mrf.mxu0
    %v7933 = vadd.f32 %v7919, %v7932
    %7934 = vdwg.mxu0
    %7935 = vmatpush.bf16.msra.mxu0 %v5445
    %7936 = vmatpush.bf16.msra.mxu0 %v5439
    %7937 = vmatpush.bf16.msra.mxu0 %v5433
    %7938 = vmatpush.bf16.msra.mxu0 %v5427
    %7939 = vmatpush.bf16.msra.mxu0 %v5421
    %7940 = vmatpush.bf16.msra.mxu0 %v5415
    %7941 = vmatpush.bf16.msra.mxu0 %v5409
    %7942 = vmatpush.bf16.msra.mxu0 %v5403
    %7943 = vmatmul.bf16.gmra.mxu0 %v140
    %v7944 = vpop.f32.mrf.mxu0
    %v7945 = vadd.f32 %v7931, %v7944
    %v7946 = vpop.f32.mrf.mxu0
    %v7947 = vadd.f32 %v7933, %v7946
    %7948 = vdwg.mxu0
    %7949 = vmatpush.bf16.msra.mxu0 %v5493
    %7950 = vmatpush.bf16.msra.mxu0 %v5487
    %7951 = vmatpush.bf16.msra.mxu0 %v5481
    %7952 = vmatpush.bf16.msra.mxu0 %v5475
    %7953 = vmatpush.bf16.msra.mxu0 %v5469
    %7954 = vmatpush.bf16.msra.mxu0 %v5463
    %7955 = vmatpush.bf16.msra.mxu0 %v5457
    %7956 = vmatpush.bf16.msra.mxu0 %v5451
    %7957 = vmatmul.bf16.gmra.mxu0 %v141
    %v7958 = vpop.f32.mrf.mxu0
    %v7959 = vadd.f32 %v7945, %v7958
    %v7960 = vpop.f32.mrf.mxu0
    %v7961 = vadd.f32 %v7947, %v7960
    %7962 = vdwg.mxu0
    %7963 = vmatpush.bf16.msra.mxu0 %v5541
    %7964 = vmatpush.bf16.msra.mxu0 %v5535
    %7965 = vmatpush.bf16.msra.mxu0 %v5529
    %7966 = vmatpush.bf16.msra.mxu0 %v5523
    %7967 = vmatpush.bf16.msra.mxu0 %v5517
    %7968 = vmatpush.bf16.msra.mxu0 %v5511
    %7969 = vmatpush.bf16.msra.mxu0 %v5505
    %7970 = vmatpush.bf16.msra.mxu0 %v5499
    %7971 = vmatmul.bf16.gmra.mxu0 %v142
    %v7972 = vpop.f32.mrf.mxu0
    %v7973 = vadd.f32 %v7959, %v7972
    %v7974 = vpop.f32.mrf.mxu0
    %v7975 = vadd.f32 %v7961, %v7974
    %7976 = vdwg.mxu0
    %7977 = vmatpush.bf16.msra.mxu0 %v5589
    %7978 = vmatpush.bf16.msra.mxu0 %v5583
    %7979 = vmatpush.bf16.msra.mxu0 %v5577
    %7980 = vmatpush.bf16.msra.mxu0 %v5571
    %7981 = vmatpush.bf16.msra.mxu0 %v5565
    %7982 = vmatpush.bf16.msra.mxu0 %v5559
    %7983 = vmatpush.bf16.msra.mxu0 %v5553
    %7984 = vmatpush.bf16.msra.mxu0 %v5547
    %7985 = vmatmul.bf16.gmra.mxu0 %v143
    %v7986 = vpop.f32.mrf.mxu0
    %v7987 = vadd.f32 %v7973, %v7986
    %v7988 = vpop.f32.mrf.mxu0
    %v7989 = vadd.f32 %v7975, %v7988
    %7990 = vdwg.mxu0
    %7991 = vmatpush.bf16.msra.mxu0 %v5637
    %7992 = vmatpush.bf16.msra.mxu0 %v5631
    %7993 = vmatpush.bf16.msra.mxu0 %v5625
    %7994 = vmatpush.bf16.msra.mxu0 %v5619
    %7995 = vmatpush.bf16.msra.mxu0 %v5613
    %7996 = vmatpush.bf16.msra.mxu0 %v5607
    %7997 = vmatpush.bf16.msra.mxu0 %v5601
    %7998 = vmatpush.bf16.msra.mxu0 %v5595
    %7999 = vmatmul.bf16.gmra.mxu0 %v144
    %v8000 = vpop.f32.mrf.mxu0
    %v8001 = vadd.f32 %v7987, %v8000
    %v8002 = vpop.f32.mrf.mxu0
    %v8003 = vadd.f32 %v7989, %v8002
    %8004 = vdwg.mxu0
    %8005 = vmatpush.bf16.msra.mxu0 %v5685
    %8006 = vmatpush.bf16.msra.mxu0 %v5679
    %8007 = vmatpush.bf16.msra.mxu0 %v5673
    %8008 = vmatpush.bf16.msra.mxu0 %v5667
    %8009 = vmatpush.bf16.msra.mxu0 %v5661
    %8010 = vmatpush.bf16.msra.mxu0 %v5655
    %8011 = vmatpush.bf16.msra.mxu0 %v5649
    %8012 = vmatpush.bf16.msra.mxu0 %v5643
    %8013 = vmatmul.bf16.gmra.mxu0 %v145
    %v8014 = vpop.f32.mrf.mxu0
    %v8015 = vadd.f32 %v8001, %v8014
    %v8016 = vpop.f32.mrf.mxu0
    %v8017 = vadd.f32 %v8003, %v8016
    %8018 = vdwg.mxu0
    %8019 = vmatpush.bf16.msra.mxu0 %v5733
    %8020 = vmatpush.bf16.msra.mxu0 %v5727
    %8021 = vmatpush.bf16.msra.mxu0 %v5721
    %8022 = vmatpush.bf16.msra.mxu0 %v5715
    %8023 = vmatpush.bf16.msra.mxu0 %v5709
    %8024 = vmatpush.bf16.msra.mxu0 %v5703
    %8025 = vmatpush.bf16.msra.mxu0 %v5697
    %8026 = vmatpush.bf16.msra.mxu0 %v5691
    %8027 = vmatmul.bf16.gmra.mxu0 %v146
    %v8028 = vpop.f32.mrf.mxu0
    %v8029 = vadd.f32 %v8015, %v8028
    %v8030 = vpop.f32.mrf.mxu0
    %v8031 = vadd.f32 %v8017, %v8030
    %8032 = vdwg.mxu0
    %8033 = vmatpush.bf16.msra.mxu0 %v5781
    %8034 = vmatpush.bf16.msra.mxu0 %v5775
    %8035 = vmatpush.bf16.msra.mxu0 %v5769
    %8036 = vmatpush.bf16.msra.mxu0 %v5763
    %8037 = vmatpush.bf16.msra.mxu0 %v5757
    %8038 = vmatpush.bf16.msra.mxu0 %v5751
    %8039 = vmatpush.bf16.msra.mxu0 %v5745
    %8040 = vmatpush.bf16.msra.mxu0 %v5739
    %8041 = vmatmul.bf16.gmra.mxu0 %v147
    %v8042 = vpop.f32.mrf.mxu0
    %v8043 = vadd.f32 %v8029, %v8042
    %v8044 = vpop.f32.mrf.mxu0
    %v8045 = vadd.f32 %v8031, %v8044
    %8046 = vdwg.mxu0
    %8047 = vmatpush.bf16.msra.mxu0 %v5829
    %8048 = vmatpush.bf16.msra.mxu0 %v5823
    %8049 = vmatpush.bf16.msra.mxu0 %v5817
    %8050 = vmatpush.bf16.msra.mxu0 %v5811
    %8051 = vmatpush.bf16.msra.mxu0 %v5805
    %8052 = vmatpush.bf16.msra.mxu0 %v5799
    %8053 = vmatpush.bf16.msra.mxu0 %v5793
    %8054 = vmatpush.bf16.msra.mxu0 %v5787
    %8055 = vmatmul.bf16.gmra.mxu0 %v148
    %v8056 = vpop.f32.mrf.mxu0
    %v8057 = vadd.f32 %v8043, %v8056
    %v8058 = vpop.f32.mrf.mxu0
    %v8059 = vadd.f32 %v8045, %v8058
    %8060 = vdwg.mxu0
    %8061 = vmatpush.bf16.msra.mxu0 %v5877
    %8062 = vmatpush.bf16.msra.mxu0 %v5871
    %8063 = vmatpush.bf16.msra.mxu0 %v5865
    %8064 = vmatpush.bf16.msra.mxu0 %v5859
    %8065 = vmatpush.bf16.msra.mxu0 %v5853
    %8066 = vmatpush.bf16.msra.mxu0 %v5847
    %8067 = vmatpush.bf16.msra.mxu0 %v5841
    %8068 = vmatpush.bf16.msra.mxu0 %v5835
    %8069 = vmatmul.bf16.gmra.mxu0 %v149
    %v8070 = vpop.f32.mrf.mxu0
    %v8071 = vadd.f32 %v8057, %v8070
    %v8072 = vpop.f32.mrf.mxu0
    %v8073 = vadd.f32 %v8059, %v8072
    %8074 = vdwg.mxu0
    %8075 = vmatpush.bf16.msra.mxu0 %v5925
    %8076 = vmatpush.bf16.msra.mxu0 %v5919
    %8077 = vmatpush.bf16.msra.mxu0 %v5913
    %8078 = vmatpush.bf16.msra.mxu0 %v5907
    %8079 = vmatpush.bf16.msra.mxu0 %v5901
    %8080 = vmatpush.bf16.msra.mxu0 %v5895
    %8081 = vmatpush.bf16.msra.mxu0 %v5889
    %8082 = vmatpush.bf16.msra.mxu0 %v5883
    %8083 = vmatmul.bf16.gmra.mxu0 %v150
    %v8084 = vpop.f32.mrf.mxu0
    %v8085 = vadd.f32 %v8071, %v8084
    %v8086 = vpop.f32.mrf.mxu0
    %v8087 = vadd.f32 %v8073, %v8086
    %8088 = vdwg.mxu0
    %8089 = vmatpush.bf16.msra.mxu0 %v4822
    %8090 = vmatpush.bf16.msra.mxu0 %v4816
    %8091 = vmatpush.bf16.msra.mxu0 %v4810
    %8092 = vmatpush.bf16.msra.mxu0 %v4804
    %8093 = vmatpush.bf16.msra.mxu0 %v4798
    %8094 = vmatpush.bf16.msra.mxu0 %v4792
    %8095 = vmatpush.bf16.msra.mxu0 %v4786
    %8096 = vmatpush.bf16.msra.mxu0 %v4780
    %8097 = vmatmul.bf16.gmra.mxu0 %v127
    %v8098 = vpop.f32.mrf.mxu0
    %v8099 = vadd.f32 %v1312, %v8098
    %v8100 = vpop.f32.mrf.mxu0
    %v8101 = vadd.f32 %v1312, %v8100
    %8102 = vdwg.mxu0
    %8103 = vmatpush.bf16.msra.mxu0 %v4870
    %8104 = vmatpush.bf16.msra.mxu0 %v4864
    %8105 = vmatpush.bf16.msra.mxu0 %v4858
    %8106 = vmatpush.bf16.msra.mxu0 %v4852
    %8107 = vmatpush.bf16.msra.mxu0 %v4846
    %8108 = vmatpush.bf16.msra.mxu0 %v4840
    %8109 = vmatpush.bf16.msra.mxu0 %v4834
    %8110 = vmatpush.bf16.msra.mxu0 %v4828
    %8111 = vmatmul.bf16.gmra.mxu0 %v128
    %v8112 = vpop.f32.mrf.mxu0
    %v8113 = vadd.f32 %v8099, %v8112
    %v8114 = vpop.f32.mrf.mxu0
    %v8115 = vadd.f32 %v8101, %v8114
    %8116 = vdwg.mxu0
    %8117 = vmatpush.bf16.msra.mxu0 %v4918
    %8118 = vmatpush.bf16.msra.mxu0 %v4912
    %8119 = vmatpush.bf16.msra.mxu0 %v4906
    %8120 = vmatpush.bf16.msra.mxu0 %v4900
    %8121 = vmatpush.bf16.msra.mxu0 %v4894
    %8122 = vmatpush.bf16.msra.mxu0 %v4888
    %8123 = vmatpush.bf16.msra.mxu0 %v4882
    %8124 = vmatpush.bf16.msra.mxu0 %v4876
    %8125 = vmatmul.bf16.gmra.mxu0 %v129
    %v8126 = vpop.f32.mrf.mxu0
    %v8127 = vadd.f32 %v8113, %v8126
    %v8128 = vpop.f32.mrf.mxu0
    %v8129 = vadd.f32 %v8115, %v8128
    %8130 = vdwg.mxu0
    %8131 = vmatpush.bf16.msra.mxu0 %v4966
    %8132 = vmatpush.bf16.msra.mxu0 %v4960
    %8133 = vmatpush.bf16.msra.mxu0 %v4954
    %8134 = vmatpush.bf16.msra.mxu0 %v4948
    %8135 = vmatpush.bf16.msra.mxu0 %v4942
    %8136 = vmatpush.bf16.msra.mxu0 %v4936
    %8137 = vmatpush.bf16.msra.mxu0 %v4930
    %8138 = vmatpush.bf16.msra.mxu0 %v4924
    %8139 = vmatmul.bf16.gmra.mxu0 %v130
    %v8140 = vpop.f32.mrf.mxu0
    %v8141 = vadd.f32 %v8127, %v8140
    %v8142 = vpop.f32.mrf.mxu0
    %v8143 = vadd.f32 %v8129, %v8142
    %8144 = vdwg.mxu0
    %8145 = vmatpush.bf16.msra.mxu0 %v5014
    %8146 = vmatpush.bf16.msra.mxu0 %v5008
    %8147 = vmatpush.bf16.msra.mxu0 %v5002
    %8148 = vmatpush.bf16.msra.mxu0 %v4996
    %8149 = vmatpush.bf16.msra.mxu0 %v4990
    %8150 = vmatpush.bf16.msra.mxu0 %v4984
    %8151 = vmatpush.bf16.msra.mxu0 %v4978
    %8152 = vmatpush.bf16.msra.mxu0 %v4972
    %8153 = vmatmul.bf16.gmra.mxu0 %v131
    %v8154 = vpop.f32.mrf.mxu0
    %v8155 = vadd.f32 %v8141, %v8154
    %v8156 = vpop.f32.mrf.mxu0
    %v8157 = vadd.f32 %v8143, %v8156
    %8158 = vdwg.mxu0
    %8159 = vmatpush.bf16.msra.mxu0 %v5062
    %8160 = vmatpush.bf16.msra.mxu0 %v5056
    %8161 = vmatpush.bf16.msra.mxu0 %v5050
    %8162 = vmatpush.bf16.msra.mxu0 %v5044
    %8163 = vmatpush.bf16.msra.mxu0 %v5038
    %8164 = vmatpush.bf16.msra.mxu0 %v5032
    %8165 = vmatpush.bf16.msra.mxu0 %v5026
    %8166 = vmatpush.bf16.msra.mxu0 %v5020
    %8167 = vmatmul.bf16.gmra.mxu0 %v132
    %v8168 = vpop.f32.mrf.mxu0
    %v8169 = vadd.f32 %v8155, %v8168
    %v8170 = vpop.f32.mrf.mxu0
    %v8171 = vadd.f32 %v8157, %v8170
    %8172 = vdwg.mxu0
    %8173 = vmatpush.bf16.msra.mxu0 %v5110
    %8174 = vmatpush.bf16.msra.mxu0 %v5104
    %8175 = vmatpush.bf16.msra.mxu0 %v5098
    %8176 = vmatpush.bf16.msra.mxu0 %v5092
    %8177 = vmatpush.bf16.msra.mxu0 %v5086
    %8178 = vmatpush.bf16.msra.mxu0 %v5080
    %8179 = vmatpush.bf16.msra.mxu0 %v5074
    %8180 = vmatpush.bf16.msra.mxu0 %v5068
    %8181 = vmatmul.bf16.gmra.mxu0 %v133
    %v8182 = vpop.f32.mrf.mxu0
    %v8183 = vadd.f32 %v8169, %v8182
    %v8184 = vpop.f32.mrf.mxu0
    %v8185 = vadd.f32 %v8171, %v8184
    %8186 = vdwg.mxu0
    %8187 = vmatpush.bf16.msra.mxu0 %v5158
    %8188 = vmatpush.bf16.msra.mxu0 %v5152
    %8189 = vmatpush.bf16.msra.mxu0 %v5146
    %8190 = vmatpush.bf16.msra.mxu0 %v5140
    %8191 = vmatpush.bf16.msra.mxu0 %v5134
    %8192 = vmatpush.bf16.msra.mxu0 %v5128
    %8193 = vmatpush.bf16.msra.mxu0 %v5122
    %8194 = vmatpush.bf16.msra.mxu0 %v5116
    %8195 = vmatmul.bf16.gmra.mxu0 %v134
    %v8196 = vpop.f32.mrf.mxu0
    %v8197 = vadd.f32 %v8183, %v8196
    %v8198 = vpop.f32.mrf.mxu0
    %v8199 = vadd.f32 %v8185, %v8198
    %8200 = vdwg.mxu0
    %8201 = vmatpush.bf16.msra.mxu0 %v5206
    %8202 = vmatpush.bf16.msra.mxu0 %v5200
    %8203 = vmatpush.bf16.msra.mxu0 %v5194
    %8204 = vmatpush.bf16.msra.mxu0 %v5188
    %8205 = vmatpush.bf16.msra.mxu0 %v5182
    %8206 = vmatpush.bf16.msra.mxu0 %v5176
    %8207 = vmatpush.bf16.msra.mxu0 %v5170
    %8208 = vmatpush.bf16.msra.mxu0 %v5164
    %8209 = vmatmul.bf16.gmra.mxu0 %v135
    %v8210 = vpop.f32.mrf.mxu0
    %v8211 = vadd.f32 %v8197, %v8210
    %v8212 = vpop.f32.mrf.mxu0
    %v8213 = vadd.f32 %v8199, %v8212
    %8214 = vdwg.mxu0
    %8215 = vmatpush.bf16.msra.mxu0 %v5254
    %8216 = vmatpush.bf16.msra.mxu0 %v5248
    %8217 = vmatpush.bf16.msra.mxu0 %v5242
    %8218 = vmatpush.bf16.msra.mxu0 %v5236
    %8219 = vmatpush.bf16.msra.mxu0 %v5230
    %8220 = vmatpush.bf16.msra.mxu0 %v5224
    %8221 = vmatpush.bf16.msra.mxu0 %v5218
    %8222 = vmatpush.bf16.msra.mxu0 %v5212
    %8223 = vmatmul.bf16.gmra.mxu0 %v136
    %v8224 = vpop.f32.mrf.mxu0
    %v8225 = vadd.f32 %v8211, %v8224
    %v8226 = vpop.f32.mrf.mxu0
    %v8227 = vadd.f32 %v8213, %v8226
    %8228 = vdwg.mxu0
    %8229 = vmatpush.bf16.msra.mxu0 %v5302
    %8230 = vmatpush.bf16.msra.mxu0 %v5296
    %8231 = vmatpush.bf16.msra.mxu0 %v5290
    %8232 = vmatpush.bf16.msra.mxu0 %v5284
    %8233 = vmatpush.bf16.msra.mxu0 %v5278
    %8234 = vmatpush.bf16.msra.mxu0 %v5272
    %8235 = vmatpush.bf16.msra.mxu0 %v5266
    %8236 = vmatpush.bf16.msra.mxu0 %v5260
    %8237 = vmatmul.bf16.gmra.mxu0 %v137
    %v8238 = vpop.f32.mrf.mxu0
    %v8239 = vadd.f32 %v8225, %v8238
    %v8240 = vpop.f32.mrf.mxu0
    %v8241 = vadd.f32 %v8227, %v8240
    %8242 = vdwg.mxu0
    %8243 = vmatpush.bf16.msra.mxu0 %v5350
    %8244 = vmatpush.bf16.msra.mxu0 %v5344
    %8245 = vmatpush.bf16.msra.mxu0 %v5338
    %8246 = vmatpush.bf16.msra.mxu0 %v5332
    %8247 = vmatpush.bf16.msra.mxu0 %v5326
    %8248 = vmatpush.bf16.msra.mxu0 %v5320
    %8249 = vmatpush.bf16.msra.mxu0 %v5314
    %8250 = vmatpush.bf16.msra.mxu0 %v5308
    %8251 = vmatmul.bf16.gmra.mxu0 %v138
    %v8252 = vpop.f32.mrf.mxu0
    %v8253 = vadd.f32 %v8239, %v8252
    %v8254 = vpop.f32.mrf.mxu0
    %v8255 = vadd.f32 %v8241, %v8254
    %8256 = vdwg.mxu0
    %8257 = vmatpush.bf16.msra.mxu0 %v5398
    %8258 = vmatpush.bf16.msra.mxu0 %v5392
    %8259 = vmatpush.bf16.msra.mxu0 %v5386
    %8260 = vmatpush.bf16.msra.mxu0 %v5380
    %8261 = vmatpush.bf16.msra.mxu0 %v5374
    %8262 = vmatpush.bf16.msra.mxu0 %v5368
    %8263 = vmatpush.bf16.msra.mxu0 %v5362
    %8264 = vmatpush.bf16.msra.mxu0 %v5356
    %8265 = vmatmul.bf16.gmra.mxu0 %v139
    %v8266 = vpop.f32.mrf.mxu0
    %v8267 = vadd.f32 %v8253, %v8266
    %v8268 = vpop.f32.mrf.mxu0
    %v8269 = vadd.f32 %v8255, %v8268
    %8270 = vdwg.mxu0
    %8271 = vmatpush.bf16.msra.mxu0 %v5446
    %8272 = vmatpush.bf16.msra.mxu0 %v5440
    %8273 = vmatpush.bf16.msra.mxu0 %v5434
    %8274 = vmatpush.bf16.msra.mxu0 %v5428
    %8275 = vmatpush.bf16.msra.mxu0 %v5422
    %8276 = vmatpush.bf16.msra.mxu0 %v5416
    %8277 = vmatpush.bf16.msra.mxu0 %v5410
    %8278 = vmatpush.bf16.msra.mxu0 %v5404
    %8279 = vmatmul.bf16.gmra.mxu0 %v140
    %v8280 = vpop.f32.mrf.mxu0
    %v8281 = vadd.f32 %v8267, %v8280
    %v8282 = vpop.f32.mrf.mxu0
    %v8283 = vadd.f32 %v8269, %v8282
    %8284 = vdwg.mxu0
    %8285 = vmatpush.bf16.msra.mxu0 %v5494
    %8286 = vmatpush.bf16.msra.mxu0 %v5488
    %8287 = vmatpush.bf16.msra.mxu0 %v5482
    %8288 = vmatpush.bf16.msra.mxu0 %v5476
    %8289 = vmatpush.bf16.msra.mxu0 %v5470
    %8290 = vmatpush.bf16.msra.mxu0 %v5464
    %8291 = vmatpush.bf16.msra.mxu0 %v5458
    %8292 = vmatpush.bf16.msra.mxu0 %v5452
    %8293 = vmatmul.bf16.gmra.mxu0 %v141
    %v8294 = vpop.f32.mrf.mxu0
    %v8295 = vadd.f32 %v8281, %v8294
    %v8296 = vpop.f32.mrf.mxu0
    %v8297 = vadd.f32 %v8283, %v8296
    %8298 = vdwg.mxu0
    %8299 = vmatpush.bf16.msra.mxu0 %v5542
    %8300 = vmatpush.bf16.msra.mxu0 %v5536
    %8301 = vmatpush.bf16.msra.mxu0 %v5530
    %8302 = vmatpush.bf16.msra.mxu0 %v5524
    %8303 = vmatpush.bf16.msra.mxu0 %v5518
    %8304 = vmatpush.bf16.msra.mxu0 %v5512
    %8305 = vmatpush.bf16.msra.mxu0 %v5506
    %8306 = vmatpush.bf16.msra.mxu0 %v5500
    %8307 = vmatmul.bf16.gmra.mxu0 %v142
    %v8308 = vpop.f32.mrf.mxu0
    %v8309 = vadd.f32 %v8295, %v8308
    %v8310 = vpop.f32.mrf.mxu0
    %v8311 = vadd.f32 %v8297, %v8310
    %8312 = vdwg.mxu0
    %8313 = vmatpush.bf16.msra.mxu0 %v5590
    %8314 = vmatpush.bf16.msra.mxu0 %v5584
    %8315 = vmatpush.bf16.msra.mxu0 %v5578
    %8316 = vmatpush.bf16.msra.mxu0 %v5572
    %8317 = vmatpush.bf16.msra.mxu0 %v5566
    %8318 = vmatpush.bf16.msra.mxu0 %v5560
    %8319 = vmatpush.bf16.msra.mxu0 %v5554
    %8320 = vmatpush.bf16.msra.mxu0 %v5548
    %8321 = vmatmul.bf16.gmra.mxu0 %v143
    %v8322 = vpop.f32.mrf.mxu0
    %v8323 = vadd.f32 %v8309, %v8322
    %v8324 = vpop.f32.mrf.mxu0
    %v8325 = vadd.f32 %v8311, %v8324
    %8326 = vdwg.mxu0
    %8327 = vmatpush.bf16.msra.mxu0 %v5638
    %8328 = vmatpush.bf16.msra.mxu0 %v5632
    %8329 = vmatpush.bf16.msra.mxu0 %v5626
    %8330 = vmatpush.bf16.msra.mxu0 %v5620
    %8331 = vmatpush.bf16.msra.mxu0 %v5614
    %8332 = vmatpush.bf16.msra.mxu0 %v5608
    %8333 = vmatpush.bf16.msra.mxu0 %v5602
    %8334 = vmatpush.bf16.msra.mxu0 %v5596
    %8335 = vmatmul.bf16.gmra.mxu0 %v144
    %v8336 = vpop.f32.mrf.mxu0
    %v8337 = vadd.f32 %v8323, %v8336
    %v8338 = vpop.f32.mrf.mxu0
    %v8339 = vadd.f32 %v8325, %v8338
    %8340 = vdwg.mxu0
    %8341 = vmatpush.bf16.msra.mxu0 %v5686
    %8342 = vmatpush.bf16.msra.mxu0 %v5680
    %8343 = vmatpush.bf16.msra.mxu0 %v5674
    %8344 = vmatpush.bf16.msra.mxu0 %v5668
    %8345 = vmatpush.bf16.msra.mxu0 %v5662
    %8346 = vmatpush.bf16.msra.mxu0 %v5656
    %8347 = vmatpush.bf16.msra.mxu0 %v5650
    %8348 = vmatpush.bf16.msra.mxu0 %v5644
    %8349 = vmatmul.bf16.gmra.mxu0 %v145
    %v8350 = vpop.f32.mrf.mxu0
    %v8351 = vadd.f32 %v8337, %v8350
    %v8352 = vpop.f32.mrf.mxu0
    %v8353 = vadd.f32 %v8339, %v8352
    %8354 = vdwg.mxu0
    %8355 = vmatpush.bf16.msra.mxu0 %v5734
    %8356 = vmatpush.bf16.msra.mxu0 %v5728
    %8357 = vmatpush.bf16.msra.mxu0 %v5722
    %8358 = vmatpush.bf16.msra.mxu0 %v5716
    %8359 = vmatpush.bf16.msra.mxu0 %v5710
    %8360 = vmatpush.bf16.msra.mxu0 %v5704
    %8361 = vmatpush.bf16.msra.mxu0 %v5698
    %8362 = vmatpush.bf16.msra.mxu0 %v5692
    %8363 = vmatmul.bf16.gmra.mxu0 %v146
    %v8364 = vpop.f32.mrf.mxu0
    %v8365 = vadd.f32 %v8351, %v8364
    %v8366 = vpop.f32.mrf.mxu0
    %v8367 = vadd.f32 %v8353, %v8366
    %8368 = vdwg.mxu0
    %8369 = vmatpush.bf16.msra.mxu0 %v5782
    %8370 = vmatpush.bf16.msra.mxu0 %v5776
    %8371 = vmatpush.bf16.msra.mxu0 %v5770
    %8372 = vmatpush.bf16.msra.mxu0 %v5764
    %8373 = vmatpush.bf16.msra.mxu0 %v5758
    %8374 = vmatpush.bf16.msra.mxu0 %v5752
    %8375 = vmatpush.bf16.msra.mxu0 %v5746
    %8376 = vmatpush.bf16.msra.mxu0 %v5740
    %8377 = vmatmul.bf16.gmra.mxu0 %v147
    %v8378 = vpop.f32.mrf.mxu0
    %v8379 = vadd.f32 %v8365, %v8378
    %v8380 = vpop.f32.mrf.mxu0
    %v8381 = vadd.f32 %v8367, %v8380
    %8382 = vdwg.mxu0
    %8383 = vmatpush.bf16.msra.mxu0 %v5830
    %8384 = vmatpush.bf16.msra.mxu0 %v5824
    %8385 = vmatpush.bf16.msra.mxu0 %v5818
    %8386 = vmatpush.bf16.msra.mxu0 %v5812
    %8387 = vmatpush.bf16.msra.mxu0 %v5806
    %8388 = vmatpush.bf16.msra.mxu0 %v5800
    %8389 = vmatpush.bf16.msra.mxu0 %v5794
    %8390 = vmatpush.bf16.msra.mxu0 %v5788
    %8391 = vmatmul.bf16.gmra.mxu0 %v148
    %v8392 = vpop.f32.mrf.mxu0
    %v8393 = vadd.f32 %v8379, %v8392
    %v8394 = vpop.f32.mrf.mxu0
    %v8395 = vadd.f32 %v8381, %v8394
    %8396 = vdwg.mxu0
    %8397 = vmatpush.bf16.msra.mxu0 %v5878
    %8398 = vmatpush.bf16.msra.mxu0 %v5872
    %8399 = vmatpush.bf16.msra.mxu0 %v5866
    %8400 = vmatpush.bf16.msra.mxu0 %v5860
    %8401 = vmatpush.bf16.msra.mxu0 %v5854
    %8402 = vmatpush.bf16.msra.mxu0 %v5848
    %8403 = vmatpush.bf16.msra.mxu0 %v5842
    %8404 = vmatpush.bf16.msra.mxu0 %v5836
    %8405 = vmatmul.bf16.gmra.mxu0 %v149
    %v8406 = vpop.f32.mrf.mxu0
    %v8407 = vadd.f32 %v8393, %v8406
    %v8408 = vpop.f32.mrf.mxu0
    %v8409 = vadd.f32 %v8395, %v8408
    %8410 = vdwg.mxu0
    %8411 = vmatpush.bf16.msra.mxu0 %v5926
    %8412 = vmatpush.bf16.msra.mxu0 %v5920
    %8413 = vmatpush.bf16.msra.mxu0 %v5914
    %8414 = vmatpush.bf16.msra.mxu0 %v5908
    %8415 = vmatpush.bf16.msra.mxu0 %v5902
    %8416 = vmatpush.bf16.msra.mxu0 %v5896
    %8417 = vmatpush.bf16.msra.mxu0 %v5890
    %8418 = vmatpush.bf16.msra.mxu0 %v5884
    %8419 = vmatmul.bf16.gmra.mxu0 %v150
    %v8420 = vpop.f32.mrf.mxu0
    %v8421 = vadd.f32 %v8407, %v8420
    %v8422 = vpop.f32.mrf.mxu0
    %v8423 = vadd.f32 %v8409, %v8422
    %8424 = vdwg.mxu0
    %8425 = vmatpush.bf16.msra.mxu0 %v4823
    %8426 = vmatpush.bf16.msra.mxu0 %v4817
    %8427 = vmatpush.bf16.msra.mxu0 %v4811
    %8428 = vmatpush.bf16.msra.mxu0 %v4805
    %8429 = vmatpush.bf16.msra.mxu0 %v4799
    %8430 = vmatpush.bf16.msra.mxu0 %v4793
    %8431 = vmatpush.bf16.msra.mxu0 %v4787
    %8432 = vmatpush.bf16.msra.mxu0 %v4781
    %8433 = vmatmul.bf16.gmra.mxu0 %v127
    %v8434 = vpop.f32.mrf.mxu0
    %v8435 = vadd.f32 %v1313, %v8434
    %v8436 = vpop.f32.mrf.mxu0
    %v8437 = vadd.f32 %v1313, %v8436
    %8438 = vdwg.mxu0
    %8439 = vmatpush.bf16.msra.mxu0 %v4871
    %8440 = vmatpush.bf16.msra.mxu0 %v4865
    %8441 = vmatpush.bf16.msra.mxu0 %v4859
    %8442 = vmatpush.bf16.msra.mxu0 %v4853
    %8443 = vmatpush.bf16.msra.mxu0 %v4847
    %8444 = vmatpush.bf16.msra.mxu0 %v4841
    %8445 = vmatpush.bf16.msra.mxu0 %v4835
    %8446 = vmatpush.bf16.msra.mxu0 %v4829
    %8447 = vmatmul.bf16.gmra.mxu0 %v128
    %v8448 = vpop.f32.mrf.mxu0
    %v8449 = vadd.f32 %v8435, %v8448
    %v8450 = vpop.f32.mrf.mxu0
    %v8451 = vadd.f32 %v8437, %v8450
    %8452 = vdwg.mxu0
    %8453 = vmatpush.bf16.msra.mxu0 %v4919
    %8454 = vmatpush.bf16.msra.mxu0 %v4913
    %8455 = vmatpush.bf16.msra.mxu0 %v4907
    %8456 = vmatpush.bf16.msra.mxu0 %v4901
    %8457 = vmatpush.bf16.msra.mxu0 %v4895
    %8458 = vmatpush.bf16.msra.mxu0 %v4889
    %8459 = vmatpush.bf16.msra.mxu0 %v4883
    %8460 = vmatpush.bf16.msra.mxu0 %v4877
    %8461 = vmatmul.bf16.gmra.mxu0 %v129
    %v8462 = vpop.f32.mrf.mxu0
    %v8463 = vadd.f32 %v8449, %v8462
    %v8464 = vpop.f32.mrf.mxu0
    %v8465 = vadd.f32 %v8451, %v8464
    %8466 = vdwg.mxu0
    %8467 = vmatpush.bf16.msra.mxu0 %v4967
    %8468 = vmatpush.bf16.msra.mxu0 %v4961
    %8469 = vmatpush.bf16.msra.mxu0 %v4955
    %8470 = vmatpush.bf16.msra.mxu0 %v4949
    %8471 = vmatpush.bf16.msra.mxu0 %v4943
    %8472 = vmatpush.bf16.msra.mxu0 %v4937
    %8473 = vmatpush.bf16.msra.mxu0 %v4931
    %8474 = vmatpush.bf16.msra.mxu0 %v4925
    %8475 = vmatmul.bf16.gmra.mxu0 %v130
    %v8476 = vpop.f32.mrf.mxu0
    %v8477 = vadd.f32 %v8463, %v8476
    %v8478 = vpop.f32.mrf.mxu0
    %v8479 = vadd.f32 %v8465, %v8478
    %8480 = vdwg.mxu0
    %8481 = vmatpush.bf16.msra.mxu0 %v5015
    %8482 = vmatpush.bf16.msra.mxu0 %v5009
    %8483 = vmatpush.bf16.msra.mxu0 %v5003
    %8484 = vmatpush.bf16.msra.mxu0 %v4997
    %8485 = vmatpush.bf16.msra.mxu0 %v4991
    %8486 = vmatpush.bf16.msra.mxu0 %v4985
    %8487 = vmatpush.bf16.msra.mxu0 %v4979
    %8488 = vmatpush.bf16.msra.mxu0 %v4973
    %8489 = vmatmul.bf16.gmra.mxu0 %v131
    %v8490 = vpop.f32.mrf.mxu0
    %v8491 = vadd.f32 %v8477, %v8490
    %v8492 = vpop.f32.mrf.mxu0
    %v8493 = vadd.f32 %v8479, %v8492
    %8494 = vdwg.mxu0
    %8495 = vmatpush.bf16.msra.mxu0 %v5063
    %8496 = vmatpush.bf16.msra.mxu0 %v5057
    %8497 = vmatpush.bf16.msra.mxu0 %v5051
    %8498 = vmatpush.bf16.msra.mxu0 %v5045
    %8499 = vmatpush.bf16.msra.mxu0 %v5039
    %8500 = vmatpush.bf16.msra.mxu0 %v5033
    %8501 = vmatpush.bf16.msra.mxu0 %v5027
    %8502 = vmatpush.bf16.msra.mxu0 %v5021
    %8503 = vmatmul.bf16.gmra.mxu0 %v132
    %v8504 = vpop.f32.mrf.mxu0
    %v8505 = vadd.f32 %v8491, %v8504
    %v8506 = vpop.f32.mrf.mxu0
    %v8507 = vadd.f32 %v8493, %v8506
    %8508 = vdwg.mxu0
    %8509 = vmatpush.bf16.msra.mxu0 %v5111
    %8510 = vmatpush.bf16.msra.mxu0 %v5105
    %8511 = vmatpush.bf16.msra.mxu0 %v5099
    %8512 = vmatpush.bf16.msra.mxu0 %v5093
    %8513 = vmatpush.bf16.msra.mxu0 %v5087
    %8514 = vmatpush.bf16.msra.mxu0 %v5081
    %8515 = vmatpush.bf16.msra.mxu0 %v5075
    %8516 = vmatpush.bf16.msra.mxu0 %v5069
    %8517 = vmatmul.bf16.gmra.mxu0 %v133
    %v8518 = vpop.f32.mrf.mxu0
    %v8519 = vadd.f32 %v8505, %v8518
    %v8520 = vpop.f32.mrf.mxu0
    %v8521 = vadd.f32 %v8507, %v8520
    %8522 = vdwg.mxu0
    %8523 = vmatpush.bf16.msra.mxu0 %v5159
    %8524 = vmatpush.bf16.msra.mxu0 %v5153
    %8525 = vmatpush.bf16.msra.mxu0 %v5147
    %8526 = vmatpush.bf16.msra.mxu0 %v5141
    %8527 = vmatpush.bf16.msra.mxu0 %v5135
    %8528 = vmatpush.bf16.msra.mxu0 %v5129
    %8529 = vmatpush.bf16.msra.mxu0 %v5123
    %8530 = vmatpush.bf16.msra.mxu0 %v5117
    %8531 = vmatmul.bf16.gmra.mxu0 %v134
    %v8532 = vpop.f32.mrf.mxu0
    %v8533 = vadd.f32 %v8519, %v8532
    %v8534 = vpop.f32.mrf.mxu0
    %v8535 = vadd.f32 %v8521, %v8534
    %8536 = vdwg.mxu0
    %8537 = vmatpush.bf16.msra.mxu0 %v5207
    %8538 = vmatpush.bf16.msra.mxu0 %v5201
    %8539 = vmatpush.bf16.msra.mxu0 %v5195
    %8540 = vmatpush.bf16.msra.mxu0 %v5189
    %8541 = vmatpush.bf16.msra.mxu0 %v5183
    %8542 = vmatpush.bf16.msra.mxu0 %v5177
    %8543 = vmatpush.bf16.msra.mxu0 %v5171
    %8544 = vmatpush.bf16.msra.mxu0 %v5165
    %8545 = vmatmul.bf16.gmra.mxu0 %v135
    %v8546 = vpop.f32.mrf.mxu0
    %v8547 = vadd.f32 %v8533, %v8546
    %v8548 = vpop.f32.mrf.mxu0
    %v8549 = vadd.f32 %v8535, %v8548
    %8550 = vdwg.mxu0
    %8551 = vmatpush.bf16.msra.mxu0 %v5255
    %8552 = vmatpush.bf16.msra.mxu0 %v5249
    %8553 = vmatpush.bf16.msra.mxu0 %v5243
    %8554 = vmatpush.bf16.msra.mxu0 %v5237
    %8555 = vmatpush.bf16.msra.mxu0 %v5231
    %8556 = vmatpush.bf16.msra.mxu0 %v5225
    %8557 = vmatpush.bf16.msra.mxu0 %v5219
    %8558 = vmatpush.bf16.msra.mxu0 %v5213
    %8559 = vmatmul.bf16.gmra.mxu0 %v136
    %v8560 = vpop.f32.mrf.mxu0
    %v8561 = vadd.f32 %v8547, %v8560
    %v8562 = vpop.f32.mrf.mxu0
    %v8563 = vadd.f32 %v8549, %v8562
    %8564 = vdwg.mxu0
    %8565 = vmatpush.bf16.msra.mxu0 %v5303
    %8566 = vmatpush.bf16.msra.mxu0 %v5297
    %8567 = vmatpush.bf16.msra.mxu0 %v5291
    %8568 = vmatpush.bf16.msra.mxu0 %v5285
    %8569 = vmatpush.bf16.msra.mxu0 %v5279
    %8570 = vmatpush.bf16.msra.mxu0 %v5273
    %8571 = vmatpush.bf16.msra.mxu0 %v5267
    %8572 = vmatpush.bf16.msra.mxu0 %v5261
    %8573 = vmatmul.bf16.gmra.mxu0 %v137
    %v8574 = vpop.f32.mrf.mxu0
    %v8575 = vadd.f32 %v8561, %v8574
    %v8576 = vpop.f32.mrf.mxu0
    %v8577 = vadd.f32 %v8563, %v8576
    %8578 = vdwg.mxu0
    %8579 = vmatpush.bf16.msra.mxu0 %v5351
    %8580 = vmatpush.bf16.msra.mxu0 %v5345
    %8581 = vmatpush.bf16.msra.mxu0 %v5339
    %8582 = vmatpush.bf16.msra.mxu0 %v5333
    %8583 = vmatpush.bf16.msra.mxu0 %v5327
    %8584 = vmatpush.bf16.msra.mxu0 %v5321
    %8585 = vmatpush.bf16.msra.mxu0 %v5315
    %8586 = vmatpush.bf16.msra.mxu0 %v5309
    %8587 = vmatmul.bf16.gmra.mxu0 %v138
    %v8588 = vpop.f32.mrf.mxu0
    %v8589 = vadd.f32 %v8575, %v8588
    %v8590 = vpop.f32.mrf.mxu0
    %v8591 = vadd.f32 %v8577, %v8590
    %8592 = vdwg.mxu0
    %8593 = vmatpush.bf16.msra.mxu0 %v5399
    %8594 = vmatpush.bf16.msra.mxu0 %v5393
    %8595 = vmatpush.bf16.msra.mxu0 %v5387
    %8596 = vmatpush.bf16.msra.mxu0 %v5381
    %8597 = vmatpush.bf16.msra.mxu0 %v5375
    %8598 = vmatpush.bf16.msra.mxu0 %v5369
    %8599 = vmatpush.bf16.msra.mxu0 %v5363
    %8600 = vmatpush.bf16.msra.mxu0 %v5357
    %8601 = vmatmul.bf16.gmra.mxu0 %v139
    %v8602 = vpop.f32.mrf.mxu0
    %v8603 = vadd.f32 %v8589, %v8602
    %v8604 = vpop.f32.mrf.mxu0
    %v8605 = vadd.f32 %v8591, %v8604
    %8606 = vdwg.mxu0
    %8607 = vmatpush.bf16.msra.mxu0 %v5447
    %8608 = vmatpush.bf16.msra.mxu0 %v5441
    %8609 = vmatpush.bf16.msra.mxu0 %v5435
    %8610 = vmatpush.bf16.msra.mxu0 %v5429
    %8611 = vmatpush.bf16.msra.mxu0 %v5423
    %8612 = vmatpush.bf16.msra.mxu0 %v5417
    %8613 = vmatpush.bf16.msra.mxu0 %v5411
    %8614 = vmatpush.bf16.msra.mxu0 %v5405
    %8615 = vmatmul.bf16.gmra.mxu0 %v140
    %v8616 = vpop.f32.mrf.mxu0
    %v8617 = vadd.f32 %v8603, %v8616
    %v8618 = vpop.f32.mrf.mxu0
    %v8619 = vadd.f32 %v8605, %v8618
    %8620 = vdwg.mxu0
    %8621 = vmatpush.bf16.msra.mxu0 %v5495
    %8622 = vmatpush.bf16.msra.mxu0 %v5489
    %8623 = vmatpush.bf16.msra.mxu0 %v5483
    %8624 = vmatpush.bf16.msra.mxu0 %v5477
    %8625 = vmatpush.bf16.msra.mxu0 %v5471
    %8626 = vmatpush.bf16.msra.mxu0 %v5465
    %8627 = vmatpush.bf16.msra.mxu0 %v5459
    %8628 = vmatpush.bf16.msra.mxu0 %v5453
    %8629 = vmatmul.bf16.gmra.mxu0 %v141
    %v8630 = vpop.f32.mrf.mxu0
    %v8631 = vadd.f32 %v8617, %v8630
    %v8632 = vpop.f32.mrf.mxu0
    %v8633 = vadd.f32 %v8619, %v8632
    %8634 = vdwg.mxu0
    %8635 = vmatpush.bf16.msra.mxu0 %v5543
    %8636 = vmatpush.bf16.msra.mxu0 %v5537
    %8637 = vmatpush.bf16.msra.mxu0 %v5531
    %8638 = vmatpush.bf16.msra.mxu0 %v5525
    %8639 = vmatpush.bf16.msra.mxu0 %v5519
    %8640 = vmatpush.bf16.msra.mxu0 %v5513
    %8641 = vmatpush.bf16.msra.mxu0 %v5507
    %8642 = vmatpush.bf16.msra.mxu0 %v5501
    %8643 = vmatmul.bf16.gmra.mxu0 %v142
    %v8644 = vpop.f32.mrf.mxu0
    %v8645 = vadd.f32 %v8631, %v8644
    %v8646 = vpop.f32.mrf.mxu0
    %v8647 = vadd.f32 %v8633, %v8646
    %8648 = vdwg.mxu0
    %8649 = vmatpush.bf16.msra.mxu0 %v5591
    %8650 = vmatpush.bf16.msra.mxu0 %v5585
    %8651 = vmatpush.bf16.msra.mxu0 %v5579
    %8652 = vmatpush.bf16.msra.mxu0 %v5573
    %8653 = vmatpush.bf16.msra.mxu0 %v5567
    %8654 = vmatpush.bf16.msra.mxu0 %v5561
    %8655 = vmatpush.bf16.msra.mxu0 %v5555
    %8656 = vmatpush.bf16.msra.mxu0 %v5549
    %8657 = vmatmul.bf16.gmra.mxu0 %v143
    %v8658 = vpop.f32.mrf.mxu0
    %v8659 = vadd.f32 %v8645, %v8658
    %v8660 = vpop.f32.mrf.mxu0
    %v8661 = vadd.f32 %v8647, %v8660
    %8662 = vdwg.mxu0
    %8663 = vmatpush.bf16.msra.mxu0 %v5639
    %8664 = vmatpush.bf16.msra.mxu0 %v5633
    %8665 = vmatpush.bf16.msra.mxu0 %v5627
    %8666 = vmatpush.bf16.msra.mxu0 %v5621
    %8667 = vmatpush.bf16.msra.mxu0 %v5615
    %8668 = vmatpush.bf16.msra.mxu0 %v5609
    %8669 = vmatpush.bf16.msra.mxu0 %v5603
    %8670 = vmatpush.bf16.msra.mxu0 %v5597
    %8671 = vmatmul.bf16.gmra.mxu0 %v144
    %v8672 = vpop.f32.mrf.mxu0
    %v8673 = vadd.f32 %v8659, %v8672
    %v8674 = vpop.f32.mrf.mxu0
    %v8675 = vadd.f32 %v8661, %v8674
    %8676 = vdwg.mxu0
    %8677 = vmatpush.bf16.msra.mxu0 %v5687
    %8678 = vmatpush.bf16.msra.mxu0 %v5681
    %8679 = vmatpush.bf16.msra.mxu0 %v5675
    %8680 = vmatpush.bf16.msra.mxu0 %v5669
    %8681 = vmatpush.bf16.msra.mxu0 %v5663
    %8682 = vmatpush.bf16.msra.mxu0 %v5657
    %8683 = vmatpush.bf16.msra.mxu0 %v5651
    %8684 = vmatpush.bf16.msra.mxu0 %v5645
    %8685 = vmatmul.bf16.gmra.mxu0 %v145
    %v8686 = vpop.f32.mrf.mxu0
    %v8687 = vadd.f32 %v8673, %v8686
    %v8688 = vpop.f32.mrf.mxu0
    %v8689 = vadd.f32 %v8675, %v8688
    %8690 = vdwg.mxu0
    %8691 = vmatpush.bf16.msra.mxu0 %v5735
    %8692 = vmatpush.bf16.msra.mxu0 %v5729
    %8693 = vmatpush.bf16.msra.mxu0 %v5723
    %8694 = vmatpush.bf16.msra.mxu0 %v5717
    %8695 = vmatpush.bf16.msra.mxu0 %v5711
    %8696 = vmatpush.bf16.msra.mxu0 %v5705
    %8697 = vmatpush.bf16.msra.mxu0 %v5699
    %8698 = vmatpush.bf16.msra.mxu0 %v5693
    %8699 = vmatmul.bf16.gmra.mxu0 %v146
    %v8700 = vpop.f32.mrf.mxu0
    %v8701 = vadd.f32 %v8687, %v8700
    %v8702 = vpop.f32.mrf.mxu0
    %v8703 = vadd.f32 %v8689, %v8702
    %8704 = vdwg.mxu0
    %8705 = vmatpush.bf16.msra.mxu0 %v5783
    %8706 = vmatpush.bf16.msra.mxu0 %v5777
    %8707 = vmatpush.bf16.msra.mxu0 %v5771
    %8708 = vmatpush.bf16.msra.mxu0 %v5765
    %8709 = vmatpush.bf16.msra.mxu0 %v5759
    %8710 = vmatpush.bf16.msra.mxu0 %v5753
    %8711 = vmatpush.bf16.msra.mxu0 %v5747
    %8712 = vmatpush.bf16.msra.mxu0 %v5741
    %8713 = vmatmul.bf16.gmra.mxu0 %v147
    %v8714 = vpop.f32.mrf.mxu0
    %v8715 = vadd.f32 %v8701, %v8714
    %v8716 = vpop.f32.mrf.mxu0
    %v8717 = vadd.f32 %v8703, %v8716
    %8718 = vdwg.mxu0
    %8719 = vmatpush.bf16.msra.mxu0 %v5831
    %8720 = vmatpush.bf16.msra.mxu0 %v5825
    %8721 = vmatpush.bf16.msra.mxu0 %v5819
    %8722 = vmatpush.bf16.msra.mxu0 %v5813
    %8723 = vmatpush.bf16.msra.mxu0 %v5807
    %8724 = vmatpush.bf16.msra.mxu0 %v5801
    %8725 = vmatpush.bf16.msra.mxu0 %v5795
    %8726 = vmatpush.bf16.msra.mxu0 %v5789
    %8727 = vmatmul.bf16.gmra.mxu0 %v148
    %v8728 = vpop.f32.mrf.mxu0
    %v8729 = vadd.f32 %v8715, %v8728
    %v8730 = vpop.f32.mrf.mxu0
    %v8731 = vadd.f32 %v8717, %v8730
    %8732 = vdwg.mxu0
    %8733 = vmatpush.bf16.msra.mxu0 %v5879
    %8734 = vmatpush.bf16.msra.mxu0 %v5873
    %8735 = vmatpush.bf16.msra.mxu0 %v5867
    %8736 = vmatpush.bf16.msra.mxu0 %v5861
    %8737 = vmatpush.bf16.msra.mxu0 %v5855
    %8738 = vmatpush.bf16.msra.mxu0 %v5849
    %8739 = vmatpush.bf16.msra.mxu0 %v5843
    %8740 = vmatpush.bf16.msra.mxu0 %v5837
    %8741 = vmatmul.bf16.gmra.mxu0 %v149
    %v8742 = vpop.f32.mrf.mxu0
    %v8743 = vadd.f32 %v8729, %v8742
    %v8744 = vpop.f32.mrf.mxu0
    %v8745 = vadd.f32 %v8731, %v8744
    %8746 = vdwg.mxu0
    %8747 = vmatpush.bf16.msra.mxu0 %v5927
    %8748 = vmatpush.bf16.msra.mxu0 %v5921
    %8749 = vmatpush.bf16.msra.mxu0 %v5915
    %8750 = vmatpush.bf16.msra.mxu0 %v5909
    %8751 = vmatpush.bf16.msra.mxu0 %v5903
    %8752 = vmatpush.bf16.msra.mxu0 %v5897
    %8753 = vmatpush.bf16.msra.mxu0 %v5891
    %8754 = vmatpush.bf16.msra.mxu0 %v5885
    %8755 = vmatmul.bf16.gmra.mxu0 %v150
    %v8756 = vpop.f32.mrf.mxu0
    %v8757 = vadd.f32 %v8743, %v8756
    %v8758 = vpop.f32.mrf.mxu0
    %v8759 = vadd.f32 %v8745, %v8758
    %8760 = vdwg.mxu0
    %8761 = vmatpush.bf16.msra.mxu0 %v4824
    %8762 = vmatpush.bf16.msra.mxu0 %v4818
    %8763 = vmatpush.bf16.msra.mxu0 %v4812
    %8764 = vmatpush.bf16.msra.mxu0 %v4806
    %8765 = vmatpush.bf16.msra.mxu0 %v4800
    %8766 = vmatpush.bf16.msra.mxu0 %v4794
    %8767 = vmatpush.bf16.msra.mxu0 %v4788
    %8768 = vmatpush.bf16.msra.mxu0 %v4782
    %8769 = vmatmul.bf16.gmra.mxu0 %v127
    %v8770 = vpop.f32.mrf.mxu0
    %v8771 = vadd.f32 %v1314, %v8770
    %v8772 = vpop.f32.mrf.mxu0
    %v8773 = vadd.f32 %v1314, %v8772
    %8774 = vdwg.mxu0
    %8775 = vmatpush.bf16.msra.mxu0 %v4872
    %8776 = vmatpush.bf16.msra.mxu0 %v4866
    %8777 = vmatpush.bf16.msra.mxu0 %v4860
    %8778 = vmatpush.bf16.msra.mxu0 %v4854
    %8779 = vmatpush.bf16.msra.mxu0 %v4848
    %8780 = vmatpush.bf16.msra.mxu0 %v4842
    %8781 = vmatpush.bf16.msra.mxu0 %v4836
    %8782 = vmatpush.bf16.msra.mxu0 %v4830
    %8783 = vmatmul.bf16.gmra.mxu0 %v128
    %v8784 = vpop.f32.mrf.mxu0
    %v8785 = vadd.f32 %v8771, %v8784
    %v8786 = vpop.f32.mrf.mxu0
    %v8787 = vadd.f32 %v8773, %v8786
    %8788 = vdwg.mxu0
    %8789 = vmatpush.bf16.msra.mxu0 %v4920
    %8790 = vmatpush.bf16.msra.mxu0 %v4914
    %8791 = vmatpush.bf16.msra.mxu0 %v4908
    %8792 = vmatpush.bf16.msra.mxu0 %v4902
    %8793 = vmatpush.bf16.msra.mxu0 %v4896
    %8794 = vmatpush.bf16.msra.mxu0 %v4890
    %8795 = vmatpush.bf16.msra.mxu0 %v4884
    %8796 = vmatpush.bf16.msra.mxu0 %v4878
    %8797 = vmatmul.bf16.gmra.mxu0 %v129
    %v8798 = vpop.f32.mrf.mxu0
    %v8799 = vadd.f32 %v8785, %v8798
    %v8800 = vpop.f32.mrf.mxu0
    %v8801 = vadd.f32 %v8787, %v8800
    %8802 = vdwg.mxu0
    %8803 = vmatpush.bf16.msra.mxu0 %v4968
    %8804 = vmatpush.bf16.msra.mxu0 %v4962
    %8805 = vmatpush.bf16.msra.mxu0 %v4956
    %8806 = vmatpush.bf16.msra.mxu0 %v4950
    %8807 = vmatpush.bf16.msra.mxu0 %v4944
    %8808 = vmatpush.bf16.msra.mxu0 %v4938
    %8809 = vmatpush.bf16.msra.mxu0 %v4932
    %8810 = vmatpush.bf16.msra.mxu0 %v4926
    %8811 = vmatmul.bf16.gmra.mxu0 %v130
    %v8812 = vpop.f32.mrf.mxu0
    %v8813 = vadd.f32 %v8799, %v8812
    %v8814 = vpop.f32.mrf.mxu0
    %v8815 = vadd.f32 %v8801, %v8814
    %8816 = vdwg.mxu0
    %8817 = vmatpush.bf16.msra.mxu0 %v5016
    %8818 = vmatpush.bf16.msra.mxu0 %v5010
    %8819 = vmatpush.bf16.msra.mxu0 %v5004
    %8820 = vmatpush.bf16.msra.mxu0 %v4998
    %8821 = vmatpush.bf16.msra.mxu0 %v4992
    %8822 = vmatpush.bf16.msra.mxu0 %v4986
    %8823 = vmatpush.bf16.msra.mxu0 %v4980
    %8824 = vmatpush.bf16.msra.mxu0 %v4974
    %8825 = vmatmul.bf16.gmra.mxu0 %v131
    %v8826 = vpop.f32.mrf.mxu0
    %v8827 = vadd.f32 %v8813, %v8826
    %v8828 = vpop.f32.mrf.mxu0
    %v8829 = vadd.f32 %v8815, %v8828
    %8830 = vdwg.mxu0
    %8831 = vmatpush.bf16.msra.mxu0 %v5064
    %8832 = vmatpush.bf16.msra.mxu0 %v5058
    %8833 = vmatpush.bf16.msra.mxu0 %v5052
    %8834 = vmatpush.bf16.msra.mxu0 %v5046
    %8835 = vmatpush.bf16.msra.mxu0 %v5040
    %8836 = vmatpush.bf16.msra.mxu0 %v5034
    %8837 = vmatpush.bf16.msra.mxu0 %v5028
    %8838 = vmatpush.bf16.msra.mxu0 %v5022
    %8839 = vmatmul.bf16.gmra.mxu0 %v132
    %v8840 = vpop.f32.mrf.mxu0
    %v8841 = vadd.f32 %v8827, %v8840
    %v8842 = vpop.f32.mrf.mxu0
    %v8843 = vadd.f32 %v8829, %v8842
    %8844 = vdwg.mxu0
    %8845 = vmatpush.bf16.msra.mxu0 %v5112
    %8846 = vmatpush.bf16.msra.mxu0 %v5106
    %8847 = vmatpush.bf16.msra.mxu0 %v5100
    %8848 = vmatpush.bf16.msra.mxu0 %v5094
    %8849 = vmatpush.bf16.msra.mxu0 %v5088
    %8850 = vmatpush.bf16.msra.mxu0 %v5082
    %8851 = vmatpush.bf16.msra.mxu0 %v5076
    %8852 = vmatpush.bf16.msra.mxu0 %v5070
    %8853 = vmatmul.bf16.gmra.mxu0 %v133
    %v8854 = vpop.f32.mrf.mxu0
    %v8855 = vadd.f32 %v8841, %v8854
    %v8856 = vpop.f32.mrf.mxu0
    %v8857 = vadd.f32 %v8843, %v8856
    %8858 = vdwg.mxu0
    %8859 = vmatpush.bf16.msra.mxu0 %v5160
    %8860 = vmatpush.bf16.msra.mxu0 %v5154
    %8861 = vmatpush.bf16.msra.mxu0 %v5148
    %8862 = vmatpush.bf16.msra.mxu0 %v5142
    %8863 = vmatpush.bf16.msra.mxu0 %v5136
    %8864 = vmatpush.bf16.msra.mxu0 %v5130
    %8865 = vmatpush.bf16.msra.mxu0 %v5124
    %8866 = vmatpush.bf16.msra.mxu0 %v5118
    %8867 = vmatmul.bf16.gmra.mxu0 %v134
    %v8868 = vpop.f32.mrf.mxu0
    %v8869 = vadd.f32 %v8855, %v8868
    %v8870 = vpop.f32.mrf.mxu0
    %v8871 = vadd.f32 %v8857, %v8870
    %8872 = vdwg.mxu0
    %8873 = vmatpush.bf16.msra.mxu0 %v5208
    %8874 = vmatpush.bf16.msra.mxu0 %v5202
    %8875 = vmatpush.bf16.msra.mxu0 %v5196
    %8876 = vmatpush.bf16.msra.mxu0 %v5190
    %8877 = vmatpush.bf16.msra.mxu0 %v5184
    %8878 = vmatpush.bf16.msra.mxu0 %v5178
    %8879 = vmatpush.bf16.msra.mxu0 %v5172
    %8880 = vmatpush.bf16.msra.mxu0 %v5166
    %8881 = vmatmul.bf16.gmra.mxu0 %v135
    %v8882 = vpop.f32.mrf.mxu0
    %v8883 = vadd.f32 %v8869, %v8882
    %v8884 = vpop.f32.mrf.mxu0
    %v8885 = vadd.f32 %v8871, %v8884
    %8886 = vdwg.mxu0
    %8887 = vmatpush.bf16.msra.mxu0 %v5256
    %8888 = vmatpush.bf16.msra.mxu0 %v5250
    %8889 = vmatpush.bf16.msra.mxu0 %v5244
    %8890 = vmatpush.bf16.msra.mxu0 %v5238
    %8891 = vmatpush.bf16.msra.mxu0 %v5232
    %8892 = vmatpush.bf16.msra.mxu0 %v5226
    %8893 = vmatpush.bf16.msra.mxu0 %v5220
    %8894 = vmatpush.bf16.msra.mxu0 %v5214
    %8895 = vmatmul.bf16.gmra.mxu0 %v136
    %v8896 = vpop.f32.mrf.mxu0
    %v8897 = vadd.f32 %v8883, %v8896
    %v8898 = vpop.f32.mrf.mxu0
    %v8899 = vadd.f32 %v8885, %v8898
    %8900 = vdwg.mxu0
    %8901 = vmatpush.bf16.msra.mxu0 %v5304
    %8902 = vmatpush.bf16.msra.mxu0 %v5298
    %8903 = vmatpush.bf16.msra.mxu0 %v5292
    %8904 = vmatpush.bf16.msra.mxu0 %v5286
    %8905 = vmatpush.bf16.msra.mxu0 %v5280
    %8906 = vmatpush.bf16.msra.mxu0 %v5274
    %8907 = vmatpush.bf16.msra.mxu0 %v5268
    %8908 = vmatpush.bf16.msra.mxu0 %v5262
    %8909 = vmatmul.bf16.gmra.mxu0 %v137
    %v8910 = vpop.f32.mrf.mxu0
    %v8911 = vadd.f32 %v8897, %v8910
    %v8912 = vpop.f32.mrf.mxu0
    %v8913 = vadd.f32 %v8899, %v8912
    %8914 = vdwg.mxu0
    %8915 = vmatpush.bf16.msra.mxu0 %v5352
    %8916 = vmatpush.bf16.msra.mxu0 %v5346
    %8917 = vmatpush.bf16.msra.mxu0 %v5340
    %8918 = vmatpush.bf16.msra.mxu0 %v5334
    %8919 = vmatpush.bf16.msra.mxu0 %v5328
    %8920 = vmatpush.bf16.msra.mxu0 %v5322
    %8921 = vmatpush.bf16.msra.mxu0 %v5316
    %8922 = vmatpush.bf16.msra.mxu0 %v5310
    %8923 = vmatmul.bf16.gmra.mxu0 %v138
    %v8924 = vpop.f32.mrf.mxu0
    %v8925 = vadd.f32 %v8911, %v8924
    %v8926 = vpop.f32.mrf.mxu0
    %v8927 = vadd.f32 %v8913, %v8926
    %8928 = vdwg.mxu0
    %8929 = vmatpush.bf16.msra.mxu0 %v5400
    %8930 = vmatpush.bf16.msra.mxu0 %v5394
    %8931 = vmatpush.bf16.msra.mxu0 %v5388
    %8932 = vmatpush.bf16.msra.mxu0 %v5382
    %8933 = vmatpush.bf16.msra.mxu0 %v5376
    %8934 = vmatpush.bf16.msra.mxu0 %v5370
    %8935 = vmatpush.bf16.msra.mxu0 %v5364
    %8936 = vmatpush.bf16.msra.mxu0 %v5358
    %8937 = vmatmul.bf16.gmra.mxu0 %v139
    %v8938 = vpop.f32.mrf.mxu0
    %v8939 = vadd.f32 %v8925, %v8938
    %v8940 = vpop.f32.mrf.mxu0
    %v8941 = vadd.f32 %v8927, %v8940
    %8942 = vdwg.mxu0
    %8943 = vmatpush.bf16.msra.mxu0 %v5448
    %8944 = vmatpush.bf16.msra.mxu0 %v5442
    %8945 = vmatpush.bf16.msra.mxu0 %v5436
    %8946 = vmatpush.bf16.msra.mxu0 %v5430
    %8947 = vmatpush.bf16.msra.mxu0 %v5424
    %8948 = vmatpush.bf16.msra.mxu0 %v5418
    %8949 = vmatpush.bf16.msra.mxu0 %v5412
    %8950 = vmatpush.bf16.msra.mxu0 %v5406
    %8951 = vmatmul.bf16.gmra.mxu0 %v140
    %v8952 = vpop.f32.mrf.mxu0
    %v8953 = vadd.f32 %v8939, %v8952
    %v8954 = vpop.f32.mrf.mxu0
    %v8955 = vadd.f32 %v8941, %v8954
    %8956 = vdwg.mxu0
    %8957 = vmatpush.bf16.msra.mxu0 %v5496
    %8958 = vmatpush.bf16.msra.mxu0 %v5490
    %8959 = vmatpush.bf16.msra.mxu0 %v5484
    %8960 = vmatpush.bf16.msra.mxu0 %v5478
    %8961 = vmatpush.bf16.msra.mxu0 %v5472
    %8962 = vmatpush.bf16.msra.mxu0 %v5466
    %8963 = vmatpush.bf16.msra.mxu0 %v5460
    %8964 = vmatpush.bf16.msra.mxu0 %v5454
    %8965 = vmatmul.bf16.gmra.mxu0 %v141
    %v8966 = vpop.f32.mrf.mxu0
    %v8967 = vadd.f32 %v8953, %v8966
    %v8968 = vpop.f32.mrf.mxu0
    %v8969 = vadd.f32 %v8955, %v8968
    %8970 = vdwg.mxu0
    %8971 = vmatpush.bf16.msra.mxu0 %v5544
    %8972 = vmatpush.bf16.msra.mxu0 %v5538
    %8973 = vmatpush.bf16.msra.mxu0 %v5532
    %8974 = vmatpush.bf16.msra.mxu0 %v5526
    %8975 = vmatpush.bf16.msra.mxu0 %v5520
    %8976 = vmatpush.bf16.msra.mxu0 %v5514
    %8977 = vmatpush.bf16.msra.mxu0 %v5508
    %8978 = vmatpush.bf16.msra.mxu0 %v5502
    %8979 = vmatmul.bf16.gmra.mxu0 %v142
    %v8980 = vpop.f32.mrf.mxu0
    %v8981 = vadd.f32 %v8967, %v8980
    %v8982 = vpop.f32.mrf.mxu0
    %v8983 = vadd.f32 %v8969, %v8982
    %8984 = vdwg.mxu0
    %8985 = vmatpush.bf16.msra.mxu0 %v5592
    %8986 = vmatpush.bf16.msra.mxu0 %v5586
    %8987 = vmatpush.bf16.msra.mxu0 %v5580
    %8988 = vmatpush.bf16.msra.mxu0 %v5574
    %8989 = vmatpush.bf16.msra.mxu0 %v5568
    %8990 = vmatpush.bf16.msra.mxu0 %v5562
    %8991 = vmatpush.bf16.msra.mxu0 %v5556
    %8992 = vmatpush.bf16.msra.mxu0 %v5550
    %8993 = vmatmul.bf16.gmra.mxu0 %v143
    %v8994 = vpop.f32.mrf.mxu0
    %v8995 = vadd.f32 %v8981, %v8994
    %v8996 = vpop.f32.mrf.mxu0
    %v8997 = vadd.f32 %v8983, %v8996
    %8998 = vdwg.mxu0
    %8999 = vmatpush.bf16.msra.mxu0 %v5640
    %9000 = vmatpush.bf16.msra.mxu0 %v5634
    %9001 = vmatpush.bf16.msra.mxu0 %v5628
    %9002 = vmatpush.bf16.msra.mxu0 %v5622
    %9003 = vmatpush.bf16.msra.mxu0 %v5616
    %9004 = vmatpush.bf16.msra.mxu0 %v5610
    %9005 = vmatpush.bf16.msra.mxu0 %v5604
    %9006 = vmatpush.bf16.msra.mxu0 %v5598
    %9007 = vmatmul.bf16.gmra.mxu0 %v144
    %v9008 = vpop.f32.mrf.mxu0
    %v9009 = vadd.f32 %v8995, %v9008
    %v9010 = vpop.f32.mrf.mxu0
    %v9011 = vadd.f32 %v8997, %v9010
    %9012 = vdwg.mxu0
    %9013 = vmatpush.bf16.msra.mxu0 %v5688
    %9014 = vmatpush.bf16.msra.mxu0 %v5682
    %9015 = vmatpush.bf16.msra.mxu0 %v5676
    %9016 = vmatpush.bf16.msra.mxu0 %v5670
    %9017 = vmatpush.bf16.msra.mxu0 %v5664
    %9018 = vmatpush.bf16.msra.mxu0 %v5658
    %9019 = vmatpush.bf16.msra.mxu0 %v5652
    %9020 = vmatpush.bf16.msra.mxu0 %v5646
    %9021 = vmatmul.bf16.gmra.mxu0 %v145
    %v9022 = vpop.f32.mrf.mxu0
    %v9023 = vadd.f32 %v9009, %v9022
    %v9024 = vpop.f32.mrf.mxu0
    %v9025 = vadd.f32 %v9011, %v9024
    %9026 = vdwg.mxu0
    %9027 = vmatpush.bf16.msra.mxu0 %v5736
    %9028 = vmatpush.bf16.msra.mxu0 %v5730
    %9029 = vmatpush.bf16.msra.mxu0 %v5724
    %9030 = vmatpush.bf16.msra.mxu0 %v5718
    %9031 = vmatpush.bf16.msra.mxu0 %v5712
    %9032 = vmatpush.bf16.msra.mxu0 %v5706
    %9033 = vmatpush.bf16.msra.mxu0 %v5700
    %9034 = vmatpush.bf16.msra.mxu0 %v5694
    %9035 = vmatmul.bf16.gmra.mxu0 %v146
    %v9036 = vpop.f32.mrf.mxu0
    %v9037 = vadd.f32 %v9023, %v9036
    %v9038 = vpop.f32.mrf.mxu0
    %v9039 = vadd.f32 %v9025, %v9038
    %9040 = vdwg.mxu0
    %9041 = vmatpush.bf16.msra.mxu0 %v5784
    %9042 = vmatpush.bf16.msra.mxu0 %v5778
    %9043 = vmatpush.bf16.msra.mxu0 %v5772
    %9044 = vmatpush.bf16.msra.mxu0 %v5766
    %9045 = vmatpush.bf16.msra.mxu0 %v5760
    %9046 = vmatpush.bf16.msra.mxu0 %v5754
    %9047 = vmatpush.bf16.msra.mxu0 %v5748
    %9048 = vmatpush.bf16.msra.mxu0 %v5742
    %9049 = vmatmul.bf16.gmra.mxu0 %v147
    %v9050 = vpop.f32.mrf.mxu0
    %v9051 = vadd.f32 %v9037, %v9050
    %v9052 = vpop.f32.mrf.mxu0
    %v9053 = vadd.f32 %v9039, %v9052
    %9054 = vdwg.mxu0
    %9055 = vmatpush.bf16.msra.mxu0 %v5832
    %9056 = vmatpush.bf16.msra.mxu0 %v5826
    %9057 = vmatpush.bf16.msra.mxu0 %v5820
    %9058 = vmatpush.bf16.msra.mxu0 %v5814
    %9059 = vmatpush.bf16.msra.mxu0 %v5808
    %9060 = vmatpush.bf16.msra.mxu0 %v5802
    %9061 = vmatpush.bf16.msra.mxu0 %v5796
    %9062 = vmatpush.bf16.msra.mxu0 %v5790
    %9063 = vmatmul.bf16.gmra.mxu0 %v148
    %v9064 = vpop.f32.mrf.mxu0
    %v9065 = vadd.f32 %v9051, %v9064
    %v9066 = vpop.f32.mrf.mxu0
    %v9067 = vadd.f32 %v9053, %v9066
    %9068 = vdwg.mxu0
    %9069 = vmatpush.bf16.msra.mxu0 %v5880
    %9070 = vmatpush.bf16.msra.mxu0 %v5874
    %9071 = vmatpush.bf16.msra.mxu0 %v5868
    %9072 = vmatpush.bf16.msra.mxu0 %v5862
    %9073 = vmatpush.bf16.msra.mxu0 %v5856
    %9074 = vmatpush.bf16.msra.mxu0 %v5850
    %9075 = vmatpush.bf16.msra.mxu0 %v5844
    %9076 = vmatpush.bf16.msra.mxu0 %v5838
    %9077 = vmatmul.bf16.gmra.mxu0 %v149
    %v9078 = vpop.f32.mrf.mxu0
    %v9079 = vadd.f32 %v9065, %v9078
    %v9080 = vpop.f32.mrf.mxu0
    %v9081 = vadd.f32 %v9067, %v9080
    %9082 = vdwg.mxu0
    %9083 = vmatpush.bf16.msra.mxu0 %v5928
    %9084 = vmatpush.bf16.msra.mxu0 %v5922
    %9085 = vmatpush.bf16.msra.mxu0 %v5916
    %9086 = vmatpush.bf16.msra.mxu0 %v5910
    %9087 = vmatpush.bf16.msra.mxu0 %v5904
    %9088 = vmatpush.bf16.msra.mxu0 %v5898
    %9089 = vmatpush.bf16.msra.mxu0 %v5892
    %9090 = vmatpush.bf16.msra.mxu0 %v5886
    %9091 = vmatmul.bf16.gmra.mxu0 %v150
    %v9092 = vpop.f32.mrf.mxu0
    %v9093 = vadd.f32 %v9079, %v9092
    %v9094 = vpop.f32.mrf.mxu0
    %v9095 = vadd.f32 %v9081, %v9094
    %9096 = vdwg.mxu0
    %v9097 = vld [vmem:[#allocation8] sm:$0xff]
    %v9098 = vld [vmem:[#allocation8 + $0x8] sm:$0xff]
    %v9099 = vld [vmem:[#allocation8 + $0x10] sm:$0xff]
    %v9100 = vld [vmem:[#allocation8 + $0x18] sm:$0xff]
    %v9101 = vld [vmem:[#allocation8 + $0x20] sm:$0xff]
    %v9102 = vld [vmem:[#allocation8 + $0x28] sm:$0xff]
    %v9103 = vld [vmem:[#allocation8 + $0x30] sm:$0xff]
    %v9104 = vld [vmem:[#allocation8 + $0x38] sm:$0xff]
    %v9105 = vld [vmem:[#allocation8 + $0x40] sm:$0xff]
    %v9106 = vld [vmem:[#allocation8 + $0x48] sm:$0xff]
    %v9107 = vld [vmem:[#allocation8 + $0x50] sm:$0xff]
    %v9108 = vld [vmem:[#allocation8 + $0x58] sm:$0xff]
    %v9109 = vadd.f32 %v7413, %v9097
    %v9110 = vadd.f32 %v7749, %v9098
    %v9111 = vadd.f32 %v8085, %v9099
    %v9112 = vadd.f32 %v8421, %v9100
    %v9113 = vadd.f32 %v8757, %v9101
    %v9114 = vadd.f32 %v9093, %v9102
    %v9115 = vadd.f32 %v7415, %v9103
    %v9116 = vadd.f32 %v7751, %v9104
    %v9117 = vadd.f32 %v8087, %v9105
    %v9118 = vadd.f32 %v8423, %v9106
    %v9119 = vadd.f32 %v8759, %v9107
    %v9120 = vadd.f32 %v9095, %v9108
    %v9121 = vadd.f32 %v9109, %v9110
    %v9122 = vadd.f32 %v9121, %v9111
    %v9123 = vadd.f32 %v9122, %v9112
    %v9124 = vadd.f32 %v9123, %v9113
    %v9125 = vadd.f32 %v9124, %v9114
    %9126 = vadd.xlane.f32.xlu0 %v9125
    %v9127 = vpop.xlane.xlu0 %9126
    %v9128 = vadd.f32 %v9115, %v9116
    %v9129 = vadd.f32 %v9128, %v9117
    %v9130 = vadd.f32 %v9129, %v9118
    %v9131 = vadd.f32 %v9130, %v9119
    %v9132 = vadd.f32 %v9131, %v9120
    %9133 = vadd.xlane.f32.xlu0 %v9132
    %v9134 = vpop.xlane.xlu0 %9133
    %v9135 = vrcp.pop 768.0
    %v9136 = vmul.f32 768.0, %v9135
    %v9137 = vsub.f32 1.0, %v9136
    %v9138 = vmul.f32 %v9135, %v9137
    %v9139 = vadd.f32 %v9135, %v9138
    %vm9140 = vweird.f32 %v9135
    %v9141 = vsel %vm9140, %v9135, %v9139
    %v9142 = vmul.f32 %v9127, %v9141
    %v9143 = vmul.f32 %v9134, %v9141
    %v9144 = vmul.f32 %v9109, %v9109
    %v9145 = vmul.f32 %v9110, %v9110
    %v9146 = vmul.f32 %v9111, %v9111
    %v9147 = vmul.f32 %v9112, %v9112
    %v9148 = vmul.f32 %v9113, %v9113
    %v9149 = vmul.f32 %v9114, %v9114
    %v9150 = vmul.f32 %v9115, %v9115
    %v9151 = vmul.f32 %v9116, %v9116
    %v9152 = vmul.f32 %v9117, %v9117
    %v9153 = vmul.f32 %v9118, %v9118
    %v9154 = vmul.f32 %v9119, %v9119
    %v9155 = vmul.f32 %v9120, %v9120
    %v9156 = vadd.f32 %v9144, %v9145
    %v9157 = vadd.f32 %v9156, %v9146
    %v9158 = vadd.f32 %v9157, %v9147
    %v9159 = vadd.f32 %v9158, %v9148
    %v9160 = vadd.f32 %v9159, %v9149
    %9161 = vadd.xlane.f32.xlu0 %v9160
    %v9162 = vpop.xlane.xlu0 %9161
    %v9163 = vadd.f32 %v9150, %v9151
    %v9164 = vadd.f32 %v9163, %v9152
    %v9165 = vadd.f32 %v9164, %v9153
    %v9166 = vadd.f32 %v9165, %v9154
    %v9167 = vadd.f32 %v9166, %v9155
    %9168 = vadd.xlane.f32.xlu0 %v9167
    %v9169 = vpop.xlane.xlu0 %9168
    %v9170 = vmul.f32 %v9162, %v9141
    %v9171 = vmul.f32 %v9169, %v9141
    %v9172 = vmul.f32 %v9142, %v9142
    %v9173 = vmul.f32 %v9143, %v9143
    %v9174 = vsub.f32 %v9170, %v9172
    %v9175 = vsub.f32 %v9171, %v9173
    %v9176 = vmax.f32 %v9174, 0.0
    %v9177 = vmax.f32 %v9175, 0.0
    %v9178 = vsub.f32 %v9109, %v9142
    %v9179 = vsub.f32 %v9110, %v9142
    %v9180 = vsub.f32 %v9111, %v9142
    %v9181 = vsub.f32 %v9112, %v9142
    %v9182 = vsub.f32 %v9113, %v9142
    %v9183 = vsub.f32 %v9114, %v9142
    %v9184 = vsub.f32 %v9115, %v9143
    %v9185 = vsub.f32 %v9116, %v9143
    %v9186 = vsub.f32 %v9117, %v9143
    %v9187 = vsub.f32 %v9118, %v9143
    %v9188 = vsub.f32 %v9119, %v9143
    %v9189 = vsub.f32 %v9120, %v9143
    %v9190 = vadd.f32 %v9176, 1e-12
    %v9191 = vadd.f32 %v9177, 1e-12
    %v9192 = vrsqrt.pop %v9190
    %v9193 = vmul.f32 %v9192, %v9190
    %v9194 = vmul.f32 %v9193, %v9192
    %v9195 = vmul.f32 0.5, %v9194
    %v9196 = vsub.f32 1.5, %v9195
    %v9197 = vmul.f32 %v9192, %v9196
    %vm9198 = vweird.f32 %v9190
    %vm9199 = vweird.f32 %v9192
    %vm9200 = vmor %vm9198, %vm9199
    %v9201 = vsel %vm9200, %v9192, %v9197
    %v9202 = vrsqrt.pop %v9191
    %v9203 = vmul.f32 %v9202, %v9191
    %v9204 = vmul.f32 %v9203, %v9202
    %v9205 = vmul.f32 0.5, %v9204
    %v9206 = vsub.f32 1.5, %v9205
    %v9207 = vmul.f32 %v9202, %v9206
    %vm9208 = vweird.f32 %v9191
    %vm9209 = vweird.f32 %v9202
    %vm9210 = vmor %vm9208, %vm9209
    %v9211 = vsel %vm9210, %v9202, %v9207
    %v9212 = vmul.f32 %v9178, %v9201
    %v9213 = vmul.f32 %v9179, %v9201
    %v9214 = vmul.f32 %v9180, %v9201
    %v9215 = vmul.f32 %v9181, %v9201
    %v9216 = vmul.f32 %v9182, %v9201
    %v9217 = vmul.f32 %v9183, %v9201
    %v9218 = vmul.f32 %v9184, %v9211
    %v9219 = vmul.f32 %v9185, %v9211
    %v9220 = vmul.f32 %v9186, %v9211
    %v9221 = vmul.f32 %v9187, %v9211
    %v9222 = vmul.f32 %v9188, %v9211
    %v9223 = vmul.f32 %v9189, %v9211
    %v9225 = vperm.slane %v1305, 0
    %v9226 = vperm.slane %v1305, 1
    %v9227 = vperm.slane %v1305, 2
    %v9228 = vperm.slane %v1305, 3
    %v9229 = vperm.slane %v1305, 4
    %v9230 = vperm.slane %v1305, 5
    %v9237 = vmul.f32 %v9225, %v9212
    %v9238 = vmul.f32 %v9226, %v9213
    %v9239 = vmul.f32 %v9227, %v9214
    %v9240 = vmul.f32 %v9228, %v9215
    %v9241 = vmul.f32 %v9229, %v9216
    %v9242 = vmul.f32 %v9230, %v9217
    %v9243 = vmul.f32 %v9225, %v9218
    %v9244 = vmul.f32 %v9226, %v9219
    %v9245 = vmul.f32 %v9227, %v9220
    %v9246 = vmul.f32 %v9228, %v9221
    %v9247 = vmul.f32 %v9229, %v9222
    %v9248 = vmul.f32 %v9230, %v9223
    %v9250 = vperm.slane %v1307, 0
    %v9251 = vperm.slane %v1307, 1
    %v9252 = vperm.slane %v1307, 2
    %v9253 = vperm.slane %v1307, 3
    %v9254 = vperm.slane %v1307, 4
    %v9255 = vperm.slane %v1307, 5
    %v9262 = vadd.f32 %v9237, %v9250
    %v9263 = vadd.f32 %v9238, %v9251
    %v9264 = vadd.f32 %v9239, %v9252
    %v9265 = vadd.f32 %v9240, %v9253
    %v9266 = vadd.f32 %v9241, %v9254
    %v9267 = vadd.f32 %v9242, %v9255
    %v9268 = vadd.f32 %v9243, %v9250
    %v9269 = vadd.f32 %v9244, %v9251
    %v9270 = vadd.f32 %v9245, %v9252
    %v9271 = vadd.f32 %v9246, %v9253
    %v9272 = vadd.f32 %v9247, %v9254
    %v9273 = vadd.f32 %v9248, %v9255
    %9274 = vst [vmem:[#allocation10] sm:$0xff] %v9262
    %9275 = vst [vmem:[#allocation10 + $0x8] sm:$0xff] %v9263
    %9276 = vst [vmem:[#allocation10 + $0x10] sm:$0xff] %v9264
    %9277 = vst [vmem:[#allocation10 + $0x18] sm:$0xff] %v9265
    %9278 = vst [vmem:[#allocation10 + $0x20] sm:$0xff] %v9266
    %9279 = vst [vmem:[#allocation10 + $0x28] sm:$0xff] %v9267
    %9280 = vst [vmem:[#allocation10 + $0x30] sm:$0xff] %v9268
    %9281 = vst [vmem:[#allocation10 + $0x38] sm:$0xff] %v9269
    %9282 = vst [vmem:[#allocation10 + $0x40] sm:$0xff] %v9270
    %9283 = vst [vmem:[#allocation10 + $0x48] sm:$0xff] %v9271
    %9284 = vst [vmem:[#allocation10 + $0x50] sm:$0xff] %v9272
    %9285 = vst [vmem:[#allocation10 + $0x58] sm:$0xff] %v9273
    // Predicated region
    $region34: #{tpu_custom_call.1} parent=1 // pred_check
      _
    $region35: #{tpu_custom_call.1} parent=1 // pred_check_branch
      %9287 = sbr.rel (0) target = $region37
    $region36: #{tpu_custom_call.1} parent=1 // pred_region
      %9289 = vsyncadd [#allocation4], 0
      %s9290 = sshll.u32 [#allocation10], 4
      %s9291 = int_to_ptr.vmem [resolvable:$true] %s9290
      %s9292 = sshll.u32 %s4, 4
      %s9293 = int_to_ptr.hbm [resolvable:$true] %s9292
      %9298 = dma.vmem_to_hbm [thread:$0]  %s9291, 1536, %s9293, [#allocation4], 768, 768, 48
    $region37: #{tpu_custom_call.1} parent=1 // pred_fallthru
      _
    // Predicated region
    $region38: #{tpu_custom_call.1} parent=1 // pred_check
      _
    $region39: #{tpu_custom_call.1} parent=1 // pred_check_branch
      %9300 = sbr.rel (0) target = $region41
    $region40: #{tpu_custom_call.1} parent=1 // pred_region
      %9302 = dma.done [#allocation4], 1536
    $region41: #{tpu_custom_call.1} parent=1 // pred_fallthru
      _
    %9303 = vsyncpa [#allocation3], 1
    %9304 = vsyncpa [#allocation6], 1
    %9305 = vsyncpa [#allocation9], 1
    %9306 = vsyncpa [#allocation4], 1

</llo_original>
